<compile_context>
chip_gen: v6e
topology: v6e:2x2x1
jax: 0.10.0
libtpu: 0.0.40
codegen_flags: <defaults>
</compile_context>

<pallas_src>
import jax
import jax.numpy as jnp
from jax import lax
from jax.experimental import pallas as pl
from jax.experimental.pallas import tpu as pltpu

PAD_IDX, SOS_IDX, EOS_IDX = 0, 1, 2

B = 2                      # batch
L = 8                      # decoder.feat_len (feature slots per video)
F = 32                     # feature dim
EMB = 32                   # decoder embedding size
A = 32                     # attention size
H = 32                     # decoder hidden size (num_layers=1, num_dirs=1 -> D*H = H)
V = 16                     # decoder.output_size (vocab size)
HR = 32                    # reconstructor hidden size
MAX_CAPTION_LEN = 6
T_FULL = MAX_CAPTION_LEN + 2    # rows of `outputs` / `hidden_states` (row 0 stays zero)
T_STEPS = MAX_CAPTION_LEN + 1   # decoder loop: t = 1 .. MAX_CAPTION_LEN + 1


def _sigmoid(x):
    # exp + reciprocal both go to the EUP slot (free vs. VALU divide).
    return pl.reciprocal(1.0 + jnp.exp(-x), approx=True)


# ------------------------------------------------------- fused forward kernel
def caption_kernel(feats_ref, emb_ref, wah_ref, waf_ref, v_ref,
                   wdec_ref, bdec_ref, wo_ref, bo_ref,
                   wrec_ref, brec_ref,
                   out_ref, rec_ref):
    feats = feats_ref[...]                               # (B, L, F)
    emb_w = emb_ref[...]                                 # (V, EMB)
    wah = wah_ref[...]                                   # (H, A)
    v_att = v_ref[...].reshape(1, 1, A)                  # (1, 1, A)
    wdec = wdec_ref[...]                                 # (EMB+F+H, 6H) block-diag
    bdec = bdec_ref[...]                                 # (1, 6H) = [b_ih | b_hh]
    wo = wo_ref[...]                                     # (H, V)
    bo = bo_ref[...]                                     # (1, V)

    # loop-invariant attention key projection, computed once
    f_att = jnp.dot(feats.reshape(B * L, F), waf_ref[...],
                    preferred_element_type=jnp.float32).reshape(B, L, A)

    # row 0 of `outputs` stays zero (as in the PyTorch code)
    out_ref[0] = jnp.zeros((B, V), jnp.float32)

    col_v = lax.broadcasted_iota(jnp.int32, (B, V), 1)
    onehot = (col_v == SOS_IDX).astype(jnp.float32)      # <SOS> one-hot feedback token
    h = jnp.zeros((B, H), jnp.float32)

    dec_hiddens = [jnp.zeros((B, H), jnp.float32)]       # hidden_states[0] == 0
    masked_sum = jnp.zeros((B, H), jnp.float32)          # online masked mean-pool
    lens = jnp.zeros((B, 1), jnp.float32)

    # ---------------- greedy decoder: t = 1 .. MAX_CAPTION_LEN + 1 (unrolled)
    for t in range(1, T_FULL):
        # word embedding via one-hot matmul (MXU)
        emb_t = jnp.dot(onehot, emb_w, preferred_element_type=jnp.float32)   # (B, EMB)

        # additive attention over the L feature slots
        h_att = jnp.dot(h, wah, preferred_element_type=jnp.float32)          # (B, A)
        e = jnp.sum(jnp.tanh(f_att + h_att[:, None, :]) * v_att, axis=-1)    # (B, L)
        e_max = jnp.max(e, axis=-1, keepdims=True)
        p = jnp.exp(e - e_max)
        alpha = p * pl.reciprocal(jnp.sum(p, axis=-1, keepdims=True), approx=True)
        ctx = jnp.sum(alpha[:, :, None] * feats, axis=1)                     # (B, F)

        # single fused GRU input matmul: [emb | ctx | h] @ blockdiag -> all 6 gates
        x_cat = jnp.concatenate([emb_t, ctx, h], axis=-1)                    # (B, EMB+F+H)
        g = jnp.dot(x_cat, wdec, preferred_element_type=jnp.float32) + bdec  # (B, 6H)
        r = _sigmoid(g[:, 0:H] + g[:, 3 * H:4 * H])
        z = _sigmoid(g[:, H:2 * H] + g[:, 4 * H:5 * H])
        n = jnp.tanh(g[:, 2 * H:3 * H] + r * g[:, 5 * H:6 * H])
        h = (1.0 - z) * n + z * h                                            # (B, H)

        # output projection + log_softmax
        logits = jnp.dot(h, wo, preferred_element_type=jnp.float32) + bo     # (B, V)
        lmax = jnp.max(logits, axis=-1, keepdims=True)
        lse = jnp.log(jnp.sum(jnp.exp(logits - lmax), axis=-1, keepdims=True)) + lmax
        logp = logits - lse
        out_ref[t] = logp                                 # static index, VMEM store

        # greedy argmax (first max index, like torch.max) -> feedback + mask
        m = jnp.max(logp, axis=-1, keepdims=True)
        idx = jnp.min(jnp.where(logp == m, col_v, V), axis=-1, keepdims=True)
        onehot = (col_v == idx).astype(jnp.float32)
        mask_t = jnp.logical_and(idx != PAD_IDX, idx != EOS_IDX).astype(jnp.float32)

        dec_hiddens.append(h)
        masked_sum = masked_sum + mask_t * h
        lens = lens + mask_t

    # ---------------- masked mean-pool of decoder hiddens
    # Row 0 is all-zero (argmax -> PAD -> masked), matching the PyTorch mask.
    # Clamp lens to >=1 to avoid inf/NaN when a row is entirely PAD/EOS.
    pooled = masked_sum * pl.reciprocal(jnp.maximum(lens, 1.0), approx=True)  # (B, H)

    # ---------------- global reconstructor GRU: t = 0 .. T_FULL-1 (unrolled)
    wrec = wrec_ref[...]                                  # (2H+HR, 6HR) block-diag
    brec = brec_ref[...]                                  # (1, 6HR)
    h_r = jnp.zeros((B, HR), jnp.float32)
    for t in range(T_FULL):
        d_t = dec_hiddens[t]                              # (B, H)
        x_cat = jnp.concatenate([d_t, pooled, h_r], axis=-1)                 # (B, 2H+HR)
        g = jnp.dot(x_cat, wrec, preferred_element_type=jnp.float32) + brec  # (B, 6HR)
        r = _sigmoid(g[:, 0:HR] + g[:, 3 * HR:4 * HR])
        z = _sigmoid(g[:, HR:2 * HR] + g[:, 4 * HR:5 * HR])
        n = jnp.tanh(g[:, 2 * HR:3 * HR] + r * g[:, 5 * HR:6 * HR])
        h_r = (1.0 - z) * n + z * h_r
        # write directly in (B, T, HR) layout -> no wrapper transpose
        rec_ref[:, t:t + 1, :] = h_r[:, None, :]


def caption_generator_forward(feats, params):
    p = params

    def full(shape):
        return pl.BlockSpec(shape, lambda i, _n=len(shape): (0,) * _n)

    grid_spec = pltpu.PrefetchScalarGridSpec(
        num_scalar_prefetch=0,
        grid=(1,),
        in_specs=[
            full((B, L, F)),
            full((V, EMB)), full((H, A)), full((F, A)), full((1, A)),
            full((EMB + F + H, 6 * H)), full((1, 6 * H)),
            full((H, V)), full((1, V)),
            full((2 * H + HR, 6 * HR)), full((1, 6 * HR)),
        ],
        out_specs=[
            full((T_FULL, B, V)),
            full((B, T_FULL, HR)),
        ],
        scratch_shapes=[],
    )
    outputs, feats_recon = pl.pallas_call(
        caption_kernel,
        out_shape=(jax.ShapeDtypeStruct((T_FULL, B, V), jnp.float32),
                   jax.ShapeDtypeStruct((B, T_FULL, HR), jnp.float32)),
        grid_spec=grid_spec,
        compiler_params=pltpu.CompilerParams(dimension_semantics=("arbitrary",)),
    )(feats, p["emb"], p["wah"], p["waf"], p["v"],
      p["wdec"], p["bdec"], p["wo"], p["bo"],
      p["wrec"], p["brec"])
    return outputs, feats_recon

# TODO(synk): teacher forcing (host random.random), beam_search/describe (python
# list-based beam bookkeeping) have no clean single-kernel Pallas equivalent and
# are not exercised by forward() with teacher_forcing_ratio=0.0.


# ---------------------------------------------------------------- params ----
def init_params(key):
    def nrm(k, shape, scale=0.1):
        return scale * jax.random.normal(k, shape, dtype=jnp.float32)

    ks = jax.random.split(key, 16)

    # decoder GRU-cell weights (PyTorch gate order r, z, n)
    wxe = nrm(ks[4], (EMB, 3 * H))     # input (embedding) -> gates
    wxc = nrm(ks[5], (F, 3 * H))       # input (attention ctx) -> gates
    whg = nrm(ks[6], (H, 3 * H))       # hidden -> gates
    bi = nrm(ks[7], (1, 3 * H))
    bh = nrm(ks[8], (1, 3 * H))
    # block-diagonal fused weight: [emb | ctx | h] @ wdec -> [gi (3H) | gh (3H)]
    wdec = jnp.zeros((EMB + F + H, 6 * H), jnp.float32)
    wdec = wdec.at[:EMB, :3 * H].set(wxe)
    wdec = wdec.at[EMB:EMB + F, :3 * H].set(wxc)
    wdec = wdec.at[EMB + F:, 3 * H:].set(whg)
    bdec = jnp.concatenate([bi, bh], axis=-1)             # (1, 6H)

    # reconstructor GRU-cell weights
    wd = nrm(ks[11], (H, 3 * HR))      # decoder hidden -> gates
    wp = nrm(ks[12], (H, 3 * HR))      # pooled hidden -> gates
    whr = nrm(ks[13], (HR, 3 * HR))    # recon hidden -> gates
    bri = nrm(ks[14], (1, 3 * HR))
    brh = nrm(ks[15], (1, 3 * HR))
    wrec = jnp.zeros((2 * H + HR, 6 * HR), jnp.float32)
    wrec = wrec.at[:H, :3 * HR].set(wd)
    wrec = wrec.at[H:2 * H, :3 * HR].set(wp)
    wrec = wrec.at[2 * H:, 3 * HR:].set(whr)
    brec = jnp.concatenate([bri, brh], axis=-1)           # (1, 6HR)

    return {
        "emb": nrm(ks[0], (V, EMB)),
        "wah": nrm(ks[1], (H, A)),
        "waf": nrm(ks[2], (F, A)),
        "v":   nrm(ks[3], (1, A)),
        "wdec": wdec, "bdec": bdec,
        "wo":  nrm(ks[9], (H, V)),
        "bo":  nrm(ks[10], (1, V)),
        "wrec": wrec, "brec": brec,
    }


if __name__ == "__main__":
    key = jax.random.PRNGKey(0)
    pkey, fkey = jax.random.split(key)
    params = init_params(pkey)
    feats = jax.random.normal(fkey, (B, L, F), dtype=jnp.float32)   # video features

    outputs, feats_recon = jax.jit(caption_generator_forward)(feats, params)
    jax.block_until_ready((outputs, feats_recon))

    assert outputs.shape == (T_FULL, B, V)
    assert feats_recon.shape == (B, T_FULL, HR)
    assert bool(jnp.all(jnp.isfinite(outputs))) and bool(jnp.all(jnp.isfinite(feats_recon)))
    print("KERNEL_OK")
</pallas_src>

<mosaic_0001>
module attributes {stable_mosaic.version = 11 : i64} {
  func.func @caption_kernel(%arg0: i32, %arg1: memref<2x8x32xf32, #tpu.memory_space<vmem>>, %arg2: memref<16x32xf32, #tpu.memory_space<vmem>>, %arg3: memref<32x32xf32, #tpu.memory_space<vmem>>, %arg4: memref<32x32xf32, #tpu.memory_space<vmem>>, %arg5: memref<1x32xf32, #tpu.memory_space<vmem>>, %arg6: memref<96x192xf32, #tpu.memory_space<vmem>>, %arg7: memref<1x192xf32, #tpu.memory_space<vmem>>, %arg8: memref<32x16xf32, #tpu.memory_space<vmem>>, %arg9: memref<1x16xf32, #tpu.memory_space<vmem>>, %arg10: memref<96x192xf32, #tpu.memory_space<vmem>>, %arg11: memref<1x192xf32, #tpu.memory_space<vmem>>, %arg12: memref<8x2x16xf32, #tpu.memory_space<vmem>>, %arg13: memref<2x8x32xf32, #tpu.memory_space<vmem>>) attributes {dimension_semantics = [#tpu.dimension_semantics<arbitrary>], iteration_bounds = array<i64: 1>, scalar_prefetch = 0 : i64, scratch_operands = 0 : i64, tpu.core_type = #tpu.core_type<tc>, window_params = [{pipeline_mode = #tpu.pipeline_mode<synchronous>, transform_indices = @transform_0, window_bounds = array<i64: 2, 8, 32>}, {pipeline_mode = #tpu.pipeline_mode<synchronous>, transform_indices = @transform_1, window_bounds = array<i64: 16, 32>}, {pipeline_mode = #tpu.pipeline_mode<synchronous>, transform_indices = @transform_2, window_bounds = array<i64: 32, 32>}, {pipeline_mode = #tpu.pipeline_mode<synchronous>, transform_indices = @transform_3, window_bounds = array<i64: 32, 32>}, {pipeline_mode = #tpu.pipeline_mode<synchronous>, transform_indices = @transform_4, window_bounds = array<i64: 1, 32>}, {pipeline_mode = #tpu.pipeline_mode<synchronous>, transform_indices = @transform_5, window_bounds = array<i64: 96, 192>}, {pipeline_mode = #tpu.pipeline_mode<synchronous>, transform_indices = @transform_6, window_bounds = array<i64: 1, 192>}, {pipeline_mode = #tpu.pipeline_mode<synchronous>, transform_indices = @transform_7, window_bounds = array<i64: 32, 16>}, {pipeline_mode = #tpu.pipeline_mode<synchronous>, transform_indices = @transform_8, window_bounds = array<i64: 1, 16>}, {pipeline_mode = #tpu.pipeline_mode<synchronous>, transform_indices = @transform_9, window_bounds = array<i64: 96, 192>}, {pipeline_mode = #tpu.pipeline_mode<synchronous>, transform_indices = @transform_10, window_bounds = array<i64: 1, 192>}, {pipeline_mode = #tpu.pipeline_mode<synchronous>, transform_indices = @transform_11, window_bounds = array<i64: 8, 2, 16>}, {pipeline_mode = #tpu.pipeline_mode<synchronous>, transform_indices = @transform_12, window_bounds = array<i64: 2, 8, 32>}]} {
    %c0 = arith.constant 0 : index
    %c0_0 = arith.constant 0 : index
    %c0_1 = arith.constant 0 : index
    %0 = vector.load %arg1[%c0, %c0_0, %c0_1] : memref<2x8x32xf32, #tpu.memory_space<vmem>>, vector<2x8x32xf32>
    %c0_2 = arith.constant 0 : index
    %c0_3 = arith.constant 0 : index
    %1 = vector.load %arg2[%c0_2, %c0_3] : memref<16x32xf32, #tpu.memory_space<vmem>>, vector<16x32xf32>
    %c0_4 = arith.constant 0 : index
    %c0_5 = arith.constant 0 : index
    %2 = vector.load %arg3[%c0_4, %c0_5] : memref<32x32xf32, #tpu.memory_space<vmem>>, vector<32x32xf32>
    %c0_6 = arith.constant 0 : index
    %c0_7 = arith.constant 0 : index
    %3 = vector.load %arg5[%c0_6, %c0_7] : memref<1x32xf32, #tpu.memory_space<vmem>>, vector<1x32xf32>
    %4 = vector.shape_cast %3 : vector<1x32xf32> to vector<1x1x32xf32>
    %c0_8 = arith.constant 0 : index
    %c0_9 = arith.constant 0 : index
    %5 = vector.load %arg6[%c0_8, %c0_9] : memref<96x192xf32, #tpu.memory_space<vmem>>, vector<96x192xf32>
    %c0_10 = arith.constant 0 : index
    %c0_11 = arith.constant 0 : index
    %6 = vector.load %arg7[%c0_10, %c0_11] : memref<1x192xf32, #tpu.memory_space<vmem>>, vector<1x192xf32>
    %c0_12 = arith.constant 0 : index
    %c0_13 = arith.constant 0 : index
    %7 = vector.load %arg8[%c0_12, %c0_13] : memref<32x16xf32, #tpu.memory_space<vmem>>, vector<32x16xf32>
    %c0_14 = arith.constant 0 : index
    %c0_15 = arith.constant 0 : index
    %8 = vector.load %arg9[%c0_14, %c0_15] : memref<1x16xf32, #tpu.memory_space<vmem>>, vector<1x16xf32>
    %9 = vector.shape_cast %0 : vector<2x8x32xf32> to vector<16x32xf32>
    %c0_16 = arith.constant 0 : index
    %c0_17 = arith.constant 0 : index
    %10 = vector.load %arg4[%c0_16, %c0_17] : memref<32x32xf32, #tpu.memory_space<vmem>>, vector<32x32xf32>
    %cst = arith.constant dense<0.000000e+00> : vector<16x32xf32>
    %11 = tpu.matmul %9, %10, %cst {dimension_numbers = #tpu.dot_dimension_numbers<[1], [0], [0], [1], [0, 0, 1, 1], [], []>} : vector<16x32xf32>, vector<32x32xf32>, vector<16x32xf32> -> vector<16x32xf32>
    %12 = vector.shape_cast %11 : vector<16x32xf32> to vector<2x8x32xf32>
    %cst_18 = arith.constant 0.000000e+00 : f32
    %13 = vector.broadcast %cst_18 : f32 to vector<2x16xf32>
    %c0_19 = arith.constant 0 : index
    %c0_20 = arith.constant 0 : index
    %c0_21 = arith.constant 0 : index
    %14 = vector.load %arg12[%c0_19, %c0_20, %c0_21] : memref<8x2x16xf32, #tpu.memory_space<vmem>>, vector<1x2x16xf32>
    %15 = vector.shape_cast %14 : vector<1x2x16xf32> to vector<2x16xf32>
    %16 = vector.shape_cast %13 : vector<2x16xf32> to vector<1x2x16xf32>
    tpu.vector_store %arg12[%c0_19, %c0_20, %c0_21], %16 {strides = array<i32>} : memref<8x2x16xf32, #tpu.memory_space<vmem>>, vector<1x2x16xf32>,
    %17 = tpu.iota {dimensions = array<i32: 1>} : vector<2x16xi32>
    %c1_i32 = arith.constant 1 : i32
    %18 = vector.broadcast %c1_i32 : i32 to vector<2x16xi32>
    %19 = arith.cmpi eq, %17, %18 : vector<2x16xi32>
    %20 = arith.extui %19 : vector<2x16xi1> to vector<2x16xi32>
    %21 = arith.sitofp %20 : vector<2x16xi32> to vector<2x16xf32>
    %cst_22 = arith.constant 0.000000e+00 : f32
    %22 = vector.broadcast %cst_22 : f32 to vector<2x32xf32>
    %cst_23 = arith.constant 0.000000e+00 : f32
    %23 = vector.broadcast %cst_23 : f32 to vector<2x32xf32>
    %cst_24 = arith.constant 0.000000e+00 : f32
    %24 = vector.broadcast %cst_24 : f32 to vector<2x32xf32>
    %cst_25 = arith.constant 0.000000e+00 : f32
    %25 = vector.broadcast %cst_25 : f32 to vector<2x1xf32>
    %cst_26 = arith.constant dense<0.000000e+00> : vector<2x32xf32>
    %26 = tpu.matmul %21, %1, %cst_26 {dimension_numbers = #tpu.dot_dimension_numbers<[1], [0], [0], [1], [0, 0, 1, 1], [], []>} : vector<2x16xf32>, vector<16x32xf32>, vector<2x32xf32> -> vector<2x32xf32>
    %cst_27 = arith.constant dense<0.000000e+00> : vector<2x32xf32>
    %27 = tpu.matmul %22, %2, %cst_27 {dimension_numbers = #tpu.dot_dimension_numbers<[1], [0], [0], [1], [0, 0, 1, 1], [], []>} : vector<2x32xf32>, vector<32x32xf32>, vector<2x32xf32> -> vector<2x32xf32>
    %28 = vector.shape_cast %27 : vector<2x32xf32> to vector<2x1x32xf32>
    %29 = vector.broadcast %28 : vector<2x1x32xf32> to vector<2x8x32xf32>
    %30 = arith.addf %12, %29 : vector<2x8x32xf32>
    %31 = math.tanh %30 : vector<2x8x32xf32>
    %32 = vector.broadcast %4 : vector<1x1x32xf32> to vector<2x8x32xf32>
    %33 = arith.mulf %31, %32 : vector<2x8x32xf32>
    %cst_28 = arith.constant dense<0.000000e+00> : vector<2x8xf32>
    %34 = vector.multi_reduction <add>, %33, %cst_28 [2] : vector<2x8x32xf32> to vector<2x8xf32>
    %cst_29 = arith.constant dense<0xFF800000> : vector<2xf32>
    %35 = vector.multi_reduction <maximumf>, %34, %cst_29 [1] : vector<2x8xf32> to vector<2xf32>
    %36 = vector.shape_cast %35 : vector<2xf32> to vector<2x1xf32>
    %37 = vector.broadcast %36 : vector<2x1xf32> to vector<2x8xf32>
    %38 = arith.subf %34, %37 : vector<2x8xf32>
    %39 = math.exp %38 : vector<2x8xf32>
    %cst_30 = arith.constant dense<0.000000e+00> : vector<2xf32>
    %40 = vector.multi_reduction <add>, %39, %cst_30 [1] : vector<2x8xf32> to vector<2xf32>
    %41 = vector.shape_cast %40 : vector<2xf32> to vector<2x1xf32>
    %42 = tpu.reciprocal %41 {approx = true} : vector<2x1xf32> -> vector<2x1xf32>
    %43 = vector.broadcast %42 : vector<2x1xf32> to vector<2x8xf32>
    %44 = arith.mulf %39, %43 : vector<2x8xf32>
    %45 = vector.shape_cast %44 : vector<2x8xf32> to vector<2x8x1xf32>
    %46 = vector.broadcast %45 : vector<2x8x1xf32> to vector<2x8x32xf32>
    %47 = arith.mulf %46, %0 : vector<2x8x32xf32>
    %cst_31 = arith.constant dense<0.000000e+00> : vector<2x32xf32>
    %48 = vector.multi_reduction <add>, %47, %cst_31 [1] : vector<2x8x32xf32> to vector<2x32xf32>
    %49 = tpu.concatenate %26, %48, %22 in 1 : vector<2x32xf32>, vector<2x32xf32>, vector<2x32xf32> -> vector<2x96xf32>
    %cst_32 = arith.constant dense<0.000000e+00> : vector<2x192xf32>
    %50 = tpu.matmul %49, %5, %cst_32 {dimension_numbers = #tpu.dot_dimension_numbers<[1], [0], [0], [1], [0, 0, 1, 1], [], []>} : vector<2x96xf32>, vector<96x192xf32>, vector<2x192xf32> -> vector<2x192xf32>
    %51 = vector.broadcast %6 : vector<1x192xf32> to vector<2x192xf32>
    %52 = arith.addf %50, %51 : vector<2x192xf32>
    %53 = vector.extract_strided_slice %52 {offsets = [0, 0], sizes = [2, 32], strides = [1, 1]} : vector<2x192xf32> to vector<2x32xf32>
    %54 = vector.extract_strided_slice %52 {offsets = [0, 96], sizes = [2, 32], strides = [1, 1]} : vector<2x192xf32> to vector<2x32xf32>
    %55 = arith.addf %53, %54 : vector<2x32xf32>
    %cst_33 = arith.constant 0.000000e+00 : f32
    %56 = vector.broadcast %cst_33 : f32 to vector<2x32xf32>
    %57 = arith.subf %56, %55 : vector<2x32xf32>
    %58 = math.exp %57 : vector<2x32xf32>
    %cst_34 = arith.constant 1.000000e+00 : f32
    %59 = vector.broadcast %cst_34 : f32 to vector<2x32xf32>
    %60 = arith.addf %59, %58 : vector<2x32xf32>
    %61 = tpu.reciprocal %60 {approx = true} : vector<2x32xf32> -> vector<2x32xf32>
    %62 = vector.extract_strided_slice %52 {offsets = [0, 32], sizes = [2, 32], strides = [1, 1]} : vector<2x192xf32> to vector<2x32xf32>
    %63 = vector.extract_strided_slice %52 {offsets = [0, 128], sizes = [2, 32], strides = [1, 1]} : vector<2x192xf32> to vector<2x32xf32>
    %64 = arith.addf %62, %63 : vector<2x32xf32>
    %cst_35 = arith.constant 0.000000e+00 : f32
    %65 = vector.broadcast %cst_35 : f32 to vector<2x32xf32>
    %66 = arith.subf %65, %64 : vector<2x32xf32>
    %67 = math.exp %66 : vector<2x32xf32>
    %cst_36 = arith.constant 1.000000e+00 : f32
    %68 = vector.broadcast %cst_36 : f32 to vector<2x32xf32>
    %69 = arith.addf %68, %67 : vector<2x32xf32>
    %70 = tpu.reciprocal %69 {approx = true} : vector<2x32xf32> -> vector<2x32xf32>
    %71 = vector.extract_strided_slice %52 {offsets = [0, 64], sizes = [2, 32], strides = [1, 1]} : vector<2x192xf32> to vector<2x32xf32>
    %72 = vector.extract_strided_slice %52 {offsets = [0, 160], sizes = [2, 32], strides = [1, 1]} : vector<2x192xf32> to vector<2x32xf32>
    %73 = arith.mulf %61, %72 : vector<2x32xf32>
    %74 = arith.addf %71, %73 : vector<2x32xf32>
    %75 = math.tanh %74 : vector<2x32xf32>
    %cst_37 = arith.constant 1.000000e+00 : f32
    %76 = vector.broadcast %cst_37 : f32 to vector<2x32xf32>
    %77 = arith.subf %76, %70 : vector<2x32xf32>
    %78 = arith.mulf %77, %75 : vector<2x32xf32>
    %79 = arith.mulf %70, %22 : vector<2x32xf32>
    %80 = arith.addf %78, %79 : vector<2x32xf32>
    %cst_38 = arith.constant dense<0.000000e+00> : vector<2x16xf32>
    %81 = tpu.matmul %80, %7, %cst_38 {dimension_numbers = #tpu.dot_dimension_numbers<[1], [0], [0], [1], [0, 0, 1, 1], [], []>} : vector<2x32xf32>, vector<32x16xf32>, vector<2x16xf32> -> vector<2x16xf32>
    %82 = vector.broadcast %8 : vector<1x16xf32> to vector<2x16xf32>
    %83 = arith.addf %81, %82 : vector<2x16xf32>
    %cst_39 = arith.constant dense<0xFF800000> : vector<2xf32>
    %84 = vector.multi_reduction <maximumf>, %83, %cst_39 [1] : vector<2x16xf32> to vector<2xf32>
    %85 = vector.shape_cast %84 : vector<2xf32> to vector<2x1xf32>
    %86 = vector.broadcast %85 : vector<2x1xf32> to vector<2x16xf32>
    %87 = arith.subf %83, %86 : vector<2x16xf32>
    %88 = math.exp %87 : vector<2x16xf32>
    %cst_40 = arith.constant dense<0.000000e+00> : vector<2xf32>
    %89 = vector.multi_reduction <add>, %88, %cst_40 [1] : vector<2x16xf32> to vector<2xf32>
    %90 = vector.shape_cast %89 : vector<2xf32> to vector<2x1xf32>
    %91 = math.log %90 : vector<2x1xf32>
    %92 = arith.addf %91, %85 : vector<2x1xf32>
    %93 = vector.broadcast %92 : vector<2x1xf32> to vector<2x16xf32>
    %94 = arith.subf %83, %93 : vector<2x16xf32>
    %c1 = arith.constant 1 : index
    %c0_41 = arith.constant 0 : index
    %c0_42 = arith.constant 0 : index
    %95 = vector.load %arg12[%c1, %c0_41, %c0_42] : memref<8x2x16xf32, #tpu.memory_space<vmem>>, vector<1x2x16xf32>
    %96 = vector.shape_cast %95 : vector<1x2x16xf32> to vector<2x16xf32>
    %97 = vector.shape_cast %94 : vector<2x16xf32> to vector<1x2x16xf32>
    tpu.vector_store %arg12[%c1, %c0_41, %c0_42], %97 {strides = array<i32>} : memref<8x2x16xf32, #tpu.memory_space<vmem>>, vector<1x2x16xf32>,
    %cst_43 = arith.constant dense<0xFF800000> : vector<2xf32>
    %98 = vector.multi_reduction <maximumf>, %94, %cst_43 [1] : vector<2x16xf32> to vector<2xf32>
    %99 = vector.shape_cast %98 : vector<2xf32> to vector<2x1xf32>
    %100 = vector.broadcast %99 : vector<2x1xf32> to vector<2x16xf32>
    %101 = arith.cmpf oeq, %94, %100 : vector<2x16xf32>
    %c16_i32 = arith.constant 16 : i32
    %102 = vector.broadcast %c16_i32 : i32 to vector<2x16xi32>
    %103 = arith.select %101, %17, %102 : vector<2x16xi1>, vector<2x16xi32>
    %cst_44 = arith.constant dense<2147483647> : vector<2xi32>
    %104 = vector.multi_reduction <minsi>, %103, %cst_44 [1] : vector<2x16xi32> to vector<2xi32>
    %105 = vector.shape_cast %104 : vector<2xi32> to vector<2x1xi32>
    %106 = vector.broadcast %105 : vector<2x1xi32> to vector<2x16xi32>
    %107 = arith.cmpi eq, %17, %106 : vector<2x16xi32>
    %108 = arith.extui %107 : vector<2x16xi1> to vector<2x16xi32>
    %109 = arith.sitofp %108 : vector<2x16xi32> to vector<2x16xf32>
    %c0_i32 = arith.constant 0 : i32
    %110 = vector.broadcast %c0_i32 : i32 to vector<2x1xi32>
    %111 = arith.cmpi ne, %105, %110 : vector<2x1xi32>
    %c2_i32 = arith.constant 2 : i32
    %112 = vector.broadcast %c2_i32 : i32 to vector<2x1xi32>
    %113 = arith.cmpi ne, %105, %112 : vector<2x1xi32>
    %114 = arith.andi %111, %113 : vector<2x1xi1>
    %115 = arith.extui %114 : vector<2x1xi1> to vector<2x1xi32>
    %116 = arith.sitofp %115 : vector<2x1xi32> to vector<2x1xf32>
    %117 = vector.broadcast %116 : vector<2x1xf32> to vector<2x32xf32>
    %118 = arith.mulf %117, %80 : vector<2x32xf32>
    %119 = arith.addf %24, %118 : vector<2x32xf32>
    %120 = arith.addf %25, %116 : vector<2x1xf32>
    %cst_45 = arith.constant dense<0.000000e+00> : vector<2x32xf32>
    %121 = tpu.matmul %109, %1, %cst_45 {dimension_numbers = #tpu.dot_dimension_numbers<[1], [0], [0], [1], [0, 0, 1, 1], [], []>} : vector<2x16xf32>, vector<16x32xf32>, vector<2x32xf32> -> vector<2x32xf32>
    %cst_46 = arith.constant dense<0.000000e+00> : vector<2x32xf32>
    %122 = tpu.matmul %80, %2, %cst_46 {dimension_numbers = #tpu.dot_dimension_numbers<[1], [0], [0], [1], [0, 0, 1, 1], [], []>} : vector<2x32xf32>, vector<32x32xf32>, vector<2x32xf32> -> vector<2x32xf32>
    %123 = vector.shape_cast %122 : vector<2x32xf32> to vector<2x1x32xf32>
    %124 = vector.broadcast %123 : vector<2x1x32xf32> to vector<2x8x32xf32>
    %125 = arith.addf %12, %124 : vector<2x8x32xf32>
    %126 = math.tanh %125 : vector<2x8x32xf32>
    %127 = vector.broadcast %4 : vector<1x1x32xf32> to vector<2x8x32xf32>
    %128 = arith.mulf %126, %127 : vector<2x8x32xf32>
    %cst_47 = arith.constant dense<0.000000e+00> : vector<2x8xf32>
    %129 = vector.multi_reduction <add>, %128, %cst_47 [2] : vector<2x8x32xf32> to vector<2x8xf32>
    %cst_48 = arith.constant dense<0xFF800000> : vector<2xf32>
    %130 = vector.multi_reduction <maximumf>, %129, %cst_48 [1] : vector<2x8xf32> to vector<2xf32>
    %131 = vector.shape_cast %130 : vector<2xf32> to vector<2x1xf32>
    %132 = vector.broadcast %131 : vector<2x1xf32> to vector<2x8xf32>
    %133 = arith.subf %129, %132 : vector<2x8xf32>
    %134 = math.exp %133 : vector<2x8xf32>
    %cst_49 = arith.constant dense<0.000000e+00> : vector<2xf32>
    %135 = vector.multi_reduction <add>, %134, %cst_49 [1] : vector<2x8xf32> to vector<2xf32>
    %136 = vector.shape_cast %135 : vector<2xf32> to vector<2x1xf32>
    %137 = tpu.reciprocal %136 {approx = true} : vector<2x1xf32> -> vector<2x1xf32>
    %138 = vector.broadcast %137 : vector<2x1xf32> to vector<2x8xf32>
    %139 = arith.mulf %134, %138 : vector<2x8xf32>
    %140 = vector.shape_cast %139 : vector<2x8xf32> to vector<2x8x1xf32>
    %141 = vector.broadcast %140 : vector<2x8x1xf32> to vector<2x8x32xf32>
    %142 = arith.mulf %141, %0 : vector<2x8x32xf32>
    %cst_50 = arith.constant dense<0.000000e+00> : vector<2x32xf32>
    %143 = vector.multi_reduction <add>, %142, %cst_50 [1] : vector<2x8x32xf32> to vector<2x32xf32>
    %144 = tpu.concatenate %121, %143, %80 in 1 : vector<2x32xf32>, vector<2x32xf32>, vector<2x32xf32> -> vector<2x96xf32>
    %cst_51 = arith.constant dense<0.000000e+00> : vector<2x192xf32>
    %145 = tpu.matmul %144, %5, %cst_51 {dimension_numbers = #tpu.dot_dimension_numbers<[1], [0], [0], [1], [0, 0, 1, 1], [], []>} : vector<2x96xf32>, vector<96x192xf32>, vector<2x192xf32> -> vector<2x192xf32>
    %146 = vector.broadcast %6 : vector<1x192xf32> to vector<2x192xf32>
    %147 = arith.addf %145, %146 : vector<2x192xf32>
    %148 = vector.extract_strided_slice %147 {offsets = [0, 0], sizes = [2, 32], strides = [1, 1]} : vector<2x192xf32> to vector<2x32xf32>
    %149 = vector.extract_strided_slice %147 {offsets = [0, 96], sizes = [2, 32], strides = [1, 1]} : vector<2x192xf32> to vector<2x32xf32>
    %150 = arith.addf %148, %149 : vector<2x32xf32>
    %cst_52 = arith.constant 0.000000e+00 : f32
    %151 = vector.broadcast %cst_52 : f32 to vector<2x32xf32>
    %152 = arith.subf %151, %150 : vector<2x32xf32>
    %153 = math.exp %152 : vector<2x32xf32>
    %cst_53 = arith.constant 1.000000e+00 : f32
    %154 = vector.broadcast %cst_53 : f32 to vector<2x32xf32>
    %155 = arith.addf %154, %153 : vector<2x32xf32>
    %156 = tpu.reciprocal %155 {approx = true} : vector<2x32xf32> -> vector<2x32xf32>
    %157 = vector.extract_strided_slice %147 {offsets = [0, 32], sizes = [2, 32], strides = [1, 1]} : vector<2x192xf32> to vector<2x32xf32>
    %158 = vector.extract_strided_slice %147 {offsets = [0, 128], sizes = [2, 32], strides = [1, 1]} : vector<2x192xf32> to vector<2x32xf32>
    %159 = arith.addf %157, %158 : vector<2x32xf32>
    %cst_54 = arith.constant 0.000000e+00 : f32
    %160 = vector.broadcast %cst_54 : f32 to vector<2x32xf32>
    %161 = arith.subf %160, %159 : vector<2x32xf32>
    %162 = math.exp %161 : vector<2x32xf32>
    %cst_55 = arith.constant 1.000000e+00 : f32
    %163 = vector.broadcast %cst_55 : f32 to vector<2x32xf32>
    %164 = arith.addf %163, %162 : vector<2x32xf32>
    %165 = tpu.reciprocal %164 {approx = true} : vector<2x32xf32> -> vector<2x32xf32>
    %166 = vector.extract_strided_slice %147 {offsets = [0, 64], sizes = [2, 32], strides = [1, 1]} : vector<2x192xf32> to vector<2x32xf32>
    %167 = vector.extract_strided_slice %147 {offsets = [0, 160], sizes = [2, 32], strides = [1, 1]} : vector<2x192xf32> to vector<2x32xf32>
    %168 = arith.mulf %156, %167 : vector<2x32xf32>
    %169 = arith.addf %166, %168 : vector<2x32xf32>
    %170 = math.tanh %169 : vector<2x32xf32>
    %cst_56 = arith.constant 1.000000e+00 : f32
    %171 = vector.broadcast %cst_56 : f32 to vector<2x32xf32>
    %172 = arith.subf %171, %165 : vector<2x32xf32>
    %173 = arith.mulf %172, %170 : vector<2x32xf32>
    %174 = arith.mulf %165, %80 : vector<2x32xf32>
    %175 = arith.addf %173, %174 : vector<2x32xf32>
    %cst_57 = arith.constant dense<0.000000e+00> : vector<2x16xf32>
    %176 = tpu.matmul %175, %7, %cst_57 {dimension_numbers = #tpu.dot_dimension_numbers<[1], [0], [0], [1], [0, 0, 1, 1], [], []>} : vector<2x32xf32>, vector<32x16xf32>, vector<2x16xf32> -> vector<2x16xf32>
    %177 = vector.broadcast %8 : vector<1x16xf32> to vector<2x16xf32>
    %178 = arith.addf %176, %177 : vector<2x16xf32>
    %cst_58 = arith.constant dense<0xFF800000> : vector<2xf32>
    %179 = vector.multi_reduction <maximumf>, %178, %cst_58 [1] : vector<2x16xf32> to vector<2xf32>
    %180 = vector.shape_cast %179 : vector<2xf32> to vector<2x1xf32>
    %181 = vector.broadcast %180 : vector<2x1xf32> to vector<2x16xf32>
    %182 = arith.subf %178, %181 : vector<2x16xf32>
    %183 = math.exp %182 : vector<2x16xf32>
    %cst_59 = arith.constant dense<0.000000e+00> : vector<2xf32>
    %184 = vector.multi_reduction <add>, %183, %cst_59 [1] : vector<2x16xf32> to vector<2xf32>
    %185 = vector.shape_cast %184 : vector<2xf32> to vector<2x1xf32>
    %186 = math.log %185 : vector<2x1xf32>
    %187 = arith.addf %186, %180 : vector<2x1xf32>
    %188 = vector.broadcast %187 : vector<2x1xf32> to vector<2x16xf32>
    %189 = arith.subf %178, %188 : vector<2x16xf32>
    %c2 = arith.constant 2 : index
    %c0_60 = arith.constant 0 : index
    %c0_61 = arith.constant 0 : index
    %190 = vector.load %arg12[%c2, %c0_60, %c0_61] : memref<8x2x16xf32, #tpu.memory_space<vmem>>, vector<1x2x16xf32>
    %191 = vector.shape_cast %190 : vector<1x2x16xf32> to vector<2x16xf32>
    %192 = vector.shape_cast %189 : vector<2x16xf32> to vector<1x2x16xf32>
    tpu.vector_store %arg12[%c2, %c0_60, %c0_61], %192 {strides = array<i32>} : memref<8x2x16xf32, #tpu.memory_space<vmem>>, vector<1x2x16xf32>,
    %cst_62 = arith.constant dense<0xFF800000> : vector<2xf32>
    %193 = vector.multi_reduction <maximumf>, %189, %cst_62 [1] : vector<2x16xf32> to vector<2xf32>
    %194 = vector.shape_cast %193 : vector<2xf32> to vector<2x1xf32>
    %195 = vector.broadcast %194 : vector<2x1xf32> to vector<2x16xf32>
    %196 = arith.cmpf oeq, %189, %195 : vector<2x16xf32>
    %c16_i32_63 = arith.constant 16 : i32
    %197 = vector.broadcast %c16_i32_63 : i32 to vector<2x16xi32>
    %198 = arith.select %196, %17, %197 : vector<2x16xi1>, vector<2x16xi32>
    %cst_64 = arith.constant dense<2147483647> : vector<2xi32>
    %199 = vector.multi_reduction <minsi>, %198, %cst_64 [1] : vector<2x16xi32> to vector<2xi32>
    %200 = vector.shape_cast %199 : vector<2xi32> to vector<2x1xi32>
    %201 = vector.broadcast %200 : vector<2x1xi32> to vector<2x16xi32>
    %202 = arith.cmpi eq, %17, %201 : vector<2x16xi32>
    %203 = arith.extui %202 : vector<2x16xi1> to vector<2x16xi32>
    %204 = arith.sitofp %203 : vector<2x16xi32> to vector<2x16xf32>
    %c0_i32_65 = arith.constant 0 : i32
    %205 = vector.broadcast %c0_i32_65 : i32 to vector<2x1xi32>
    %206 = arith.cmpi ne, %200, %205 : vector<2x1xi32>
    %c2_i32_66 = arith.constant 2 : i32
    %207 = vector.broadcast %c2_i32_66 : i32 to vector<2x1xi32>
    %208 = arith.cmpi ne, %200, %207 : vector<2x1xi32>
    %209 = arith.andi %206, %208 : vector<2x1xi1>
    %210 = arith.extui %209 : vector<2x1xi1> to vector<2x1xi32>
    %211 = arith.sitofp %210 : vector<2x1xi32> to vector<2x1xf32>
    %212 = vector.broadcast %211 : vector<2x1xf32> to vector<2x32xf32>
    %213 = arith.mulf %212, %175 : vector<2x32xf32>
    %214 = arith.addf %119, %213 : vector<2x32xf32>
    %215 = arith.addf %120, %211 : vector<2x1xf32>
    %cst_67 = arith.constant dense<0.000000e+00> : vector<2x32xf32>
    %216 = tpu.matmul %204, %1, %cst_67 {dimension_numbers = #tpu.dot_dimension_numbers<[1], [0], [0], [1], [0, 0, 1, 1], [], []>} : vector<2x16xf32>, vector<16x32xf32>, vector<2x32xf32> -> vector<2x32xf32>
    %cst_68 = arith.constant dense<0.000000e+00> : vector<2x32xf32>
    %217 = tpu.matmul %175, %2, %cst_68 {dimension_numbers = #tpu.dot_dimension_numbers<[1], [0], [0], [1], [0, 0, 1, 1], [], []>} : vector<2x32xf32>, vector<32x32xf32>, vector<2x32xf32> -> vector<2x32xf32>
    %218 = vector.shape_cast %217 : vector<2x32xf32> to vector<2x1x32xf32>
    %219 = vector.broadcast %218 : vector<2x1x32xf32> to vector<2x8x32xf32>
    %220 = arith.addf %12, %219 : vector<2x8x32xf32>
    %221 = math.tanh %220 : vector<2x8x32xf32>
    %222 = vector.broadcast %4 : vector<1x1x32xf32> to vector<2x8x32xf32>
    %223 = arith.mulf %221, %222 : vector<2x8x32xf32>
    %cst_69 = arith.constant dense<0.000000e+00> : vector<2x8xf32>
    %224 = vector.multi_reduction <add>, %223, %cst_69 [2] : vector<2x8x32xf32> to vector<2x8xf32>
    %cst_70 = arith.constant dense<0xFF800000> : vector<2xf32>
    %225 = vector.multi_reduction <maximumf>, %224, %cst_70 [1] : vector<2x8xf32> to vector<2xf32>
    %226 = vector.shape_cast %225 : vector<2xf32> to vector<2x1xf32>
    %227 = vector.broadcast %226 : vector<2x1xf32> to vector<2x8xf32>
    %228 = arith.subf %224, %227 : vector<2x8xf32>
    %229 = math.exp %228 : vector<2x8xf32>
    %cst_71 = arith.constant dense<0.000000e+00> : vector<2xf32>
    %230 = vector.multi_reduction <add>, %229, %cst_71 [1] : vector<2x8xf32> to vector<2xf32>
    %231 = vector.shape_cast %230 : vector<2xf32> to vector<2x1xf32>
    %232 = tpu.reciprocal %231 {approx = true} : vector<2x1xf32> -> vector<2x1xf32>
    %233 = vector.broadcast %232 : vector<2x1xf32> to vector<2x8xf32>
    %234 = arith.mulf %229, %233 : vector<2x8xf32>
    %235 = vector.shape_cast %234 : vector<2x8xf32> to vector<2x8x1xf32>
    %236 = vector.broadcast %235 : vector<2x8x1xf32> to vector<2x8x32xf32>
    %237 = arith.mulf %236, %0 : vector<2x8x32xf32>
    %cst_72 = arith.constant dense<0.000000e+00> : vector<2x32xf32>
    %238 = vector.multi_reduction <add>, %237, %cst_72 [1] : vector<2x8x32xf32> to vector<2x32xf32>
    %239 = tpu.concatenate %216, %238, %175 in 1 : vector<2x32xf32>, vector<2x32xf32>, vector<2x32xf32> -> vector<2x96xf32>
    %cst_73 = arith.constant dense<0.000000e+00> : vector<2x192xf32>
    %240 = tpu.matmul %239, %5, %cst_73 {dimension_numbers = #tpu.dot_dimension_numbers<[1], [0], [0], [1], [0, 0, 1, 1], [], []>} : vector<2x96xf32>, vector<96x192xf32>, vector<2x192xf32> -> vector<2x192xf32>
    %241 = vector.broadcast %6 : vector<1x192xf32> to vector<2x192xf32>
    %242 = arith.addf %240, %241 : vector<2x192xf32>
    %243 = vector.extract_strided_slice %242 {offsets = [0, 0], sizes = [2, 32], strides = [1, 1]} : vector<2x192xf32> to vector<2x32xf32>
    %244 = vector.extract_strided_slice %242 {offsets = [0, 96], sizes = [2, 32], strides = [1, 1]} : vector<2x192xf32> to vector<2x32xf32>
    %245 = arith.addf %243, %244 : vector<2x32xf32>
    %cst_74 = arith.constant 0.000000e+00 : f32
    %246 = vector.broadcast %cst_74 : f32 to vector<2x32xf32>
    %247 = arith.subf %246, %245 : vector<2x32xf32>
    %248 = math.exp %247 : vector<2x32xf32>
    %cst_75 = arith.constant 1.000000e+00 : f32
    %249 = vector.broadcast %cst_75 : f32 to vector<2x32xf32>
    %250 = arith.addf %249, %248 : vector<2x32xf32>
    %251 = tpu.reciprocal %250 {approx = true} : vector<2x32xf32> -> vector<2x32xf32>
    %252 = vector.extract_strided_slice %242 {offsets = [0, 32], sizes = [2, 32], strides = [1, 1]} : vector<2x192xf32> to vector<2x32xf32>
    %253 = vector.extract_strided_slice %242 {offsets = [0, 128], sizes = [2, 32], strides = [1, 1]} : vector<2x192xf32> to vector<2x32xf32>
    %254 = arith.addf %252, %253 : vector<2x32xf32>
    %cst_76 = arith.constant 0.000000e+00 : f32
    %255 = vector.broadcast %cst_76 : f32 to vector<2x32xf32>
    %256 = arith.subf %255, %254 : vector<2x32xf32>
    %257 = math.exp %256 : vector<2x32xf32>
    %cst_77 = arith.constant 1.000000e+00 : f32
    %258 = vector.broadcast %cst_77 : f32 to vector<2x32xf32>
    %259 = arith.addf %258, %257 : vector<2x32xf32>
    %260 = tpu.reciprocal %259 {approx = true} : vector<2x32xf32> -> vector<2x32xf32>
    %261 = vector.extract_strided_slice %242 {offsets = [0, 64], sizes = [2, 32], strides = [1, 1]} : vector<2x192xf32> to vector<2x32xf32>
    %262 = vector.extract_strided_slice %242 {offsets = [0, 160], sizes = [2, 32], strides = [1, 1]} : vector<2x192xf32> to vector<2x32xf32>
    %263 = arith.mulf %251, %262 : vector<2x32xf32>
    %264 = arith.addf %261, %263 : vector<2x32xf32>
    %265 = math.tanh %264 : vector<2x32xf32>
    %cst_78 = arith.constant 1.000000e+00 : f32
    %266 = vector.broadcast %cst_78 : f32 to vector<2x32xf32>
    %267 = arith.subf %266, %260 : vector<2x32xf32>
    %268 = arith.mulf %267, %265 : vector<2x32xf32>
    %269 = arith.mulf %260, %175 : vector<2x32xf32>
    %270 = arith.addf %268, %269 : vector<2x32xf32>
    %cst_79 = arith.constant dense<0.000000e+00> : vector<2x16xf32>
    %271 = tpu.matmul %270, %7, %cst_79 {dimension_numbers = #tpu.dot_dimension_numbers<[1], [0], [0], [1], [0, 0, 1, 1], [], []>} : vector<2x32xf32>, vector<32x16xf32>, vector<2x16xf32> -> vector<2x16xf32>
    %272 = vector.broadcast %8 : vector<1x16xf32> to vector<2x16xf32>
    %273 = arith.addf %271, %272 : vector<2x16xf32>
    %cst_80 = arith.constant dense<0xFF800000> : vector<2xf32>
    %274 = vector.multi_reduction <maximumf>, %273, %cst_80 [1] : vector<2x16xf32> to vector<2xf32>
    %275 = vector.shape_cast %274 : vector<2xf32> to vector<2x1xf32>
    %276 = vector.broadcast %275 : vector<2x1xf32> to vector<2x16xf32>
    %277 = arith.subf %273, %276 : vector<2x16xf32>
    %278 = math.exp %277 : vector<2x16xf32>
    %cst_81 = arith.constant dense<0.000000e+00> : vector<2xf32>
    %279 = vector.multi_reduction <add>, %278, %cst_81 [1] : vector<2x16xf32> to vector<2xf32>
    %280 = vector.shape_cast %279 : vector<2xf32> to vector<2x1xf32>
    %281 = math.log %280 : vector<2x1xf32>
    %282 = arith.addf %281, %275 : vector<2x1xf32>
    %283 = vector.broadcast %282 : vector<2x1xf32> to vector<2x16xf32>
    %284 = arith.subf %273, %283 : vector<2x16xf32>
    %c3 = arith.constant 3 : index
    %c0_82 = arith.constant 0 : index
    %c0_83 = arith.constant 0 : index
    %285 = vector.load %arg12[%c3, %c0_82, %c0_83] : memref<8x2x16xf32, #tpu.memory_space<vmem>>, vector<1x2x16xf32>
    %286 = vector.shape_cast %285 : vector<1x2x16xf32> to vector<2x16xf32>
    %287 = vector.shape_cast %284 : vector<2x16xf32> to vector<1x2x16xf32>
    tpu.vector_store %arg12[%c3, %c0_82, %c0_83], %287 {strides = array<i32>} : memref<8x2x16xf32, #tpu.memory_space<vmem>>, vector<1x2x16xf32>,
    %cst_84 = arith.constant dense<0xFF800000> : vector<2xf32>
    %288 = vector.multi_reduction <maximumf>, %284, %cst_84 [1] : vector<2x16xf32> to vector<2xf32>
    %289 = vector.shape_cast %288 : vector<2xf32> to vector<2x1xf32>
    %290 = vector.broadcast %289 : vector<2x1xf32> to vector<2x16xf32>
    %291 = arith.cmpf oeq, %284, %290 : vector<2x16xf32>
    %c16_i32_85 = arith.constant 16 : i32
    %292 = vector.broadcast %c16_i32_85 : i32 to vector<2x16xi32>
    %293 = arith.select %291, %17, %292 : vector<2x16xi1>, vector<2x16xi32>
    %cst_86 = arith.constant dense<2147483647> : vector<2xi32>
    %294 = vector.multi_reduction <minsi>, %293, %cst_86 [1] : vector<2x16xi32> to vector<2xi32>
    %295 = vector.shape_cast %294 : vector<2xi32> to vector<2x1xi32>
    %296 = vector.broadcast %295 : vector<2x1xi32> to vector<2x16xi32>
    %297 = arith.cmpi eq, %17, %296 : vector<2x16xi32>
    %298 = arith.extui %297 : vector<2x16xi1> to vector<2x16xi32>
    %299 = arith.sitofp %298 : vector<2x16xi32> to vector<2x16xf32>
    %c0_i32_87 = arith.constant 0 : i32
    %300 = vector.broadcast %c0_i32_87 : i32 to vector<2x1xi32>
    %301 = arith.cmpi ne, %295, %300 : vector<2x1xi32>
    %c2_i32_88 = arith.constant 2 : i32
    %302 = vector.broadcast %c2_i32_88 : i32 to vector<2x1xi32>
    %303 = arith.cmpi ne, %295, %302 : vector<2x1xi32>
    %304 = arith.andi %301, %303 : vector<2x1xi1>
    %305 = arith.extui %304 : vector<2x1xi1> to vector<2x1xi32>
    %306 = arith.sitofp %305 : vector<2x1xi32> to vector<2x1xf32>
    %307 = vector.broadcast %306 : vector<2x1xf32> to vector<2x32xf32>
    %308 = arith.mulf %307, %270 : vector<2x32xf32>
    %309 = arith.addf %214, %308 : vector<2x32xf32>
    %310 = arith.addf %215, %306 : vector<2x1xf32>
    %cst_89 = arith.constant dense<0.000000e+00> : vector<2x32xf32>
    %311 = tpu.matmul %299, %1, %cst_89 {dimension_numbers = #tpu.dot_dimension_numbers<[1], [0], [0], [1], [0, 0, 1, 1], [], []>} : vector<2x16xf32>, vector<16x32xf32>, vector<2x32xf32> -> vector<2x32xf32>
    %cst_90 = arith.constant dense<0.000000e+00> : vector<2x32xf32>
    %312 = tpu.matmul %270, %2, %cst_90 {dimension_numbers = #tpu.dot_dimension_numbers<[1], [0], [0], [1], [0, 0, 1, 1], [], []>} : vector<2x32xf32>, vector<32x32xf32>, vector<2x32xf32> -> vector<2x32xf32>
    %313 = vector.shape_cast %312 : vector<2x32xf32> to vector<2x1x32xf32>
    %314 = vector.broadcast %313 : vector<2x1x32xf32> to vector<2x8x32xf32>
    %315 = arith.addf %12, %314 : vector<2x8x32xf32>
    %316 = math.tanh %315 : vector<2x8x32xf32>
    %317 = vector.broadcast %4 : vector<1x1x32xf32> to vector<2x8x32xf32>
    %318 = arith.mulf %316, %317 : vector<2x8x32xf32>
    %cst_91 = arith.constant dense<0.000000e+00> : vector<2x8xf32>
    %319 = vector.multi_reduction <add>, %318, %cst_91 [2] : vector<2x8x32xf32> to vector<2x8xf32>
    %cst_92 = arith.constant dense<0xFF800000> : vector<2xf32>
    %320 = vector.multi_reduction <maximumf>, %319, %cst_92 [1] : vector<2x8xf32> to vector<2xf32>
    %321 = vector.shape_cast %320 : vector<2xf32> to vector<2x1xf32>
    %322 = vector.broadcast %321 : vector<2x1xf32> to vector<2x8xf32>
    %323 = arith.subf %319, %322 : vector<2x8xf32>
    %324 = math.exp %323 : vector<2x8xf32>
    %cst_93 = arith.constant dense<0.000000e+00> : vector<2xf32>
    %325 = vector.multi_reduction <add>, %324, %cst_93 [1] : vector<2x8xf32> to vector<2xf32>
    %326 = vector.shape_cast %325 : vector<2xf32> to vector<2x1xf32>
    %327 = tpu.reciprocal %326 {approx = true} : vector<2x1xf32> -> vector<2x1xf32>
    %328 = vector.broadcast %327 : vector<2x1xf32> to vector<2x8xf32>
    %329 = arith.mulf %324, %328 : vector<2x8xf32>
    %330 = vector.shape_cast %329 : vector<2x8xf32> to vector<2x8x1xf32>
    %331 = vector.broadcast %330 : vector<2x8x1xf32> to vector<2x8x32xf32>
    %332 = arith.mulf %331, %0 : vector<2x8x32xf32>
    %cst_94 = arith.constant dense<0.000000e+00> : vector<2x32xf32>
    %333 = vector.multi_reduction <add>, %332, %cst_94 [1] : vector<2x8x32xf32> to vector<2x32xf32>
    %334 = tpu.concatenate %311, %333, %270 in 1 : vector<2x32xf32>, vector<2x32xf32>, vector<2x32xf32> -> vector<2x96xf32>
    %cst_95 = arith.constant dense<0.000000e+00> : vector<2x192xf32>
    %335 = tpu.matmul %334, %5, %cst_95 {dimension_numbers = #tpu.dot_dimension_numbers<[1], [0], [0], [1], [0, 0, 1, 1], [], []>} : vector<2x96xf32>, vector<96x192xf32>, vector<2x192xf32> -> vector<2x192xf32>
    %336 = vector.broadcast %6 : vector<1x192xf32> to vector<2x192xf32>
    %337 = arith.addf %335, %336 : vector<2x192xf32>
    %338 = vector.extract_strided_slice %337 {offsets = [0, 0], sizes = [2, 32], strides = [1, 1]} : vector<2x192xf32> to vector<2x32xf32>
    %339 = vector.extract_strided_slice %337 {offsets = [0, 96], sizes = [2, 32], strides = [1, 1]} : vector<2x192xf32> to vector<2x32xf32>
    %340 = arith.addf %338, %339 : vector<2x32xf32>
    %cst_96 = arith.constant 0.000000e+00 : f32
    %341 = vector.broadcast %cst_96 : f32 to vector<2x32xf32>
    %342 = arith.subf %341, %340 : vector<2x32xf32>
    %343 = math.exp %342 : vector<2x32xf32>
    %cst_97 = arith.constant 1.000000e+00 : f32
    %344 = vector.broadcast %cst_97 : f32 to vector<2x32xf32>
    %345 = arith.addf %344, %343 : vector<2x32xf32>
    %346 = tpu.reciprocal %345 {approx = true} : vector<2x32xf32> -> vector<2x32xf32>
    %347 = vector.extract_strided_slice %337 {offsets = [0, 32], sizes = [2, 32], strides = [1, 1]} : vector<2x192xf32> to vector<2x32xf32>
    %348 = vector.extract_strided_slice %337 {offsets = [0, 128], sizes = [2, 32], strides = [1, 1]} : vector<2x192xf32> to vector<2x32xf32>
    %349 = arith.addf %347, %348 : vector<2x32xf32>
    %cst_98 = arith.constant 0.000000e+00 : f32
    %350 = vector.broadcast %cst_98 : f32 to vector<2x32xf32>
    %351 = arith.subf %350, %349 : vector<2x32xf32>
    %352 = math.exp %351 : vector<2x32xf32>
    %cst_99 = arith.constant 1.000000e+00 : f32
    %353 = vector.broadcast %cst_99 : f32 to vector<2x32xf32>
    %354 = arith.addf %353, %352 : vector<2x32xf32>
    %355 = tpu.reciprocal %354 {approx = true} : vector<2x32xf32> -> vector<2x32xf32>
    %356 = vector.extract_strided_slice %337 {offsets = [0, 64], sizes = [2, 32], strides = [1, 1]} : vector<2x192xf32> to vector<2x32xf32>
    %357 = vector.extract_strided_slice %337 {offsets = [0, 160], sizes = [2, 32], strides = [1, 1]} : vector<2x192xf32> to vector<2x32xf32>
    %358 = arith.mulf %346, %357 : vector<2x32xf32>
    %359 = arith.addf %356, %358 : vector<2x32xf32>
    %360 = math.tanh %359 : vector<2x32xf32>
    %cst_100 = arith.constant 1.000000e+00 : f32
    %361 = vector.broadcast %cst_100 : f32 to vector<2x32xf32>
    %362 = arith.subf %361, %355 : vector<2x32xf32>
    %363 = arith.mulf %362, %360 : vector<2x32xf32>
    %364 = arith.mulf %355, %270 : vector<2x32xf32>
    %365 = arith.addf %363, %364 : vector<2x32xf32>
    %cst_101 = arith.constant dense<0.000000e+00> : vector<2x16xf32>
    %366 = tpu.matmul %365, %7, %cst_101 {dimension_numbers = #tpu.dot_dimension_numbers<[1], [0], [0], [1], [0, 0, 1, 1], [], []>} : vector<2x32xf32>, vector<32x16xf32>, vector<2x16xf32> -> vector<2x16xf32>
    %367 = vector.broadcast %8 : vector<1x16xf32> to vector<2x16xf32>
    %368 = arith.addf %366, %367 : vector<2x16xf32>
    %cst_102 = arith.constant dense<0xFF800000> : vector<2xf32>
    %369 = vector.multi_reduction <maximumf>, %368, %cst_102 [1] : vector<2x16xf32> to vector<2xf32>
    %370 = vector.shape_cast %369 : vector<2xf32> to vector<2x1xf32>
    %371 = vector.broadcast %370 : vector<2x1xf32> to vector<2x16xf32>
    %372 = arith.subf %368, %371 : vector<2x16xf32>
    %373 = math.exp %372 : vector<2x16xf32>
    %cst_103 = arith.constant dense<0.000000e+00> : vector<2xf32>
    %374 = vector.multi_reduction <add>, %373, %cst_103 [1] : vector<2x16xf32> to vector<2xf32>
    %375 = vector.shape_cast %374 : vector<2xf32> to vector<2x1xf32>
    %376 = math.log %375 : vector<2x1xf32>
    %377 = arith.addf %376, %370 : vector<2x1xf32>
    %378 = vector.broadcast %377 : vector<2x1xf32> to vector<2x16xf32>
    %379 = arith.subf %368, %378 : vector<2x16xf32>
    %c4 = arith.constant 4 : index
    %c0_104 = arith.constant 0 : index
    %c0_105 = arith.constant 0 : index
    %380 = vector.load %arg12[%c4, %c0_104, %c0_105] : memref<8x2x16xf32, #tpu.memory_space<vmem>>, vector<1x2x16xf32>
    %381 = vector.shape_cast %380 : vector<1x2x16xf32> to vector<2x16xf32>
    %382 = vector.shape_cast %379 : vector<2x16xf32> to vector<1x2x16xf32>
    tpu.vector_store %arg12[%c4, %c0_104, %c0_105], %382 {strides = array<i32>} : memref<8x2x16xf32, #tpu.memory_space<vmem>>, vector<1x2x16xf32>,
    %cst_106 = arith.constant dense<0xFF800000> : vector<2xf32>
    %383 = vector.multi_reduction <maximumf>, %379, %cst_106 [1] : vector<2x16xf32> to vector<2xf32>
    %384 = vector.shape_cast %383 : vector<2xf32> to vector<2x1xf32>
    %385 = vector.broadcast %384 : vector<2x1xf32> to vector<2x16xf32>
    %386 = arith.cmpf oeq, %379, %385 : vector<2x16xf32>
    %c16_i32_107 = arith.constant 16 : i32
    %387 = vector.broadcast %c16_i32_107 : i32 to vector<2x16xi32>
    %388 = arith.select %386, %17, %387 : vector<2x16xi1>, vector<2x16xi32>
    %cst_108 = arith.constant dense<2147483647> : vector<2xi32>
    %389 = vector.multi_reduction <minsi>, %388, %cst_108 [1] : vector<2x16xi32> to vector<2xi32>
    %390 = vector.shape_cast %389 : vector<2xi32> to vector<2x1xi32>
    %391 = vector.broadcast %390 : vector<2x1xi32> to vector<2x16xi32>
    %392 = arith.cmpi eq, %17, %391 : vector<2x16xi32>
    %393 = arith.extui %392 : vector<2x16xi1> to vector<2x16xi32>
    %394 = arith.sitofp %393 : vector<2x16xi32> to vector<2x16xf32>
    %c0_i32_109 = arith.constant 0 : i32
    %395 = vector.broadcast %c0_i32_109 : i32 to vector<2x1xi32>
    %396 = arith.cmpi ne, %390, %395 : vector<2x1xi32>
    %c2_i32_110 = arith.constant 2 : i32
    %397 = vector.broadcast %c2_i32_110 : i32 to vector<2x1xi32>
    %398 = arith.cmpi ne, %390, %397 : vector<2x1xi32>
    %399 = arith.andi %396, %398 : vector<2x1xi1>
    %400 = arith.extui %399 : vector<2x1xi1> to vector<2x1xi32>
    %401 = arith.sitofp %400 : vector<2x1xi32> to vector<2x1xf32>
    %402 = vector.broadcast %401 : vector<2x1xf32> to vector<2x32xf32>
    %403 = arith.mulf %402, %365 : vector<2x32xf32>
    %404 = arith.addf %309, %403 : vector<2x32xf32>
    %405 = arith.addf %310, %401 : vector<2x1xf32>
    %cst_111 = arith.constant dense<0.000000e+00> : vector<2x32xf32>
    %406 = tpu.matmul %394, %1, %cst_111 {dimension_numbers = #tpu.dot_dimension_numbers<[1], [0], [0], [1], [0, 0, 1, 1], [], []>} : vector<2x16xf32>, vector<16x32xf32>, vector<2x32xf32> -> vector<2x32xf32>
    %cst_112 = arith.constant dense<0.000000e+00> : vector<2x32xf32>
    %407 = tpu.matmul %365, %2, %cst_112 {dimension_numbers = #tpu.dot_dimension_numbers<[1], [0], [0], [1], [0, 0, 1, 1], [], []>} : vector<2x32xf32>, vector<32x32xf32>, vector<2x32xf32> -> vector<2x32xf32>
    %408 = vector.shape_cast %407 : vector<2x32xf32> to vector<2x1x32xf32>
    %409 = vector.broadcast %408 : vector<2x1x32xf32> to vector<2x8x32xf32>
    %410 = arith.addf %12, %409 : vector<2x8x32xf32>
    %411 = math.tanh %410 : vector<2x8x32xf32>
    %412 = vector.broadcast %4 : vector<1x1x32xf32> to vector<2x8x32xf32>
    %413 = arith.mulf %411, %412 : vector<2x8x32xf32>
    %cst_113 = arith.constant dense<0.000000e+00> : vector<2x8xf32>
    %414 = vector.multi_reduction <add>, %413, %cst_113 [2] : vector<2x8x32xf32> to vector<2x8xf32>
    %cst_114 = arith.constant dense<0xFF800000> : vector<2xf32>
    %415 = vector.multi_reduction <maximumf>, %414, %cst_114 [1] : vector<2x8xf32> to vector<2xf32>
    %416 = vector.shape_cast %415 : vector<2xf32> to vector<2x1xf32>
    %417 = vector.broadcast %416 : vector<2x1xf32> to vector<2x8xf32>
    %418 = arith.subf %414, %417 : vector<2x8xf32>
    %419 = math.exp %418 : vector<2x8xf32>
    %cst_115 = arith.constant dense<0.000000e+00> : vector<2xf32>
    %420 = vector.multi_reduction <add>, %419, %cst_115 [1] : vector<2x8xf32> to vector<2xf32>
    %421 = vector.shape_cast %420 : vector<2xf32> to vector<2x1xf32>
    %422 = tpu.reciprocal %421 {approx = true} : vector<2x1xf32> -> vector<2x1xf32>
    %423 = vector.broadcast %422 : vector<2x1xf32> to vector<2x8xf32>
    %424 = arith.mulf %419, %423 : vector<2x8xf32>
    %425 = vector.shape_cast %424 : vector<2x8xf32> to vector<2x8x1xf32>
    %426 = vector.broadcast %425 : vector<2x8x1xf32> to vector<2x8x32xf32>
    %427 = arith.mulf %426, %0 : vector<2x8x32xf32>
    %cst_116 = arith.constant dense<0.000000e+00> : vector<2x32xf32>
    %428 = vector.multi_reduction <add>, %427, %cst_116 [1] : vector<2x8x32xf32> to vector<2x32xf32>
    %429 = tpu.concatenate %406, %428, %365 in 1 : vector<2x32xf32>, vector<2x32xf32>, vector<2x32xf32> -> vector<2x96xf32>
    %cst_117 = arith.constant dense<0.000000e+00> : vector<2x192xf32>
    %430 = tpu.matmul %429, %5, %cst_117 {dimension_numbers = #tpu.dot_dimension_numbers<[1], [0], [0], [1], [0, 0, 1, 1], [], []>} : vector<2x96xf32>, vector<96x192xf32>, vector<2x192xf32> -> vector<2x192xf32>
    %431 = vector.broadcast %6 : vector<1x192xf32> to vector<2x192xf32>
    %432 = arith.addf %430, %431 : vector<2x192xf32>
    %433 = vector.extract_strided_slice %432 {offsets = [0, 0], sizes = [2, 32], strides = [1, 1]} : vector<2x192xf32> to vector<2x32xf32>
    %434 = vector.extract_strided_slice %432 {offsets = [0, 96], sizes = [2, 32], strides = [1, 1]} : vector<2x192xf32> to vector<2x32xf32>
    %435 = arith.addf %433, %434 : vector<2x32xf32>
    %cst_118 = arith.constant 0.000000e+00 : f32
    %436 = vector.broadcast %cst_118 : f32 to vector<2x32xf32>
    %437 = arith.subf %436, %435 : vector<2x32xf32>
    %438 = math.exp %437 : vector<2x32xf32>
    %cst_119 = arith.constant 1.000000e+00 : f32
    %439 = vector.broadcast %cst_119 : f32 to vector<2x32xf32>
    %440 = arith.addf %439, %438 : vector<2x32xf32>
    %441 = tpu.reciprocal %440 {approx = true} : vector<2x32xf32> -> vector<2x32xf32>
    %442 = vector.extract_strided_slice %432 {offsets = [0, 32], sizes = [2, 32], strides = [1, 1]} : vector<2x192xf32> to vector<2x32xf32>
    %443 = vector.extract_strided_slice %432 {offsets = [0, 128], sizes = [2, 32], strides = [1, 1]} : vector<2x192xf32> to vector<2x32xf32>
    %444 = arith.addf %442, %443 : vector<2x32xf32>
    %cst_120 = arith.constant 0.000000e+00 : f32
    %445 = vector.broadcast %cst_120 : f32 to vector<2x32xf32>
    %446 = arith.subf %445, %444 : vector<2x32xf32>
    %447 = math.exp %446 : vector<2x32xf32>
    %cst_121 = arith.constant 1.000000e+00 : f32
    %448 = vector.broadcast %cst_121 : f32 to vector<2x32xf32>
    %449 = arith.addf %448, %447 : vector<2x32xf32>
    %450 = tpu.reciprocal %449 {approx = true} : vector<2x32xf32> -> vector<2x32xf32>
    %451 = vector.extract_strided_slice %432 {offsets = [0, 64], sizes = [2, 32], strides = [1, 1]} : vector<2x192xf32> to vector<2x32xf32>
    %452 = vector.extract_strided_slice %432 {offsets = [0, 160], sizes = [2, 32], strides = [1, 1]} : vector<2x192xf32> to vector<2x32xf32>
    %453 = arith.mulf %441, %452 : vector<2x32xf32>
    %454 = arith.addf %451, %453 : vector<2x32xf32>
    %455 = math.tanh %454 : vector<2x32xf32>
    %cst_122 = arith.constant 1.000000e+00 : f32
    %456 = vector.broadcast %cst_122 : f32 to vector<2x32xf32>
    %457 = arith.subf %456, %450 : vector<2x32xf32>
    %458 = arith.mulf %457, %455 : vector<2x32xf32>
    %459 = arith.mulf %450, %365 : vector<2x32xf32>
    %460 = arith.addf %458, %459 : vector<2x32xf32>
    %cst_123 = arith.constant dense<0.000000e+00> : vector<2x16xf32>
    %461 = tpu.matmul %460, %7, %cst_123 {dimension_numbers = #tpu.dot_dimension_numbers<[1], [0], [0], [1], [0, 0, 1, 1], [], []>} : vector<2x32xf32>, vector<32x16xf32>, vector<2x16xf32> -> vector<2x16xf32>
    %462 = vector.broadcast %8 : vector<1x16xf32> to vector<2x16xf32>
    %463 = arith.addf %461, %462 : vector<2x16xf32>
    %cst_124 = arith.constant dense<0xFF800000> : vector<2xf32>
    %464 = vector.multi_reduction <maximumf>, %463, %cst_124 [1] : vector<2x16xf32> to vector<2xf32>
    %465 = vector.shape_cast %464 : vector<2xf32> to vector<2x1xf32>
    %466 = vector.broadcast %465 : vector<2x1xf32> to vector<2x16xf32>
    %467 = arith.subf %463, %466 : vector<2x16xf32>
    %468 = math.exp %467 : vector<2x16xf32>
    %cst_125 = arith.constant dense<0.000000e+00> : vector<2xf32>
    %469 = vector.multi_reduction <add>, %468, %cst_125 [1] : vector<2x16xf32> to vector<2xf32>
    %470 = vector.shape_cast %469 : vector<2xf32> to vector<2x1xf32>
    %471 = math.log %470 : vector<2x1xf32>
    %472 = arith.addf %471, %465 : vector<2x1xf32>
    %473 = vector.broadcast %472 : vector<2x1xf32> to vector<2x16xf32>
    %474 = arith.subf %463, %473 : vector<2x16xf32>
    %c5 = arith.constant 5 : index
    %c0_126 = arith.constant 0 : index
    %c0_127 = arith.constant 0 : index
    %475 = vector.load %arg12[%c5, %c0_126, %c0_127] : memref<8x2x16xf32, #tpu.memory_space<vmem>>, vector<1x2x16xf32>
    %476 = vector.shape_cast %475 : vector<1x2x16xf32> to vector<2x16xf32>
    %477 = vector.shape_cast %474 : vector<2x16xf32> to vector<1x2x16xf32>
    tpu.vector_store %arg12[%c5, %c0_126, %c0_127], %477 {strides = array<i32>} : memref<8x2x16xf32, #tpu.memory_space<vmem>>, vector<1x2x16xf32>,
    %cst_128 = arith.constant dense<0xFF800000> : vector<2xf32>
    %478 = vector.multi_reduction <maximumf>, %474, %cst_128 [1] : vector<2x16xf32> to vector<2xf32>
    %479 = vector.shape_cast %478 : vector<2xf32> to vector<2x1xf32>
    %480 = vector.broadcast %479 : vector<2x1xf32> to vector<2x16xf32>
    %481 = arith.cmpf oeq, %474, %480 : vector<2x16xf32>
    %c16_i32_129 = arith.constant 16 : i32
    %482 = vector.broadcast %c16_i32_129 : i32 to vector<2x16xi32>
    %483 = arith.select %481, %17, %482 : vector<2x16xi1>, vector<2x16xi32>
    %cst_130 = arith.constant dense<2147483647> : vector<2xi32>
    %484 = vector.multi_reduction <minsi>, %483, %cst_130 [1] : vector<2x16xi32> to vector<2xi32>
    %485 = vector.shape_cast %484 : vector<2xi32> to vector<2x1xi32>
    %486 = vector.broadcast %485 : vector<2x1xi32> to vector<2x16xi32>
    %487 = arith.cmpi eq, %17, %486 : vector<2x16xi32>
    %488 = arith.extui %487 : vector<2x16xi1> to vector<2x16xi32>
    %489 = arith.sitofp %488 : vector<2x16xi32> to vector<2x16xf32>
    %c0_i32_131 = arith.constant 0 : i32
    %490 = vector.broadcast %c0_i32_131 : i32 to vector<2x1xi32>
    %491 = arith.cmpi ne, %485, %490 : vector<2x1xi32>
    %c2_i32_132 = arith.constant 2 : i32
    %492 = vector.broadcast %c2_i32_132 : i32 to vector<2x1xi32>
    %493 = arith.cmpi ne, %485, %492 : vector<2x1xi32>
    %494 = arith.andi %491, %493 : vector<2x1xi1>
    %495 = arith.extui %494 : vector<2x1xi1> to vector<2x1xi32>
    %496 = arith.sitofp %495 : vector<2x1xi32> to vector<2x1xf32>
    %497 = vector.broadcast %496 : vector<2x1xf32> to vector<2x32xf32>
    %498 = arith.mulf %497, %460 : vector<2x32xf32>
    %499 = arith.addf %404, %498 : vector<2x32xf32>
    %500 = arith.addf %405, %496 : vector<2x1xf32>
    %cst_133 = arith.constant dense<0.000000e+00> : vector<2x32xf32>
    %501 = tpu.matmul %489, %1, %cst_133 {dimension_numbers = #tpu.dot_dimension_numbers<[1], [0], [0], [1], [0, 0, 1, 1], [], []>} : vector<2x16xf32>, vector<16x32xf32>, vector<2x32xf32> -> vector<2x32xf32>
    %cst_134 = arith.constant dense<0.000000e+00> : vector<2x32xf32>
    %502 = tpu.matmul %460, %2, %cst_134 {dimension_numbers = #tpu.dot_dimension_numbers<[1], [0], [0], [1], [0, 0, 1, 1], [], []>} : vector<2x32xf32>, vector<32x32xf32>, vector<2x32xf32> -> vector<2x32xf32>
    %503 = vector.shape_cast %502 : vector<2x32xf32> to vector<2x1x32xf32>
    %504 = vector.broadcast %503 : vector<2x1x32xf32> to vector<2x8x32xf32>
    %505 = arith.addf %12, %504 : vector<2x8x32xf32>
    %506 = math.tanh %505 : vector<2x8x32xf32>
    %507 = vector.broadcast %4 : vector<1x1x32xf32> to vector<2x8x32xf32>
    %508 = arith.mulf %506, %507 : vector<2x8x32xf32>
    %cst_135 = arith.constant dense<0.000000e+00> : vector<2x8xf32>
    %509 = vector.multi_reduction <add>, %508, %cst_135 [2] : vector<2x8x32xf32> to vector<2x8xf32>
    %cst_136 = arith.constant dense<0xFF800000> : vector<2xf32>
    %510 = vector.multi_reduction <maximumf>, %509, %cst_136 [1] : vector<2x8xf32> to vector<2xf32>
    %511 = vector.shape_cast %510 : vector<2xf32> to vector<2x1xf32>
    %512 = vector.broadcast %511 : vector<2x1xf32> to vector<2x8xf32>
    %513 = arith.subf %509, %512 : vector<2x8xf32>
    %514 = math.exp %513 : vector<2x8xf32>
    %cst_137 = arith.constant dense<0.000000e+00> : vector<2xf32>
    %515 = vector.multi_reduction <add>, %514, %cst_137 [1] : vector<2x8xf32> to vector<2xf32>
    %516 = vector.shape_cast %515 : vector<2xf32> to vector<2x1xf32>
    %517 = tpu.reciprocal %516 {approx = true} : vector<2x1xf32> -> vector<2x1xf32>
    %518 = vector.broadcast %517 : vector<2x1xf32> to vector<2x8xf32>
    %519 = arith.mulf %514, %518 : vector<2x8xf32>
    %520 = vector.shape_cast %519 : vector<2x8xf32> to vector<2x8x1xf32>
    %521 = vector.broadcast %520 : vector<2x8x1xf32> to vector<2x8x32xf32>
    %522 = arith.mulf %521, %0 : vector<2x8x32xf32>
    %cst_138 = arith.constant dense<0.000000e+00> : vector<2x32xf32>
    %523 = vector.multi_reduction <add>, %522, %cst_138 [1] : vector<2x8x32xf32> to vector<2x32xf32>
    %524 = tpu.concatenate %501, %523, %460 in 1 : vector<2x32xf32>, vector<2x32xf32>, vector<2x32xf32> -> vector<2x96xf32>
    %cst_139 = arith.constant dense<0.000000e+00> : vector<2x192xf32>
    %525 = tpu.matmul %524, %5, %cst_139 {dimension_numbers = #tpu.dot_dimension_numbers<[1], [0], [0], [1], [0, 0, 1, 1], [], []>} : vector<2x96xf32>, vector<96x192xf32>, vector<2x192xf32> -> vector<2x192xf32>
    %526 = vector.broadcast %6 : vector<1x192xf32> to vector<2x192xf32>
    %527 = arith.addf %525, %526 : vector<2x192xf32>
    %528 = vector.extract_strided_slice %527 {offsets = [0, 0], sizes = [2, 32], strides = [1, 1]} : vector<2x192xf32> to vector<2x32xf32>
    %529 = vector.extract_strided_slice %527 {offsets = [0, 96], sizes = [2, 32], strides = [1, 1]} : vector<2x192xf32> to vector<2x32xf32>
    %530 = arith.addf %528, %529 : vector<2x32xf32>
    %cst_140 = arith.constant 0.000000e+00 : f32
    %531 = vector.broadcast %cst_140 : f32 to vector<2x32xf32>
    %532 = arith.subf %531, %530 : vector<2x32xf32>
    %533 = math.exp %532 : vector<2x32xf32>
    %cst_141 = arith.constant 1.000000e+00 : f32
    %534 = vector.broadcast %cst_141 : f32 to vector<2x32xf32>
    %535 = arith.addf %534, %533 : vector<2x32xf32>
    %536 = tpu.reciprocal %535 {approx = true} : vector<2x32xf32> -> vector<2x32xf32>
    %537 = vector.extract_strided_slice %527 {offsets = [0, 32], sizes = [2, 32], strides = [1, 1]} : vector<2x192xf32> to vector<2x32xf32>
    %538 = vector.extract_strided_slice %527 {offsets = [0, 128], sizes = [2, 32], strides = [1, 1]} : vector<2x192xf32> to vector<2x32xf32>
    %539 = arith.addf %537, %538 : vector<2x32xf32>
    %cst_142 = arith.constant 0.000000e+00 : f32
    %540 = vector.broadcast %cst_142 : f32 to vector<2x32xf32>
    %541 = arith.subf %540, %539 : vector<2x32xf32>
    %542 = math.exp %541 : vector<2x32xf32>
    %cst_143 = arith.constant 1.000000e+00 : f32
    %543 = vector.broadcast %cst_143 : f32 to vector<2x32xf32>
    %544 = arith.addf %543, %542 : vector<2x32xf32>
    %545 = tpu.reciprocal %544 {approx = true} : vector<2x32xf32> -> vector<2x32xf32>
    %546 = vector.extract_strided_slice %527 {offsets = [0, 64], sizes = [2, 32], strides = [1, 1]} : vector<2x192xf32> to vector<2x32xf32>
    %547 = vector.extract_strided_slice %527 {offsets = [0, 160], sizes = [2, 32], strides = [1, 1]} : vector<2x192xf32> to vector<2x32xf32>
    %548 = arith.mulf %536, %547 : vector<2x32xf32>
    %549 = arith.addf %546, %548 : vector<2x32xf32>
    %550 = math.tanh %549 : vector<2x32xf32>
    %cst_144 = arith.constant 1.000000e+00 : f32
    %551 = vector.broadcast %cst_144 : f32 to vector<2x32xf32>
    %552 = arith.subf %551, %545 : vector<2x32xf32>
    %553 = arith.mulf %552, %550 : vector<2x32xf32>
    %554 = arith.mulf %545, %460 : vector<2x32xf32>
    %555 = arith.addf %553, %554 : vector<2x32xf32>
    %cst_145 = arith.constant dense<0.000000e+00> : vector<2x16xf32>
    %556 = tpu.matmul %555, %7, %cst_145 {dimension_numbers = #tpu.dot_dimension_numbers<[1], [0], [0], [1], [0, 0, 1, 1], [], []>} : vector<2x32xf32>, vector<32x16xf32>, vector<2x16xf32> -> vector<2x16xf32>
    %557 = vector.broadcast %8 : vector<1x16xf32> to vector<2x16xf32>
    %558 = arith.addf %556, %557 : vector<2x16xf32>
    %cst_146 = arith.constant dense<0xFF800000> : vector<2xf32>
    %559 = vector.multi_reduction <maximumf>, %558, %cst_146 [1] : vector<2x16xf32> to vector<2xf32>
    %560 = vector.shape_cast %559 : vector<2xf32> to vector<2x1xf32>
    %561 = vector.broadcast %560 : vector<2x1xf32> to vector<2x16xf32>
    %562 = arith.subf %558, %561 : vector<2x16xf32>
    %563 = math.exp %562 : vector<2x16xf32>
    %cst_147 = arith.constant dense<0.000000e+00> : vector<2xf32>
    %564 = vector.multi_reduction <add>, %563, %cst_147 [1] : vector<2x16xf32> to vector<2xf32>
    %565 = vector.shape_cast %564 : vector<2xf32> to vector<2x1xf32>
    %566 = math.log %565 : vector<2x1xf32>
    %567 = arith.addf %566, %560 : vector<2x1xf32>
    %568 = vector.broadcast %567 : vector<2x1xf32> to vector<2x16xf32>
    %569 = arith.subf %558, %568 : vector<2x16xf32>
    %c6 = arith.constant 6 : index
    %c0_148 = arith.constant 0 : index
    %c0_149 = arith.constant 0 : index
    %570 = vector.load %arg12[%c6, %c0_148, %c0_149] : memref<8x2x16xf32, #tpu.memory_space<vmem>>, vector<1x2x16xf32>
    %571 = vector.shape_cast %570 : vector<1x2x16xf32> to vector<2x16xf32>
    %572 = vector.shape_cast %569 : vector<2x16xf32> to vector<1x2x16xf32>
    tpu.vector_store %arg12[%c6, %c0_148, %c0_149], %572 {strides = array<i32>} : memref<8x2x16xf32, #tpu.memory_space<vmem>>, vector<1x2x16xf32>,
    %cst_150 = arith.constant dense<0xFF800000> : vector<2xf32>
    %573 = vector.multi_reduction <maximumf>, %569, %cst_150 [1] : vector<2x16xf32> to vector<2xf32>
    %574 = vector.shape_cast %573 : vector<2xf32> to vector<2x1xf32>
    %575 = vector.broadcast %574 : vector<2x1xf32> to vector<2x16xf32>
    %576 = arith.cmpf oeq, %569, %575 : vector<2x16xf32>
    %c16_i32_151 = arith.constant 16 : i32
    %577 = vector.broadcast %c16_i32_151 : i32 to vector<2x16xi32>
    %578 = arith.select %576, %17, %577 : vector<2x16xi1>, vector<2x16xi32>
    %cst_152 = arith.constant dense<2147483647> : vector<2xi32>
    %579 = vector.multi_reduction <minsi>, %578, %cst_152 [1] : vector<2x16xi32> to vector<2xi32>
    %580 = vector.shape_cast %579 : vector<2xi32> to vector<2x1xi32>
    %581 = vector.broadcast %580 : vector<2x1xi32> to vector<2x16xi32>
    %582 = arith.cmpi eq, %17, %581 : vector<2x16xi32>
    %583 = arith.extui %582 : vector<2x16xi1> to vector<2x16xi32>
    %584 = arith.sitofp %583 : vector<2x16xi32> to vector<2x16xf32>
    %c0_i32_153 = arith.constant 0 : i32
    %585 = vector.broadcast %c0_i32_153 : i32 to vector<2x1xi32>
    %586 = arith.cmpi ne, %580, %585 : vector<2x1xi32>
    %c2_i32_154 = arith.constant 2 : i32
    %587 = vector.broadcast %c2_i32_154 : i32 to vector<2x1xi32>
    %588 = arith.cmpi ne, %580, %587 : vector<2x1xi32>
    %589 = arith.andi %586, %588 : vector<2x1xi1>
    %590 = arith.extui %589 : vector<2x1xi1> to vector<2x1xi32>
    %591 = arith.sitofp %590 : vector<2x1xi32> to vector<2x1xf32>
    %592 = vector.broadcast %591 : vector<2x1xf32> to vector<2x32xf32>
    %593 = arith.mulf %592, %555 : vector<2x32xf32>
    %594 = arith.addf %499, %593 : vector<2x32xf32>
    %595 = arith.addf %500, %591 : vector<2x1xf32>
    %cst_155 = arith.constant dense<0.000000e+00> : vector<2x32xf32>
    %596 = tpu.matmul %584, %1, %cst_155 {dimension_numbers = #tpu.dot_dimension_numbers<[1], [0], [0], [1], [0, 0, 1, 1], [], []>} : vector<2x16xf32>, vector<16x32xf32>, vector<2x32xf32> -> vector<2x32xf32>
    %cst_156 = arith.constant dense<0.000000e+00> : vector<2x32xf32>
    %597 = tpu.matmul %555, %2, %cst_156 {dimension_numbers = #tpu.dot_dimension_numbers<[1], [0], [0], [1], [0, 0, 1, 1], [], []>} : vector<2x32xf32>, vector<32x32xf32>, vector<2x32xf32> -> vector<2x32xf32>
    %598 = vector.shape_cast %597 : vector<2x32xf32> to vector<2x1x32xf32>
    %599 = vector.broadcast %598 : vector<2x1x32xf32> to vector<2x8x32xf32>
    %600 = arith.addf %12, %599 : vector<2x8x32xf32>
    %601 = math.tanh %600 : vector<2x8x32xf32>
    %602 = vector.broadcast %4 : vector<1x1x32xf32> to vector<2x8x32xf32>
    %603 = arith.mulf %601, %602 : vector<2x8x32xf32>
    %cst_157 = arith.constant dense<0.000000e+00> : vector<2x8xf32>
    %604 = vector.multi_reduction <add>, %603, %cst_157 [2] : vector<2x8x32xf32> to vector<2x8xf32>
    %cst_158 = arith.constant dense<0xFF800000> : vector<2xf32>
    %605 = vector.multi_reduction <maximumf>, %604, %cst_158 [1] : vector<2x8xf32> to vector<2xf32>
    %606 = vector.shape_cast %605 : vector<2xf32> to vector<2x1xf32>
    %607 = vector.broadcast %606 : vector<2x1xf32> to vector<2x8xf32>
    %608 = arith.subf %604, %607 : vector<2x8xf32>
    %609 = math.exp %608 : vector<2x8xf32>
    %cst_159 = arith.constant dense<0.000000e+00> : vector<2xf32>
    %610 = vector.multi_reduction <add>, %609, %cst_159 [1] : vector<2x8xf32> to vector<2xf32>
    %611 = vector.shape_cast %610 : vector<2xf32> to vector<2x1xf32>
    %612 = tpu.reciprocal %611 {approx = true} : vector<2x1xf32> -> vector<2x1xf32>
    %613 = vector.broadcast %612 : vector<2x1xf32> to vector<2x8xf32>
    %614 = arith.mulf %609, %613 : vector<2x8xf32>
    %615 = vector.shape_cast %614 : vector<2x8xf32> to vector<2x8x1xf32>
    %616 = vector.broadcast %615 : vector<2x8x1xf32> to vector<2x8x32xf32>
    %617 = arith.mulf %616, %0 : vector<2x8x32xf32>
    %cst_160 = arith.constant dense<0.000000e+00> : vector<2x32xf32>
    %618 = vector.multi_reduction <add>, %617, %cst_160 [1] : vector<2x8x32xf32> to vector<2x32xf32>
    %619 = tpu.concatenate %596, %618, %555 in 1 : vector<2x32xf32>, vector<2x32xf32>, vector<2x32xf32> -> vector<2x96xf32>
    %cst_161 = arith.constant dense<0.000000e+00> : vector<2x192xf32>
    %620 = tpu.matmul %619, %5, %cst_161 {dimension_numbers = #tpu.dot_dimension_numbers<[1], [0], [0], [1], [0, 0, 1, 1], [], []>} : vector<2x96xf32>, vector<96x192xf32>, vector<2x192xf32> -> vector<2x192xf32>
    %621 = vector.broadcast %6 : vector<1x192xf32> to vector<2x192xf32>
    %622 = arith.addf %620, %621 : vector<2x192xf32>
    %623 = vector.extract_strided_slice %622 {offsets = [0, 0], sizes = [2, 32], strides = [1, 1]} : vector<2x192xf32> to vector<2x32xf32>
    %624 = vector.extract_strided_slice %622 {offsets = [0, 96], sizes = [2, 32], strides = [1, 1]} : vector<2x192xf32> to vector<2x32xf32>
    %625 = arith.addf %623, %624 : vector<2x32xf32>
    %cst_162 = arith.constant 0.000000e+00 : f32
    %626 = vector.broadcast %cst_162 : f32 to vector<2x32xf32>
    %627 = arith.subf %626, %625 : vector<2x32xf32>
    %628 = math.exp %627 : vector<2x32xf32>
    %cst_163 = arith.constant 1.000000e+00 : f32
    %629 = vector.broadcast %cst_163 : f32 to vector<2x32xf32>
    %630 = arith.addf %629, %628 : vector<2x32xf32>
    %631 = tpu.reciprocal %630 {approx = true} : vector<2x32xf32> -> vector<2x32xf32>
    %632 = vector.extract_strided_slice %622 {offsets = [0, 32], sizes = [2, 32], strides = [1, 1]} : vector<2x192xf32> to vector<2x32xf32>
    %633 = vector.extract_strided_slice %622 {offsets = [0, 128], sizes = [2, 32], strides = [1, 1]} : vector<2x192xf32> to vector<2x32xf32>
    %634 = arith.addf %632, %633 : vector<2x32xf32>
    %cst_164 = arith.constant 0.000000e+00 : f32
    %635 = vector.broadcast %cst_164 : f32 to vector<2x32xf32>
    %636 = arith.subf %635, %634 : vector<2x32xf32>
    %637 = math.exp %636 : vector<2x32xf32>
    %cst_165 = arith.constant 1.000000e+00 : f32
    %638 = vector.broadcast %cst_165 : f32 to vector<2x32xf32>
    %639 = arith.addf %638, %637 : vector<2x32xf32>
    %640 = tpu.reciprocal %639 {approx = true} : vector<2x32xf32> -> vector<2x32xf32>
    %641 = vector.extract_strided_slice %622 {offsets = [0, 64], sizes = [2, 32], strides = [1, 1]} : vector<2x192xf32> to vector<2x32xf32>
    %642 = vector.extract_strided_slice %622 {offsets = [0, 160], sizes = [2, 32], strides = [1, 1]} : vector<2x192xf32> to vector<2x32xf32>
    %643 = arith.mulf %631, %642 : vector<2x32xf32>
    %644 = arith.addf %641, %643 : vector<2x32xf32>
    %645 = math.tanh %644 : vector<2x32xf32>
    %cst_166 = arith.constant 1.000000e+00 : f32
    %646 = vector.broadcast %cst_166 : f32 to vector<2x32xf32>
    %647 = arith.subf %646, %640 : vector<2x32xf32>
    %648 = arith.mulf %647, %645 : vector<2x32xf32>
    %649 = arith.mulf %640, %555 : vector<2x32xf32>
    %650 = arith.addf %648, %649 : vector<2x32xf32>
    %cst_167 = arith.constant dense<0.000000e+00> : vector<2x16xf32>
    %651 = tpu.matmul %650, %7, %cst_167 {dimension_numbers = #tpu.dot_dimension_numbers<[1], [0], [0], [1], [0, 0, 1, 1], [], []>} : vector<2x32xf32>, vector<32x16xf32>, vector<2x16xf32> -> vector<2x16xf32>
    %652 = vector.broadcast %8 : vector<1x16xf32> to vector<2x16xf32>
    %653 = arith.addf %651, %652 : vector<2x16xf32>
    %cst_168 = arith.constant dense<0xFF800000> : vector<2xf32>
    %654 = vector.multi_reduction <maximumf>, %653, %cst_168 [1] : vector<2x16xf32> to vector<2xf32>
    %655 = vector.shape_cast %654 : vector<2xf32> to vector<2x1xf32>
    %656 = vector.broadcast %655 : vector<2x1xf32> to vector<2x16xf32>
    %657 = arith.subf %653, %656 : vector<2x16xf32>
    %658 = math.exp %657 : vector<2x16xf32>
    %cst_169 = arith.constant dense<0.000000e+00> : vector<2xf32>
    %659 = vector.multi_reduction <add>, %658, %cst_169 [1] : vector<2x16xf32> to vector<2xf32>
    %660 = vector.shape_cast %659 : vector<2xf32> to vector<2x1xf32>
    %661 = math.log %660 : vector<2x1xf32>
    %662 = arith.addf %661, %655 : vector<2x1xf32>
    %663 = vector.broadcast %662 : vector<2x1xf32> to vector<2x16xf32>
    %664 = arith.subf %653, %663 : vector<2x16xf32>
    %c7 = arith.constant 7 : index
    %c0_170 = arith.constant 0 : index
    %c0_171 = arith.constant 0 : index
    %665 = vector.load %arg12[%c7, %c0_170, %c0_171] : memref<8x2x16xf32, #tpu.memory_space<vmem>>, vector<1x2x16xf32>
    %666 = vector.shape_cast %665 : vector<1x2x16xf32> to vector<2x16xf32>
    %667 = vector.shape_cast %664 : vector<2x16xf32> to vector<1x2x16xf32>
    tpu.vector_store %arg12[%c7, %c0_170, %c0_171], %667 {strides = array<i32>} : memref<8x2x16xf32, #tpu.memory_space<vmem>>, vector<1x2x16xf32>,
    %cst_172 = arith.constant dense<0xFF800000> : vector<2xf32>
    %668 = vector.multi_reduction <maximumf>, %664, %cst_172 [1] : vector<2x16xf32> to vector<2xf32>
    %669 = vector.shape_cast %668 : vector<2xf32> to vector<2x1xf32>
    %670 = vector.broadcast %669 : vector<2x1xf32> to vector<2x16xf32>
    %671 = arith.cmpf oeq, %664, %670 : vector<2x16xf32>
    %c16_i32_173 = arith.constant 16 : i32
    %672 = vector.broadcast %c16_i32_173 : i32 to vector<2x16xi32>
    %673 = arith.select %671, %17, %672 : vector<2x16xi1>, vector<2x16xi32>
    %cst_174 = arith.constant dense<2147483647> : vector<2xi32>
    %674 = vector.multi_reduction <minsi>, %673, %cst_174 [1] : vector<2x16xi32> to vector<2xi32>
    %675 = vector.shape_cast %674 : vector<2xi32> to vector<2x1xi32>
    %c0_i32_175 = arith.constant 0 : i32
    %676 = vector.broadcast %c0_i32_175 : i32 to vector<2x1xi32>
    %677 = arith.cmpi ne, %675, %676 : vector<2x1xi32>
    %c2_i32_176 = arith.constant 2 : i32
    %678 = vector.broadcast %c2_i32_176 : i32 to vector<2x1xi32>
    %679 = arith.cmpi ne, %675, %678 : vector<2x1xi32>
    %680 = arith.andi %677, %679 : vector<2x1xi1>
    %681 = arith.extui %680 : vector<2x1xi1> to vector<2x1xi32>
    %682 = arith.sitofp %681 : vector<2x1xi32> to vector<2x1xf32>
    %683 = vector.broadcast %682 : vector<2x1xf32> to vector<2x32xf32>
    %684 = arith.mulf %683, %650 : vector<2x32xf32>
    %685 = arith.addf %594, %684 : vector<2x32xf32>
    %686 = arith.addf %595, %682 : vector<2x1xf32>
    %cst_177 = arith.constant 1.000000e+00 : f32
    %687 = vector.broadcast %cst_177 : f32 to vector<2x1xf32>
    %688 = arith.maximumf %686, %687 : vector<2x1xf32>
    %689 = tpu.reciprocal %688 {approx = true} : vector<2x1xf32> -> vector<2x1xf32>
    %690 = vector.broadcast %689 : vector<2x1xf32> to vector<2x32xf32>
    %691 = arith.mulf %685, %690 : vector<2x32xf32>
    %c0_178 = arith.constant 0 : index
    %c0_179 = arith.constant 0 : index
    %692 = vector.load %arg10[%c0_178, %c0_179] : memref<96x192xf32, #tpu.memory_space<vmem>>, vector<96x192xf32>
    %c0_180 = arith.constant 0 : index
    %c0_181 = arith.constant 0 : index
    %693 = vector.load %arg11[%c0_180, %c0_181] : memref<1x192xf32, #tpu.memory_space<vmem>>, vector<1x192xf32>
    %cst_182 = arith.constant 0.000000e+00 : f32
    %694 = vector.broadcast %cst_182 : f32 to vector<2x32xf32>
    %695 = tpu.concatenate %23, %691, %694 in 1 : vector<2x32xf32>, vector<2x32xf32>, vector<2x32xf32> -> vector<2x96xf32>
    %cst_183 = arith.constant dense<0.000000e+00> : vector<2x192xf32>
    %696 = tpu.matmul %695, %692, %cst_183 {dimension_numbers = #tpu.dot_dimension_numbers<[1], [0], [0], [1], [0, 0, 1, 1], [], []>} : vector<2x96xf32>, vector<96x192xf32>, vector<2x192xf32> -> vector<2x192xf32>
    %697 = vector.broadcast %693 : vector<1x192xf32> to vector<2x192xf32>
    %698 = arith.addf %696, %697 : vector<2x192xf32>
    %699 = vector.extract_strided_slice %698 {offsets = [0, 0], sizes = [2, 32], strides = [1, 1]} : vector<2x192xf32> to vector<2x32xf32>
    %700 = vector.extract_strided_slice %698 {offsets = [0, 96], sizes = [2, 32], strides = [1, 1]} : vector<2x192xf32> to vector<2x32xf32>
    %701 = arith.addf %699, %700 : vector<2x32xf32>
    %cst_184 = arith.constant 0.000000e+00 : f32
    %702 = vector.broadcast %cst_184 : f32 to vector<2x32xf32>
    %703 = arith.subf %702, %701 : vector<2x32xf32>
    %704 = math.exp %703 : vector<2x32xf32>
    %cst_185 = arith.constant 1.000000e+00 : f32
    %705 = vector.broadcast %cst_185 : f32 to vector<2x32xf32>
    %706 = arith.addf %705, %704 : vector<2x32xf32>
    %707 = tpu.reciprocal %706 {approx = true} : vector<2x32xf32> -> vector<2x32xf32>
    %708 = vector.extract_strided_slice %698 {offsets = [0, 32], sizes = [2, 32], strides = [1, 1]} : vector<2x192xf32> to vector<2x32xf32>
    %709 = vector.extract_strided_slice %698 {offsets = [0, 128], sizes = [2, 32], strides = [1, 1]} : vector<2x192xf32> to vector<2x32xf32>
    %710 = arith.addf %708, %709 : vector<2x32xf32>
    %cst_186 = arith.constant 0.000000e+00 : f32
    %711 = vector.broadcast %cst_186 : f32 to vector<2x32xf32>
    %712 = arith.subf %711, %710 : vector<2x32xf32>
    %713 = math.exp %712 : vector<2x32xf32>
    %cst_187 = arith.constant 1.000000e+00 : f32
    %714 = vector.broadcast %cst_187 : f32 to vector<2x32xf32>
    %715 = arith.addf %714, %713 : vector<2x32xf32>
    %716 = tpu.reciprocal %715 {approx = true} : vector<2x32xf32> -> vector<2x32xf32>
    %717 = vector.extract_strided_slice %698 {offsets = [0, 64], sizes = [2, 32], strides = [1, 1]} : vector<2x192xf32> to vector<2x32xf32>
    %718 = vector.extract_strided_slice %698 {offsets = [0, 160], sizes = [2, 32], strides = [1, 1]} : vector<2x192xf32> to vector<2x32xf32>
    %719 = arith.mulf %707, %718 : vector<2x32xf32>
    %720 = arith.addf %717, %719 : vector<2x32xf32>
    %721 = math.tanh %720 : vector<2x32xf32>
    %cst_188 = arith.constant 1.000000e+00 : f32
    %722 = vector.broadcast %cst_188 : f32 to vector<2x32xf32>
    %723 = arith.subf %722, %716 : vector<2x32xf32>
    %724 = arith.mulf %723, %721 : vector<2x32xf32>
    %725 = arith.mulf %716, %694 : vector<2x32xf32>
    %726 = arith.addf %724, %725 : vector<2x32xf32>
    %727 = vector.shape_cast %726 : vector<2x32xf32> to vector<2x1x32xf32>
    %c0_189 = arith.constant 0 : index
    %c0_190 = arith.constant 0 : index
    %c0_191 = arith.constant 0 : index
    %728 = vector.load %arg13[%c0_189, %c0_190, %c0_191] : memref<2x8x32xf32, #tpu.memory_space<vmem>>, vector<2x1x32xf32>
    tpu.vector_store %arg13[%c0_189, %c0_190, %c0_191], %727 {strides = array<i32>} : memref<2x8x32xf32, #tpu.memory_space<vmem>>, vector<2x1x32xf32>,
    %729 = tpu.concatenate %80, %691, %726 in 1 : vector<2x32xf32>, vector<2x32xf32>, vector<2x32xf32> -> vector<2x96xf32>
    %cst_192 = arith.constant dense<0.000000e+00> : vector<2x192xf32>
    %730 = tpu.matmul %729, %692, %cst_192 {dimension_numbers = #tpu.dot_dimension_numbers<[1], [0], [0], [1], [0, 0, 1, 1], [], []>} : vector<2x96xf32>, vector<96x192xf32>, vector<2x192xf32> -> vector<2x192xf32>
    %731 = vector.broadcast %693 : vector<1x192xf32> to vector<2x192xf32>
    %732 = arith.addf %730, %731 : vector<2x192xf32>
    %733 = vector.extract_strided_slice %732 {offsets = [0, 0], sizes = [2, 32], strides = [1, 1]} : vector<2x192xf32> to vector<2x32xf32>
    %734 = vector.extract_strided_slice %732 {offsets = [0, 96], sizes = [2, 32], strides = [1, 1]} : vector<2x192xf32> to vector<2x32xf32>
    %735 = arith.addf %733, %734 : vector<2x32xf32>
    %cst_193 = arith.constant 0.000000e+00 : f32
    %736 = vector.broadcast %cst_193 : f32 to vector<2x32xf32>
    %737 = arith.subf %736, %735 : vector<2x32xf32>
    %738 = math.exp %737 : vector<2x32xf32>
    %cst_194 = arith.constant 1.000000e+00 : f32
    %739 = vector.broadcast %cst_194 : f32 to vector<2x32xf32>
    %740 = arith.addf %739, %738 : vector<2x32xf32>
    %741 = tpu.reciprocal %740 {approx = true} : vector<2x32xf32> -> vector<2x32xf32>
    %742 = vector.extract_strided_slice %732 {offsets = [0, 32], sizes = [2, 32], strides = [1, 1]} : vector<2x192xf32> to vector<2x32xf32>
    %743 = vector.extract_strided_slice %732 {offsets = [0, 128], sizes = [2, 32], strides = [1, 1]} : vector<2x192xf32> to vector<2x32xf32>
    %744 = arith.addf %742, %743 : vector<2x32xf32>
    %cst_195 = arith.constant 0.000000e+00 : f32
    %745 = vector.broadcast %cst_195 : f32 to vector<2x32xf32>
    %746 = arith.subf %745, %744 : vector<2x32xf32>
    %747 = math.exp %746 : vector<2x32xf32>
    %cst_196 = arith.constant 1.000000e+00 : f32
    %748 = vector.broadcast %cst_196 : f32 to vector<2x32xf32>
    %749 = arith.addf %748, %747 : vector<2x32xf32>
    %750 = tpu.reciprocal %749 {approx = true} : vector<2x32xf32> -> vector<2x32xf32>
    %751 = vector.extract_strided_slice %732 {offsets = [0, 64], sizes = [2, 32], strides = [1, 1]} : vector<2x192xf32> to vector<2x32xf32>
    %752 = vector.extract_strided_slice %732 {offsets = [0, 160], sizes = [2, 32], strides = [1, 1]} : vector<2x192xf32> to vector<2x32xf32>
    %753 = arith.mulf %741, %752 : vector<2x32xf32>
    %754 = arith.addf %751, %753 : vector<2x32xf32>
    %755 = math.tanh %754 : vector<2x32xf32>
    %cst_197 = arith.constant 1.000000e+00 : f32
    %756 = vector.broadcast %cst_197 : f32 to vector<2x32xf32>
    %757 = arith.subf %756, %750 : vector<2x32xf32>
    %758 = arith.mulf %757, %755 : vector<2x32xf32>
    %759 = arith.mulf %750, %726 : vector<2x32xf32>
    %760 = arith.addf %758, %759 : vector<2x32xf32>
    %761 = vector.shape_cast %760 : vector<2x32xf32> to vector<2x1x32xf32>
    %c0_198 = arith.constant 0 : index
    %c1_199 = arith.constant 1 : index
    %c0_200 = arith.constant 0 : index
    %762 = vector.load %arg13[%c0_198, %c1_199, %c0_200] : memref<2x8x32xf32, #tpu.memory_space<vmem>>, vector<2x1x32xf32>
    tpu.vector_store %arg13[%c0_198, %c1_199, %c0_200], %761 {strides = array<i32>} : memref<2x8x32xf32, #tpu.memory_space<vmem>>, vector<2x1x32xf32>,
    %763 = tpu.concatenate %175, %691, %760 in 1 : vector<2x32xf32>, vector<2x32xf32>, vector<2x32xf32> -> vector<2x96xf32>
    %cst_201 = arith.constant dense<0.000000e+00> : vector<2x192xf32>
    %764 = tpu.matmul %763, %692, %cst_201 {dimension_numbers = #tpu.dot_dimension_numbers<[1], [0], [0], [1], [0, 0, 1, 1], [], []>} : vector<2x96xf32>, vector<96x192xf32>, vector<2x192xf32> -> vector<2x192xf32>
    %765 = vector.broadcast %693 : vector<1x192xf32> to vector<2x192xf32>
    %766 = arith.addf %764, %765 : vector<2x192xf32>
    %767 = vector.extract_strided_slice %766 {offsets = [0, 0], sizes = [2, 32], strides = [1, 1]} : vector<2x192xf32> to vector<2x32xf32>
    %768 = vector.extract_strided_slice %766 {offsets = [0, 96], sizes = [2, 32], strides = [1, 1]} : vector<2x192xf32> to vector<2x32xf32>
    %769 = arith.addf %767, %768 : vector<2x32xf32>
    %cst_202 = arith.constant 0.000000e+00 : f32
    %770 = vector.broadcast %cst_202 : f32 to vector<2x32xf32>
    %771 = arith.subf %770, %769 : vector<2x32xf32>
    %772 = math.exp %771 : vector<2x32xf32>
    %cst_203 = arith.constant 1.000000e+00 : f32
    %773 = vector.broadcast %cst_203 : f32 to vector<2x32xf32>
    %774 = arith.addf %773, %772 : vector<2x32xf32>
    %775 = tpu.reciprocal %774 {approx = true} : vector<2x32xf32> -> vector<2x32xf32>
    %776 = vector.extract_strided_slice %766 {offsets = [0, 32], sizes = [2, 32], strides = [1, 1]} : vector<2x192xf32> to vector<2x32xf32>
    %777 = vector.extract_strided_slice %766 {offsets = [0, 128], sizes = [2, 32], strides = [1, 1]} : vector<2x192xf32> to vector<2x32xf32>
    %778 = arith.addf %776, %777 : vector<2x32xf32>
    %cst_204 = arith.constant 0.000000e+00 : f32
    %779 = vector.broadcast %cst_204 : f32 to vector<2x32xf32>
    %780 = arith.subf %779, %778 : vector<2x32xf32>
    %781 = math.exp %780 : vector<2x32xf32>
    %cst_205 = arith.constant 1.000000e+00 : f32
    %782 = vector.broadcast %cst_205 : f32 to vector<2x32xf32>
    %783 = arith.addf %782, %781 : vector<2x32xf32>
    %784 = tpu.reciprocal %783 {approx = true} : vector<2x32xf32> -> vector<2x32xf32>
    %785 = vector.extract_strided_slice %766 {offsets = [0, 64], sizes = [2, 32], strides = [1, 1]} : vector<2x192xf32> to vector<2x32xf32>
    %786 = vector.extract_strided_slice %766 {offsets = [0, 160], sizes = [2, 32], strides = [1, 1]} : vector<2x192xf32> to vector<2x32xf32>
    %787 = arith.mulf %775, %786 : vector<2x32xf32>
    %788 = arith.addf %785, %787 : vector<2x32xf32>
    %789 = math.tanh %788 : vector<2x32xf32>
    %cst_206 = arith.constant 1.000000e+00 : f32
    %790 = vector.broadcast %cst_206 : f32 to vector<2x32xf32>
    %791 = arith.subf %790, %784 : vector<2x32xf32>
    %792 = arith.mulf %791, %789 : vector<2x32xf32>
    %793 = arith.mulf %784, %760 : vector<2x32xf32>
    %794 = arith.addf %792, %793 : vector<2x32xf32>
    %795 = vector.shape_cast %794 : vector<2x32xf32> to vector<2x1x32xf32>
    %c0_207 = arith.constant 0 : index
    %c2_208 = arith.constant 2 : index
    %c0_209 = arith.constant 0 : index
    %796 = vector.load %arg13[%c0_207, %c2_208, %c0_209] : memref<2x8x32xf32, #tpu.memory_space<vmem>>, vector<2x1x32xf32>
    tpu.vector_store %arg13[%c0_207, %c2_208, %c0_209], %795 {strides = array<i32>} : memref<2x8x32xf32, #tpu.memory_space<vmem>>, vector<2x1x32xf32>,
    %797 = tpu.concatenate %270, %691, %794 in 1 : vector<2x32xf32>, vector<2x32xf32>, vector<2x32xf32> -> vector<2x96xf32>
    %cst_210 = arith.constant dense<0.000000e+00> : vector<2x192xf32>
    %798 = tpu.matmul %797, %692, %cst_210 {dimension_numbers = #tpu.dot_dimension_numbers<[1], [0], [0], [1], [0, 0, 1, 1], [], []>} : vector<2x96xf32>, vector<96x192xf32>, vector<2x192xf32> -> vector<2x192xf32>
    %799 = vector.broadcast %693 : vector<1x192xf32> to vector<2x192xf32>
    %800 = arith.addf %798, %799 : vector<2x192xf32>
    %801 = vector.extract_strided_slice %800 {offsets = [0, 0], sizes = [2, 32], strides = [1, 1]} : vector<2x192xf32> to vector<2x32xf32>
    %802 = vector.extract_strided_slice %800 {offsets = [0, 96], sizes = [2, 32], strides = [1, 1]} : vector<2x192xf32> to vector<2x32xf32>
    %803 = arith.addf %801, %802 : vector<2x32xf32>
    %cst_211 = arith.constant 0.000000e+00 : f32
    %804 = vector.broadcast %cst_211 : f32 to vector<2x32xf32>
    %805 = arith.subf %804, %803 : vector<2x32xf32>
    %806 = math.exp %805 : vector<2x32xf32>
    %cst_212 = arith.constant 1.000000e+00 : f32
    %807 = vector.broadcast %cst_212 : f32 to vector<2x32xf32>
    %808 = arith.addf %807, %806 : vector<2x32xf32>
    %809 = tpu.reciprocal %808 {approx = true} : vector<2x32xf32> -> vector<2x32xf32>
    %810 = vector.extract_strided_slice %800 {offsets = [0, 32], sizes = [2, 32], strides = [1, 1]} : vector<2x192xf32> to vector<2x32xf32>
    %811 = vector.extract_strided_slice %800 {offsets = [0, 128], sizes = [2, 32], strides = [1, 1]} : vector<2x192xf32> to vector<2x32xf32>
    %812 = arith.addf %810, %811 : vector<2x32xf32>
    %cst_213 = arith.constant 0.000000e+00 : f32
    %813 = vector.broadcast %cst_213 : f32 to vector<2x32xf32>
    %814 = arith.subf %813, %812 : vector<2x32xf32>
    %815 = math.exp %814 : vector<2x32xf32>
    %cst_214 = arith.constant 1.000000e+00 : f32
    %816 = vector.broadcast %cst_214 : f32 to vector<2x32xf32>
    %817 = arith.addf %816, %815 : vector<2x32xf32>
    %818 = tpu.reciprocal %817 {approx = true} : vector<2x32xf32> -> vector<2x32xf32>
    %819 = vector.extract_strided_slice %800 {offsets = [0, 64], sizes = [2, 32], strides = [1, 1]} : vector<2x192xf32> to vector<2x32xf32>
    %820 = vector.extract_strided_slice %800 {offsets = [0, 160], sizes = [2, 32], strides = [1, 1]} : vector<2x192xf32> to vector<2x32xf32>
    %821 = arith.mulf %809, %820 : vector<2x32xf32>
    %822 = arith.addf %819, %821 : vector<2x32xf32>
    %823 = math.tanh %822 : vector<2x32xf32>
    %cst_215 = arith.constant 1.000000e+00 : f32
    %824 = vector.broadcast %cst_215 : f32 to vector<2x32xf32>
    %825 = arith.subf %824, %818 : vector<2x32xf32>
    %826 = arith.mulf %825, %823 : vector<2x32xf32>
    %827 = arith.mulf %818, %794 : vector<2x32xf32>
    %828 = arith.addf %826, %827 : vector<2x32xf32>
    %829 = vector.shape_cast %828 : vector<2x32xf32> to vector<2x1x32xf32>
    %c0_216 = arith.constant 0 : index
    %c3_217 = arith.constant 3 : index
    %c0_218 = arith.constant 0 : index
    %830 = vector.load %arg13[%c0_216, %c3_217, %c0_218] : memref<2x8x32xf32, #tpu.memory_space<vmem>>, vector<2x1x32xf32>
    tpu.vector_store %arg13[%c0_216, %c3_217, %c0_218], %829 {strides = array<i32>} : memref<2x8x32xf32, #tpu.memory_space<vmem>>, vector<2x1x32xf32>,
    %831 = tpu.concatenate %365, %691, %828 in 1 : vector<2x32xf32>, vector<2x32xf32>, vector<2x32xf32> -> vector<2x96xf32>
    %cst_219 = arith.constant dense<0.000000e+00> : vector<2x192xf32>
    %832 = tpu.matmul %831, %692, %cst_219 {dimension_numbers = #tpu.dot_dimension_numbers<[1], [0], [0], [1], [0, 0, 1, 1], [], []>} : vector<2x96xf32>, vector<96x192xf32>, vector<2x192xf32> -> vector<2x192xf32>
    %833 = vector.broadcast %693 : vector<1x192xf32> to vector<2x192xf32>
    %834 = arith.addf %832, %833 : vector<2x192xf32>
    %835 = vector.extract_strided_slice %834 {offsets = [0, 0], sizes = [2, 32], strides = [1, 1]} : vector<2x192xf32> to vector<2x32xf32>
    %836 = vector.extract_strided_slice %834 {offsets = [0, 96], sizes = [2, 32], strides = [1, 1]} : vector<2x192xf32> to vector<2x32xf32>
    %837 = arith.addf %835, %836 : vector<2x32xf32>
    %cst_220 = arith.constant 0.000000e+00 : f32
    %838 = vector.broadcast %cst_220 : f32 to vector<2x32xf32>
    %839 = arith.subf %838, %837 : vector<2x32xf32>
    %840 = math.exp %839 : vector<2x32xf32>
    %cst_221 = arith.constant 1.000000e+00 : f32
    %841 = vector.broadcast %cst_221 : f32 to vector<2x32xf32>
    %842 = arith.addf %841, %840 : vector<2x32xf32>
    %843 = tpu.reciprocal %842 {approx = true} : vector<2x32xf32> -> vector<2x32xf32>
    %844 = vector.extract_strided_slice %834 {offsets = [0, 32], sizes = [2, 32], strides = [1, 1]} : vector<2x192xf32> to vector<2x32xf32>
    %845 = vector.extract_strided_slice %834 {offsets = [0, 128], sizes = [2, 32], strides = [1, 1]} : vector<2x192xf32> to vector<2x32xf32>
    %846 = arith.addf %844, %845 : vector<2x32xf32>
    %cst_222 = arith.constant 0.000000e+00 : f32
    %847 = vector.broadcast %cst_222 : f32 to vector<2x32xf32>
    %848 = arith.subf %847, %846 : vector<2x32xf32>
    %849 = math.exp %848 : vector<2x32xf32>
    %cst_223 = arith.constant 1.000000e+00 : f32
    %850 = vector.broadcast %cst_223 : f32 to vector<2x32xf32>
    %851 = arith.addf %850, %849 : vector<2x32xf32>
    %852 = tpu.reciprocal %851 {approx = true} : vector<2x32xf32> -> vector<2x32xf32>
    %853 = vector.extract_strided_slice %834 {offsets = [0, 64], sizes = [2, 32], strides = [1, 1]} : vector<2x192xf32> to vector<2x32xf32>
    %854 = vector.extract_strided_slice %834 {offsets = [0, 160], sizes = [2, 32], strides = [1, 1]} : vector<2x192xf32> to vector<2x32xf32>
    %855 = arith.mulf %843, %854 : vector<2x32xf32>
    %856 = arith.addf %853, %855 : vector<2x32xf32>
    %857 = math.tanh %856 : vector<2x32xf32>
    %cst_224 = arith.constant 1.000000e+00 : f32
    %858 = vector.broadcast %cst_224 : f32 to vector<2x32xf32>
    %859 = arith.subf %858, %852 : vector<2x32xf32>
    %860 = arith.mulf %859, %857 : vector<2x32xf32>
    %861 = arith.mulf %852, %828 : vector<2x32xf32>
    %862 = arith.addf %860, %861 : vector<2x32xf32>
    %863 = vector.shape_cast %862 : vector<2x32xf32> to vector<2x1x32xf32>
    %c0_225 = arith.constant 0 : index
    %c4_226 = arith.constant 4 : index
    %c0_227 = arith.constant 0 : index
    %864 = vector.load %arg13[%c0_225, %c4_226, %c0_227] : memref<2x8x32xf32, #tpu.memory_space<vmem>>, vector<2x1x32xf32>
    tpu.vector_store %arg13[%c0_225, %c4_226, %c0_227], %863 {strides = array<i32>} : memref<2x8x32xf32, #tpu.memory_space<vmem>>, vector<2x1x32xf32>,
    %865 = tpu.concatenate %460, %691, %862 in 1 : vector<2x32xf32>, vector<2x32xf32>, vector<2x32xf32> -> vector<2x96xf32>
    %cst_228 = arith.constant dense<0.000000e+00> : vector<2x192xf32>
    %866 = tpu.matmul %865, %692, %cst_228 {dimension_numbers = #tpu.dot_dimension_numbers<[1], [0], [0], [1], [0, 0, 1, 1], [], []>} : vector<2x96xf32>, vector<96x192xf32>, vector<2x192xf32> -> vector<2x192xf32>
    %867 = vector.broadcast %693 : vector<1x192xf32> to vector<2x192xf32>
    %868 = arith.addf %866, %867 : vector<2x192xf32>
    %869 = vector.extract_strided_slice %868 {offsets = [0, 0], sizes = [2, 32], strides = [1, 1]} : vector<2x192xf32> to vector<2x32xf32>
    %870 = vector.extract_strided_slice %868 {offsets = [0, 96], sizes = [2, 32], strides = [1, 1]} : vector<2x192xf32> to vector<2x32xf32>
    %871 = arith.addf %869, %870 : vector<2x32xf32>
    %cst_229 = arith.constant 0.000000e+00 : f32
    %872 = vector.broadcast %cst_229 : f32 to vector<2x32xf32>
    %873 = arith.subf %872, %871 : vector<2x32xf32>
    %874 = math.exp %873 : vector<2x32xf32>
    %cst_230 = arith.constant 1.000000e+00 : f32
    %875 = vector.broadcast %cst_230 : f32 to vector<2x32xf32>
    %876 = arith.addf %875, %874 : vector<2x32xf32>
    %877 = tpu.reciprocal %876 {approx = true} : vector<2x32xf32> -> vector<2x32xf32>
    %878 = vector.extract_strided_slice %868 {offsets = [0, 32], sizes = [2, 32], strides = [1, 1]} : vector<2x192xf32> to vector<2x32xf32>
    %879 = vector.extract_strided_slice %868 {offsets = [0, 128], sizes = [2, 32], strides = [1, 1]} : vector<2x192xf32> to vector<2x32xf32>
    %880 = arith.addf %878, %879 : vector<2x32xf32>
    %cst_231 = arith.constant 0.000000e+00 : f32
    %881 = vector.broadcast %cst_231 : f32 to vector<2x32xf32>
    %882 = arith.subf %881, %880 : vector<2x32xf32>
    %883 = math.exp %882 : vector<2x32xf32>
    %cst_232 = arith.constant 1.000000e+00 : f32
    %884 = vector.broadcast %cst_232 : f32 to vector<2x32xf32>
    %885 = arith.addf %884, %883 : vector<2x32xf32>
    %886 = tpu.reciprocal %885 {approx = true} : vector<2x32xf32> -> vector<2x32xf32>
    %887 = vector.extract_strided_slice %868 {offsets = [0, 64], sizes = [2, 32], strides = [1, 1]} : vector<2x192xf32> to vector<2x32xf32>
    %888 = vector.extract_strided_slice %868 {offsets = [0, 160], sizes = [2, 32], strides = [1, 1]} : vector<2x192xf32> to vector<2x32xf32>
    %889 = arith.mulf %877, %888 : vector<2x32xf32>
    %890 = arith.addf %887, %889 : vector<2x32xf32>
    %891 = math.tanh %890 : vector<2x32xf32>
    %cst_233 = arith.constant 1.000000e+00 : f32
    %892 = vector.broadcast %cst_233 : f32 to vector<2x32xf32>
    %893 = arith.subf %892, %886 : vector<2x32xf32>
    %894 = arith.mulf %893, %891 : vector<2x32xf32>
    %895 = arith.mulf %886, %862 : vector<2x32xf32>
    %896 = arith.addf %894, %895 : vector<2x32xf32>
    %897 = vector.shape_cast %896 : vector<2x32xf32> to vector<2x1x32xf32>
    %c0_234 = arith.constant 0 : index
    %c5_235 = arith.constant 5 : index
    %c0_236 = arith.constant 0 : index
    %898 = vector.load %arg13[%c0_234, %c5_235, %c0_236] : memref<2x8x32xf32, #tpu.memory_space<vmem>>, vector<2x1x32xf32>
    tpu.vector_store %arg13[%c0_234, %c5_235, %c0_236], %897 {strides = array<i32>} : memref<2x8x32xf32, #tpu.memory_space<vmem>>, vector<2x1x32xf32>,
    %899 = tpu.concatenate %555, %691, %896 in 1 : vector<2x32xf32>, vector<2x32xf32>, vector<2x32xf32> -> vector<2x96xf32>
    %cst_237 = arith.constant dense<0.000000e+00> : vector<2x192xf32>
    %900 = tpu.matmul %899, %692, %cst_237 {dimension_numbers = #tpu.dot_dimension_numbers<[1], [0], [0], [1], [0, 0, 1, 1], [], []>} : vector<2x96xf32>, vector<96x192xf32>, vector<2x192xf32> -> vector<2x192xf32>
    %901 = vector.broadcast %693 : vector<1x192xf32> to vector<2x192xf32>
    %902 = arith.addf %900, %901 : vector<2x192xf32>
    %903 = vector.extract_strided_slice %902 {offsets = [0, 0], sizes = [2, 32], strides = [1, 1]} : vector<2x192xf32> to vector<2x32xf32>
    %904 = vector.extract_strided_slice %902 {offsets = [0, 96], sizes = [2, 32], strides = [1, 1]} : vector<2x192xf32> to vector<2x32xf32>
    %905 = arith.addf %903, %904 : vector<2x32xf32>
    %cst_238 = arith.constant 0.000000e+00 : f32
    %906 = vector.broadcast %cst_238 : f32 to vector<2x32xf32>
    %907 = arith.subf %906, %905 : vector<2x32xf32>
    %908 = math.exp %907 : vector<2x32xf32>
    %cst_239 = arith.constant 1.000000e+00 : f32
    %909 = vector.broadcast %cst_239 : f32 to vector<2x32xf32>
    %910 = arith.addf %909, %908 : vector<2x32xf32>
    %911 = tpu.reciprocal %910 {approx = true} : vector<2x32xf32> -> vector<2x32xf32>
    %912 = vector.extract_strided_slice %902 {offsets = [0, 32], sizes = [2, 32], strides = [1, 1]} : vector<2x192xf32> to vector<2x32xf32>
    %913 = vector.extract_strided_slice %902 {offsets = [0, 128], sizes = [2, 32], strides = [1, 1]} : vector<2x192xf32> to vector<2x32xf32>
    %914 = arith.addf %912, %913 : vector<2x32xf32>
    %cst_240 = arith.constant 0.000000e+00 : f32
    %915 = vector.broadcast %cst_240 : f32 to vector<2x32xf32>
    %916 = arith.subf %915, %914 : vector<2x32xf32>
    %917 = math.exp %916 : vector<2x32xf32>
    %cst_241 = arith.constant 1.000000e+00 : f32
    %918 = vector.broadcast %cst_241 : f32 to vector<2x32xf32>
    %919 = arith.addf %918, %917 : vector<2x32xf32>
    %920 = tpu.reciprocal %919 {approx = true} : vector<2x32xf32> -> vector<2x32xf32>
    %921 = vector.extract_strided_slice %902 {offsets = [0, 64], sizes = [2, 32], strides = [1, 1]} : vector<2x192xf32> to vector<2x32xf32>
    %922 = vector.extract_strided_slice %902 {offsets = [0, 160], sizes = [2, 32], strides = [1, 1]} : vector<2x192xf32> to vector<2x32xf32>
    %923 = arith.mulf %911, %922 : vector<2x32xf32>
    %924 = arith.addf %921, %923 : vector<2x32xf32>
    %925 = math.tanh %924 : vector<2x32xf32>
    %cst_242 = arith.constant 1.000000e+00 : f32
    %926 = vector.broadcast %cst_242 : f32 to vector<2x32xf32>
    %927 = arith.subf %926, %920 : vector<2x32xf32>
    %928 = arith.mulf %927, %925 : vector<2x32xf32>
    %929 = arith.mulf %920, %896 : vector<2x32xf32>
    %930 = arith.addf %928, %929 : vector<2x32xf32>
    %931 = vector.shape_cast %930 : vector<2x32xf32> to vector<2x1x32xf32>
    %c0_243 = arith.constant 0 : index
    %c6_244 = arith.constant 6 : index
    %c0_245 = arith.constant 0 : index
    %932 = vector.load %arg13[%c0_243, %c6_244, %c0_245] : memref<2x8x32xf32, #tpu.memory_space<vmem>>, vector<2x1x32xf32>
    tpu.vector_store %arg13[%c0_243, %c6_244, %c0_245], %931 {strides = array<i32>} : memref<2x8x32xf32, #tpu.memory_space<vmem>>, vector<2x1x32xf32>,
    %933 = tpu.concatenate %650, %691, %930 in 1 : vector<2x32xf32>, vector<2x32xf32>, vector<2x32xf32> -> vector<2x96xf32>
    %cst_246 = arith.constant dense<0.000000e+00> : vector<2x192xf32>
    %934 = tpu.matmul %933, %692, %cst_246 {dimension_numbers = #tpu.dot_dimension_numbers<[1], [0], [0], [1], [0, 0, 1, 1], [], []>} : vector<2x96xf32>, vector<96x192xf32>, vector<2x192xf32> -> vector<2x192xf32>
    %935 = vector.broadcast %693 : vector<1x192xf32> to vector<2x192xf32>
    %936 = arith.addf %934, %935 : vector<2x192xf32>
    %937 = vector.extract_strided_slice %936 {offsets = [0, 0], sizes = [2, 32], strides = [1, 1]} : vector<2x192xf32> to vector<2x32xf32>
    %938 = vector.extract_strided_slice %936 {offsets = [0, 96], sizes = [2, 32], strides = [1, 1]} : vector<2x192xf32> to vector<2x32xf32>
    %939 = arith.addf %937, %938 : vector<2x32xf32>
    %cst_247 = arith.constant 0.000000e+00 : f32
    %940 = vector.broadcast %cst_247 : f32 to vector<2x32xf32>
    %941 = arith.subf %940, %939 : vector<2x32xf32>
    %942 = math.exp %941 : vector<2x32xf32>
    %cst_248 = arith.constant 1.000000e+00 : f32
    %943 = vector.broadcast %cst_248 : f32 to vector<2x32xf32>
    %944 = arith.addf %943, %942 : vector<2x32xf32>
    %945 = tpu.reciprocal %944 {approx = true} : vector<2x32xf32> -> vector<2x32xf32>
    %946 = vector.extract_strided_slice %936 {offsets = [0, 32], sizes = [2, 32], strides = [1, 1]} : vector<2x192xf32> to vector<2x32xf32>
    %947 = vector.extract_strided_slice %936 {offsets = [0, 128], sizes = [2, 32], strides = [1, 1]} : vector<2x192xf32> to vector<2x32xf32>
    %948 = arith.addf %946, %947 : vector<2x32xf32>
    %cst_249 = arith.constant 0.000000e+00 : f32
    %949 = vector.broadcast %cst_249 : f32 to vector<2x32xf32>
    %950 = arith.subf %949, %948 : vector<2x32xf32>
    %951 = math.exp %950 : vector<2x32xf32>
    %cst_250 = arith.constant 1.000000e+00 : f32
    %952 = vector.broadcast %cst_250 : f32 to vector<2x32xf32>
    %953 = arith.addf %952, %951 : vector<2x32xf32>
    %954 = tpu.reciprocal %953 {approx = true} : vector<2x32xf32> -> vector<2x32xf32>
    %955 = vector.extract_strided_slice %936 {offsets = [0, 64], sizes = [2, 32], strides = [1, 1]} : vector<2x192xf32> to vector<2x32xf32>
    %956 = vector.extract_strided_slice %936 {offsets = [0, 160], sizes = [2, 32], strides = [1, 1]} : vector<2x192xf32> to vector<2x32xf32>
    %957 = arith.mulf %945, %956 : vector<2x32xf32>
    %958 = arith.addf %955, %957 : vector<2x32xf32>
    %959 = math.tanh %958 : vector<2x32xf32>
    %cst_251 = arith.constant 1.000000e+00 : f32
    %960 = vector.broadcast %cst_251 : f32 to vector<2x32xf32>
    %961 = arith.subf %960, %954 : vector<2x32xf32>
    %962 = arith.mulf %961, %959 : vector<2x32xf32>
    %963 = arith.mulf %954, %930 : vector<2x32xf32>
    %964 = arith.addf %962, %963 : vector<2x32xf32>
    %965 = vector.shape_cast %964 : vector<2x32xf32> to vector<2x1x32xf32>
    %c0_252 = arith.constant 0 : index
    %c7_253 = arith.constant 7 : index
    %c0_254 = arith.constant 0 : index
    %966 = vector.load %arg13[%c0_252, %c7_253, %c0_254] : memref<2x8x32xf32, #tpu.memory_space<vmem>>, vector<2x1x32xf32>
    tpu.vector_store %arg13[%c0_252, %c7_253, %c0_254], %965 {strides = array<i32>} : memref<2x8x32xf32, #tpu.memory_space<vmem>>, vector<2x1x32xf32>,
    return
  }
  func.func @transform_0(%arg0: i32) -> (i32, i32, i32) {
    %c0_i32 = arith.constant 0 : i32
    %c0_i32_0 = arith.constant 0 : i32
    %c0_i32_1 = arith.constant 0 : i32
    %c0_i32_2 = arith.constant 0 : i32
    return %c0_i32, %c0_i32_0, %c0_i32_1 : i32, i32, i32
  }
  func.func @transform_1(%arg0: i32) -> (i32, i32) {
    %c0_i32 = arith.constant 0 : i32
    %c0_i32_0 = arith.constant 0 : i32
    %c0_i32_1 = arith.constant 0 : i32
    return %c0_i32, %c0_i32_0 : i32, i32
  }
  func.func @transform_2(%arg0: i32) -> (i32, i32) {
    %c0_i32 = arith.constant 0 : i32
    %c0_i32_0 = arith.constant 0 : i32
    %c0_i32_1 = arith.constant 0 : i32
    return %c0_i32, %c0_i32_0 : i32, i32
  }
  func.func @transform_3(%arg0: i32) -> (i32, i32) {
    %c0_i32 = arith.constant 0 : i32
    %c0_i32_0 = arith.constant 0 : i32
    %c0_i32_1 = arith.constant 0 : i32
    return %c0_i32, %c0_i32_0 : i32, i32
  }
  func.func @transform_4(%arg0: i32) -> (i32, i32) {
    %c0_i32 = arith.constant 0 : i32
    %c0_i32_0 = arith.constant 0 : i32
    %c0_i32_1 = arith.constant 0 : i32
    return %c0_i32, %c0_i32_0 : i32, i32
  }
  func.func @transform_5(%arg0: i32) -> (i32, i32) {
    %c0_i32 = arith.constant 0 : i32
    %c0_i32_0 = arith.constant 0 : i32
    %c0_i32_1 = arith.constant 0 : i32
    return %c0_i32, %c0_i32_0 : i32, i32
  }
  func.func @transform_6(%arg0: i32) -> (i32, i32) {
    %c0_i32 = arith.constant 0 : i32
    %c0_i32_0 = arith.constant 0 : i32
    %c0_i32_1 = arith.constant 0 : i32
    return %c0_i32, %c0_i32_0 : i32, i32
  }
  func.func @transform_7(%arg0: i32) -> (i32, i32) {
    %c0_i32 = arith.constant 0 : i32
    %c0_i32_0 = arith.constant 0 : i32
    %c0_i32_1 = arith.constant 0 : i32
    return %c0_i32, %c0_i32_0 : i32, i32
  }
  func.func @transform_8(%arg0: i32) -> (i32, i32) {
    %c0_i32 = arith.constant 0 : i32
    %c0_i32_0 = arith.constant 0 : i32
    %c0_i32_1 = arith.constant 0 : i32
    return %c0_i32, %c0_i32_0 : i32, i32
  }
  func.func @transform_9(%arg0: i32) -> (i32, i32) {
    %c0_i32 = arith.constant 0 : i32
    %c0_i32_0 = arith.constant 0 : i32
    %c0_i32_1 = arith.constant 0 : i32
    return %c0_i32, %c0_i32_0 : i32, i32
  }
  func.func @transform_10(%arg0: i32) -> (i32, i32) {
    %c0_i32 = arith.constant 0 : i32
    %c0_i32_0 = arith.constant 0 : i32
    %c0_i32_1 = arith.constant 0 : i32
    return %c0_i32, %c0_i32_0 : i32, i32
  }
  func.func @transform_11(%arg0: i32) -> (i32, i32, i32) {
    %c0_i32 = arith.constant 0 : i32
    %c0_i32_0 = arith.constant 0 : i32
    %c0_i32_1 = arith.constant 0 : i32
    %c0_i32_2 = arith.constant 0 : i32
    return %c0_i32, %c0_i32_0, %c0_i32_1 : i32, i32, i32
  }
  func.func @transform_12(%arg0: i32) -> (i32, i32, i32) {
    %c0_i32 = arith.constant 0 : i32
    %c0_i32_0 = arith.constant 0 : i32
    %c0_i32_1 = arith.constant 0 : i32
    %c0_i32_2 = arith.constant 0 : i32
    return %c0_i32, %c0_i32_0, %c0_i32_1 : i32, i32, i32
  }
}

</mosaic_0001>

<llo_original>
// kernel: caption_generator_forward.1
$region0: #{caption_generator_forward.1}
  #allocation0 [shape = 'u32[]', space=smem, size = 0x4, offset = 0x4, fixed_abs, tag = 'smem constant byte address 0x4 - core index']
  #allocation1 [shape = 'u32[144,128]{1,0:T(1,128)}', space=vmem, size = 0x12000, scoped, tag = 'internal scratch']
  %s0 = inlined_call_operand.vmem [shape: f32[2,8,32], index: 0, kind: input, shape index: {}]
  %s1 = inlined_call_operand.hbm [shape: f32[16,32], index: 1, kind: input, shape index: {}]
  %s2 = inlined_call_operand.vmem [shape: f32[32,32], index: 2, kind: input, shape index: {}]
  %s3 = inlined_call_operand.hbm [shape: f32[32,32], index: 3, kind: input, shape index: {}]
  %s4 = inlined_call_operand.hbm [shape: f32[1,32], index: 4, kind: input, shape index: {}]
  %s5 = inlined_call_operand.hbm [shape: f32[96,192], index: 5, kind: input, shape index: {}]
  %s6 = inlined_call_operand.hbm [shape: f32[1,192], index: 6, kind: input, shape index: {}]
  %s7 = inlined_call_operand.vmem [shape: f32[32,16], index: 7, kind: input, shape index: {}]
  %s8 = inlined_call_operand.hbm [shape: f32[1,16], index: 8, kind: input, shape index: {}]
  %s9 = inlined_call_operand.hbm [shape: f32[96,192], index: 9, kind: input, shape index: {}]
  %s10 = inlined_call_operand.hbm [shape: f32[1,192], index: 10, kind: input, shape index: {}]
  %s11 = inlined_call_operand.hbm [shape: f32[8,2,16], index: 11, kind: output, shape index: {0}]
  %s12 = inlined_call_operand.hbm [shape: f32[2,8,32], index: 12, kind: output, shape index: {1}]
  %13 = xla_tuple %s11, %s12
  %s14 = sld [smem:[#allocation0]]
  $region94: #{caption_generator_forward.1} parent=0
    _
  %s16 = ssub.s32 1, %s14
  %s17 = scalar_select 0, %s16, %s14
  $region1: #{caption_generator_forward.1} parent=0
    #allocation2 [shape = 'u8[8192]{0}', space=vmem, size = 0x2000, scoped, tag = 'input window, operand 1, single buffered']
    #allocation3 [shape = 's32[1]{0}', space=sflag, size = 0x4, scoped, tag = 'scoped memory for caption_generator_forward.1']
    #allocation4 [shape = 's32[1]{0}', space=sflag, size = 0x4, scoped, tag = 'scoped memory for caption_generator_forward.1']
    #allocation5 [shape = 'u8[16384]{0}', space=vmem, size = 0x4000, scoped, tag = 'input window, operand 3, single buffered']
    #allocation6 [shape = 's32[1]{0}', space=sflag, size = 0x4, scoped, tag = 'scoped memory for caption_generator_forward.1']
    #allocation7 [shape = 'u8[512]{0}', space=vmem, size = 0x400, scoped, tag = 'input window, operand 4, single buffered']
    #allocation8 [shape = 'u8[98304]{0}', space=vmem, size = 0x18000, scoped, tag = 'input window, operand 5, single buffered']
    #allocation9 [shape = 's32[1]{0}', space=sflag, size = 0x4, scoped, tag = 'scoped memory for caption_generator_forward.1']
    #allocation10 [shape = 'u8[1024]{0}', space=vmem, size = 0x400, scoped, tag = 'input window, operand 6, single buffered']
    #allocation11 [shape = 'u8[512]{0}', space=vmem, size = 0x400, scoped, tag = 'input window, operand 8, single buffered']
    #allocation12 [shape = 's32[1]{0}', space=sflag, size = 0x4, scoped, tag = 'scoped memory for caption_generator_forward.1']
    #allocation13 [shape = 'u8[98304]{0}', space=vmem, size = 0x18000, scoped, tag = 'input window, operand 9, single buffered']
    #allocation14 [shape = 'u8[1024]{0}', space=vmem, size = 0x400, scoped, tag = 'input window, operand 10, single buffered']
    #allocation15 [shape = 's32[1]{0}', space=sflag, size = 0x4, scoped, tag = 'scoped memory for caption_generator_forward.1']
    #allocation16 [shape = 'u8[8192]{0}', space=vmem, size = 0x2000, scoped, tag = 'output window, operand 0, single buffered']
    #allocation17 [shape = 'u8[8192]{0}', space=vmem, size = 0x2000, scoped, tag = 'output window, operand 1, single buffered']
    #allocation18 [shape = 's32[1]{0}', space=sflag, size = 0x4, scoped, tag = 'scoped memory for caption_generator_forward.1']
    %18 = vsyncpa [#allocation3], 0
    %19 = vsyncpa [#allocation6], 0
    %20 = vsyncpa [#allocation9], 0
    %21 = vsyncpa [#allocation12], 0
    %22 = vsyncpa [#allocation15], 0
    %23 = vsyncpa [#allocation4], 0
    %24 = vsyncpa [#allocation18], 0
    // Predicated region
    $region2: #{caption_generator_forward.1} parent=1 // pred_check
      _
    $region3: #{caption_generator_forward.1} parent=1 // pred_check_branch
      %26 = sbr.rel (0) target = $region5
    $region4: #{caption_generator_forward.1} parent=1 // pred_region
      _
    $region5: #{caption_generator_forward.1} parent=1 // pred_fallthru
      _
    // Predicated region
    $region6: #{caption_generator_forward.1} parent=1 // pred_check
      _
    $region7: #{caption_generator_forward.1} parent=1 // pred_check_branch
      %28 = sbr.rel (0) target = $region9
    $region8: #{caption_generator_forward.1} parent=1 // pred_region
      %s30 = ssub.s32 256, 256
      %31 = vsyncadd [#allocation3], %s30
      %s32 = sshll.u32 [#allocation2], 4
      %s33 = int_to_ptr.vmem [resolvable:$true] %s32
      %38 = dma.hbm_to_vmem [thread:$0]  %s1, 256, %s33, [#allocation3], 128, 128, 8
    $region9: #{caption_generator_forward.1} parent=1 // pred_fallthru
      _
    // Predicated region
    $region10: #{caption_generator_forward.1} parent=1 // pred_check
      _
    $region11: #{caption_generator_forward.1} parent=1 // pred_check_branch
      %40 = sbr.rel (0) target = $region13
    $region12: #{caption_generator_forward.1} parent=1 // pred_region
      _
    $region13: #{caption_generator_forward.1} parent=1 // pred_fallthru
      _
    // Predicated region
    $region14: #{caption_generator_forward.1} parent=1 // pred_check
      _
    $region15: #{caption_generator_forward.1} parent=1 // pred_check_branch
      %42 = sbr.rel (0) target = $region17
    $region16: #{caption_generator_forward.1} parent=1 // pred_region
      %s44 = ssub.s32 512, 512
      %45 = vsyncadd [#allocation6], %s44
      %s46 = sshll.u32 [#allocation5], 4
      %s47 = int_to_ptr.vmem [resolvable:$true] %s46
      %52 = dma.hbm_to_vmem [thread:$0]  %s3, 512, %s47, [#allocation6], 128, 128, 8
    $region17: #{caption_generator_forward.1} parent=1 // pred_fallthru
      _
    // Predicated region
    $region18: #{caption_generator_forward.1} parent=1 // pred_check
      _
    $region19: #{caption_generator_forward.1} parent=1 // pred_check_branch
      %54 = sbr.rel (0) target = $region21
    $region20: #{caption_generator_forward.1} parent=1 // pred_region
      %s56 = ssub.s32 16, 16
      %57 = vsyncadd [#allocation6], %s56
      %s59 = sshll.u32 [#allocation7], 4
      %s60 = int_to_ptr.vmem [resolvable:$true] %s59
      %62 = dma.hbm_to_vmem [thread:$0]  %s4, 16, %s60, [#allocation6]
    $region21: #{caption_generator_forward.1} parent=1 // pred_fallthru
      _
    // Predicated region
    $region22: #{caption_generator_forward.1} parent=1 // pred_check
      _
    $region23: #{caption_generator_forward.1} parent=1 // pred_check_branch
      %64 = sbr.rel (0) target = $region25
    $region24: #{caption_generator_forward.1} parent=1 // pred_region
      %s66 = ssub.s32 3072, 3072
      %67 = vsyncadd [#allocation9], %s66
      %s68 = sshll.u32 [#allocation8], 4
      %s69 = int_to_ptr.vmem [resolvable:$true] %s68
      %74 = dma.hbm_to_vmem [thread:$0]  %s5, 3072, %s69, [#allocation9], 256, 256, 16
    $region25: #{caption_generator_forward.1} parent=1 // pred_fallthru
      _
    // Predicated region
    $region26: #{caption_generator_forward.1} parent=1 // pred_check
      _
    $region27: #{caption_generator_forward.1} parent=1 // pred_check_branch
      %76 = sbr.rel (0) target = $region29
    $region28: #{caption_generator_forward.1} parent=1 // pred_region
      %s78 = ssub.s32 32, 32
      %79 = vsyncadd [#allocation9], %s78
      %s81 = sshll.u32 [#allocation10], 4
      %s82 = int_to_ptr.vmem [resolvable:$true] %s81
      %84 = dma.hbm_to_vmem [thread:$0]  %s6, 32, %s82, [#allocation9]
    $region29: #{caption_generator_forward.1} parent=1 // pred_fallthru
      _
    // Predicated region
    $region30: #{caption_generator_forward.1} parent=1 // pred_check
      _
    $region31: #{caption_generator_forward.1} parent=1 // pred_check_branch
      %86 = sbr.rel (0) target = $region33
    $region32: #{caption_generator_forward.1} parent=1 // pred_region
      _
    $region33: #{caption_generator_forward.1} parent=1 // pred_fallthru
      _
    // Predicated region
    $region34: #{caption_generator_forward.1} parent=1 // pred_check
      _
    $region35: #{caption_generator_forward.1} parent=1 // pred_check_branch
      %88 = sbr.rel (0) target = $region37
    $region36: #{caption_generator_forward.1} parent=1 // pred_region
      %s90 = ssub.s32 16, 16
      %91 = vsyncadd [#allocation12], %s90
      %s93 = sshll.u32 [#allocation11], 4
      %s94 = int_to_ptr.vmem [resolvable:$true] %s93
      %96 = dma.hbm_to_vmem [thread:$0]  %s8, 16, %s94, [#allocation12]
    $region37: #{caption_generator_forward.1} parent=1 // pred_fallthru
      _
    // Predicated region
    $region38: #{caption_generator_forward.1} parent=1 // pred_check
      _
    $region39: #{caption_generator_forward.1} parent=1 // pred_check_branch
      %98 = sbr.rel (0) target = $region41
    $region40: #{caption_generator_forward.1} parent=1 // pred_region
      %s100 = ssub.s32 3072, 3072
      %101 = vsyncadd [#allocation12], %s100
      %s102 = sshll.u32 [#allocation13], 4
      %s103 = int_to_ptr.vmem [resolvable:$true] %s102
      %108 = dma.hbm_to_vmem [thread:$0]  %s9, 3072, %s103, [#allocation12], 256, 256, 16
    $region41: #{caption_generator_forward.1} parent=1 // pred_fallthru
      _
    // Predicated region
    $region42: #{caption_generator_forward.1} parent=1 // pred_check
      _
    $region43: #{caption_generator_forward.1} parent=1 // pred_check_branch
      %110 = sbr.rel (0) target = $region45
    $region44: #{caption_generator_forward.1} parent=1 // pred_region
      %s112 = ssub.s32 32, 32
      %113 = vsyncadd [#allocation15], %s112
      %s115 = sshll.u32 [#allocation14], 4
      %s116 = int_to_ptr.vmem [resolvable:$true] %s115
      %118 = dma.hbm_to_vmem [thread:$0]  %s10, 32, %s116, [#allocation15]
    $region45: #{caption_generator_forward.1} parent=1 // pred_fallthru
      _
    // Predicated region
    $region46: #{caption_generator_forward.1} parent=1 // pred_check
      _
    $region47: #{caption_generator_forward.1} parent=1 // pred_check_branch
      %120 = sbr.rel (0) target = $region49
    $region48: #{caption_generator_forward.1} parent=1 // pred_region
      %121 = dma.done [#allocation3], 256
    $region49: #{caption_generator_forward.1} parent=1 // pred_fallthru
      _
    // Predicated region
    $region50: #{caption_generator_forward.1} parent=1 // pred_check
      _
    $region51: #{caption_generator_forward.1} parent=1 // pred_check_branch
      %123 = sbr.rel (0) target = $region53
    $region52: #{caption_generator_forward.1} parent=1 // pred_region
      %124 = dma.done [#allocation6], 512
    $region53: #{caption_generator_forward.1} parent=1 // pred_fallthru
      _
    // Predicated region
    $region54: #{caption_generator_forward.1} parent=1 // pred_check
      _
    $region55: #{caption_generator_forward.1} parent=1 // pred_check_branch
      %126 = sbr.rel (0) target = $region57
    $region56: #{caption_generator_forward.1} parent=1 // pred_region
      %127 = dma.done [#allocation6], 16
    $region57: #{caption_generator_forward.1} parent=1 // pred_fallthru
      _
    // Predicated region
    $region58: #{caption_generator_forward.1} parent=1 // pred_check
      _
    $region59: #{caption_generator_forward.1} parent=1 // pred_check_branch
      %129 = sbr.rel (0) target = $region61
    $region60: #{caption_generator_forward.1} parent=1 // pred_region
      %130 = dma.done [#allocation9], 3072
    $region61: #{caption_generator_forward.1} parent=1 // pred_fallthru
      _
    // Predicated region
    $region62: #{caption_generator_forward.1} parent=1 // pred_check
      _
    $region63: #{caption_generator_forward.1} parent=1 // pred_check_branch
      %132 = sbr.rel (0) target = $region65
    $region64: #{caption_generator_forward.1} parent=1 // pred_region
      %133 = dma.done [#allocation9], 32
    $region65: #{caption_generator_forward.1} parent=1 // pred_fallthru
      _
    // Predicated region
    $region66: #{caption_generator_forward.1} parent=1 // pred_check
      _
    $region67: #{caption_generator_forward.1} parent=1 // pred_check_branch
      %135 = sbr.rel (0) target = $region69
    $region68: #{caption_generator_forward.1} parent=1 // pred_region
      %136 = dma.done [#allocation12], 16
    $region69: #{caption_generator_forward.1} parent=1 // pred_fallthru
      _
    // Predicated region
    $region70: #{caption_generator_forward.1} parent=1 // pred_check
      _
    $region71: #{caption_generator_forward.1} parent=1 // pred_check_branch
      %138 = sbr.rel (0) target = $region73
    $region72: #{caption_generator_forward.1} parent=1 // pred_region
      %139 = dma.done [#allocation12], 3072
    $region73: #{caption_generator_forward.1} parent=1 // pred_fallthru
      _
    // Predicated region
    $region74: #{caption_generator_forward.1} parent=1 // pred_check
      _
    $region75: #{caption_generator_forward.1} parent=1 // pred_check_branch
      %141 = sbr.rel (0) target = $region77
    $region76: #{caption_generator_forward.1} parent=1 // pred_region
      %142 = dma.done [#allocation15], 32
    $region77: #{caption_generator_forward.1} parent=1 // pred_fallthru
      _
    %v143 = vld [vmem:[%s0] sm:$0xff]
    %v144 = vld [vmem:[%s0 + $0x8] sm:$0xff]
    %v145 = vld [vmem:[#allocation2] sm:$0xff]
    %v146 = vld [vmem:[#allocation2 + $0x8] sm:$0xff]
    %v147 = vld [vmem:[%s2] sm:$0xff]
    %v148 = vld [vmem:[%s2 + $0x8] sm:$0xff]
    %v149 = vld [vmem:[%s2 + $0x10] sm:$0xff]
    %v150 = vld [vmem:[%s2 + $0x18] sm:$0xff]
    %v151 = vld [vmem:[#allocation7] sm:$0x1]
    %v152 = vld [vmem:[#allocation8] sm:$0xff]
    %v153 = vld [vmem:[#allocation8 + $0x8] sm:$0xff]
    %v154 = vld [vmem:[#allocation8 + $0x10] sm:$0xff]
    %v155 = vld [vmem:[#allocation8 + $0x18] sm:$0xff]
    %v156 = vld [vmem:[#allocation8 + $0x20] sm:$0xff]
    %v157 = vld [vmem:[#allocation8 + $0x28] sm:$0xff]
    %v158 = vld [vmem:[#allocation8 + $0x30] sm:$0xff]
    %v159 = vld [vmem:[#allocation8 + $0x38] sm:$0xff]
    %v160 = vld [vmem:[#allocation8 + $0x40] sm:$0xff]
    %v161 = vld [vmem:[#allocation8 + $0x48] sm:$0xff]
    %v162 = vld [vmem:[#allocation8 + $0x50] sm:$0xff]
    %v163 = vld [vmem:[#allocation8 + $0x58] sm:$0xff]
    %v164 = vld [vmem:[#allocation8 + $0x60] sm:$0xff]
    %v165 = vld [vmem:[#allocation8 + $0x68] sm:$0xff]
    %v166 = vld [vmem:[#allocation8 + $0x70] sm:$0xff]
    %v167 = vld [vmem:[#allocation8 + $0x78] sm:$0xff]
    %v168 = vld [vmem:[#allocation8 + $0x80] sm:$0xff]
    %v169 = vld [vmem:[#allocation8 + $0x88] sm:$0xff]
    %v170 = vld [vmem:[#allocation8 + $0x90] sm:$0xff]
    %v171 = vld [vmem:[#allocation8 + $0x98] sm:$0xff]
    %v172 = vld [vmem:[#allocation8 + $0xa0] sm:$0xff]
    %v173 = vld [vmem:[#allocation8 + $0xa8] sm:$0xff]
    %v174 = vld [vmem:[#allocation8 + $0xb0] sm:$0xff]
    %v175 = vld [vmem:[#allocation8 + $0xb8] sm:$0xff]
    %v176 = vld [vmem:[#allocation10] sm:$0x3]
    %v177 = vld [vmem:[%s7] sm:$0xff]
    %v178 = vld [vmem:[%s7 + $0x8] sm:$0xff]
    %v179 = vld [vmem:[%s7 + $0x10] sm:$0xff]
    %v180 = vld [vmem:[%s7 + $0x18] sm:$0xff]
    %v181 = vld [vmem:[#allocation11] sm:$0x1]
    %v182 = vld [vmem:[#allocation5] sm:$0xff]
    %v183 = vld [vmem:[#allocation5 + $0x8] sm:$0xff]
    %v184 = vld [vmem:[#allocation5 + $0x10] sm:$0xff]
    %v185 = vld [vmem:[#allocation5 + $0x18] sm:$0xff]
    %vm186 = vcmask 261120
    %v188 = vsel %vm186, %v143, 0
    %v191 = vsel %vm186, %v144, 0
    %193 = vmatprep.subr.mxu0 0.0
    %194 = vmatpush1.msra.mxu0 0.0
    %195 = vmatprep.subr.mxu0 0.0
    %196 = vmatpush1.msra.mxu0 0.0
    %197 = vmatprep.subr.mxu0 0.0
    %198 = vmatpush1.msra.mxu0 0.0
    %199 = vmatprep.subr.mxu0 0.0
    %200 = vmatpush1.msra.mxu0 0.0
    %201 = vmatprep.subr.mxu0 0.0
    %202 = vmatpush1.msra.mxu0 0.0
    %203 = vmatprep.subr.mxu0 0.0
    %204 = vmatpush1.msra.mxu0 0.0
    %205 = vmatprep.subr.mxu0 0.0
    %206 = vmatpush1.msra.mxu0 0.0
    %207 = vmatprep.subr.mxu0 0.0
    %208 = vmatpush1.msra.mxu0 0.0
    %209 = vmatprep.subr.mxu0 0.0
    %210 = vmatpush1.msra.mxu0 0.0
    %211 = vmatprep.subr.mxu0 0.0
    %212 = vmatpush1.msra.mxu0 0.0
    %213 = vmatprep.subr.mxu0 0.0
    %214 = vmatpush1.msra.mxu0 0.0
    %215 = vmatprep.subr.mxu0 0.0
    %216 = vmatpush1.msra.mxu0 0.0
    %217 = vmatprep.subr.mxu0 0.0
    %218 = vmatpush1.msra.mxu0 %v185
    %219 = vmatprep.subr.mxu0 0.0
    %220 = vmatpush1.msra.mxu0 %v184
    %221 = vmatprep.subr.mxu0 0.0
    %222 = vmatpush1.msra.mxu0 %v183
    %223 = vmatprep.subr.mxu0 0.0
    %224 = vmatpush1.msra.mxu0 %v182
    %225 = vmatprep.subr.mxu0 0.0
    %226 = vmatpush2.msra.mxu0 0.0
    %227 = vmatprep.subr.mxu0 0.0
    %228 = vmatpush2.msra.mxu0 0.0
    %229 = vmatprep.subr.mxu0 0.0
    %230 = vmatpush2.msra.mxu0 0.0
    %231 = vmatprep.subr.mxu0 0.0
    %232 = vmatpush2.msra.mxu0 0.0
    %233 = vmatprep.subr.mxu0 0.0
    %234 = vmatpush2.msra.mxu0 0.0
    %235 = vmatprep.subr.mxu0 0.0
    %236 = vmatpush2.msra.mxu0 0.0
    %237 = vmatprep.subr.mxu0 0.0
    %238 = vmatpush2.msra.mxu0 0.0
    %239 = vmatprep.subr.mxu0 0.0
    %240 = vmatpush2.msra.mxu0 0.0
    %241 = vmatprep.subr.mxu0 0.0
    %242 = vmatpush2.msra.mxu0 0.0
    %243 = vmatprep.subr.mxu0 0.0
    %244 = vmatpush2.msra.mxu0 0.0
    %245 = vmatprep.subr.mxu0 0.0
    %246 = vmatpush2.msra.mxu0 0.0
    %247 = vmatprep.subr.mxu0 0.0
    %248 = vmatpush2.msra.mxu0 0.0
    %249 = vmatprep.subr.mxu0 0.0
    %250 = vmatpush2.msra.mxu0 0.0
    %251 = vmatprep.subr.mxu0 0.0
    %252 = vmatpush2.msra.mxu0 0.0
    %253 = vmatprep.subr.mxu0 0.0
    %254 = vmatpush2.msra.mxu0 0.0
    %255 = vmatprep.subr.mxu0 0.0
    %256 = vmatpush2.msra.mxu0 0.0
    %257 = vmatprep.mubr.f32.mxu0 0.0
    %258 = vmatmul.mubr.f32.gmra.mxu0 %v188
    %v259 = vpop.f32.mrf.mxu0
    %v260 = vadd.f32 0.0, %v259
    %v261 = vpop.f32.mrf.mxu0
    %262 = vmatprep.mubr.f32.mxu0 0.0
    %263 = vmatmul.mubr.f32.gmra.mxu0 %v191
    %v264 = vpop.f32.mrf.mxu0
    %v265 = vadd.f32 0.0, %v264
    %v266 = vpop.f32.mrf.mxu0
    %267 = vdwg.mxu0
    %vm268 = vcmask 123904
    %269 = vst.msk [vmem:[#allocation16] sm:$0x3] %vm268, 0.0
    %v270 = vlaneseq
    %v271 = vand.u32 %v270, 127
    %vm272 = vcmp.eq.s32.totalorder %v271, 1
    %v273 = vsel %vm272, 1, 0
    %v274 = vcvt.s32.f32 %v273
    %vm275 = vcmask 130048
    %v277 = vsel %vm275, %v274, 0
    %279 = vmatprep.subr.mxu0 0.0
    %280 = vmatpush1.msra.mxu0 0.0
    %281 = vmatprep.subr.mxu0 0.0
    %282 = vmatpush1.msra.mxu0 0.0
    %283 = vmatprep.subr.mxu0 0.0
    %284 = vmatpush1.msra.mxu0 0.0
    %285 = vmatprep.subr.mxu0 0.0
    %286 = vmatpush1.msra.mxu0 0.0
    %287 = vmatprep.subr.mxu0 0.0
    %288 = vmatpush1.msra.mxu0 0.0
    %289 = vmatprep.subr.mxu0 0.0
    %290 = vmatpush1.msra.mxu0 0.0
    %291 = vmatprep.subr.mxu0 0.0
    %292 = vmatpush1.msra.mxu0 0.0
    %293 = vmatprep.subr.mxu0 0.0
    %294 = vmatpush1.msra.mxu0 0.0
    %295 = vmatprep.subr.mxu0 0.0
    %296 = vmatpush1.msra.mxu0 0.0
    %297 = vmatprep.subr.mxu0 0.0
    %298 = vmatpush1.msra.mxu0 0.0
    %299 = vmatprep.subr.mxu0 0.0
    %300 = vmatpush1.msra.mxu0 0.0
    %301 = vmatprep.subr.mxu0 0.0
    %302 = vmatpush1.msra.mxu0 0.0
    %303 = vmatprep.subr.mxu0 0.0
    %304 = vmatpush1.msra.mxu0 0.0
    %305 = vmatprep.subr.mxu0 0.0
    %306 = vmatpush1.msra.mxu0 0.0
    %307 = vmatprep.subr.mxu0 0.0
    %308 = vmatpush1.msra.mxu0 %v146
    %309 = vmatprep.subr.mxu0 0.0
    %310 = vmatpush1.msra.mxu0 %v145
    %311 = vmatprep.subr.mxu0 0.0
    %312 = vmatpush2.msra.mxu0 0.0
    %313 = vmatprep.subr.mxu0 0.0
    %314 = vmatpush2.msra.mxu0 0.0
    %315 = vmatprep.subr.mxu0 0.0
    %316 = vmatpush2.msra.mxu0 0.0
    %317 = vmatprep.subr.mxu0 0.0
    %318 = vmatpush2.msra.mxu0 0.0
    %319 = vmatprep.subr.mxu0 0.0
    %320 = vmatpush2.msra.mxu0 0.0
    %321 = vmatprep.subr.mxu0 0.0
    %322 = vmatpush2.msra.mxu0 0.0
    %323 = vmatprep.subr.mxu0 0.0
    %324 = vmatpush2.msra.mxu0 0.0
    %325 = vmatprep.subr.mxu0 0.0
    %326 = vmatpush2.msra.mxu0 0.0
    %327 = vmatprep.subr.mxu0 0.0
    %328 = vmatpush2.msra.mxu0 0.0
    %329 = vmatprep.subr.mxu0 0.0
    %330 = vmatpush2.msra.mxu0 0.0
    %331 = vmatprep.subr.mxu0 0.0
    %332 = vmatpush2.msra.mxu0 0.0
    %333 = vmatprep.subr.mxu0 0.0
    %334 = vmatpush2.msra.mxu0 0.0
    %335 = vmatprep.subr.mxu0 0.0
    %336 = vmatpush2.msra.mxu0 0.0
    %337 = vmatprep.subr.mxu0 0.0
    %338 = vmatpush2.msra.mxu0 0.0
    %339 = vmatprep.subr.mxu0 0.0
    %340 = vmatpush2.msra.mxu0 0.0
    %341 = vmatprep.subr.mxu0 0.0
    %342 = vmatpush2.msra.mxu0 0.0
    %343 = vmatprep.mubr.f32.mxu0 0.0
    %344 = vmatmul.mubr.f32.gmra.mxu0 %v277
    %v345 = vpop.f32.mrf.mxu0
    %v346 = vadd.f32 0.0, %v345
    %v347 = vpop.f32.mrf.mxu0
    %348 = vdwg.mxu0
    %v350 = vsel %vm186, 0.0, 0
    %352 = vmatprep.subr.mxu0 0.0
    %353 = vmatpush1.msra.mxu0 0.0
    %354 = vmatprep.subr.mxu0 0.0
    %355 = vmatpush1.msra.mxu0 0.0
    %356 = vmatprep.subr.mxu0 0.0
    %357 = vmatpush1.msra.mxu0 0.0
    %358 = vmatprep.subr.mxu0 0.0
    %359 = vmatpush1.msra.mxu0 0.0
    %360 = vmatprep.subr.mxu0 0.0
    %361 = vmatpush1.msra.mxu0 0.0
    %362 = vmatprep.subr.mxu0 0.0
    %363 = vmatpush1.msra.mxu0 0.0
    %364 = vmatprep.subr.mxu0 0.0
    %365 = vmatpush1.msra.mxu0 0.0
    %366 = vmatprep.subr.mxu0 0.0
    %367 = vmatpush1.msra.mxu0 0.0
    %368 = vmatprep.subr.mxu0 0.0
    %369 = vmatpush1.msra.mxu0 0.0
    %370 = vmatprep.subr.mxu0 0.0
    %371 = vmatpush1.msra.mxu0 0.0
    %372 = vmatprep.subr.mxu0 0.0
    %373 = vmatpush1.msra.mxu0 0.0
    %374 = vmatprep.subr.mxu0 0.0
    %375 = vmatpush1.msra.mxu0 0.0
    %376 = vmatprep.subr.mxu0 0.0
    %377 = vmatpush1.msra.mxu0 %v150
    %378 = vmatprep.subr.mxu0 0.0
    %379 = vmatpush1.msra.mxu0 %v149
    %380 = vmatprep.subr.mxu0 0.0
    %381 = vmatpush1.msra.mxu0 %v148
    %382 = vmatprep.subr.mxu0 0.0
    %383 = vmatpush1.msra.mxu0 %v147
    %384 = vmatprep.subr.mxu0 0.0
    %385 = vmatpush2.msra.mxu0 0.0
    %386 = vmatprep.subr.mxu0 0.0
    %387 = vmatpush2.msra.mxu0 0.0
    %388 = vmatprep.subr.mxu0 0.0
    %389 = vmatpush2.msra.mxu0 0.0
    %390 = vmatprep.subr.mxu0 0.0
    %391 = vmatpush2.msra.mxu0 0.0
    %392 = vmatprep.subr.mxu0 0.0
    %393 = vmatpush2.msra.mxu0 0.0
    %394 = vmatprep.subr.mxu0 0.0
    %395 = vmatpush2.msra.mxu0 0.0
    %396 = vmatprep.subr.mxu0 0.0
    %397 = vmatpush2.msra.mxu0 0.0
    %398 = vmatprep.subr.mxu0 0.0
    %399 = vmatpush2.msra.mxu0 0.0
    %400 = vmatprep.subr.mxu0 0.0
    %401 = vmatpush2.msra.mxu0 0.0
    %402 = vmatprep.subr.mxu0 0.0
    %403 = vmatpush2.msra.mxu0 0.0
    %404 = vmatprep.subr.mxu0 0.0
    %405 = vmatpush2.msra.mxu0 0.0
    %406 = vmatprep.subr.mxu0 0.0
    %407 = vmatpush2.msra.mxu0 0.0
    %408 = vmatprep.subr.mxu0 0.0
    %409 = vmatpush2.msra.mxu0 0.0
    %410 = vmatprep.subr.mxu0 0.0
    %411 = vmatpush2.msra.mxu0 0.0
    %412 = vmatprep.subr.mxu0 0.0
    %413 = vmatpush2.msra.mxu0 0.0
    %414 = vmatprep.subr.mxu0 0.0
    %415 = vmatpush2.msra.mxu0 0.0
    %416 = vmatprep.mubr.f32.mxu0 0.0
    %417 = vmatmul.mubr.f32.gmra.mxu0 %v350
    %v418 = vpop.f32.mrf.mxu0
    %v419 = vadd.f32 0.0, %v418
    %v420 = vpop.f32.mrf.mxu0
    %421 = vdwg.mxu0
    %v424 = vunpack.c.l.s4 1966171168
    %v425 = vunpack.c.0.s8 %v424
    %v426 = vlaneseq
    %v427 = vshrl.u32 %v426, 7
    %v428 = vsub.s32 %v425, %v427
    %v429 = vrot.slane %v419, %v428
    %v430 = vcombine.high %v429, %v429
    %v432 = vunpack.c.l.s4 1966171168
    %v433 = vunpack.c.0.s8 %v432
    %v434 = vlaneseq
    %v435 = vshrl.u32 %v434, 7
    %v436 = vsub.s32 %v433, %v435
    %v437 = vrot.slane %v429, %v436
    %v439 = vunpack.c.l.s4 1966171168
    %v440 = vunpack.c.0.s8 %v439
    %v441 = vlaneseq
    %v442 = vshrl.u32 %v441, 7
    %v443 = vsub.s32 %v440, %v442
    %v444 = vrot.slane %v430, %v443
    %v445 = vlaneseq
    %v446 = vshrl.u32 %v445, 7
    %v447 = vsub.s32 0, %v446
    %v448 = vrot.slane %v437, %v447
    %v449 = vlaneseq
    %v450 = vshrl.u32 %v449, 7
    %v451 = vsub.s32 0, %v450
    %v452 = vrot.slane %v444, %v451
    %v455 = vadd.f32 %v260, %v448
    %v456 = vadd.f32 %v265, %v452
    %v457 = vtanh.pop %v455
    %v458 = vtanh.pop %v456
    %v460 = vlaneseq
    %v461 = vshrl.u32 %v460, 7
    %v462 = vsub.s32 0, %v461
    %v463 = vrot.slane %v151, %v462
    %v465 = vmul.f32 %v457, %v463
    %v466 = vmul.f32 %v458, %v463
    %v467 = vsel %vm186, %v465, 0.0
    %468 = vadd.xlane.f32.xlu0 %v467
    %v469 = vpop.xlane.xlu0 %468
    %v470 = vsel %vm186, %v466, 0.0
    %471 = vadd.xlane.f32.xlu0 %v470
    %v472 = vpop.xlane.xlu0 %471
    %v475 = vlaneseq
    %v476 = vshrl.u32 %v475, 7
    %v477 = vsub.s32 %v271, %v476
    %v478 = vrot.slane %v469, %v477
    %v479 = vlaneseq
    %v480 = vshrl.u32 %v479, 7
    %v481 = vsub.s32 %v271, %v480
    %v482 = vrot.slane %v472, %v481
    %vm483 = vcmask 1041409
    %v484 = vsel %vm483, %v482, %v478
    %vm486 = vcmask 58368
    %v487 = vsel %vm486, %v484, -inf
    %488 = vmax.xlane.f32.xlu0 %v487
    %v489 = vpop.xlane.xlu0 %488
    %v491 = vlaneseq
    %v492 = vshrl.u32 %v491, 7
    %v493 = vsub.s32 0, %v492
    %v494 = vrot.slane %v489, %v493
    %v495 = vlaneseq
    %v496 = vshrl.u32 %v495, 7
    %v497 = vsub.s32 1, %v496
    %v498 = vrot.slane %v489, %v497
    %v501 = vsub.f32 %v469, %v494
    %v502 = vsub.f32 %v472, %v498
    %v503 = vmul.f32 %v501, 1.442695
    %v504 = vpow.pop %v503
    %v505 = vmul.f32 %v502, 1.442695
    %v506 = vpow.pop %v505
    %509 = vset.pattern.permute.xlu0 0
    %510 = vperm.xlu0 %509, %v504
    %v511 = vpop.permute.xlu0 %510
    %512 = vset.pattern.permute.xlu0 0
    %513 = vperm.xlu0 %512, %v506
    %v514 = vpop.permute.xlu0 %513
    %v515 = vlaneseq
    %v516 = vshrl.u32 %v515, 7
    %v517 = vsub.s32 %v271, %v516
    %v518 = vrot.slane %v511, %v517
    %v519 = vlaneseq
    %v520 = vshrl.u32 %v519, 7
    %v521 = vsub.s32 %v271, %v520
    %v522 = vrot.slane %v514, %v521
    %v523 = vsel %vm483, %v522, %v518
    %v525 = vsel %vm486, %v523, 0.0
    %526 = vadd.xlane.f32.xlu0 %v525
    %v527 = vpop.xlane.xlu0 %526
    %v528 = vrcp.pop %v527
    %v530 = vlaneseq
    %v531 = vshrl.u32 %v530, 7
    %v532 = vsub.s32 0, %v531
    %v533 = vrot.slane %v528, %v532
    %v534 = vlaneseq
    %v535 = vshrl.u32 %v534, 7
    %v536 = vsub.s32 1, %v535
    %v537 = vrot.slane %v528, %v536
    %v540 = vmul.f32 %v504, %v533
    %v541 = vmul.f32 %v506, %v537
    %543 = vset.pattern.permute.xlu0 0
    %544 = vperm.xlu0 %543, %v540
    %v545 = vpop.permute.xlu0 %544
    %548 = vset.pattern.permute.xlu0 0
    %549 = vperm.xlu0 %548, %v541
    %v550 = vpop.permute.xlu0 %549
    %v552 = vmul.f32 %v545, %v143
    %v553 = vmul.f32 %v550, %v144
    %v554 = vsel %vm186, %v552, 0.0
    %v555 = vrot.slane %v554, 4
    %v556 = vadd.f32 %v554, %v555
    %v557 = vrot.slane %v556, 2
    %v558 = vadd.f32 %v556, %v557
    %v559 = vrot.slane %v558, 1
    %v560 = vadd.f32 %v558, %v559
    %v561 = vsel %vm186, %v553, 0.0
    %v562 = vrot.slane %v561, 4
    %v563 = vadd.f32 %v561, %v562
    %v564 = vrot.slane %v563, 2
    %v565 = vadd.f32 %v563, %v564
    %v566 = vrot.slane %v565, 1
    %v567 = vadd.f32 %v565, %v566
    %v570 = vsel %vm483, %v567, %v560
    %571 = vrot.lane.b32.xlu0 %v570, 32
    %v572 = vpop.permute.xlu0 %571
    %v574 = vsel %vm186, %v346, %v572
    %vm575 = vcmask 523264
    %v576 = vsel %vm575, %v574, 0.0
    %v578 = vlaneseq
    %v579 = vshrl.u32 %v578, 7
    %v580 = vsub.s32 0, %v579
    %v581 = vrot.slane %v176, %v580
    %v582 = vlaneseq
    %v583 = vshrl.u32 %v582, 7
    %v584 = vsub.s32 1, %v583
    %v585 = vrot.slane %v176, %v584
    %vm588 = vcmask 785408
    %v590 = vsel %vm588, %v576, 0
    %592 = vmatprep.subr.mxu0 0.0
    %593 = vmatpush1.msra.mxu0 0.0
    %594 = vmatprep.subr.mxu0 0.0
    %595 = vmatpush1.msra.mxu0 0.0
    %596 = vmatprep.subr.mxu0 0.0
    %597 = vmatpush1.msra.mxu0 0.0
    %598 = vmatprep.subr.mxu0 0.0
    %599 = vmatpush1.msra.mxu0 0.0
    %600 = vmatprep.subr.mxu0 %v175
    %601 = vmatpush1.msra.mxu0 %v174
    %602 = vmatprep.subr.mxu0 %v173
    %603 = vmatpush1.msra.mxu0 %v172
    %604 = vmatprep.subr.mxu0 %v171
    %605 = vmatpush1.msra.mxu0 %v170
    %606 = vmatprep.subr.mxu0 %v169
    %607 = vmatpush1.msra.mxu0 %v168
    %608 = vmatprep.subr.mxu0 %v167
    %609 = vmatpush1.msra.mxu0 %v166
    %610 = vmatprep.subr.mxu0 %v165
    %611 = vmatpush1.msra.mxu0 %v164
    %612 = vmatprep.subr.mxu0 %v163
    %613 = vmatpush1.msra.mxu0 %v162
    %614 = vmatprep.subr.mxu0 %v161
    %615 = vmatpush1.msra.mxu0 %v160
    %616 = vmatprep.subr.mxu0 %v159
    %617 = vmatpush1.msra.mxu0 %v158
    %618 = vmatprep.subr.mxu0 %v157
    %619 = vmatpush1.msra.mxu0 %v156
    %620 = vmatprep.subr.mxu0 %v155
    %621 = vmatpush1.msra.mxu0 %v154
    %622 = vmatprep.subr.mxu0 %v153
    %623 = vmatpush1.msra.mxu0 %v152
    %624 = vmatprep.subr.mxu0 0.0
    %625 = vmatpush2.msra.mxu0 0.0
    %626 = vmatprep.subr.mxu0 0.0
    %627 = vmatpush2.msra.mxu0 0.0
    %628 = vmatprep.subr.mxu0 0.0
    %629 = vmatpush2.msra.mxu0 0.0
    %630 = vmatprep.subr.mxu0 0.0
    %631 = vmatpush2.msra.mxu0 0.0
    %632 = vmatprep.subr.mxu0 0.0
    %633 = vmatpush2.msra.mxu0 0.0
    %634 = vmatprep.subr.mxu0 0.0
    %635 = vmatpush2.msra.mxu0 0.0
    %636 = vmatprep.subr.mxu0 0.0
    %637 = vmatpush2.msra.mxu0 0.0
    %638 = vmatprep.subr.mxu0 0.0
    %639 = vmatpush2.msra.mxu0 0.0
    %640 = vmatprep.subr.mxu0 0.0
    %641 = vmatpush2.msra.mxu0 0.0
    %642 = vmatprep.subr.mxu0 0.0
    %643 = vmatpush2.msra.mxu0 0.0
    %644 = vmatprep.subr.mxu0 0.0
    %645 = vmatpush2.msra.mxu0 0.0
    %646 = vmatprep.subr.mxu0 0.0
    %647 = vmatpush2.msra.mxu0 0.0
    %648 = vmatprep.subr.mxu0 0.0
    %649 = vmatpush2.msra.mxu0 0.0
    %650 = vmatprep.subr.mxu0 0.0
    %651 = vmatpush2.msra.mxu0 0.0
    %652 = vmatprep.subr.mxu0 0.0
    %653 = vmatpush2.msra.mxu0 0.0
    %654 = vmatprep.subr.mxu0 0.0
    %655 = vmatpush2.msra.mxu0 0.0
    %656 = vmatprep.mubr.f32.mxu0 0.0
    %657 = vmatmul.mubr.f32.gmra.mxu0 %v590
    %v658 = vpop.f32.mrf.mxu0
    %v659 = vadd.f32 %v581, %v658
    %v660 = vpop.f32.mrf.mxu0
    %v661 = vadd.f32 %v585, %v660
    %662 = vdwg.mxu0
    %664 = vrot.lane.b32.xlu0 %v659, 32
    %v665 = vpop.permute.xlu0 %664
    %v667 = vadd.f32 %v659, %v665
    %v668 = vsub.f32 0.0, %v667
    %v669 = vmul.f32 %v668, 1.442695
    %v670 = vpow.pop %v669
    %v671 = vadd.f32 %v670, 1.0
    %v672 = vrcp.pop %v671
    %674 = vrot.lane.b32.xlu0 %v661, 32
    %v675 = vpop.permute.xlu0 %674
    %v677 = vadd.f32 %v659, %v675
    %v678 = vsub.f32 0.0, %v677
    %v679 = vmul.f32 %v678, 1.442695
    %v680 = vpow.pop %v679
    %v681 = vadd.f32 %v680, 1.0
    %v682 = vrcp.pop %v681
    %683 = vrot.lane.b32.xlu0 %v661, 96
    %v684 = vpop.permute.xlu0 %683
    %v686 = vmul.f32 %v672, %v684
    %688 = vrot.lane.b32.xlu0 %v686, 64
    %v689 = vpop.permute.xlu0 %688
    %v691 = vadd.f32 %v659, %v689
    %v692 = vtanh.pop %v691
    %v693 = vsub.f32 1.0, %v682
    %695 = vrot.lane.b32.xlu0 %v692, 96
    %v696 = vpop.permute.xlu0 %695
    %v698 = vmul.f32 %v693, %v696
    %v699 = vmul.f32 %v682, 0.0
    %v700 = vadd.f32 %v698, %v699
    %v702 = vlaneseq
    %v703 = vshrl.u32 %v702, 7
    %v704 = vsub.s32 0, %v703
    %v705 = vrot.slane %v181, %v704
    %708 = vrot.lane.b32.xlu0 %v700, 96
    %v709 = vpop.permute.xlu0 %708
    %v710 = vsel %vm186, %v709, 0
    %712 = vmatprep.subr.mxu0 0.0
    %713 = vmatpush1.msra.mxu0 0.0
    %714 = vmatprep.subr.mxu0 0.0
    %715 = vmatpush1.msra.mxu0 0.0
    %716 = vmatprep.subr.mxu0 0.0
    %717 = vmatpush1.msra.mxu0 0.0
    %718 = vmatprep.subr.mxu0 0.0
    %719 = vmatpush1.msra.mxu0 0.0
    %720 = vmatprep.subr.mxu0 0.0
    %721 = vmatpush1.msra.mxu0 0.0
    %722 = vmatprep.subr.mxu0 0.0
    %723 = vmatpush1.msra.mxu0 0.0
    %724 = vmatprep.subr.mxu0 0.0
    %725 = vmatpush1.msra.mxu0 0.0
    %726 = vmatprep.subr.mxu0 0.0
    %727 = vmatpush1.msra.mxu0 0.0
    %728 = vmatprep.subr.mxu0 0.0
    %729 = vmatpush1.msra.mxu0 0.0
    %730 = vmatprep.subr.mxu0 0.0
    %731 = vmatpush1.msra.mxu0 0.0
    %732 = vmatprep.subr.mxu0 0.0
    %733 = vmatpush1.msra.mxu0 0.0
    %734 = vmatprep.subr.mxu0 0.0
    %735 = vmatpush1.msra.mxu0 0.0
    %736 = vmatprep.subr.mxu0 0.0
    %737 = vmatpush1.msra.mxu0 %v180
    %738 = vmatprep.subr.mxu0 0.0
    %739 = vmatpush1.msra.mxu0 %v179
    %740 = vmatprep.subr.mxu0 0.0
    %741 = vmatpush1.msra.mxu0 %v178
    %742 = vmatprep.subr.mxu0 0.0
    %743 = vmatpush1.msra.mxu0 %v177
    %744 = vmatprep.subr.mxu0 0.0
    %745 = vmatpush2.msra.mxu0 0.0
    %746 = vmatprep.subr.mxu0 0.0
    %747 = vmatpush2.msra.mxu0 0.0
    %748 = vmatprep.subr.mxu0 0.0
    %749 = vmatpush2.msra.mxu0 0.0
    %750 = vmatprep.subr.mxu0 0.0
    %751 = vmatpush2.msra.mxu0 0.0
    %752 = vmatprep.subr.mxu0 0.0
    %753 = vmatpush2.msra.mxu0 0.0
    %754 = vmatprep.subr.mxu0 0.0
    %755 = vmatpush2.msra.mxu0 0.0
    %756 = vmatprep.subr.mxu0 0.0
    %757 = vmatpush2.msra.mxu0 0.0
    %758 = vmatprep.subr.mxu0 0.0
    %759 = vmatpush2.msra.mxu0 0.0
    %760 = vmatprep.subr.mxu0 0.0
    %761 = vmatpush2.msra.mxu0 0.0
    %762 = vmatprep.subr.mxu0 0.0
    %763 = vmatpush2.msra.mxu0 0.0
    %764 = vmatprep.subr.mxu0 0.0
    %765 = vmatpush2.msra.mxu0 0.0
    %766 = vmatprep.subr.mxu0 0.0
    %767 = vmatpush2.msra.mxu0 0.0
    %768 = vmatprep.subr.mxu0 0.0
    %769 = vmatpush2.msra.mxu0 0.0
    %770 = vmatprep.subr.mxu0 0.0
    %771 = vmatpush2.msra.mxu0 0.0
    %772 = vmatprep.subr.mxu0 0.0
    %773 = vmatpush2.msra.mxu0 0.0
    %774 = vmatprep.subr.mxu0 0.0
    %775 = vmatpush2.msra.mxu0 0.0
    %776 = vmatprep.mubr.f32.mxu0 0.0
    %777 = vmatmul.mubr.f32.gmra.mxu0 %v710
    %v778 = vpop.f32.mrf.mxu0
    %v779 = vadd.f32 %v705, %v778
    %v780 = vpop.f32.mrf.mxu0
    %781 = vdwg.mxu0
    %v782 = vsel %vm268, %v779, -inf
    %783 = vmax.xlane.f32.xlu0 %v782
    %v784 = vpop.xlane.xlu0 %783
    %v785 = vsub.f32 %v779, %v784
    %v786 = vmul.f32 %v785, 1.442695
    %v787 = vpow.pop %v786
    %v788 = vsel %vm268, %v787, 0.0
    %789 = vadd.xlane.f32.xlu0 %v788
    %v790 = vpop.xlane.xlu0 %789
    %v791 = vlog2.pop %v790
    %v792 = vmul.f32 %v791, 0.6931472
    %v793 = vadd.f32 %v792, %v784
    %v794 = vsub.f32 %v779, %v793
    %s795 = scalar_lea.vmem [#allocation16], 2
    %796 = vst.msk [vmem:[%s795] sm:$0x3] %vm268, %v794
    %v797 = vsel %vm268, %v794, -inf
    %798 = vmax.xlane.f32.xlu0 %v797
    %v799 = vpop.xlane.xlu0 %798
    %vm800 = vcmp.eq.f32.partialorder %v794, %v799
    %v801 = vsel %vm800, %v271, 16
    %v802 = vsel %vm268, %v801, 2147483647
    %v803 = vand.u32 %v802, 65535
    %v804 = vshra.s32 %v802, 16
    %v805 = vcvt.s32.f32 %v803
    %v806 = vcvt.s32.f32 %v804
    %807 = vmin.xlane.f32.xlu0 %v806
    %v808 = vpop.xlane.xlu0 %807
    %vm809 = vcmp.eq.f32.partialorder %v806, %v808
    %v810 = vsel %vm809, %v805, inf
    %811 = vmin.xlane.f32.xlu0 %v810
    %v812 = vpop.xlane.xlu0 %811
    %v813 = vcvt.f32.s32 %v812
    %v814 = vcvt.f32.s32 %v808
    %v815 = vshll.u32 %v814, 16
    %v816 = vadd.s32 %v815, %v813
    %vm817 = vcmp.eq.s32.totalorder %v271, %v816
    %v818 = vsel %vm817, 1, 0
    %v819 = vcvt.s32.f32 %v818
    %vm820 = vcmp.ne.s32.totalorder %v816, 0
    %vm821 = vcmp.ne.s32.totalorder %v816, 2
    %vm822 = vmand %vm820, %vm821
    %v823 = vsel %vm822, 1, 0
    %v824 = vcvt.s32.f32 %v823
    %v825 = vmul.f32 %v824, %v700
    %v826 = vadd.f32 %v825, 0.0
    %v827 = vadd.f32 %v824, 0.0
    %v829 = vsel %vm275, %v819, 0
    %831 = vmatprep.subr.mxu0 0.0
    %832 = vmatpush1.msra.mxu0 0.0
    %833 = vmatprep.subr.mxu0 0.0
    %834 = vmatpush1.msra.mxu0 0.0
    %835 = vmatprep.subr.mxu0 0.0
    %836 = vmatpush1.msra.mxu0 0.0
    %837 = vmatprep.subr.mxu0 0.0
    %838 = vmatpush1.msra.mxu0 0.0
    %839 = vmatprep.subr.mxu0 0.0
    %840 = vmatpush1.msra.mxu0 0.0
    %841 = vmatprep.subr.mxu0 0.0
    %842 = vmatpush1.msra.mxu0 0.0
    %843 = vmatprep.subr.mxu0 0.0
    %844 = vmatpush1.msra.mxu0 0.0
    %845 = vmatprep.subr.mxu0 0.0
    %846 = vmatpush1.msra.mxu0 0.0
    %847 = vmatprep.subr.mxu0 0.0
    %848 = vmatpush1.msra.mxu0 0.0
    %849 = vmatprep.subr.mxu0 0.0
    %850 = vmatpush1.msra.mxu0 0.0
    %851 = vmatprep.subr.mxu0 0.0
    %852 = vmatpush1.msra.mxu0 0.0
    %853 = vmatprep.subr.mxu0 0.0
    %854 = vmatpush1.msra.mxu0 0.0
    %855 = vmatprep.subr.mxu0 0.0
    %856 = vmatpush1.msra.mxu0 0.0
    %857 = vmatprep.subr.mxu0 0.0
    %858 = vmatpush1.msra.mxu0 0.0
    %859 = vmatprep.subr.mxu0 0.0
    %860 = vmatpush1.msra.mxu0 %v146
    %861 = vmatprep.subr.mxu0 0.0
    %862 = vmatpush1.msra.mxu0 %v145
    %863 = vmatprep.subr.mxu0 0.0
    %864 = vmatpush2.msra.mxu0 0.0
    %865 = vmatprep.subr.mxu0 0.0
    %866 = vmatpush2.msra.mxu0 0.0
    %867 = vmatprep.subr.mxu0 0.0
    %868 = vmatpush2.msra.mxu0 0.0
    %869 = vmatprep.subr.mxu0 0.0
    %870 = vmatpush2.msra.mxu0 0.0
    %871 = vmatprep.subr.mxu0 0.0
    %872 = vmatpush2.msra.mxu0 0.0
    %873 = vmatprep.subr.mxu0 0.0
    %874 = vmatpush2.msra.mxu0 0.0
    %875 = vmatprep.subr.mxu0 0.0
    %876 = vmatpush2.msra.mxu0 0.0
    %877 = vmatprep.subr.mxu0 0.0
    %878 = vmatpush2.msra.mxu0 0.0
    %879 = vmatprep.subr.mxu0 0.0
    %880 = vmatpush2.msra.mxu0 0.0
    %881 = vmatprep.subr.mxu0 0.0
    %882 = vmatpush2.msra.mxu0 0.0
    %883 = vmatprep.subr.mxu0 0.0
    %884 = vmatpush2.msra.mxu0 0.0
    %885 = vmatprep.subr.mxu0 0.0
    %886 = vmatpush2.msra.mxu0 0.0
    %887 = vmatprep.subr.mxu0 0.0
    %888 = vmatpush2.msra.mxu0 0.0
    %889 = vmatprep.subr.mxu0 0.0
    %890 = vmatpush2.msra.mxu0 0.0
    %891 = vmatprep.subr.mxu0 0.0
    %892 = vmatpush2.msra.mxu0 0.0
    %893 = vmatprep.subr.mxu0 0.0
    %894 = vmatpush2.msra.mxu0 0.0
    %895 = vmatprep.mubr.f32.mxu0 0.0
    %896 = vmatmul.mubr.f32.gmra.mxu0 %v829
    %v897 = vpop.f32.mrf.mxu0
    %v898 = vadd.f32 0.0, %v897
    %v899 = vpop.f32.mrf.mxu0
    %900 = vdwg.mxu0
    %901 = vmatprep.subr.mxu0 0.0
    %902 = vmatpush1.msra.mxu0 0.0
    %903 = vmatprep.subr.mxu0 0.0
    %904 = vmatpush1.msra.mxu0 0.0
    %905 = vmatprep.subr.mxu0 0.0
    %906 = vmatpush1.msra.mxu0 0.0
    %907 = vmatprep.subr.mxu0 0.0
    %908 = vmatpush1.msra.mxu0 0.0
    %909 = vmatprep.subr.mxu0 0.0
    %910 = vmatpush1.msra.mxu0 0.0
    %911 = vmatprep.subr.mxu0 0.0
    %912 = vmatpush1.msra.mxu0 0.0
    %913 = vmatprep.subr.mxu0 0.0
    %914 = vmatpush1.msra.mxu0 0.0
    %915 = vmatprep.subr.mxu0 0.0
    %916 = vmatpush1.msra.mxu0 0.0
    %917 = vmatprep.subr.mxu0 0.0
    %918 = vmatpush1.msra.mxu0 0.0
    %919 = vmatprep.subr.mxu0 0.0
    %920 = vmatpush1.msra.mxu0 0.0
    %921 = vmatprep.subr.mxu0 0.0
    %922 = vmatpush1.msra.mxu0 0.0
    %923 = vmatprep.subr.mxu0 0.0
    %924 = vmatpush1.msra.mxu0 0.0
    %925 = vmatprep.subr.mxu0 0.0
    %926 = vmatpush1.msra.mxu0 %v150
    %927 = vmatprep.subr.mxu0 0.0
    %928 = vmatpush1.msra.mxu0 %v149
    %929 = vmatprep.subr.mxu0 0.0
    %930 = vmatpush1.msra.mxu0 %v148
    %931 = vmatprep.subr.mxu0 0.0
    %932 = vmatpush1.msra.mxu0 %v147
    %933 = vmatprep.subr.mxu0 0.0
    %934 = vmatpush2.msra.mxu0 0.0
    %935 = vmatprep.subr.mxu0 0.0
    %936 = vmatpush2.msra.mxu0 0.0
    %937 = vmatprep.subr.mxu0 0.0
    %938 = vmatpush2.msra.mxu0 0.0
    %939 = vmatprep.subr.mxu0 0.0
    %940 = vmatpush2.msra.mxu0 0.0
    %941 = vmatprep.subr.mxu0 0.0
    %942 = vmatpush2.msra.mxu0 0.0
    %943 = vmatprep.subr.mxu0 0.0
    %944 = vmatpush2.msra.mxu0 0.0
    %945 = vmatprep.subr.mxu0 0.0
    %946 = vmatpush2.msra.mxu0 0.0
    %947 = vmatprep.subr.mxu0 0.0
    %948 = vmatpush2.msra.mxu0 0.0
    %949 = vmatprep.subr.mxu0 0.0
    %950 = vmatpush2.msra.mxu0 0.0
    %951 = vmatprep.subr.mxu0 0.0
    %952 = vmatpush2.msra.mxu0 0.0
    %953 = vmatprep.subr.mxu0 0.0
    %954 = vmatpush2.msra.mxu0 0.0
    %955 = vmatprep.subr.mxu0 0.0
    %956 = vmatpush2.msra.mxu0 0.0
    %957 = vmatprep.subr.mxu0 0.0
    %958 = vmatpush2.msra.mxu0 0.0
    %959 = vmatprep.subr.mxu0 0.0
    %960 = vmatpush2.msra.mxu0 0.0
    %961 = vmatprep.subr.mxu0 0.0
    %962 = vmatpush2.msra.mxu0 0.0
    %963 = vmatprep.subr.mxu0 0.0
    %964 = vmatpush2.msra.mxu0 0.0
    %965 = vmatprep.mubr.f32.mxu0 0.0
    %966 = vmatmul.mubr.f32.gmra.mxu0 %v710
    %v967 = vpop.f32.mrf.mxu0
    %v968 = vadd.f32 0.0, %v967
    %v969 = vpop.f32.mrf.mxu0
    %970 = vdwg.mxu0
    %v973 = vunpack.c.l.s4 1966171168
    %v974 = vunpack.c.0.s8 %v973
    %v975 = vlaneseq
    %v976 = vshrl.u32 %v975, 7
    %v977 = vsub.s32 %v974, %v976
    %v978 = vrot.slane %v968, %v977
    %v979 = vcombine.high %v978, %v978
    %v981 = vunpack.c.l.s4 1966171168
    %v982 = vunpack.c.0.s8 %v981
    %v983 = vlaneseq
    %v984 = vshrl.u32 %v983, 7
    %v985 = vsub.s32 %v982, %v984
    %v986 = vrot.slane %v978, %v985
    %v988 = vunpack.c.l.s4 1966171168
    %v989 = vunpack.c.0.s8 %v988
    %v990 = vlaneseq
    %v991 = vshrl.u32 %v990, 7
    %v992 = vsub.s32 %v989, %v991
    %v993 = vrot.slane %v979, %v992
    %v994 = vlaneseq
    %v995 = vshrl.u32 %v994, 7
    %v996 = vsub.s32 0, %v995
    %v997 = vrot.slane %v986, %v996
    %v998 = vlaneseq
    %v999 = vshrl.u32 %v998, 7
    %v1000 = vsub.s32 0, %v999
    %v1001 = vrot.slane %v993, %v1000
    %v1004 = vadd.f32 %v260, %v997
    %v1005 = vadd.f32 %v265, %v1001
    %v1006 = vtanh.pop %v1004
    %v1007 = vtanh.pop %v1005
    %v1008 = vmul.f32 %v1006, %v463
    %v1009 = vmul.f32 %v1007, %v463
    %v1010 = vsel %vm186, %v1008, 0.0
    %1011 = vadd.xlane.f32.xlu0 %v1010
    %v1012 = vpop.xlane.xlu0 %1011
    %v1013 = vsel %vm186, %v1009, 0.0
    %1014 = vadd.xlane.f32.xlu0 %v1013
    %v1015 = vpop.xlane.xlu0 %1014
    %v1018 = vlaneseq
    %v1019 = vshrl.u32 %v1018, 7
    %v1020 = vsub.s32 %v271, %v1019
    %v1021 = vrot.slane %v1012, %v1020
    %v1022 = vlaneseq
    %v1023 = vshrl.u32 %v1022, 7
    %v1024 = vsub.s32 %v271, %v1023
    %v1025 = vrot.slane %v1015, %v1024
    %v1026 = vsel %vm483, %v1025, %v1021
    %v1028 = vsel %vm486, %v1026, -inf
    %1029 = vmax.xlane.f32.xlu0 %v1028
    %v1030 = vpop.xlane.xlu0 %1029
    %v1032 = vlaneseq
    %v1033 = vshrl.u32 %v1032, 7
    %v1034 = vsub.s32 0, %v1033
    %v1035 = vrot.slane %v1030, %v1034
    %v1036 = vlaneseq
    %v1037 = vshrl.u32 %v1036, 7
    %v1038 = vsub.s32 1, %v1037
    %v1039 = vrot.slane %v1030, %v1038
    %v1042 = vsub.f32 %v1012, %v1035
    %v1043 = vsub.f32 %v1015, %v1039
    %v1044 = vmul.f32 %v1042, 1.442695
    %v1045 = vpow.pop %v1044
    %v1046 = vmul.f32 %v1043, 1.442695
    %v1047 = vpow.pop %v1046
    %1050 = vset.pattern.permute.xlu0 0
    %1051 = vperm.xlu0 %1050, %v1045
    %v1052 = vpop.permute.xlu0 %1051
    %1053 = vset.pattern.permute.xlu0 0
    %1054 = vperm.xlu0 %1053, %v1047
    %v1055 = vpop.permute.xlu0 %1054
    %v1056 = vlaneseq
    %v1057 = vshrl.u32 %v1056, 7
    %v1058 = vsub.s32 %v271, %v1057
    %v1059 = vrot.slane %v1052, %v1058
    %v1060 = vlaneseq
    %v1061 = vshrl.u32 %v1060, 7
    %v1062 = vsub.s32 %v271, %v1061
    %v1063 = vrot.slane %v1055, %v1062
    %v1064 = vsel %vm483, %v1063, %v1059
    %v1066 = vsel %vm486, %v1064, 0.0
    %1067 = vadd.xlane.f32.xlu0 %v1066
    %v1068 = vpop.xlane.xlu0 %1067
    %v1069 = vrcp.pop %v1068
    %v1071 = vlaneseq
    %v1072 = vshrl.u32 %v1071, 7
    %v1073 = vsub.s32 0, %v1072
    %v1074 = vrot.slane %v1069, %v1073
    %v1075 = vlaneseq
    %v1076 = vshrl.u32 %v1075, 7
    %v1077 = vsub.s32 1, %v1076
    %v1078 = vrot.slane %v1069, %v1077
    %v1081 = vmul.f32 %v1045, %v1074
    %v1082 = vmul.f32 %v1047, %v1078
    %1084 = vset.pattern.permute.xlu0 0
    %1085 = vperm.xlu0 %1084, %v1081
    %v1086 = vpop.permute.xlu0 %1085
    %1089 = vset.pattern.permute.xlu0 0
    %1090 = vperm.xlu0 %1089, %v1082
    %v1091 = vpop.permute.xlu0 %1090
    %v1093 = vmul.f32 %v1086, %v143
    %v1094 = vmul.f32 %v1091, %v144
    %v1095 = vsel %vm186, %v1093, 0.0
    %v1096 = vrot.slane %v1095, 4
    %v1097 = vadd.f32 %v1095, %v1096
    %v1098 = vrot.slane %v1097, 2
    %v1099 = vadd.f32 %v1097, %v1098
    %v1100 = vrot.slane %v1099, 1
    %v1101 = vadd.f32 %v1099, %v1100
    %v1102 = vsel %vm186, %v1094, 0.0
    %v1103 = vrot.slane %v1102, 4
    %v1104 = vadd.f32 %v1102, %v1103
    %v1105 = vrot.slane %v1104, 2
    %v1106 = vadd.f32 %v1104, %v1105
    %v1107 = vrot.slane %v1106, 1
    %v1108 = vadd.f32 %v1106, %v1107
    %v1111 = vsel %vm483, %v1108, %v1101
    %1112 = vrot.lane.b32.xlu0 %v1111, 32
    %v1113 = vpop.permute.xlu0 %1112
    %1115 = vrot.lane.b32.xlu0 %v700, 32
    %v1116 = vpop.permute.xlu0 %1115
    %v1118 = vsel %vm186, %v898, %v1113
    %v1119 = vsel %vm575, %v1118, %v1116
    %v1121 = vsel %vm588, %v1119, 0
    %1123 = vmatprep.subr.mxu0 0.0
    %1124 = vmatpush1.msra.mxu0 0.0
    %1125 = vmatprep.subr.mxu0 0.0
    %1126 = vmatpush1.msra.mxu0 0.0
    %1127 = vmatprep.subr.mxu0 0.0
    %1128 = vmatpush1.msra.mxu0 0.0
    %1129 = vmatprep.subr.mxu0 0.0
    %1130 = vmatpush1.msra.mxu0 0.0
    %1131 = vmatprep.subr.mxu0 %v175
    %1132 = vmatpush1.msra.mxu0 %v174
    %1133 = vmatprep.subr.mxu0 %v173
    %1134 = vmatpush1.msra.mxu0 %v172
    %1135 = vmatprep.subr.mxu0 %v171
    %1136 = vmatpush1.msra.mxu0 %v170
    %1137 = vmatprep.subr.mxu0 %v169
    %1138 = vmatpush1.msra.mxu0 %v168
    %1139 = vmatprep.subr.mxu0 %v167
    %1140 = vmatpush1.msra.mxu0 %v166
    %1141 = vmatprep.subr.mxu0 %v165
    %1142 = vmatpush1.msra.mxu0 %v164
    %1143 = vmatprep.subr.mxu0 %v163
    %1144 = vmatpush1.msra.mxu0 %v162
    %1145 = vmatprep.subr.mxu0 %v161
    %1146 = vmatpush1.msra.mxu0 %v160
    %1147 = vmatprep.subr.mxu0 %v159
    %1148 = vmatpush1.msra.mxu0 %v158
    %1149 = vmatprep.subr.mxu0 %v157
    %1150 = vmatpush1.msra.mxu0 %v156
    %1151 = vmatprep.subr.mxu0 %v155
    %1152 = vmatpush1.msra.mxu0 %v154
    %1153 = vmatprep.subr.mxu0 %v153
    %1154 = vmatpush1.msra.mxu0 %v152
    %1155 = vmatprep.subr.mxu0 0.0
    %1156 = vmatpush2.msra.mxu0 0.0
    %1157 = vmatprep.subr.mxu0 0.0
    %1158 = vmatpush2.msra.mxu0 0.0
    %1159 = vmatprep.subr.mxu0 0.0
    %1160 = vmatpush2.msra.mxu0 0.0
    %1161 = vmatprep.subr.mxu0 0.0
    %1162 = vmatpush2.msra.mxu0 0.0
    %1163 = vmatprep.subr.mxu0 0.0
    %1164 = vmatpush2.msra.mxu0 0.0
    %1165 = vmatprep.subr.mxu0 0.0
    %1166 = vmatpush2.msra.mxu0 0.0
    %1167 = vmatprep.subr.mxu0 0.0
    %1168 = vmatpush2.msra.mxu0 0.0
    %1169 = vmatprep.subr.mxu0 0.0
    %1170 = vmatpush2.msra.mxu0 0.0
    %1171 = vmatprep.subr.mxu0 0.0
    %1172 = vmatpush2.msra.mxu0 0.0
    %1173 = vmatprep.subr.mxu0 0.0
    %1174 = vmatpush2.msra.mxu0 0.0
    %1175 = vmatprep.subr.mxu0 0.0
    %1176 = vmatpush2.msra.mxu0 0.0
    %1177 = vmatprep.subr.mxu0 0.0
    %1178 = vmatpush2.msra.mxu0 0.0
    %1179 = vmatprep.subr.mxu0 0.0
    %1180 = vmatpush2.msra.mxu0 0.0
    %1181 = vmatprep.subr.mxu0 0.0
    %1182 = vmatpush2.msra.mxu0 0.0
    %1183 = vmatprep.subr.mxu0 0.0
    %1184 = vmatpush2.msra.mxu0 0.0
    %1185 = vmatprep.subr.mxu0 0.0
    %1186 = vmatpush2.msra.mxu0 0.0
    %1187 = vmatprep.mubr.f32.mxu0 0.0
    %1188 = vmatmul.mubr.f32.gmra.mxu0 %v1121
    %v1189 = vpop.f32.mrf.mxu0
    %v1190 = vadd.f32 %v581, %v1189
    %v1191 = vpop.f32.mrf.mxu0
    %v1192 = vadd.f32 %v585, %v1191
    %1193 = vdwg.mxu0
    %1195 = vrot.lane.b32.xlu0 %v1190, 32
    %v1196 = vpop.permute.xlu0 %1195
    %v1198 = vadd.f32 %v1190, %v1196
    %v1199 = vsub.f32 0.0, %v1198
    %v1200 = vmul.f32 %v1199, 1.442695
    %v1201 = vpow.pop %v1200
    %v1202 = vadd.f32 %v1201, 1.0
    %v1203 = vrcp.pop %v1202
    %1205 = vrot.lane.b32.xlu0 %v1192, 32
    %v1206 = vpop.permute.xlu0 %1205
    %v1208 = vadd.f32 %v1190, %v1206
    %v1209 = vsub.f32 0.0, %v1208
    %v1210 = vmul.f32 %v1209, 1.442695
    %v1211 = vpow.pop %v1210
    %v1212 = vadd.f32 %v1211, 1.0
    %v1213 = vrcp.pop %v1212
    %1214 = vrot.lane.b32.xlu0 %v1192, 96
    %v1215 = vpop.permute.xlu0 %1214
    %v1217 = vmul.f32 %v1203, %v1215
    %1219 = vrot.lane.b32.xlu0 %v1217, 64
    %v1220 = vpop.permute.xlu0 %1219
    %v1222 = vadd.f32 %v1190, %v1220
    %v1223 = vtanh.pop %v1222
    %v1224 = vsub.f32 1.0, %v1213
    %1226 = vrot.lane.b32.xlu0 %v1223, 96
    %v1227 = vpop.permute.xlu0 %1226
    %v1229 = vmul.f32 %v1224, %v1227
    %v1230 = vmul.f32 %v1213, %v700
    %v1231 = vadd.f32 %v1229, %v1230
    %1233 = vrot.lane.b32.xlu0 %v1231, 96
    %v1234 = vpop.permute.xlu0 %1233
    %v1235 = vsel %vm186, %v1234, 0
    %1237 = vmatprep.subr.mxu0 0.0
    %1238 = vmatpush1.msra.mxu0 0.0
    %1239 = vmatprep.subr.mxu0 0.0
    %1240 = vmatpush1.msra.mxu0 0.0
    %1241 = vmatprep.subr.mxu0 0.0
    %1242 = vmatpush1.msra.mxu0 0.0
    %1243 = vmatprep.subr.mxu0 0.0
    %1244 = vmatpush1.msra.mxu0 0.0
    %1245 = vmatprep.subr.mxu0 0.0
    %1246 = vmatpush1.msra.mxu0 0.0
    %1247 = vmatprep.subr.mxu0 0.0
    %1248 = vmatpush1.msra.mxu0 0.0
    %1249 = vmatprep.subr.mxu0 0.0
    %1250 = vmatpush1.msra.mxu0 0.0
    %1251 = vmatprep.subr.mxu0 0.0
    %1252 = vmatpush1.msra.mxu0 0.0
    %1253 = vmatprep.subr.mxu0 0.0
    %1254 = vmatpush1.msra.mxu0 0.0
    %1255 = vmatprep.subr.mxu0 0.0
    %1256 = vmatpush1.msra.mxu0 0.0
    %1257 = vmatprep.subr.mxu0 0.0
    %1258 = vmatpush1.msra.mxu0 0.0
    %1259 = vmatprep.subr.mxu0 0.0
    %1260 = vmatpush1.msra.mxu0 0.0
    %1261 = vmatprep.subr.mxu0 0.0
    %1262 = vmatpush1.msra.mxu0 %v180
    %1263 = vmatprep.subr.mxu0 0.0
    %1264 = vmatpush1.msra.mxu0 %v179
    %1265 = vmatprep.subr.mxu0 0.0
    %1266 = vmatpush1.msra.mxu0 %v178
    %1267 = vmatprep.subr.mxu0 0.0
    %1268 = vmatpush1.msra.mxu0 %v177
    %1269 = vmatprep.subr.mxu0 0.0
    %1270 = vmatpush2.msra.mxu0 0.0
    %1271 = vmatprep.subr.mxu0 0.0
    %1272 = vmatpush2.msra.mxu0 0.0
    %1273 = vmatprep.subr.mxu0 0.0
    %1274 = vmatpush2.msra.mxu0 0.0
    %1275 = vmatprep.subr.mxu0 0.0
    %1276 = vmatpush2.msra.mxu0 0.0
    %1277 = vmatprep.subr.mxu0 0.0
    %1278 = vmatpush2.msra.mxu0 0.0
    %1279 = vmatprep.subr.mxu0 0.0
    %1280 = vmatpush2.msra.mxu0 0.0
    %1281 = vmatprep.subr.mxu0 0.0
    %1282 = vmatpush2.msra.mxu0 0.0
    %1283 = vmatprep.subr.mxu0 0.0
    %1284 = vmatpush2.msra.mxu0 0.0
    %1285 = vmatprep.subr.mxu0 0.0
    %1286 = vmatpush2.msra.mxu0 0.0
    %1287 = vmatprep.subr.mxu0 0.0
    %1288 = vmatpush2.msra.mxu0 0.0
    %1289 = vmatprep.subr.mxu0 0.0
    %1290 = vmatpush2.msra.mxu0 0.0
    %1291 = vmatprep.subr.mxu0 0.0
    %1292 = vmatpush2.msra.mxu0 0.0
    %1293 = vmatprep.subr.mxu0 0.0
    %1294 = vmatpush2.msra.mxu0 0.0
    %1295 = vmatprep.subr.mxu0 0.0
    %1296 = vmatpush2.msra.mxu0 0.0
    %1297 = vmatprep.subr.mxu0 0.0
    %1298 = vmatpush2.msra.mxu0 0.0
    %1299 = vmatprep.subr.mxu0 0.0
    %1300 = vmatpush2.msra.mxu0 0.0
    %1301 = vmatprep.mubr.f32.mxu0 0.0
    %1302 = vmatmul.mubr.f32.gmra.mxu0 %v1235
    %v1303 = vpop.f32.mrf.mxu0
    %v1304 = vadd.f32 %v705, %v1303
    %v1305 = vpop.f32.mrf.mxu0
    %1306 = vdwg.mxu0
    %v1307 = vsel %vm268, %v1304, -inf
    %1308 = vmax.xlane.f32.xlu0 %v1307
    %v1309 = vpop.xlane.xlu0 %1308
    %v1310 = vsub.f32 %v1304, %v1309
    %v1311 = vmul.f32 %v1310, 1.442695
    %v1312 = vpow.pop %v1311
    %v1313 = vsel %vm268, %v1312, 0.0
    %1314 = vadd.xlane.f32.xlu0 %v1313
    %v1315 = vpop.xlane.xlu0 %1314
    %v1316 = vlog2.pop %v1315
    %v1317 = vmul.f32 %v1316, 0.6931472
    %v1318 = vadd.f32 %v1317, %v1309
    %v1319 = vsub.f32 %v1304, %v1318
    %s1320 = scalar_lea.vmem [#allocation16], 4
    %1321 = vst.msk [vmem:[%s1320] sm:$0x3] %vm268, %v1319
    %v1322 = vsel %vm268, %v1319, -inf
    %1323 = vmax.xlane.f32.xlu0 %v1322
    %v1324 = vpop.xlane.xlu0 %1323
    %vm1325 = vcmp.eq.f32.partialorder %v1319, %v1324
    %v1326 = vsel %vm1325, %v271, 16
    %v1327 = vsel %vm268, %v1326, 2147483647
    %v1328 = vand.u32 %v1327, 65535
    %v1329 = vshra.s32 %v1327, 16
    %v1330 = vcvt.s32.f32 %v1328
    %v1331 = vcvt.s32.f32 %v1329
    %1332 = vmin.xlane.f32.xlu0 %v1331
    %v1333 = vpop.xlane.xlu0 %1332
    %vm1334 = vcmp.eq.f32.partialorder %v1331, %v1333
    %v1335 = vsel %vm1334, %v1330, inf
    %1336 = vmin.xlane.f32.xlu0 %v1335
    %v1337 = vpop.xlane.xlu0 %1336
    %v1338 = vcvt.f32.s32 %v1337
    %v1339 = vcvt.f32.s32 %v1333
    %v1340 = vshll.u32 %v1339, 16
    %v1341 = vadd.s32 %v1340, %v1338
    %vm1342 = vcmp.eq.s32.totalorder %v271, %v1341
    %v1343 = vsel %vm1342, 1, 0
    %v1344 = vcvt.s32.f32 %v1343
    %vm1345 = vcmp.ne.s32.totalorder %v1341, 0
    %vm1346 = vcmp.ne.s32.totalorder %v1341, 2
    %vm1347 = vmand %vm1345, %vm1346
    %v1348 = vsel %vm1347, 1, 0
    %v1349 = vcvt.s32.f32 %v1348
    %v1350 = vmul.f32 %v1349, %v1231
    %v1351 = vadd.f32 %v826, %v1350
    %v1352 = vadd.f32 %v827, %v1349
    %v1354 = vsel %vm275, %v1344, 0
    %1356 = vmatprep.subr.mxu0 0.0
    %1357 = vmatpush1.msra.mxu0 0.0
    %1358 = vmatprep.subr.mxu0 0.0
    %1359 = vmatpush1.msra.mxu0 0.0
    %1360 = vmatprep.subr.mxu0 0.0
    %1361 = vmatpush1.msra.mxu0 0.0
    %1362 = vmatprep.subr.mxu0 0.0
    %1363 = vmatpush1.msra.mxu0 0.0
    %1364 = vmatprep.subr.mxu0 0.0
    %1365 = vmatpush1.msra.mxu0 0.0
    %1366 = vmatprep.subr.mxu0 0.0
    %1367 = vmatpush1.msra.mxu0 0.0
    %1368 = vmatprep.subr.mxu0 0.0
    %1369 = vmatpush1.msra.mxu0 0.0
    %1370 = vmatprep.subr.mxu0 0.0
    %1371 = vmatpush1.msra.mxu0 0.0
    %1372 = vmatprep.subr.mxu0 0.0
    %1373 = vmatpush1.msra.mxu0 0.0
    %1374 = vmatprep.subr.mxu0 0.0
    %1375 = vmatpush1.msra.mxu0 0.0
    %1376 = vmatprep.subr.mxu0 0.0
    %1377 = vmatpush1.msra.mxu0 0.0
    %1378 = vmatprep.subr.mxu0 0.0
    %1379 = vmatpush1.msra.mxu0 0.0
    %1380 = vmatprep.subr.mxu0 0.0
    %1381 = vmatpush1.msra.mxu0 0.0
    %1382 = vmatprep.subr.mxu0 0.0
    %1383 = vmatpush1.msra.mxu0 0.0
    %1384 = vmatprep.subr.mxu0 0.0
    %1385 = vmatpush1.msra.mxu0 %v146
    %1386 = vmatprep.subr.mxu0 0.0
    %1387 = vmatpush1.msra.mxu0 %v145
    %1388 = vmatprep.subr.mxu0 0.0
    %1389 = vmatpush2.msra.mxu0 0.0
    %1390 = vmatprep.subr.mxu0 0.0
    %1391 = vmatpush2.msra.mxu0 0.0
    %1392 = vmatprep.subr.mxu0 0.0
    %1393 = vmatpush2.msra.mxu0 0.0
    %1394 = vmatprep.subr.mxu0 0.0
    %1395 = vmatpush2.msra.mxu0 0.0
    %1396 = vmatprep.subr.mxu0 0.0
    %1397 = vmatpush2.msra.mxu0 0.0
    %1398 = vmatprep.subr.mxu0 0.0
    %1399 = vmatpush2.msra.mxu0 0.0
    %1400 = vmatprep.subr.mxu0 0.0
    %1401 = vmatpush2.msra.mxu0 0.0
    %1402 = vmatprep.subr.mxu0 0.0
    %1403 = vmatpush2.msra.mxu0 0.0
    %1404 = vmatprep.subr.mxu0 0.0
    %1405 = vmatpush2.msra.mxu0 0.0
    %1406 = vmatprep.subr.mxu0 0.0
    %1407 = vmatpush2.msra.mxu0 0.0
    %1408 = vmatprep.subr.mxu0 0.0
    %1409 = vmatpush2.msra.mxu0 0.0
    %1410 = vmatprep.subr.mxu0 0.0
    %1411 = vmatpush2.msra.mxu0 0.0
    %1412 = vmatprep.subr.mxu0 0.0
    %1413 = vmatpush2.msra.mxu0 0.0
    %1414 = vmatprep.subr.mxu0 0.0
    %1415 = vmatpush2.msra.mxu0 0.0
    %1416 = vmatprep.subr.mxu0 0.0
    %1417 = vmatpush2.msra.mxu0 0.0
    %1418 = vmatprep.subr.mxu0 0.0
    %1419 = vmatpush2.msra.mxu0 0.0
    %1420 = vmatprep.mubr.f32.mxu0 0.0
    %1421 = vmatmul.mubr.f32.gmra.mxu0 %v1354
    %v1422 = vpop.f32.mrf.mxu0
    %v1423 = vadd.f32 0.0, %v1422
    %v1424 = vpop.f32.mrf.mxu0
    %1425 = vdwg.mxu0
    %1426 = vmatprep.subr.mxu0 0.0
    %1427 = vmatpush1.msra.mxu0 0.0
    %1428 = vmatprep.subr.mxu0 0.0
    %1429 = vmatpush1.msra.mxu0 0.0
    %1430 = vmatprep.subr.mxu0 0.0
    %1431 = vmatpush1.msra.mxu0 0.0
    %1432 = vmatprep.subr.mxu0 0.0
    %1433 = vmatpush1.msra.mxu0 0.0
    %1434 = vmatprep.subr.mxu0 0.0
    %1435 = vmatpush1.msra.mxu0 0.0
    %1436 = vmatprep.subr.mxu0 0.0
    %1437 = vmatpush1.msra.mxu0 0.0
    %1438 = vmatprep.subr.mxu0 0.0
    %1439 = vmatpush1.msra.mxu0 0.0
    %1440 = vmatprep.subr.mxu0 0.0
    %1441 = vmatpush1.msra.mxu0 0.0
    %1442 = vmatprep.subr.mxu0 0.0
    %1443 = vmatpush1.msra.mxu0 0.0
    %1444 = vmatprep.subr.mxu0 0.0
    %1445 = vmatpush1.msra.mxu0 0.0
    %1446 = vmatprep.subr.mxu0 0.0
    %1447 = vmatpush1.msra.mxu0 0.0
    %1448 = vmatprep.subr.mxu0 0.0
    %1449 = vmatpush1.msra.mxu0 0.0
    %1450 = vmatprep.subr.mxu0 0.0
    %1451 = vmatpush1.msra.mxu0 %v150
    %1452 = vmatprep.subr.mxu0 0.0
    %1453 = vmatpush1.msra.mxu0 %v149
    %1454 = vmatprep.subr.mxu0 0.0
    %1455 = vmatpush1.msra.mxu0 %v148
    %1456 = vmatprep.subr.mxu0 0.0
    %1457 = vmatpush1.msra.mxu0 %v147
    %1458 = vmatprep.subr.mxu0 0.0
    %1459 = vmatpush2.msra.mxu0 0.0
    %1460 = vmatprep.subr.mxu0 0.0
    %1461 = vmatpush2.msra.mxu0 0.0
    %1462 = vmatprep.subr.mxu0 0.0
    %1463 = vmatpush2.msra.mxu0 0.0
    %1464 = vmatprep.subr.mxu0 0.0
    %1465 = vmatpush2.msra.mxu0 0.0
    %1466 = vmatprep.subr.mxu0 0.0
    %1467 = vmatpush2.msra.mxu0 0.0
    %1468 = vmatprep.subr.mxu0 0.0
    %1469 = vmatpush2.msra.mxu0 0.0
    %1470 = vmatprep.subr.mxu0 0.0
    %1471 = vmatpush2.msra.mxu0 0.0
    %1472 = vmatprep.subr.mxu0 0.0
    %1473 = vmatpush2.msra.mxu0 0.0
    %1474 = vmatprep.subr.mxu0 0.0
    %1475 = vmatpush2.msra.mxu0 0.0
    %1476 = vmatprep.subr.mxu0 0.0
    %1477 = vmatpush2.msra.mxu0 0.0
    %1478 = vmatprep.subr.mxu0 0.0
    %1479 = vmatpush2.msra.mxu0 0.0
    %1480 = vmatprep.subr.mxu0 0.0
    %1481 = vmatpush2.msra.mxu0 0.0
    %1482 = vmatprep.subr.mxu0 0.0
    %1483 = vmatpush2.msra.mxu0 0.0
    %1484 = vmatprep.subr.mxu0 0.0
    %1485 = vmatpush2.msra.mxu0 0.0
    %1486 = vmatprep.subr.mxu0 0.0
    %1487 = vmatpush2.msra.mxu0 0.0
    %1488 = vmatprep.subr.mxu0 0.0
    %1489 = vmatpush2.msra.mxu0 0.0
    %1490 = vmatprep.mubr.f32.mxu0 0.0
    %1491 = vmatmul.mubr.f32.gmra.mxu0 %v1235
    %v1492 = vpop.f32.mrf.mxu0
    %v1493 = vadd.f32 0.0, %v1492
    %v1494 = vpop.f32.mrf.mxu0
    %1495 = vdwg.mxu0
    %v1498 = vunpack.c.l.s4 1966171168
    %v1499 = vunpack.c.0.s8 %v1498
    %v1500 = vlaneseq
    %v1501 = vshrl.u32 %v1500, 7
    %v1502 = vsub.s32 %v1499, %v1501
    %v1503 = vrot.slane %v1493, %v1502
    %v1504 = vcombine.high %v1503, %v1503
    %v1506 = vunpack.c.l.s4 1966171168
    %v1507 = vunpack.c.0.s8 %v1506
    %v1508 = vlaneseq
    %v1509 = vshrl.u32 %v1508, 7
    %v1510 = vsub.s32 %v1507, %v1509
    %v1511 = vrot.slane %v1503, %v1510
    %v1513 = vunpack.c.l.s4 1966171168
    %v1514 = vunpack.c.0.s8 %v1513
    %v1515 = vlaneseq
    %v1516 = vshrl.u32 %v1515, 7
    %v1517 = vsub.s32 %v1514, %v1516
    %v1518 = vrot.slane %v1504, %v1517
    %v1519 = vlaneseq
    %v1520 = vshrl.u32 %v1519, 7
    %v1521 = vsub.s32 0, %v1520
    %v1522 = vrot.slane %v1511, %v1521
    %v1523 = vlaneseq
    %v1524 = vshrl.u32 %v1523, 7
    %v1525 = vsub.s32 0, %v1524
    %v1526 = vrot.slane %v1518, %v1525
    %v1529 = vadd.f32 %v260, %v1522
    %v1530 = vadd.f32 %v265, %v1526
    %v1531 = vtanh.pop %v1529
    %v1532 = vtanh.pop %v1530
    %v1533 = vmul.f32 %v1531, %v463
    %v1534 = vmul.f32 %v1532, %v463
    %v1535 = vsel %vm186, %v1533, 0.0
    %1536 = vadd.xlane.f32.xlu0 %v1535
    %v1537 = vpop.xlane.xlu0 %1536
    %v1538 = vsel %vm186, %v1534, 0.0
    %1539 = vadd.xlane.f32.xlu0 %v1538
    %v1540 = vpop.xlane.xlu0 %1539
    %v1543 = vlaneseq
    %v1544 = vshrl.u32 %v1543, 7
    %v1545 = vsub.s32 %v271, %v1544
    %v1546 = vrot.slane %v1537, %v1545
    %v1547 = vlaneseq
    %v1548 = vshrl.u32 %v1547, 7
    %v1549 = vsub.s32 %v271, %v1548
    %v1550 = vrot.slane %v1540, %v1549
    %v1551 = vsel %vm483, %v1550, %v1546
    %v1553 = vsel %vm486, %v1551, -inf
    %1554 = vmax.xlane.f32.xlu0 %v1553
    %v1555 = vpop.xlane.xlu0 %1554
    %v1557 = vlaneseq
    %v1558 = vshrl.u32 %v1557, 7
    %v1559 = vsub.s32 0, %v1558
    %v1560 = vrot.slane %v1555, %v1559
    %v1561 = vlaneseq
    %v1562 = vshrl.u32 %v1561, 7
    %v1563 = vsub.s32 1, %v1562
    %v1564 = vrot.slane %v1555, %v1563
    %v1567 = vsub.f32 %v1537, %v1560
    %v1568 = vsub.f32 %v1540, %v1564
    %v1569 = vmul.f32 %v1567, 1.442695
    %v1570 = vpow.pop %v1569
    %v1571 = vmul.f32 %v1568, 1.442695
    %v1572 = vpow.pop %v1571
    %1575 = vset.pattern.permute.xlu0 0
    %1576 = vperm.xlu0 %1575, %v1570
    %v1577 = vpop.permute.xlu0 %1576
    %1578 = vset.pattern.permute.xlu0 0
    %1579 = vperm.xlu0 %1578, %v1572
    %v1580 = vpop.permute.xlu0 %1579
    %v1581 = vlaneseq
    %v1582 = vshrl.u32 %v1581, 7
    %v1583 = vsub.s32 %v271, %v1582
    %v1584 = vrot.slane %v1577, %v1583
    %v1585 = vlaneseq
    %v1586 = vshrl.u32 %v1585, 7
    %v1587 = vsub.s32 %v271, %v1586
    %v1588 = vrot.slane %v1580, %v1587
    %v1589 = vsel %vm483, %v1588, %v1584
    %v1591 = vsel %vm486, %v1589, 0.0
    %1592 = vadd.xlane.f32.xlu0 %v1591
    %v1593 = vpop.xlane.xlu0 %1592
    %v1594 = vrcp.pop %v1593
    %v1596 = vlaneseq
    %v1597 = vshrl.u32 %v1596, 7
    %v1598 = vsub.s32 0, %v1597
    %v1599 = vrot.slane %v1594, %v1598
    %v1600 = vlaneseq
    %v1601 = vshrl.u32 %v1600, 7
    %v1602 = vsub.s32 1, %v1601
    %v1603 = vrot.slane %v1594, %v1602
    %v1606 = vmul.f32 %v1570, %v1599
    %v1607 = vmul.f32 %v1572, %v1603
    %1609 = vset.pattern.permute.xlu0 0
    %1610 = vperm.xlu0 %1609, %v1606
    %v1611 = vpop.permute.xlu0 %1610
    %1614 = vset.pattern.permute.xlu0 0
    %1615 = vperm.xlu0 %1614, %v1607
    %v1616 = vpop.permute.xlu0 %1615
    %v1618 = vmul.f32 %v1611, %v143
    %v1619 = vmul.f32 %v1616, %v144
    %v1620 = vsel %vm186, %v1618, 0.0
    %v1621 = vrot.slane %v1620, 4
    %v1622 = vadd.f32 %v1620, %v1621
    %v1623 = vrot.slane %v1622, 2
    %v1624 = vadd.f32 %v1622, %v1623
    %v1625 = vrot.slane %v1624, 1
    %v1626 = vadd.f32 %v1624, %v1625
    %v1627 = vsel %vm186, %v1619, 0.0
    %v1628 = vrot.slane %v1627, 4
    %v1629 = vadd.f32 %v1627, %v1628
    %v1630 = vrot.slane %v1629, 2
    %v1631 = vadd.f32 %v1629, %v1630
    %v1632 = vrot.slane %v1631, 1
    %v1633 = vadd.f32 %v1631, %v1632
    %v1636 = vsel %vm483, %v1633, %v1626
    %1637 = vrot.lane.b32.xlu0 %v1636, 32
    %v1638 = vpop.permute.xlu0 %1637
    %1640 = vrot.lane.b32.xlu0 %v1231, 32
    %v1641 = vpop.permute.xlu0 %1640
    %v1643 = vsel %vm186, %v1423, %v1638
    %v1644 = vsel %vm575, %v1643, %v1641
    %v1646 = vsel %vm588, %v1644, 0
    %1648 = vmatprep.subr.mxu0 0.0
    %1649 = vmatpush1.msra.mxu0 0.0
    %1650 = vmatprep.subr.mxu0 0.0
    %1651 = vmatpush1.msra.mxu0 0.0
    %1652 = vmatprep.subr.mxu0 0.0
    %1653 = vmatpush1.msra.mxu0 0.0
    %1654 = vmatprep.subr.mxu0 0.0
    %1655 = vmatpush1.msra.mxu0 0.0
    %1656 = vmatprep.subr.mxu0 %v175
    %1657 = vmatpush1.msra.mxu0 %v174
    %1658 = vmatprep.subr.mxu0 %v173
    %1659 = vmatpush1.msra.mxu0 %v172
    %1660 = vmatprep.subr.mxu0 %v171
    %1661 = vmatpush1.msra.mxu0 %v170
    %1662 = vmatprep.subr.mxu0 %v169
    %1663 = vmatpush1.msra.mxu0 %v168
    %1664 = vmatprep.subr.mxu0 %v167
    %1665 = vmatpush1.msra.mxu0 %v166
    %1666 = vmatprep.subr.mxu0 %v165
    %1667 = vmatpush1.msra.mxu0 %v164
    %1668 = vmatprep.subr.mxu0 %v163
    %1669 = vmatpush1.msra.mxu0 %v162
    %1670 = vmatprep.subr.mxu0 %v161
    %1671 = vmatpush1.msra.mxu0 %v160
    %1672 = vmatprep.subr.mxu0 %v159
    %1673 = vmatpush1.msra.mxu0 %v158
    %1674 = vmatprep.subr.mxu0 %v157
    %1675 = vmatpush1.msra.mxu0 %v156
    %1676 = vmatprep.subr.mxu0 %v155
    %1677 = vmatpush1.msra.mxu0 %v154
    %1678 = vmatprep.subr.mxu0 %v153
    %1679 = vmatpush1.msra.mxu0 %v152
    %1680 = vmatprep.subr.mxu0 0.0
    %1681 = vmatpush2.msra.mxu0 0.0
    %1682 = vmatprep.subr.mxu0 0.0
    %1683 = vmatpush2.msra.mxu0 0.0
    %1684 = vmatprep.subr.mxu0 0.0
    %1685 = vmatpush2.msra.mxu0 0.0
    %1686 = vmatprep.subr.mxu0 0.0
    %1687 = vmatpush2.msra.mxu0 0.0
    %1688 = vmatprep.subr.mxu0 0.0
    %1689 = vmatpush2.msra.mxu0 0.0
    %1690 = vmatprep.subr.mxu0 0.0
    %1691 = vmatpush2.msra.mxu0 0.0
    %1692 = vmatprep.subr.mxu0 0.0
    %1693 = vmatpush2.msra.mxu0 0.0
    %1694 = vmatprep.subr.mxu0 0.0
    %1695 = vmatpush2.msra.mxu0 0.0
    %1696 = vmatprep.subr.mxu0 0.0
    %1697 = vmatpush2.msra.mxu0 0.0
    %1698 = vmatprep.subr.mxu0 0.0
    %1699 = vmatpush2.msra.mxu0 0.0
    %1700 = vmatprep.subr.mxu0 0.0
    %1701 = vmatpush2.msra.mxu0 0.0
    %1702 = vmatprep.subr.mxu0 0.0
    %1703 = vmatpush2.msra.mxu0 0.0
    %1704 = vmatprep.subr.mxu0 0.0
    %1705 = vmatpush2.msra.mxu0 0.0
    %1706 = vmatprep.subr.mxu0 0.0
    %1707 = vmatpush2.msra.mxu0 0.0
    %1708 = vmatprep.subr.mxu0 0.0
    %1709 = vmatpush2.msra.mxu0 0.0
    %1710 = vmatprep.subr.mxu0 0.0
    %1711 = vmatpush2.msra.mxu0 0.0
    %1712 = vmatprep.mubr.f32.mxu0 0.0
    %1713 = vmatmul.mubr.f32.gmra.mxu0 %v1646
    %v1714 = vpop.f32.mrf.mxu0
    %v1715 = vadd.f32 %v581, %v1714
    %v1716 = vpop.f32.mrf.mxu0
    %v1717 = vadd.f32 %v585, %v1716
    %1718 = vdwg.mxu0
    %1720 = vrot.lane.b32.xlu0 %v1715, 32
    %v1721 = vpop.permute.xlu0 %1720
    %v1723 = vadd.f32 %v1715, %v1721
    %v1724 = vsub.f32 0.0, %v1723
    %v1725 = vmul.f32 %v1724, 1.442695
    %v1726 = vpow.pop %v1725
    %v1727 = vadd.f32 %v1726, 1.0
    %v1728 = vrcp.pop %v1727
    %1730 = vrot.lane.b32.xlu0 %v1717, 32
    %v1731 = vpop.permute.xlu0 %1730
    %v1733 = vadd.f32 %v1715, %v1731
    %v1734 = vsub.f32 0.0, %v1733
    %v1735 = vmul.f32 %v1734, 1.442695
    %v1736 = vpow.pop %v1735
    %v1737 = vadd.f32 %v1736, 1.0
    %v1738 = vrcp.pop %v1737
    %1739 = vrot.lane.b32.xlu0 %v1717, 96
    %v1740 = vpop.permute.xlu0 %1739
    %v1742 = vmul.f32 %v1728, %v1740
    %1744 = vrot.lane.b32.xlu0 %v1742, 64
    %v1745 = vpop.permute.xlu0 %1744
    %v1747 = vadd.f32 %v1715, %v1745
    %v1748 = vtanh.pop %v1747
    %v1749 = vsub.f32 1.0, %v1738
    %1751 = vrot.lane.b32.xlu0 %v1748, 96
    %v1752 = vpop.permute.xlu0 %1751
    %v1754 = vmul.f32 %v1749, %v1752
    %v1755 = vmul.f32 %v1738, %v1231
    %v1756 = vadd.f32 %v1754, %v1755
    %1758 = vrot.lane.b32.xlu0 %v1756, 96
    %v1759 = vpop.permute.xlu0 %1758
    %v1760 = vsel %vm186, %v1759, 0
    %1762 = vmatprep.subr.mxu0 0.0
    %1763 = vmatpush1.msra.mxu0 0.0
    %1764 = vmatprep.subr.mxu0 0.0
    %1765 = vmatpush1.msra.mxu0 0.0
    %1766 = vmatprep.subr.mxu0 0.0
    %1767 = vmatpush1.msra.mxu0 0.0
    %1768 = vmatprep.subr.mxu0 0.0
    %1769 = vmatpush1.msra.mxu0 0.0
    %1770 = vmatprep.subr.mxu0 0.0
    %1771 = vmatpush1.msra.mxu0 0.0
    %1772 = vmatprep.subr.mxu0 0.0
    %1773 = vmatpush1.msra.mxu0 0.0
    %1774 = vmatprep.subr.mxu0 0.0
    %1775 = vmatpush1.msra.mxu0 0.0
    %1776 = vmatprep.subr.mxu0 0.0
    %1777 = vmatpush1.msra.mxu0 0.0
    %1778 = vmatprep.subr.mxu0 0.0
    %1779 = vmatpush1.msra.mxu0 0.0
    %1780 = vmatprep.subr.mxu0 0.0
    %1781 = vmatpush1.msra.mxu0 0.0
    %1782 = vmatprep.subr.mxu0 0.0
    %1783 = vmatpush1.msra.mxu0 0.0
    %1784 = vmatprep.subr.mxu0 0.0
    %1785 = vmatpush1.msra.mxu0 0.0
    %1786 = vmatprep.subr.mxu0 0.0
    %1787 = vmatpush1.msra.mxu0 %v180
    %1788 = vmatprep.subr.mxu0 0.0
    %1789 = vmatpush1.msra.mxu0 %v179
    %1790 = vmatprep.subr.mxu0 0.0
    %1791 = vmatpush1.msra.mxu0 %v178
    %1792 = vmatprep.subr.mxu0 0.0
    %1793 = vmatpush1.msra.mxu0 %v177
    %1794 = vmatprep.subr.mxu0 0.0
    %1795 = vmatpush2.msra.mxu0 0.0
    %1796 = vmatprep.subr.mxu0 0.0
    %1797 = vmatpush2.msra.mxu0 0.0
    %1798 = vmatprep.subr.mxu0 0.0
    %1799 = vmatpush2.msra.mxu0 0.0
    %1800 = vmatprep.subr.mxu0 0.0
    %1801 = vmatpush2.msra.mxu0 0.0
    %1802 = vmatprep.subr.mxu0 0.0
    %1803 = vmatpush2.msra.mxu0 0.0
    %1804 = vmatprep.subr.mxu0 0.0
    %1805 = vmatpush2.msra.mxu0 0.0
    %1806 = vmatprep.subr.mxu0 0.0
    %1807 = vmatpush2.msra.mxu0 0.0
    %1808 = vmatprep.subr.mxu0 0.0
    %1809 = vmatpush2.msra.mxu0 0.0
    %1810 = vmatprep.subr.mxu0 0.0
    %1811 = vmatpush2.msra.mxu0 0.0
    %1812 = vmatprep.subr.mxu0 0.0
    %1813 = vmatpush2.msra.mxu0 0.0
    %1814 = vmatprep.subr.mxu0 0.0
    %1815 = vmatpush2.msra.mxu0 0.0
    %1816 = vmatprep.subr.mxu0 0.0
    %1817 = vmatpush2.msra.mxu0 0.0
    %1818 = vmatprep.subr.mxu0 0.0
    %1819 = vmatpush2.msra.mxu0 0.0
    %1820 = vmatprep.subr.mxu0 0.0
    %1821 = vmatpush2.msra.mxu0 0.0
    %1822 = vmatprep.subr.mxu0 0.0
    %1823 = vmatpush2.msra.mxu0 0.0
    %1824 = vmatprep.subr.mxu0 0.0
    %1825 = vmatpush2.msra.mxu0 0.0
    %1826 = vmatprep.mubr.f32.mxu0 0.0
    %1827 = vmatmul.mubr.f32.gmra.mxu0 %v1760
    %v1828 = vpop.f32.mrf.mxu0
    %v1829 = vadd.f32 %v705, %v1828
    %v1830 = vpop.f32.mrf.mxu0
    %1831 = vdwg.mxu0
    %v1832 = vsel %vm268, %v1829, -inf
    %1833 = vmax.xlane.f32.xlu0 %v1832
    %v1834 = vpop.xlane.xlu0 %1833
    %v1835 = vsub.f32 %v1829, %v1834
    %v1836 = vmul.f32 %v1835, 1.442695
    %v1837 = vpow.pop %v1836
    %v1838 = vsel %vm268, %v1837, 0.0
    %1839 = vadd.xlane.f32.xlu0 %v1838
    %v1840 = vpop.xlane.xlu0 %1839
    %v1841 = vlog2.pop %v1840
    %v1842 = vmul.f32 %v1841, 0.6931472
    %v1843 = vadd.f32 %v1842, %v1834
    %v1844 = vsub.f32 %v1829, %v1843
    %s1845 = scalar_lea.vmem [#allocation16], 6
    %1846 = vst.msk [vmem:[%s1845] sm:$0x3] %vm268, %v1844
    %v1847 = vsel %vm268, %v1844, -inf
    %1848 = vmax.xlane.f32.xlu0 %v1847
    %v1849 = vpop.xlane.xlu0 %1848
    %vm1850 = vcmp.eq.f32.partialorder %v1844, %v1849
    %v1851 = vsel %vm1850, %v271, 16
    %v1852 = vsel %vm268, %v1851, 2147483647
    %v1853 = vand.u32 %v1852, 65535
    %v1854 = vshra.s32 %v1852, 16
    %v1855 = vcvt.s32.f32 %v1853
    %v1856 = vcvt.s32.f32 %v1854
    %1857 = vmin.xlane.f32.xlu0 %v1856
    %v1858 = vpop.xlane.xlu0 %1857
    %vm1859 = vcmp.eq.f32.partialorder %v1856, %v1858
    %v1860 = vsel %vm1859, %v1855, inf
    %1861 = vmin.xlane.f32.xlu0 %v1860
    %v1862 = vpop.xlane.xlu0 %1861
    %v1863 = vcvt.f32.s32 %v1862
    %v1864 = vcvt.f32.s32 %v1858
    %v1865 = vshll.u32 %v1864, 16
    %v1866 = vadd.s32 %v1865, %v1863
    %vm1867 = vcmp.eq.s32.totalorder %v271, %v1866
    %v1868 = vsel %vm1867, 1, 0
    %v1869 = vcvt.s32.f32 %v1868
    %vm1870 = vcmp.ne.s32.totalorder %v1866, 0
    %vm1871 = vcmp.ne.s32.totalorder %v1866, 2
    %vm1872 = vmand %vm1870, %vm1871
    %v1873 = vsel %vm1872, 1, 0
    %v1874 = vcvt.s32.f32 %v1873
    %v1875 = vmul.f32 %v1874, %v1756
    %v1876 = vadd.f32 %v1351, %v1875
    %v1877 = vadd.f32 %v1352, %v1874
    %v1879 = vsel %vm275, %v1869, 0
    %1881 = vmatprep.subr.mxu0 0.0
    %1882 = vmatpush1.msra.mxu0 0.0
    %1883 = vmatprep.subr.mxu0 0.0
    %1884 = vmatpush1.msra.mxu0 0.0
    %1885 = vmatprep.subr.mxu0 0.0
    %1886 = vmatpush1.msra.mxu0 0.0
    %1887 = vmatprep.subr.mxu0 0.0
    %1888 = vmatpush1.msra.mxu0 0.0
    %1889 = vmatprep.subr.mxu0 0.0
    %1890 = vmatpush1.msra.mxu0 0.0
    %1891 = vmatprep.subr.mxu0 0.0
    %1892 = vmatpush1.msra.mxu0 0.0
    %1893 = vmatprep.subr.mxu0 0.0
    %1894 = vmatpush1.msra.mxu0 0.0
    %1895 = vmatprep.subr.mxu0 0.0
    %1896 = vmatpush1.msra.mxu0 0.0
    %1897 = vmatprep.subr.mxu0 0.0
    %1898 = vmatpush1.msra.mxu0 0.0
    %1899 = vmatprep.subr.mxu0 0.0
    %1900 = vmatpush1.msra.mxu0 0.0
    %1901 = vmatprep.subr.mxu0 0.0
    %1902 = vmatpush1.msra.mxu0 0.0
    %1903 = vmatprep.subr.mxu0 0.0
    %1904 = vmatpush1.msra.mxu0 0.0
    %1905 = vmatprep.subr.mxu0 0.0
    %1906 = vmatpush1.msra.mxu0 0.0
    %1907 = vmatprep.subr.mxu0 0.0
    %1908 = vmatpush1.msra.mxu0 0.0
    %1909 = vmatprep.subr.mxu0 0.0
    %1910 = vmatpush1.msra.mxu0 %v146
    %1911 = vmatprep.subr.mxu0 0.0
    %1912 = vmatpush1.msra.mxu0 %v145
    %1913 = vmatprep.subr.mxu0 0.0
    %1914 = vmatpush2.msra.mxu0 0.0
    %1915 = vmatprep.subr.mxu0 0.0
    %1916 = vmatpush2.msra.mxu0 0.0
    %1917 = vmatprep.subr.mxu0 0.0
    %1918 = vmatpush2.msra.mxu0 0.0
    %1919 = vmatprep.subr.mxu0 0.0
    %1920 = vmatpush2.msra.mxu0 0.0
    %1921 = vmatprep.subr.mxu0 0.0
    %1922 = vmatpush2.msra.mxu0 0.0
    %1923 = vmatprep.subr.mxu0 0.0
    %1924 = vmatpush2.msra.mxu0 0.0
    %1925 = vmatprep.subr.mxu0 0.0
    %1926 = vmatpush2.msra.mxu0 0.0
    %1927 = vmatprep.subr.mxu0 0.0
    %1928 = vmatpush2.msra.mxu0 0.0
    %1929 = vmatprep.subr.mxu0 0.0
    %1930 = vmatpush2.msra.mxu0 0.0
    %1931 = vmatprep.subr.mxu0 0.0
    %1932 = vmatpush2.msra.mxu0 0.0
    %1933 = vmatprep.subr.mxu0 0.0
    %1934 = vmatpush2.msra.mxu0 0.0
    %1935 = vmatprep.subr.mxu0 0.0
    %1936 = vmatpush2.msra.mxu0 0.0
    %1937 = vmatprep.subr.mxu0 0.0
    %1938 = vmatpush2.msra.mxu0 0.0
    %1939 = vmatprep.subr.mxu0 0.0
    %1940 = vmatpush2.msra.mxu0 0.0
    %1941 = vmatprep.subr.mxu0 0.0
    %1942 = vmatpush2.msra.mxu0 0.0
    %1943 = vmatprep.subr.mxu0 0.0
    %1944 = vmatpush2.msra.mxu0 0.0
    %1945 = vmatprep.mubr.f32.mxu0 0.0
    %1946 = vmatmul.mubr.f32.gmra.mxu0 %v1879
    %v1947 = vpop.f32.mrf.mxu0
    %v1948 = vadd.f32 0.0, %v1947
    %v1949 = vpop.f32.mrf.mxu0
    %1950 = vdwg.mxu0
    %1951 = vmatprep.subr.mxu0 0.0
    %1952 = vmatpush1.msra.mxu0 0.0
    %1953 = vmatprep.subr.mxu0 0.0
    %1954 = vmatpush1.msra.mxu0 0.0
    %1955 = vmatprep.subr.mxu0 0.0
    %1956 = vmatpush1.msra.mxu0 0.0
    %1957 = vmatprep.subr.mxu0 0.0
    %1958 = vmatpush1.msra.mxu0 0.0
    %1959 = vmatprep.subr.mxu0 0.0
    %1960 = vmatpush1.msra.mxu0 0.0
    %1961 = vmatprep.subr.mxu0 0.0
    %1962 = vmatpush1.msra.mxu0 0.0
    %1963 = vmatprep.subr.mxu0 0.0
    %1964 = vmatpush1.msra.mxu0 0.0
    %1965 = vmatprep.subr.mxu0 0.0
    %1966 = vmatpush1.msra.mxu0 0.0
    %1967 = vmatprep.subr.mxu0 0.0
    %1968 = vmatpush1.msra.mxu0 0.0
    %1969 = vmatprep.subr.mxu0 0.0
    %1970 = vmatpush1.msra.mxu0 0.0
    %1971 = vmatprep.subr.mxu0 0.0
    %1972 = vmatpush1.msra.mxu0 0.0
    %1973 = vmatprep.subr.mxu0 0.0
    %1974 = vmatpush1.msra.mxu0 0.0
    %1975 = vmatprep.subr.mxu0 0.0
    %1976 = vmatpush1.msra.mxu0 %v150
    %1977 = vmatprep.subr.mxu0 0.0
    %1978 = vmatpush1.msra.mxu0 %v149
    %1979 = vmatprep.subr.mxu0 0.0
    %1980 = vmatpush1.msra.mxu0 %v148
    %1981 = vmatprep.subr.mxu0 0.0
    %1982 = vmatpush1.msra.mxu0 %v147
    %1983 = vmatprep.subr.mxu0 0.0
    %1984 = vmatpush2.msra.mxu0 0.0
    %1985 = vmatprep.subr.mxu0 0.0
    %1986 = vmatpush2.msra.mxu0 0.0
    %1987 = vmatprep.subr.mxu0 0.0
    %1988 = vmatpush2.msra.mxu0 0.0
    %1989 = vmatprep.subr.mxu0 0.0
    %1990 = vmatpush2.msra.mxu0 0.0
    %1991 = vmatprep.subr.mxu0 0.0
    %1992 = vmatpush2.msra.mxu0 0.0
    %1993 = vmatprep.subr.mxu0 0.0
    %1994 = vmatpush2.msra.mxu0 0.0
    %1995 = vmatprep.subr.mxu0 0.0
    %1996 = vmatpush2.msra.mxu0 0.0
    %1997 = vmatprep.subr.mxu0 0.0
    %1998 = vmatpush2.msra.mxu0 0.0
    %1999 = vmatprep.subr.mxu0 0.0
    %2000 = vmatpush2.msra.mxu0 0.0
    %2001 = vmatprep.subr.mxu0 0.0
    %2002 = vmatpush2.msra.mxu0 0.0
    %2003 = vmatprep.subr.mxu0 0.0
    %2004 = vmatpush2.msra.mxu0 0.0
    %2005 = vmatprep.subr.mxu0 0.0
    %2006 = vmatpush2.msra.mxu0 0.0
    %2007 = vmatprep.subr.mxu0 0.0
    %2008 = vmatpush2.msra.mxu0 0.0
    %2009 = vmatprep.subr.mxu0 0.0
    %2010 = vmatpush2.msra.mxu0 0.0
    %2011 = vmatprep.subr.mxu0 0.0
    %2012 = vmatpush2.msra.mxu0 0.0
    %2013 = vmatprep.subr.mxu0 0.0
    %2014 = vmatpush2.msra.mxu0 0.0
    %2015 = vmatprep.mubr.f32.mxu0 0.0
    %2016 = vmatmul.mubr.f32.gmra.mxu0 %v1760
    %v2017 = vpop.f32.mrf.mxu0
    %v2018 = vadd.f32 0.0, %v2017
    %v2019 = vpop.f32.mrf.mxu0
    %2020 = vdwg.mxu0
    %v2023 = vunpack.c.l.s4 1966171168
    %v2024 = vunpack.c.0.s8 %v2023
    %v2025 = vlaneseq
    %v2026 = vshrl.u32 %v2025, 7
    %v2027 = vsub.s32 %v2024, %v2026
    %v2028 = vrot.slane %v2018, %v2027
    %v2029 = vcombine.high %v2028, %v2028
    %v2031 = vunpack.c.l.s4 1966171168
    %v2032 = vunpack.c.0.s8 %v2031
    %v2033 = vlaneseq
    %v2034 = vshrl.u32 %v2033, 7
    %v2035 = vsub.s32 %v2032, %v2034
    %v2036 = vrot.slane %v2028, %v2035
    %v2038 = vunpack.c.l.s4 1966171168
    %v2039 = vunpack.c.0.s8 %v2038
    %v2040 = vlaneseq
    %v2041 = vshrl.u32 %v2040, 7
    %v2042 = vsub.s32 %v2039, %v2041
    %v2043 = vrot.slane %v2029, %v2042
    %v2044 = vlaneseq
    %v2045 = vshrl.u32 %v2044, 7
    %v2046 = vsub.s32 0, %v2045
    %v2047 = vrot.slane %v2036, %v2046
    %v2048 = vlaneseq
    %v2049 = vshrl.u32 %v2048, 7
    %v2050 = vsub.s32 0, %v2049
    %v2051 = vrot.slane %v2043, %v2050
    %v2054 = vadd.f32 %v260, %v2047
    %v2055 = vadd.f32 %v265, %v2051
    %v2056 = vtanh.pop %v2054
    %v2057 = vtanh.pop %v2055
    %v2058 = vmul.f32 %v2056, %v463
    %v2059 = vmul.f32 %v2057, %v463
    %v2060 = vsel %vm186, %v2058, 0.0
    %2061 = vadd.xlane.f32.xlu0 %v2060
    %v2062 = vpop.xlane.xlu0 %2061
    %v2063 = vsel %vm186, %v2059, 0.0
    %2064 = vadd.xlane.f32.xlu0 %v2063
    %v2065 = vpop.xlane.xlu0 %2064
    %v2068 = vlaneseq
    %v2069 = vshrl.u32 %v2068, 7
    %v2070 = vsub.s32 %v271, %v2069
    %v2071 = vrot.slane %v2062, %v2070
    %v2072 = vlaneseq
    %v2073 = vshrl.u32 %v2072, 7
    %v2074 = vsub.s32 %v271, %v2073
    %v2075 = vrot.slane %v2065, %v2074
    %v2076 = vsel %vm483, %v2075, %v2071
    %v2078 = vsel %vm486, %v2076, -inf
    %2079 = vmax.xlane.f32.xlu0 %v2078
    %v2080 = vpop.xlane.xlu0 %2079
    %v2082 = vlaneseq
    %v2083 = vshrl.u32 %v2082, 7
    %v2084 = vsub.s32 0, %v2083
    %v2085 = vrot.slane %v2080, %v2084
    %v2086 = vlaneseq
    %v2087 = vshrl.u32 %v2086, 7
    %v2088 = vsub.s32 1, %v2087
    %v2089 = vrot.slane %v2080, %v2088
    %v2092 = vsub.f32 %v2062, %v2085
    %v2093 = vsub.f32 %v2065, %v2089
    %v2094 = vmul.f32 %v2092, 1.442695
    %v2095 = vpow.pop %v2094
    %v2096 = vmul.f32 %v2093, 1.442695
    %v2097 = vpow.pop %v2096
    %2100 = vset.pattern.permute.xlu0 0
    %2101 = vperm.xlu0 %2100, %v2095
    %v2102 = vpop.permute.xlu0 %2101
    %2103 = vset.pattern.permute.xlu0 0
    %2104 = vperm.xlu0 %2103, %v2097
    %v2105 = vpop.permute.xlu0 %2104
    %v2106 = vlaneseq
    %v2107 = vshrl.u32 %v2106, 7
    %v2108 = vsub.s32 %v271, %v2107
    %v2109 = vrot.slane %v2102, %v2108
    %v2110 = vlaneseq
    %v2111 = vshrl.u32 %v2110, 7
    %v2112 = vsub.s32 %v271, %v2111
    %v2113 = vrot.slane %v2105, %v2112
    %v2114 = vsel %vm483, %v2113, %v2109
    %v2116 = vsel %vm486, %v2114, 0.0
    %2117 = vadd.xlane.f32.xlu0 %v2116
    %v2118 = vpop.xlane.xlu0 %2117
    %v2119 = vrcp.pop %v2118
    %v2121 = vlaneseq
    %v2122 = vshrl.u32 %v2121, 7
    %v2123 = vsub.s32 0, %v2122
    %v2124 = vrot.slane %v2119, %v2123
    %v2125 = vlaneseq
    %v2126 = vshrl.u32 %v2125, 7
    %v2127 = vsub.s32 1, %v2126
    %v2128 = vrot.slane %v2119, %v2127
    %v2131 = vmul.f32 %v2095, %v2124
    %v2132 = vmul.f32 %v2097, %v2128
    %2134 = vset.pattern.permute.xlu0 0
    %2135 = vperm.xlu0 %2134, %v2131
    %v2136 = vpop.permute.xlu0 %2135
    %2139 = vset.pattern.permute.xlu0 0
    %2140 = vperm.xlu0 %2139, %v2132
    %v2141 = vpop.permute.xlu0 %2140
    %v2143 = vmul.f32 %v2136, %v143
    %v2144 = vmul.f32 %v2141, %v144
    %v2145 = vsel %vm186, %v2143, 0.0
    %v2146 = vrot.slane %v2145, 4
    %v2147 = vadd.f32 %v2145, %v2146
    %v2148 = vrot.slane %v2147, 2
    %v2149 = vadd.f32 %v2147, %v2148
    %v2150 = vrot.slane %v2149, 1
    %v2151 = vadd.f32 %v2149, %v2150
    %v2152 = vsel %vm186, %v2144, 0.0
    %v2153 = vrot.slane %v2152, 4
    %v2154 = vadd.f32 %v2152, %v2153
    %v2155 = vrot.slane %v2154, 2
    %v2156 = vadd.f32 %v2154, %v2155
    %v2157 = vrot.slane %v2156, 1
    %v2158 = vadd.f32 %v2156, %v2157
    %v2161 = vsel %vm483, %v2158, %v2151
    %2162 = vrot.lane.b32.xlu0 %v2161, 32
    %v2163 = vpop.permute.xlu0 %2162
    %2165 = vrot.lane.b32.xlu0 %v1756, 32
    %v2166 = vpop.permute.xlu0 %2165
    %v2168 = vsel %vm186, %v1948, %v2163
    %v2169 = vsel %vm575, %v2168, %v2166
    %v2171 = vsel %vm588, %v2169, 0
    %2173 = vmatprep.subr.mxu0 0.0
    %2174 = vmatpush1.msra.mxu0 0.0
    %2175 = vmatprep.subr.mxu0 0.0
    %2176 = vmatpush1.msra.mxu0 0.0
    %2177 = vmatprep.subr.mxu0 0.0
    %2178 = vmatpush1.msra.mxu0 0.0
    %2179 = vmatprep.subr.mxu0 0.0
    %2180 = vmatpush1.msra.mxu0 0.0
    %2181 = vmatprep.subr.mxu0 %v175
    %2182 = vmatpush1.msra.mxu0 %v174
    %2183 = vmatprep.subr.mxu0 %v173
    %2184 = vmatpush1.msra.mxu0 %v172
    %2185 = vmatprep.subr.mxu0 %v171
    %2186 = vmatpush1.msra.mxu0 %v170
    %2187 = vmatprep.subr.mxu0 %v169
    %2188 = vmatpush1.msra.mxu0 %v168
    %2189 = vmatprep.subr.mxu0 %v167
    %2190 = vmatpush1.msra.mxu0 %v166
    %2191 = vmatprep.subr.mxu0 %v165
    %2192 = vmatpush1.msra.mxu0 %v164
    %2193 = vmatprep.subr.mxu0 %v163
    %2194 = vmatpush1.msra.mxu0 %v162
    %2195 = vmatprep.subr.mxu0 %v161
    %2196 = vmatpush1.msra.mxu0 %v160
    %2197 = vmatprep.subr.mxu0 %v159
    %2198 = vmatpush1.msra.mxu0 %v158
    %2199 = vmatprep.subr.mxu0 %v157
    %2200 = vmatpush1.msra.mxu0 %v156
    %2201 = vmatprep.subr.mxu0 %v155
    %2202 = vmatpush1.msra.mxu0 %v154
    %2203 = vmatprep.subr.mxu0 %v153
    %2204 = vmatpush1.msra.mxu0 %v152
    %2205 = vmatprep.subr.mxu0 0.0
    %2206 = vmatpush2.msra.mxu0 0.0
    %2207 = vmatprep.subr.mxu0 0.0
    %2208 = vmatpush2.msra.mxu0 0.0
    %2209 = vmatprep.subr.mxu0 0.0
    %2210 = vmatpush2.msra.mxu0 0.0
    %2211 = vmatprep.subr.mxu0 0.0
    %2212 = vmatpush2.msra.mxu0 0.0
    %2213 = vmatprep.subr.mxu0 0.0
    %2214 = vmatpush2.msra.mxu0 0.0
    %2215 = vmatprep.subr.mxu0 0.0
    %2216 = vmatpush2.msra.mxu0 0.0
    %2217 = vmatprep.subr.mxu0 0.0
    %2218 = vmatpush2.msra.mxu0 0.0
    %2219 = vmatprep.subr.mxu0 0.0
    %2220 = vmatpush2.msra.mxu0 0.0
    %2221 = vmatprep.subr.mxu0 0.0
    %2222 = vmatpush2.msra.mxu0 0.0
    %2223 = vmatprep.subr.mxu0 0.0
    %2224 = vmatpush2.msra.mxu0 0.0
    %2225 = vmatprep.subr.mxu0 0.0
    %2226 = vmatpush2.msra.mxu0 0.0
    %2227 = vmatprep.subr.mxu0 0.0
    %2228 = vmatpush2.msra.mxu0 0.0
    %2229 = vmatprep.subr.mxu0 0.0
    %2230 = vmatpush2.msra.mxu0 0.0
    %2231 = vmatprep.subr.mxu0 0.0
    %2232 = vmatpush2.msra.mxu0 0.0
    %2233 = vmatprep.subr.mxu0 0.0
    %2234 = vmatpush2.msra.mxu0 0.0
    %2235 = vmatprep.subr.mxu0 0.0
    %2236 = vmatpush2.msra.mxu0 0.0
    %2237 = vmatprep.mubr.f32.mxu0 0.0
    %2238 = vmatmul.mubr.f32.gmra.mxu0 %v2171
    %v2239 = vpop.f32.mrf.mxu0
    %v2240 = vadd.f32 %v581, %v2239
    %v2241 = vpop.f32.mrf.mxu0
    %v2242 = vadd.f32 %v585, %v2241
    %2243 = vdwg.mxu0
    %2245 = vrot.lane.b32.xlu0 %v2240, 32
    %v2246 = vpop.permute.xlu0 %2245
    %v2248 = vadd.f32 %v2240, %v2246
    %v2249 = vsub.f32 0.0, %v2248
    %v2250 = vmul.f32 %v2249, 1.442695
    %v2251 = vpow.pop %v2250
    %v2252 = vadd.f32 %v2251, 1.0
    %v2253 = vrcp.pop %v2252
    %2255 = vrot.lane.b32.xlu0 %v2242, 32
    %v2256 = vpop.permute.xlu0 %2255
    %v2258 = vadd.f32 %v2240, %v2256
    %v2259 = vsub.f32 0.0, %v2258
    %v2260 = vmul.f32 %v2259, 1.442695
    %v2261 = vpow.pop %v2260
    %v2262 = vadd.f32 %v2261, 1.0
    %v2263 = vrcp.pop %v2262
    %2264 = vrot.lane.b32.xlu0 %v2242, 96
    %v2265 = vpop.permute.xlu0 %2264
    %v2267 = vmul.f32 %v2253, %v2265
    %2269 = vrot.lane.b32.xlu0 %v2267, 64
    %v2270 = vpop.permute.xlu0 %2269
    %v2272 = vadd.f32 %v2240, %v2270
    %v2273 = vtanh.pop %v2272
    %v2274 = vsub.f32 1.0, %v2263
    %2276 = vrot.lane.b32.xlu0 %v2273, 96
    %v2277 = vpop.permute.xlu0 %2276
    %v2279 = vmul.f32 %v2274, %v2277
    %v2280 = vmul.f32 %v2263, %v1756
    %v2281 = vadd.f32 %v2279, %v2280
    %2283 = vrot.lane.b32.xlu0 %v2281, 96
    %v2284 = vpop.permute.xlu0 %2283
    %v2285 = vsel %vm186, %v2284, 0
    %2287 = vmatprep.subr.mxu0 0.0
    %2288 = vmatpush1.msra.mxu0 0.0
    %2289 = vmatprep.subr.mxu0 0.0
    %2290 = vmatpush1.msra.mxu0 0.0
    %2291 = vmatprep.subr.mxu0 0.0
    %2292 = vmatpush1.msra.mxu0 0.0
    %2293 = vmatprep.subr.mxu0 0.0
    %2294 = vmatpush1.msra.mxu0 0.0
    %2295 = vmatprep.subr.mxu0 0.0
    %2296 = vmatpush1.msra.mxu0 0.0
    %2297 = vmatprep.subr.mxu0 0.0
    %2298 = vmatpush1.msra.mxu0 0.0
    %2299 = vmatprep.subr.mxu0 0.0
    %2300 = vmatpush1.msra.mxu0 0.0
    %2301 = vmatprep.subr.mxu0 0.0
    %2302 = vmatpush1.msra.mxu0 0.0
    %2303 = vmatprep.subr.mxu0 0.0
    %2304 = vmatpush1.msra.mxu0 0.0
    %2305 = vmatprep.subr.mxu0 0.0
    %2306 = vmatpush1.msra.mxu0 0.0
    %2307 = vmatprep.subr.mxu0 0.0
    %2308 = vmatpush1.msra.mxu0 0.0
    %2309 = vmatprep.subr.mxu0 0.0
    %2310 = vmatpush1.msra.mxu0 0.0
    %2311 = vmatprep.subr.mxu0 0.0
    %2312 = vmatpush1.msra.mxu0 %v180
    %2313 = vmatprep.subr.mxu0 0.0
    %2314 = vmatpush1.msra.mxu0 %v179
    %2315 = vmatprep.subr.mxu0 0.0
    %2316 = vmatpush1.msra.mxu0 %v178
    %2317 = vmatprep.subr.mxu0 0.0
    %2318 = vmatpush1.msra.mxu0 %v177
    %2319 = vmatprep.subr.mxu0 0.0
    %2320 = vmatpush2.msra.mxu0 0.0
    %2321 = vmatprep.subr.mxu0 0.0
    %2322 = vmatpush2.msra.mxu0 0.0
    %2323 = vmatprep.subr.mxu0 0.0
    %2324 = vmatpush2.msra.mxu0 0.0
    %2325 = vmatprep.subr.mxu0 0.0
    %2326 = vmatpush2.msra.mxu0 0.0
    %2327 = vmatprep.subr.mxu0 0.0
    %2328 = vmatpush2.msra.mxu0 0.0
    %2329 = vmatprep.subr.mxu0 0.0
    %2330 = vmatpush2.msra.mxu0 0.0
    %2331 = vmatprep.subr.mxu0 0.0
    %2332 = vmatpush2.msra.mxu0 0.0
    %2333 = vmatprep.subr.mxu0 0.0
    %2334 = vmatpush2.msra.mxu0 0.0
    %2335 = vmatprep.subr.mxu0 0.0
    %2336 = vmatpush2.msra.mxu0 0.0
    %2337 = vmatprep.subr.mxu0 0.0
    %2338 = vmatpush2.msra.mxu0 0.0
    %2339 = vmatprep.subr.mxu0 0.0
    %2340 = vmatpush2.msra.mxu0 0.0
    %2341 = vmatprep.subr.mxu0 0.0
    %2342 = vmatpush2.msra.mxu0 0.0
    %2343 = vmatprep.subr.mxu0 0.0
    %2344 = vmatpush2.msra.mxu0 0.0
    %2345 = vmatprep.subr.mxu0 0.0
    %2346 = vmatpush2.msra.mxu0 0.0
    %2347 = vmatprep.subr.mxu0 0.0
    %2348 = vmatpush2.msra.mxu0 0.0
    %2349 = vmatprep.subr.mxu0 0.0
    %2350 = vmatpush2.msra.mxu0 0.0
    %2351 = vmatprep.mubr.f32.mxu0 0.0
    %2352 = vmatmul.mubr.f32.gmra.mxu0 %v2285
    %v2353 = vpop.f32.mrf.mxu0
    %v2354 = vadd.f32 %v705, %v2353
    %v2355 = vpop.f32.mrf.mxu0
    %2356 = vdwg.mxu0
    %v2357 = vsel %vm268, %v2354, -inf
    %2358 = vmax.xlane.f32.xlu0 %v2357
    %v2359 = vpop.xlane.xlu0 %2358
    %v2360 = vsub.f32 %v2354, %v2359
    %v2361 = vmul.f32 %v2360, 1.442695
    %v2362 = vpow.pop %v2361
    %v2363 = vsel %vm268, %v2362, 0.0
    %2364 = vadd.xlane.f32.xlu0 %v2363
    %v2365 = vpop.xlane.xlu0 %2364
    %v2366 = vlog2.pop %v2365
    %v2367 = vmul.f32 %v2366, 0.6931472
    %v2368 = vadd.f32 %v2367, %v2359
    %v2369 = vsub.f32 %v2354, %v2368
    %s2370 = scalar_lea.vmem [#allocation16], 8
    %2371 = vst.msk [vmem:[%s2370] sm:$0x3] %vm268, %v2369
    %v2372 = vsel %vm268, %v2369, -inf
    %2373 = vmax.xlane.f32.xlu0 %v2372
    %v2374 = vpop.xlane.xlu0 %2373
    %vm2375 = vcmp.eq.f32.partialorder %v2369, %v2374
    %v2376 = vsel %vm2375, %v271, 16
    %v2377 = vsel %vm268, %v2376, 2147483647
    %v2378 = vand.u32 %v2377, 65535
    %v2379 = vshra.s32 %v2377, 16
    %v2380 = vcvt.s32.f32 %v2378
    %v2381 = vcvt.s32.f32 %v2379
    %2382 = vmin.xlane.f32.xlu0 %v2381
    %v2383 = vpop.xlane.xlu0 %2382
    %vm2384 = vcmp.eq.f32.partialorder %v2381, %v2383
    %v2385 = vsel %vm2384, %v2380, inf
    %2386 = vmin.xlane.f32.xlu0 %v2385
    %v2387 = vpop.xlane.xlu0 %2386
    %v2388 = vcvt.f32.s32 %v2387
    %v2389 = vcvt.f32.s32 %v2383
    %v2390 = vshll.u32 %v2389, 16
    %v2391 = vadd.s32 %v2390, %v2388
    %vm2392 = vcmp.eq.s32.totalorder %v271, %v2391
    %v2393 = vsel %vm2392, 1, 0
    %v2394 = vcvt.s32.f32 %v2393
    %vm2395 = vcmp.ne.s32.totalorder %v2391, 0
    %vm2396 = vcmp.ne.s32.totalorder %v2391, 2
    %vm2397 = vmand %vm2395, %vm2396
    %v2398 = vsel %vm2397, 1, 0
    %v2399 = vcvt.s32.f32 %v2398
    %v2400 = vmul.f32 %v2399, %v2281
    %v2401 = vadd.f32 %v1876, %v2400
    %v2402 = vadd.f32 %v1877, %v2399
    %v2404 = vsel %vm275, %v2394, 0
    %2406 = vmatprep.subr.mxu0 0.0
    %2407 = vmatpush1.msra.mxu0 0.0
    %2408 = vmatprep.subr.mxu0 0.0
    %2409 = vmatpush1.msra.mxu0 0.0
    %2410 = vmatprep.subr.mxu0 0.0
    %2411 = vmatpush1.msra.mxu0 0.0
    %2412 = vmatprep.subr.mxu0 0.0
    %2413 = vmatpush1.msra.mxu0 0.0
    %2414 = vmatprep.subr.mxu0 0.0
    %2415 = vmatpush1.msra.mxu0 0.0
    %2416 = vmatprep.subr.mxu0 0.0
    %2417 = vmatpush1.msra.mxu0 0.0
    %2418 = vmatprep.subr.mxu0 0.0
    %2419 = vmatpush1.msra.mxu0 0.0
    %2420 = vmatprep.subr.mxu0 0.0
    %2421 = vmatpush1.msra.mxu0 0.0
    %2422 = vmatprep.subr.mxu0 0.0
    %2423 = vmatpush1.msra.mxu0 0.0
    %2424 = vmatprep.subr.mxu0 0.0
    %2425 = vmatpush1.msra.mxu0 0.0
    %2426 = vmatprep.subr.mxu0 0.0
    %2427 = vmatpush1.msra.mxu0 0.0
    %2428 = vmatprep.subr.mxu0 0.0
    %2429 = vmatpush1.msra.mxu0 0.0
    %2430 = vmatprep.subr.mxu0 0.0
    %2431 = vmatpush1.msra.mxu0 0.0
    %2432 = vmatprep.subr.mxu0 0.0
    %2433 = vmatpush1.msra.mxu0 0.0
    %2434 = vmatprep.subr.mxu0 0.0
    %2435 = vmatpush1.msra.mxu0 %v146
    %2436 = vmatprep.subr.mxu0 0.0
    %2437 = vmatpush1.msra.mxu0 %v145
    %2438 = vmatprep.subr.mxu0 0.0
    %2439 = vmatpush2.msra.mxu0 0.0
    %2440 = vmatprep.subr.mxu0 0.0
    %2441 = vmatpush2.msra.mxu0 0.0
    %2442 = vmatprep.subr.mxu0 0.0
    %2443 = vmatpush2.msra.mxu0 0.0
    %2444 = vmatprep.subr.mxu0 0.0
    %2445 = vmatpush2.msra.mxu0 0.0
    %2446 = vmatprep.subr.mxu0 0.0
    %2447 = vmatpush2.msra.mxu0 0.0
    %2448 = vmatprep.subr.mxu0 0.0
    %2449 = vmatpush2.msra.mxu0 0.0
    %2450 = vmatprep.subr.mxu0 0.0
    %2451 = vmatpush2.msra.mxu0 0.0
    %2452 = vmatprep.subr.mxu0 0.0
    %2453 = vmatpush2.msra.mxu0 0.0
    %2454 = vmatprep.subr.mxu0 0.0
    %2455 = vmatpush2.msra.mxu0 0.0
    %2456 = vmatprep.subr.mxu0 0.0
    %2457 = vmatpush2.msra.mxu0 0.0
    %2458 = vmatprep.subr.mxu0 0.0
    %2459 = vmatpush2.msra.mxu0 0.0
    %2460 = vmatprep.subr.mxu0 0.0
    %2461 = vmatpush2.msra.mxu0 0.0
    %2462 = vmatprep.subr.mxu0 0.0
    %2463 = vmatpush2.msra.mxu0 0.0
    %2464 = vmatprep.subr.mxu0 0.0
    %2465 = vmatpush2.msra.mxu0 0.0
    %2466 = vmatprep.subr.mxu0 0.0
    %2467 = vmatpush2.msra.mxu0 0.0
    %2468 = vmatprep.subr.mxu0 0.0
    %2469 = vmatpush2.msra.mxu0 0.0
    %2470 = vmatprep.mubr.f32.mxu0 0.0
    %2471 = vmatmul.mubr.f32.gmra.mxu0 %v2404
    %v2472 = vpop.f32.mrf.mxu0
    %v2473 = vadd.f32 0.0, %v2472
    %v2474 = vpop.f32.mrf.mxu0
    %2475 = vdwg.mxu0
    %2476 = vmatprep.subr.mxu0 0.0
    %2477 = vmatpush1.msra.mxu0 0.0
    %2478 = vmatprep.subr.mxu0 0.0
    %2479 = vmatpush1.msra.mxu0 0.0
    %2480 = vmatprep.subr.mxu0 0.0
    %2481 = vmatpush1.msra.mxu0 0.0
    %2482 = vmatprep.subr.mxu0 0.0
    %2483 = vmatpush1.msra.mxu0 0.0
    %2484 = vmatprep.subr.mxu0 0.0
    %2485 = vmatpush1.msra.mxu0 0.0
    %2486 = vmatprep.subr.mxu0 0.0
    %2487 = vmatpush1.msra.mxu0 0.0
    %2488 = vmatprep.subr.mxu0 0.0
    %2489 = vmatpush1.msra.mxu0 0.0
    %2490 = vmatprep.subr.mxu0 0.0
    %2491 = vmatpush1.msra.mxu0 0.0
    %2492 = vmatprep.subr.mxu0 0.0
    %2493 = vmatpush1.msra.mxu0 0.0
    %2494 = vmatprep.subr.mxu0 0.0
    %2495 = vmatpush1.msra.mxu0 0.0
    %2496 = vmatprep.subr.mxu0 0.0
    %2497 = vmatpush1.msra.mxu0 0.0
    %2498 = vmatprep.subr.mxu0 0.0
    %2499 = vmatpush1.msra.mxu0 0.0
    %2500 = vmatprep.subr.mxu0 0.0
    %2501 = vmatpush1.msra.mxu0 %v150
    %2502 = vmatprep.subr.mxu0 0.0
    %2503 = vmatpush1.msra.mxu0 %v149
    %2504 = vmatprep.subr.mxu0 0.0
    %2505 = vmatpush1.msra.mxu0 %v148
    %2506 = vmatprep.subr.mxu0 0.0
    %2507 = vmatpush1.msra.mxu0 %v147
    %2508 = vmatprep.subr.mxu0 0.0
    %2509 = vmatpush2.msra.mxu0 0.0
    %2510 = vmatprep.subr.mxu0 0.0
    %2511 = vmatpush2.msra.mxu0 0.0
    %2512 = vmatprep.subr.mxu0 0.0
    %2513 = vmatpush2.msra.mxu0 0.0
    %2514 = vmatprep.subr.mxu0 0.0
    %2515 = vmatpush2.msra.mxu0 0.0
    %2516 = vmatprep.subr.mxu0 0.0
    %2517 = vmatpush2.msra.mxu0 0.0
    %2518 = vmatprep.subr.mxu0 0.0
    %2519 = vmatpush2.msra.mxu0 0.0
    %2520 = vmatprep.subr.mxu0 0.0
    %2521 = vmatpush2.msra.mxu0 0.0
    %2522 = vmatprep.subr.mxu0 0.0
    %2523 = vmatpush2.msra.mxu0 0.0
    %2524 = vmatprep.subr.mxu0 0.0
    %2525 = vmatpush2.msra.mxu0 0.0
    %2526 = vmatprep.subr.mxu0 0.0
    %2527 = vmatpush2.msra.mxu0 0.0
    %2528 = vmatprep.subr.mxu0 0.0
    %2529 = vmatpush2.msra.mxu0 0.0
    %2530 = vmatprep.subr.mxu0 0.0
    %2531 = vmatpush2.msra.mxu0 0.0
    %2532 = vmatprep.subr.mxu0 0.0
    %2533 = vmatpush2.msra.mxu0 0.0
    %2534 = vmatprep.subr.mxu0 0.0
    %2535 = vmatpush2.msra.mxu0 0.0
    %2536 = vmatprep.subr.mxu0 0.0
    %2537 = vmatpush2.msra.mxu0 0.0
    %2538 = vmatprep.subr.mxu0 0.0
    %2539 = vmatpush2.msra.mxu0 0.0
    %2540 = vmatprep.mubr.f32.mxu0 0.0
    %2541 = vmatmul.mubr.f32.gmra.mxu0 %v2285
    %v2542 = vpop.f32.mrf.mxu0
    %v2543 = vadd.f32 0.0, %v2542
    %v2544 = vpop.f32.mrf.mxu0
    %2545 = vdwg.mxu0
    %v2548 = vunpack.c.l.s4 1966171168
    %v2549 = vunpack.c.0.s8 %v2548
    %v2550 = vlaneseq
    %v2551 = vshrl.u32 %v2550, 7
    %v2552 = vsub.s32 %v2549, %v2551
    %v2553 = vrot.slane %v2543, %v2552
    %v2554 = vcombine.high %v2553, %v2553
    %v2556 = vunpack.c.l.s4 1966171168
    %v2557 = vunpack.c.0.s8 %v2556
    %v2558 = vlaneseq
    %v2559 = vshrl.u32 %v2558, 7
    %v2560 = vsub.s32 %v2557, %v2559
    %v2561 = vrot.slane %v2553, %v2560
    %v2563 = vunpack.c.l.s4 1966171168
    %v2564 = vunpack.c.0.s8 %v2563
    %v2565 = vlaneseq
    %v2566 = vshrl.u32 %v2565, 7
    %v2567 = vsub.s32 %v2564, %v2566
    %v2568 = vrot.slane %v2554, %v2567
    %v2569 = vlaneseq
    %v2570 = vshrl.u32 %v2569, 7
    %v2571 = vsub.s32 0, %v2570
    %v2572 = vrot.slane %v2561, %v2571
    %v2573 = vlaneseq
    %v2574 = vshrl.u32 %v2573, 7
    %v2575 = vsub.s32 0, %v2574
    %v2576 = vrot.slane %v2568, %v2575
    %v2579 = vadd.f32 %v260, %v2572
    %v2580 = vadd.f32 %v265, %v2576
    %v2581 = vtanh.pop %v2579
    %v2582 = vtanh.pop %v2580
    %v2583 = vmul.f32 %v2581, %v463
    %v2584 = vmul.f32 %v2582, %v463
    %v2585 = vsel %vm186, %v2583, 0.0
    %2586 = vadd.xlane.f32.xlu0 %v2585
    %v2587 = vpop.xlane.xlu0 %2586
    %v2588 = vsel %vm186, %v2584, 0.0
    %2589 = vadd.xlane.f32.xlu0 %v2588
    %v2590 = vpop.xlane.xlu0 %2589
    %v2593 = vlaneseq
    %v2594 = vshrl.u32 %v2593, 7
    %v2595 = vsub.s32 %v271, %v2594
    %v2596 = vrot.slane %v2587, %v2595
    %v2597 = vlaneseq
    %v2598 = vshrl.u32 %v2597, 7
    %v2599 = vsub.s32 %v271, %v2598
    %v2600 = vrot.slane %v2590, %v2599
    %v2601 = vsel %vm483, %v2600, %v2596
    %v2603 = vsel %vm486, %v2601, -inf
    %2604 = vmax.xlane.f32.xlu0 %v2603
    %v2605 = vpop.xlane.xlu0 %2604
    %v2607 = vlaneseq
    %v2608 = vshrl.u32 %v2607, 7
    %v2609 = vsub.s32 0, %v2608
    %v2610 = vrot.slane %v2605, %v2609
    %v2611 = vlaneseq
    %v2612 = vshrl.u32 %v2611, 7
    %v2613 = vsub.s32 1, %v2612
    %v2614 = vrot.slane %v2605, %v2613
    %v2617 = vsub.f32 %v2587, %v2610
    %v2618 = vsub.f32 %v2590, %v2614
    %v2619 = vmul.f32 %v2617, 1.442695
    %v2620 = vpow.pop %v2619
    %v2621 = vmul.f32 %v2618, 1.442695
    %v2622 = vpow.pop %v2621
    %2625 = vset.pattern.permute.xlu0 0
    %2626 = vperm.xlu0 %2625, %v2620
    %v2627 = vpop.permute.xlu0 %2626
    %2628 = vset.pattern.permute.xlu0 0
    %2629 = vperm.xlu0 %2628, %v2622
    %v2630 = vpop.permute.xlu0 %2629
    %v2631 = vlaneseq
    %v2632 = vshrl.u32 %v2631, 7
    %v2633 = vsub.s32 %v271, %v2632
    %v2634 = vrot.slane %v2627, %v2633
    %v2635 = vlaneseq
    %v2636 = vshrl.u32 %v2635, 7
    %v2637 = vsub.s32 %v271, %v2636
    %v2638 = vrot.slane %v2630, %v2637
    %v2639 = vsel %vm483, %v2638, %v2634
    %v2641 = vsel %vm486, %v2639, 0.0
    %2642 = vadd.xlane.f32.xlu0 %v2641
    %v2643 = vpop.xlane.xlu0 %2642
    %v2644 = vrcp.pop %v2643
    %v2646 = vlaneseq
    %v2647 = vshrl.u32 %v2646, 7
    %v2648 = vsub.s32 0, %v2647
    %v2649 = vrot.slane %v2644, %v2648
    %v2650 = vlaneseq
    %v2651 = vshrl.u32 %v2650, 7
    %v2652 = vsub.s32 1, %v2651
    %v2653 = vrot.slane %v2644, %v2652
    %v2656 = vmul.f32 %v2620, %v2649
    %v2657 = vmul.f32 %v2622, %v2653
    %2659 = vset.pattern.permute.xlu0 0
    %2660 = vperm.xlu0 %2659, %v2656
    %v2661 = vpop.permute.xlu0 %2660
    %2664 = vset.pattern.permute.xlu0 0
    %2665 = vperm.xlu0 %2664, %v2657
    %v2666 = vpop.permute.xlu0 %2665
    %v2668 = vmul.f32 %v2661, %v143
    %v2669 = vmul.f32 %v2666, %v144
    %v2670 = vsel %vm186, %v2668, 0.0
    %v2671 = vrot.slane %v2670, 4
    %v2672 = vadd.f32 %v2670, %v2671
    %v2673 = vrot.slane %v2672, 2
    %v2674 = vadd.f32 %v2672, %v2673
    %v2675 = vrot.slane %v2674, 1
    %v2676 = vadd.f32 %v2674, %v2675
    %v2677 = vsel %vm186, %v2669, 0.0
    %v2678 = vrot.slane %v2677, 4
    %v2679 = vadd.f32 %v2677, %v2678
    %v2680 = vrot.slane %v2679, 2
    %v2681 = vadd.f32 %v2679, %v2680
    %v2682 = vrot.slane %v2681, 1
    %v2683 = vadd.f32 %v2681, %v2682
    %v2686 = vsel %vm483, %v2683, %v2676
    %2687 = vrot.lane.b32.xlu0 %v2686, 32
    %v2688 = vpop.permute.xlu0 %2687
    %2690 = vrot.lane.b32.xlu0 %v2281, 32
    %v2691 = vpop.permute.xlu0 %2690
    %v2693 = vsel %vm186, %v2473, %v2688
    %v2694 = vsel %vm575, %v2693, %v2691
    %v2696 = vsel %vm588, %v2694, 0
    %2698 = vmatprep.subr.mxu0 0.0
    %2699 = vmatpush1.msra.mxu0 0.0
    %2700 = vmatprep.subr.mxu0 0.0
    %2701 = vmatpush1.msra.mxu0 0.0
    %2702 = vmatprep.subr.mxu0 0.0
    %2703 = vmatpush1.msra.mxu0 0.0
    %2704 = vmatprep.subr.mxu0 0.0
    %2705 = vmatpush1.msra.mxu0 0.0
    %2706 = vmatprep.subr.mxu0 %v175
    %2707 = vmatpush1.msra.mxu0 %v174
    %2708 = vmatprep.subr.mxu0 %v173
    %2709 = vmatpush1.msra.mxu0 %v172
    %2710 = vmatprep.subr.mxu0 %v171
    %2711 = vmatpush1.msra.mxu0 %v170
    %2712 = vmatprep.subr.mxu0 %v169
    %2713 = vmatpush1.msra.mxu0 %v168
    %2714 = vmatprep.subr.mxu0 %v167
    %2715 = vmatpush1.msra.mxu0 %v166
    %2716 = vmatprep.subr.mxu0 %v165
    %2717 = vmatpush1.msra.mxu0 %v164
    %2718 = vmatprep.subr.mxu0 %v163
    %2719 = vmatpush1.msra.mxu0 %v162
    %2720 = vmatprep.subr.mxu0 %v161
    %2721 = vmatpush1.msra.mxu0 %v160
    %2722 = vmatprep.subr.mxu0 %v159
    %2723 = vmatpush1.msra.mxu0 %v158
    %2724 = vmatprep.subr.mxu0 %v157
    %2725 = vmatpush1.msra.mxu0 %v156
    %2726 = vmatprep.subr.mxu0 %v155
    %2727 = vmatpush1.msra.mxu0 %v154
    %2728 = vmatprep.subr.mxu0 %v153
    %2729 = vmatpush1.msra.mxu0 %v152
    %2730 = vmatprep.subr.mxu0 0.0
    %2731 = vmatpush2.msra.mxu0 0.0
    %2732 = vmatprep.subr.mxu0 0.0
    %2733 = vmatpush2.msra.mxu0 0.0
    %2734 = vmatprep.subr.mxu0 0.0
    %2735 = vmatpush2.msra.mxu0 0.0
    %2736 = vmatprep.subr.mxu0 0.0
    %2737 = vmatpush2.msra.mxu0 0.0
    %2738 = vmatprep.subr.mxu0 0.0
    %2739 = vmatpush2.msra.mxu0 0.0
    %2740 = vmatprep.subr.mxu0 0.0
    %2741 = vmatpush2.msra.mxu0 0.0
    %2742 = vmatprep.subr.mxu0 0.0
    %2743 = vmatpush2.msra.mxu0 0.0
    %2744 = vmatprep.subr.mxu0 0.0
    %2745 = vmatpush2.msra.mxu0 0.0
    %2746 = vmatprep.subr.mxu0 0.0
    %2747 = vmatpush2.msra.mxu0 0.0
    %2748 = vmatprep.subr.mxu0 0.0
    %2749 = vmatpush2.msra.mxu0 0.0
    %2750 = vmatprep.subr.mxu0 0.0
    %2751 = vmatpush2.msra.mxu0 0.0
    %2752 = vmatprep.subr.mxu0 0.0
    %2753 = vmatpush2.msra.mxu0 0.0
    %2754 = vmatprep.subr.mxu0 0.0
    %2755 = vmatpush2.msra.mxu0 0.0
    %2756 = vmatprep.subr.mxu0 0.0
    %2757 = vmatpush2.msra.mxu0 0.0
    %2758 = vmatprep.subr.mxu0 0.0
    %2759 = vmatpush2.msra.mxu0 0.0
    %2760 = vmatprep.subr.mxu0 0.0
    %2761 = vmatpush2.msra.mxu0 0.0
    %2762 = vmatprep.mubr.f32.mxu0 0.0
    %2763 = vmatmul.mubr.f32.gmra.mxu0 %v2696
    %v2764 = vpop.f32.mrf.mxu0
    %v2765 = vadd.f32 %v581, %v2764
    %v2766 = vpop.f32.mrf.mxu0
    %v2767 = vadd.f32 %v585, %v2766
    %2768 = vdwg.mxu0
    %2770 = vrot.lane.b32.xlu0 %v2765, 32
    %v2771 = vpop.permute.xlu0 %2770
    %v2773 = vadd.f32 %v2765, %v2771
    %v2774 = vsub.f32 0.0, %v2773
    %v2775 = vmul.f32 %v2774, 1.442695
    %v2776 = vpow.pop %v2775
    %v2777 = vadd.f32 %v2776, 1.0
    %v2778 = vrcp.pop %v2777
    %2780 = vrot.lane.b32.xlu0 %v2767, 32
    %v2781 = vpop.permute.xlu0 %2780
    %v2783 = vadd.f32 %v2765, %v2781
    %v2784 = vsub.f32 0.0, %v2783
    %v2785 = vmul.f32 %v2784, 1.442695
    %v2786 = vpow.pop %v2785
    %v2787 = vadd.f32 %v2786, 1.0
    %v2788 = vrcp.pop %v2787
    %2789 = vrot.lane.b32.xlu0 %v2767, 96
    %v2790 = vpop.permute.xlu0 %2789
    %v2792 = vmul.f32 %v2778, %v2790
    %2794 = vrot.lane.b32.xlu0 %v2792, 64
    %v2795 = vpop.permute.xlu0 %2794
    %v2797 = vadd.f32 %v2765, %v2795
    %v2798 = vtanh.pop %v2797
    %v2799 = vsub.f32 1.0, %v2788
    %2801 = vrot.lane.b32.xlu0 %v2798, 96
    %v2802 = vpop.permute.xlu0 %2801
    %v2804 = vmul.f32 %v2799, %v2802
    %v2805 = vmul.f32 %v2788, %v2281
    %v2806 = vadd.f32 %v2804, %v2805
    %2808 = vrot.lane.b32.xlu0 %v2806, 96
    %v2809 = vpop.permute.xlu0 %2808
    %v2810 = vsel %vm186, %v2809, 0
    %2812 = vmatprep.subr.mxu0 0.0
    %2813 = vmatpush1.msra.mxu0 0.0
    %2814 = vmatprep.subr.mxu0 0.0
    %2815 = vmatpush1.msra.mxu0 0.0
    %2816 = vmatprep.subr.mxu0 0.0
    %2817 = vmatpush1.msra.mxu0 0.0
    %2818 = vmatprep.subr.mxu0 0.0
    %2819 = vmatpush1.msra.mxu0 0.0
    %2820 = vmatprep.subr.mxu0 0.0
    %2821 = vmatpush1.msra.mxu0 0.0
    %2822 = vmatprep.subr.mxu0 0.0
    %2823 = vmatpush1.msra.mxu0 0.0
    %2824 = vmatprep.subr.mxu0 0.0
    %2825 = vmatpush1.msra.mxu0 0.0
    %2826 = vmatprep.subr.mxu0 0.0
    %2827 = vmatpush1.msra.mxu0 0.0
    %2828 = vmatprep.subr.mxu0 0.0
    %2829 = vmatpush1.msra.mxu0 0.0
    %2830 = vmatprep.subr.mxu0 0.0
    %2831 = vmatpush1.msra.mxu0 0.0
    %2832 = vmatprep.subr.mxu0 0.0
    %2833 = vmatpush1.msra.mxu0 0.0
    %2834 = vmatprep.subr.mxu0 0.0
    %2835 = vmatpush1.msra.mxu0 0.0
    %2836 = vmatprep.subr.mxu0 0.0
    %2837 = vmatpush1.msra.mxu0 %v180
    %2838 = vmatprep.subr.mxu0 0.0
    %2839 = vmatpush1.msra.mxu0 %v179
    %2840 = vmatprep.subr.mxu0 0.0
    %2841 = vmatpush1.msra.mxu0 %v178
    %2842 = vmatprep.subr.mxu0 0.0
    %2843 = vmatpush1.msra.mxu0 %v177
    %2844 = vmatprep.subr.mxu0 0.0
    %2845 = vmatpush2.msra.mxu0 0.0
    %2846 = vmatprep.subr.mxu0 0.0
    %2847 = vmatpush2.msra.mxu0 0.0
    %2848 = vmatprep.subr.mxu0 0.0
    %2849 = vmatpush2.msra.mxu0 0.0
    %2850 = vmatprep.subr.mxu0 0.0
    %2851 = vmatpush2.msra.mxu0 0.0
    %2852 = vmatprep.subr.mxu0 0.0
    %2853 = vmatpush2.msra.mxu0 0.0
    %2854 = vmatprep.subr.mxu0 0.0
    %2855 = vmatpush2.msra.mxu0 0.0
    %2856 = vmatprep.subr.mxu0 0.0
    %2857 = vmatpush2.msra.mxu0 0.0
    %2858 = vmatprep.subr.mxu0 0.0
    %2859 = vmatpush2.msra.mxu0 0.0
    %2860 = vmatprep.subr.mxu0 0.0
    %2861 = vmatpush2.msra.mxu0 0.0
    %2862 = vmatprep.subr.mxu0 0.0
    %2863 = vmatpush2.msra.mxu0 0.0
    %2864 = vmatprep.subr.mxu0 0.0
    %2865 = vmatpush2.msra.mxu0 0.0
    %2866 = vmatprep.subr.mxu0 0.0
    %2867 = vmatpush2.msra.mxu0 0.0
    %2868 = vmatprep.subr.mxu0 0.0
    %2869 = vmatpush2.msra.mxu0 0.0
    %2870 = vmatprep.subr.mxu0 0.0
    %2871 = vmatpush2.msra.mxu0 0.0
    %2872 = vmatprep.subr.mxu0 0.0
    %2873 = vmatpush2.msra.mxu0 0.0
    %2874 = vmatprep.subr.mxu0 0.0
    %2875 = vmatpush2.msra.mxu0 0.0
    %2876 = vmatprep.mubr.f32.mxu0 0.0
    %2877 = vmatmul.mubr.f32.gmra.mxu0 %v2810
    %v2878 = vpop.f32.mrf.mxu0
    %v2879 = vadd.f32 %v705, %v2878
    %v2880 = vpop.f32.mrf.mxu0
    %2881 = vdwg.mxu0
    %v2882 = vsel %vm268, %v2879, -inf
    %2883 = vmax.xlane.f32.xlu0 %v2882
    %v2884 = vpop.xlane.xlu0 %2883
    %v2885 = vsub.f32 %v2879, %v2884
    %v2886 = vmul.f32 %v2885, 1.442695
    %v2887 = vpow.pop %v2886
    %v2888 = vsel %vm268, %v2887, 0.0
    %2889 = vadd.xlane.f32.xlu0 %v2888
    %v2890 = vpop.xlane.xlu0 %2889
    %v2891 = vlog2.pop %v2890
    %v2892 = vmul.f32 %v2891, 0.6931472
    %v2893 = vadd.f32 %v2892, %v2884
    %v2894 = vsub.f32 %v2879, %v2893
    %s2895 = scalar_lea.vmem [#allocation16], 10
    %2896 = vst.msk [vmem:[%s2895] sm:$0x3] %vm268, %v2894
    %v2897 = vsel %vm268, %v2894, -inf
    %2898 = vmax.xlane.f32.xlu0 %v2897
    %v2899 = vpop.xlane.xlu0 %2898
    %vm2900 = vcmp.eq.f32.partialorder %v2894, %v2899
    %v2901 = vsel %vm2900, %v271, 16
    %v2902 = vsel %vm268, %v2901, 2147483647
    %v2903 = vand.u32 %v2902, 65535
    %v2904 = vshra.s32 %v2902, 16
    %v2905 = vcvt.s32.f32 %v2903
    %v2906 = vcvt.s32.f32 %v2904
    %2907 = vmin.xlane.f32.xlu0 %v2906
    %v2908 = vpop.xlane.xlu0 %2907
    %vm2909 = vcmp.eq.f32.partialorder %v2906, %v2908
    %v2910 = vsel %vm2909, %v2905, inf
    %2911 = vmin.xlane.f32.xlu0 %v2910
    %v2912 = vpop.xlane.xlu0 %2911
    %v2913 = vcvt.f32.s32 %v2912
    %v2914 = vcvt.f32.s32 %v2908
    %v2915 = vshll.u32 %v2914, 16
    %v2916 = vadd.s32 %v2915, %v2913
    %vm2917 = vcmp.eq.s32.totalorder %v271, %v2916
    %v2918 = vsel %vm2917, 1, 0
    %v2919 = vcvt.s32.f32 %v2918
    %vm2920 = vcmp.ne.s32.totalorder %v2916, 0
    %vm2921 = vcmp.ne.s32.totalorder %v2916, 2
    %vm2922 = vmand %vm2920, %vm2921
    %v2923 = vsel %vm2922, 1, 0
    %v2924 = vcvt.s32.f32 %v2923
    %v2925 = vmul.f32 %v2924, %v2806
    %v2926 = vadd.f32 %v2401, %v2925
    %v2927 = vadd.f32 %v2402, %v2924
    %v2929 = vsel %vm275, %v2919, 0
    %2931 = vmatprep.subr.mxu0 0.0
    %2932 = vmatpush1.msra.mxu0 0.0
    %2933 = vmatprep.subr.mxu0 0.0
    %2934 = vmatpush1.msra.mxu0 0.0
    %2935 = vmatprep.subr.mxu0 0.0
    %2936 = vmatpush1.msra.mxu0 0.0
    %2937 = vmatprep.subr.mxu0 0.0
    %2938 = vmatpush1.msra.mxu0 0.0
    %2939 = vmatprep.subr.mxu0 0.0
    %2940 = vmatpush1.msra.mxu0 0.0
    %2941 = vmatprep.subr.mxu0 0.0
    %2942 = vmatpush1.msra.mxu0 0.0
    %2943 = vmatprep.subr.mxu0 0.0
    %2944 = vmatpush1.msra.mxu0 0.0
    %2945 = vmatprep.subr.mxu0 0.0
    %2946 = vmatpush1.msra.mxu0 0.0
    %2947 = vmatprep.subr.mxu0 0.0
    %2948 = vmatpush1.msra.mxu0 0.0
    %2949 = vmatprep.subr.mxu0 0.0
    %2950 = vmatpush1.msra.mxu0 0.0
    %2951 = vmatprep.subr.mxu0 0.0
    %2952 = vmatpush1.msra.mxu0 0.0
    %2953 = vmatprep.subr.mxu0 0.0
    %2954 = vmatpush1.msra.mxu0 0.0
    %2955 = vmatprep.subr.mxu0 0.0
    %2956 = vmatpush1.msra.mxu0 0.0
    %2957 = vmatprep.subr.mxu0 0.0
    %2958 = vmatpush1.msra.mxu0 0.0
    %2959 = vmatprep.subr.mxu0 0.0
    %2960 = vmatpush1.msra.mxu0 %v146
    %2961 = vmatprep.subr.mxu0 0.0
    %2962 = vmatpush1.msra.mxu0 %v145
    %2963 = vmatprep.subr.mxu0 0.0
    %2964 = vmatpush2.msra.mxu0 0.0
    %2965 = vmatprep.subr.mxu0 0.0
    %2966 = vmatpush2.msra.mxu0 0.0
    %2967 = vmatprep.subr.mxu0 0.0
    %2968 = vmatpush2.msra.mxu0 0.0
    %2969 = vmatprep.subr.mxu0 0.0
    %2970 = vmatpush2.msra.mxu0 0.0
    %2971 = vmatprep.subr.mxu0 0.0
    %2972 = vmatpush2.msra.mxu0 0.0
    %2973 = vmatprep.subr.mxu0 0.0
    %2974 = vmatpush2.msra.mxu0 0.0
    %2975 = vmatprep.subr.mxu0 0.0
    %2976 = vmatpush2.msra.mxu0 0.0
    %2977 = vmatprep.subr.mxu0 0.0
    %2978 = vmatpush2.msra.mxu0 0.0
    %2979 = vmatprep.subr.mxu0 0.0
    %2980 = vmatpush2.msra.mxu0 0.0
    %2981 = vmatprep.subr.mxu0 0.0
    %2982 = vmatpush2.msra.mxu0 0.0
    %2983 = vmatprep.subr.mxu0 0.0
    %2984 = vmatpush2.msra.mxu0 0.0
    %2985 = vmatprep.subr.mxu0 0.0
    %2986 = vmatpush2.msra.mxu0 0.0
    %2987 = vmatprep.subr.mxu0 0.0
    %2988 = vmatpush2.msra.mxu0 0.0
    %2989 = vmatprep.subr.mxu0 0.0
    %2990 = vmatpush2.msra.mxu0 0.0
    %2991 = vmatprep.subr.mxu0 0.0
    %2992 = vmatpush2.msra.mxu0 0.0
    %2993 = vmatprep.subr.mxu0 0.0
    %2994 = vmatpush2.msra.mxu0 0.0
    %2995 = vmatprep.mubr.f32.mxu0 0.0
    %2996 = vmatmul.mubr.f32.gmra.mxu0 %v2929
    %v2997 = vpop.f32.mrf.mxu0
    %v2998 = vadd.f32 0.0, %v2997
    %v2999 = vpop.f32.mrf.mxu0
    %3000 = vdwg.mxu0
    %3001 = vmatprep.subr.mxu0 0.0
    %3002 = vmatpush1.msra.mxu0 0.0
    %3003 = vmatprep.subr.mxu0 0.0
    %3004 = vmatpush1.msra.mxu0 0.0
    %3005 = vmatprep.subr.mxu0 0.0
    %3006 = vmatpush1.msra.mxu0 0.0
    %3007 = vmatprep.subr.mxu0 0.0
    %3008 = vmatpush1.msra.mxu0 0.0
    %3009 = vmatprep.subr.mxu0 0.0
    %3010 = vmatpush1.msra.mxu0 0.0
    %3011 = vmatprep.subr.mxu0 0.0
    %3012 = vmatpush1.msra.mxu0 0.0
    %3013 = vmatprep.subr.mxu0 0.0
    %3014 = vmatpush1.msra.mxu0 0.0
    %3015 = vmatprep.subr.mxu0 0.0
    %3016 = vmatpush1.msra.mxu0 0.0
    %3017 = vmatprep.subr.mxu0 0.0
    %3018 = vmatpush1.msra.mxu0 0.0
    %3019 = vmatprep.subr.mxu0 0.0
    %3020 = vmatpush1.msra.mxu0 0.0
    %3021 = vmatprep.subr.mxu0 0.0
    %3022 = vmatpush1.msra.mxu0 0.0
    %3023 = vmatprep.subr.mxu0 0.0
    %3024 = vmatpush1.msra.mxu0 0.0
    %3025 = vmatprep.subr.mxu0 0.0
    %3026 = vmatpush1.msra.mxu0 %v150
    %3027 = vmatprep.subr.mxu0 0.0
    %3028 = vmatpush1.msra.mxu0 %v149
    %3029 = vmatprep.subr.mxu0 0.0
    %3030 = vmatpush1.msra.mxu0 %v148
    %3031 = vmatprep.subr.mxu0 0.0
    %3032 = vmatpush1.msra.mxu0 %v147
    %3033 = vmatprep.subr.mxu0 0.0
    %3034 = vmatpush2.msra.mxu0 0.0
    %3035 = vmatprep.subr.mxu0 0.0
    %3036 = vmatpush2.msra.mxu0 0.0
    %3037 = vmatprep.subr.mxu0 0.0
    %3038 = vmatpush2.msra.mxu0 0.0
    %3039 = vmatprep.subr.mxu0 0.0
    %3040 = vmatpush2.msra.mxu0 0.0
    %3041 = vmatprep.subr.mxu0 0.0
    %3042 = vmatpush2.msra.mxu0 0.0
    %3043 = vmatprep.subr.mxu0 0.0
    %3044 = vmatpush2.msra.mxu0 0.0
    %3045 = vmatprep.subr.mxu0 0.0
    %3046 = vmatpush2.msra.mxu0 0.0
    %3047 = vmatprep.subr.mxu0 0.0
    %3048 = vmatpush2.msra.mxu0 0.0
    %3049 = vmatprep.subr.mxu0 0.0
    %3050 = vmatpush2.msra.mxu0 0.0
    %3051 = vmatprep.subr.mxu0 0.0
    %3052 = vmatpush2.msra.mxu0 0.0
    %3053 = vmatprep.subr.mxu0 0.0
    %3054 = vmatpush2.msra.mxu0 0.0
    %3055 = vmatprep.subr.mxu0 0.0
    %3056 = vmatpush2.msra.mxu0 0.0
    %3057 = vmatprep.subr.mxu0 0.0
    %3058 = vmatpush2.msra.mxu0 0.0
    %3059 = vmatprep.subr.mxu0 0.0
    %3060 = vmatpush2.msra.mxu0 0.0
    %3061 = vmatprep.subr.mxu0 0.0
    %3062 = vmatpush2.msra.mxu0 0.0
    %3063 = vmatprep.subr.mxu0 0.0
    %3064 = vmatpush2.msra.mxu0 0.0
    %3065 = vmatprep.mubr.f32.mxu0 0.0
    %3066 = vmatmul.mubr.f32.gmra.mxu0 %v2810
    %v3067 = vpop.f32.mrf.mxu0
    %v3068 = vadd.f32 0.0, %v3067
    %v3069 = vpop.f32.mrf.mxu0
    %3070 = vdwg.mxu0
    %v3073 = vunpack.c.l.s4 1966171168
    %v3074 = vunpack.c.0.s8 %v3073
    %v3075 = vlaneseq
    %v3076 = vshrl.u32 %v3075, 7
    %v3077 = vsub.s32 %v3074, %v3076
    %v3078 = vrot.slane %v3068, %v3077
    %v3079 = vcombine.high %v3078, %v3078
    %v3081 = vunpack.c.l.s4 1966171168
    %v3082 = vunpack.c.0.s8 %v3081
    %v3083 = vlaneseq
    %v3084 = vshrl.u32 %v3083, 7
    %v3085 = vsub.s32 %v3082, %v3084
    %v3086 = vrot.slane %v3078, %v3085
    %v3088 = vunpack.c.l.s4 1966171168
    %v3089 = vunpack.c.0.s8 %v3088
    %v3090 = vlaneseq
    %v3091 = vshrl.u32 %v3090, 7
    %v3092 = vsub.s32 %v3089, %v3091
    %v3093 = vrot.slane %v3079, %v3092
    %v3094 = vlaneseq
    %v3095 = vshrl.u32 %v3094, 7
    %v3096 = vsub.s32 0, %v3095
    %v3097 = vrot.slane %v3086, %v3096
    %v3098 = vlaneseq
    %v3099 = vshrl.u32 %v3098, 7
    %v3100 = vsub.s32 0, %v3099
    %v3101 = vrot.slane %v3093, %v3100
    %v3104 = vadd.f32 %v260, %v3097
    %v3105 = vadd.f32 %v265, %v3101
    %v3106 = vtanh.pop %v3104
    %v3107 = vtanh.pop %v3105
    %v3108 = vmul.f32 %v3106, %v463
    %v3109 = vmul.f32 %v3107, %v463
    %v3110 = vsel %vm186, %v3108, 0.0
    %3111 = vadd.xlane.f32.xlu0 %v3110
    %v3112 = vpop.xlane.xlu0 %3111
    %v3113 = vsel %vm186, %v3109, 0.0
    %3114 = vadd.xlane.f32.xlu0 %v3113
    %v3115 = vpop.xlane.xlu0 %3114
    %v3118 = vlaneseq
    %v3119 = vshrl.u32 %v3118, 7
    %v3120 = vsub.s32 %v271, %v3119
    %v3121 = vrot.slane %v3112, %v3120
    %v3122 = vlaneseq
    %v3123 = vshrl.u32 %v3122, 7
    %v3124 = vsub.s32 %v271, %v3123
    %v3125 = vrot.slane %v3115, %v3124
    %v3126 = vsel %vm483, %v3125, %v3121
    %v3128 = vsel %vm486, %v3126, -inf
    %3129 = vmax.xlane.f32.xlu0 %v3128
    %v3130 = vpop.xlane.xlu0 %3129
    %v3132 = vlaneseq
    %v3133 = vshrl.u32 %v3132, 7
    %v3134 = vsub.s32 0, %v3133
    %v3135 = vrot.slane %v3130, %v3134
    %v3136 = vlaneseq
    %v3137 = vshrl.u32 %v3136, 7
    %v3138 = vsub.s32 1, %v3137
    %v3139 = vrot.slane %v3130, %v3138
    %v3142 = vsub.f32 %v3112, %v3135
    %v3143 = vsub.f32 %v3115, %v3139
    %v3144 = vmul.f32 %v3142, 1.442695
    %v3145 = vpow.pop %v3144
    %v3146 = vmul.f32 %v3143, 1.442695
    %v3147 = vpow.pop %v3146
    %3150 = vset.pattern.permute.xlu0 0
    %3151 = vperm.xlu0 %3150, %v3145
    %v3152 = vpop.permute.xlu0 %3151
    %3153 = vset.pattern.permute.xlu0 0
    %3154 = vperm.xlu0 %3153, %v3147
    %v3155 = vpop.permute.xlu0 %3154
    %v3156 = vlaneseq
    %v3157 = vshrl.u32 %v3156, 7
    %v3158 = vsub.s32 %v271, %v3157
    %v3159 = vrot.slane %v3152, %v3158
    %v3160 = vlaneseq
    %v3161 = vshrl.u32 %v3160, 7
    %v3162 = vsub.s32 %v271, %v3161
    %v3163 = vrot.slane %v3155, %v3162
    %v3164 = vsel %vm483, %v3163, %v3159
    %v3166 = vsel %vm486, %v3164, 0.0
    %3167 = vadd.xlane.f32.xlu0 %v3166
    %v3168 = vpop.xlane.xlu0 %3167
    %v3169 = vrcp.pop %v3168
    %v3171 = vlaneseq
    %v3172 = vshrl.u32 %v3171, 7
    %v3173 = vsub.s32 0, %v3172
    %v3174 = vrot.slane %v3169, %v3173
    %v3175 = vlaneseq
    %v3176 = vshrl.u32 %v3175, 7
    %v3177 = vsub.s32 1, %v3176
    %v3178 = vrot.slane %v3169, %v3177
    %v3181 = vmul.f32 %v3145, %v3174
    %v3182 = vmul.f32 %v3147, %v3178
    %3184 = vset.pattern.permute.xlu0 0
    %3185 = vperm.xlu0 %3184, %v3181
    %v3186 = vpop.permute.xlu0 %3185
    %3189 = vset.pattern.permute.xlu0 0
    %3190 = vperm.xlu0 %3189, %v3182
    %v3191 = vpop.permute.xlu0 %3190
    %v3193 = vmul.f32 %v3186, %v143
    %v3194 = vmul.f32 %v3191, %v144
    %v3195 = vsel %vm186, %v3193, 0.0
    %v3196 = vrot.slane %v3195, 4
    %v3197 = vadd.f32 %v3195, %v3196
    %v3198 = vrot.slane %v3197, 2
    %v3199 = vadd.f32 %v3197, %v3198
    %v3200 = vrot.slane %v3199, 1
    %v3201 = vadd.f32 %v3199, %v3200
    %v3202 = vsel %vm186, %v3194, 0.0
    %v3203 = vrot.slane %v3202, 4
    %v3204 = vadd.f32 %v3202, %v3203
    %v3205 = vrot.slane %v3204, 2
    %v3206 = vadd.f32 %v3204, %v3205
    %v3207 = vrot.slane %v3206, 1
    %v3208 = vadd.f32 %v3206, %v3207
    %v3211 = vsel %vm483, %v3208, %v3201
    %3212 = vrot.lane.b32.xlu0 %v3211, 32
    %v3213 = vpop.permute.xlu0 %3212
    %3215 = vrot.lane.b32.xlu0 %v2806, 32
    %v3216 = vpop.permute.xlu0 %3215
    %v3218 = vsel %vm186, %v2998, %v3213
    %v3219 = vsel %vm575, %v3218, %v3216
    %v3221 = vsel %vm588, %v3219, 0
    %3223 = vmatprep.subr.mxu0 0.0
    %3224 = vmatpush1.msra.mxu0 0.0
    %3225 = vmatprep.subr.mxu0 0.0
    %3226 = vmatpush1.msra.mxu0 0.0
    %3227 = vmatprep.subr.mxu0 0.0
    %3228 = vmatpush1.msra.mxu0 0.0
    %3229 = vmatprep.subr.mxu0 0.0
    %3230 = vmatpush1.msra.mxu0 0.0
    %3231 = vmatprep.subr.mxu0 %v175
    %3232 = vmatpush1.msra.mxu0 %v174
    %3233 = vmatprep.subr.mxu0 %v173
    %3234 = vmatpush1.msra.mxu0 %v172
    %3235 = vmatprep.subr.mxu0 %v171
    %3236 = vmatpush1.msra.mxu0 %v170
    %3237 = vmatprep.subr.mxu0 %v169
    %3238 = vmatpush1.msra.mxu0 %v168
    %3239 = vmatprep.subr.mxu0 %v167
    %3240 = vmatpush1.msra.mxu0 %v166
    %3241 = vmatprep.subr.mxu0 %v165
    %3242 = vmatpush1.msra.mxu0 %v164
    %3243 = vmatprep.subr.mxu0 %v163
    %3244 = vmatpush1.msra.mxu0 %v162
    %3245 = vmatprep.subr.mxu0 %v161
    %3246 = vmatpush1.msra.mxu0 %v160
    %3247 = vmatprep.subr.mxu0 %v159
    %3248 = vmatpush1.msra.mxu0 %v158
    %3249 = vmatprep.subr.mxu0 %v157
    %3250 = vmatpush1.msra.mxu0 %v156
    %3251 = vmatprep.subr.mxu0 %v155
    %3252 = vmatpush1.msra.mxu0 %v154
    %3253 = vmatprep.subr.mxu0 %v153
    %3254 = vmatpush1.msra.mxu0 %v152
    %3255 = vmatprep.subr.mxu0 0.0
    %3256 = vmatpush2.msra.mxu0 0.0
    %3257 = vmatprep.subr.mxu0 0.0
    %3258 = vmatpush2.msra.mxu0 0.0
    %3259 = vmatprep.subr.mxu0 0.0
    %3260 = vmatpush2.msra.mxu0 0.0
    %3261 = vmatprep.subr.mxu0 0.0
    %3262 = vmatpush2.msra.mxu0 0.0
    %3263 = vmatprep.subr.mxu0 0.0
    %3264 = vmatpush2.msra.mxu0 0.0
    %3265 = vmatprep.subr.mxu0 0.0
    %3266 = vmatpush2.msra.mxu0 0.0
    %3267 = vmatprep.subr.mxu0 0.0
    %3268 = vmatpush2.msra.mxu0 0.0
    %3269 = vmatprep.subr.mxu0 0.0
    %3270 = vmatpush2.msra.mxu0 0.0
    %3271 = vmatprep.subr.mxu0 0.0
    %3272 = vmatpush2.msra.mxu0 0.0
    %3273 = vmatprep.subr.mxu0 0.0
    %3274 = vmatpush2.msra.mxu0 0.0
    %3275 = vmatprep.subr.mxu0 0.0
    %3276 = vmatpush2.msra.mxu0 0.0
    %3277 = vmatprep.subr.mxu0 0.0
    %3278 = vmatpush2.msra.mxu0 0.0
    %3279 = vmatprep.subr.mxu0 0.0
    %3280 = vmatpush2.msra.mxu0 0.0
    %3281 = vmatprep.subr.mxu0 0.0
    %3282 = vmatpush2.msra.mxu0 0.0
    %3283 = vmatprep.subr.mxu0 0.0
    %3284 = vmatpush2.msra.mxu0 0.0
    %3285 = vmatprep.subr.mxu0 0.0
    %3286 = vmatpush2.msra.mxu0 0.0
    %3287 = vmatprep.mubr.f32.mxu0 0.0
    %3288 = vmatmul.mubr.f32.gmra.mxu0 %v3221
    %v3289 = vpop.f32.mrf.mxu0
    %v3290 = vadd.f32 %v581, %v3289
    %v3291 = vpop.f32.mrf.mxu0
    %v3292 = vadd.f32 %v585, %v3291
    %3293 = vdwg.mxu0
    %3295 = vrot.lane.b32.xlu0 %v3290, 32
    %v3296 = vpop.permute.xlu0 %3295
    %v3298 = vadd.f32 %v3290, %v3296
    %v3299 = vsub.f32 0.0, %v3298
    %v3300 = vmul.f32 %v3299, 1.442695
    %v3301 = vpow.pop %v3300
    %v3302 = vadd.f32 %v3301, 1.0
    %v3303 = vrcp.pop %v3302
    %3305 = vrot.lane.b32.xlu0 %v3292, 32
    %v3306 = vpop.permute.xlu0 %3305
    %v3308 = vadd.f32 %v3290, %v3306
    %v3309 = vsub.f32 0.0, %v3308
    %v3310 = vmul.f32 %v3309, 1.442695
    %v3311 = vpow.pop %v3310
    %v3312 = vadd.f32 %v3311, 1.0
    %v3313 = vrcp.pop %v3312
    %3314 = vrot.lane.b32.xlu0 %v3292, 96
    %v3315 = vpop.permute.xlu0 %3314
    %v3317 = vmul.f32 %v3303, %v3315
    %3319 = vrot.lane.b32.xlu0 %v3317, 64
    %v3320 = vpop.permute.xlu0 %3319
    %v3322 = vadd.f32 %v3290, %v3320
    %v3323 = vtanh.pop %v3322
    %v3324 = vsub.f32 1.0, %v3313
    %3326 = vrot.lane.b32.xlu0 %v3323, 96
    %v3327 = vpop.permute.xlu0 %3326
    %v3329 = vmul.f32 %v3324, %v3327
    %v3330 = vmul.f32 %v3313, %v2806
    %v3331 = vadd.f32 %v3329, %v3330
    %3333 = vrot.lane.b32.xlu0 %v3331, 96
    %v3334 = vpop.permute.xlu0 %3333
    %v3335 = vsel %vm186, %v3334, 0
    %3337 = vmatprep.subr.mxu0 0.0
    %3338 = vmatpush1.msra.mxu0 0.0
    %3339 = vmatprep.subr.mxu0 0.0
    %3340 = vmatpush1.msra.mxu0 0.0
    %3341 = vmatprep.subr.mxu0 0.0
    %3342 = vmatpush1.msra.mxu0 0.0
    %3343 = vmatprep.subr.mxu0 0.0
    %3344 = vmatpush1.msra.mxu0 0.0
    %3345 = vmatprep.subr.mxu0 0.0
    %3346 = vmatpush1.msra.mxu0 0.0
    %3347 = vmatprep.subr.mxu0 0.0
    %3348 = vmatpush1.msra.mxu0 0.0
    %3349 = vmatprep.subr.mxu0 0.0
    %3350 = vmatpush1.msra.mxu0 0.0
    %3351 = vmatprep.subr.mxu0 0.0
    %3352 = vmatpush1.msra.mxu0 0.0
    %3353 = vmatprep.subr.mxu0 0.0
    %3354 = vmatpush1.msra.mxu0 0.0
    %3355 = vmatprep.subr.mxu0 0.0
    %3356 = vmatpush1.msra.mxu0 0.0
    %3357 = vmatprep.subr.mxu0 0.0
    %3358 = vmatpush1.msra.mxu0 0.0
    %3359 = vmatprep.subr.mxu0 0.0
    %3360 = vmatpush1.msra.mxu0 0.0
    %3361 = vmatprep.subr.mxu0 0.0
    %3362 = vmatpush1.msra.mxu0 %v180
    %3363 = vmatprep.subr.mxu0 0.0
    %3364 = vmatpush1.msra.mxu0 %v179
    %3365 = vmatprep.subr.mxu0 0.0
    %3366 = vmatpush1.msra.mxu0 %v178
    %3367 = vmatprep.subr.mxu0 0.0
    %3368 = vmatpush1.msra.mxu0 %v177
    %3369 = vmatprep.subr.mxu0 0.0
    %3370 = vmatpush2.msra.mxu0 0.0
    %3371 = vmatprep.subr.mxu0 0.0
    %3372 = vmatpush2.msra.mxu0 0.0
    %3373 = vmatprep.subr.mxu0 0.0
    %3374 = vmatpush2.msra.mxu0 0.0
    %3375 = vmatprep.subr.mxu0 0.0
    %3376 = vmatpush2.msra.mxu0 0.0
    %3377 = vmatprep.subr.mxu0 0.0
    %3378 = vmatpush2.msra.mxu0 0.0
    %3379 = vmatprep.subr.mxu0 0.0
    %3380 = vmatpush2.msra.mxu0 0.0
    %3381 = vmatprep.subr.mxu0 0.0
    %3382 = vmatpush2.msra.mxu0 0.0
    %3383 = vmatprep.subr.mxu0 0.0
    %3384 = vmatpush2.msra.mxu0 0.0
    %3385 = vmatprep.subr.mxu0 0.0
    %3386 = vmatpush2.msra.mxu0 0.0
    %3387 = vmatprep.subr.mxu0 0.0
    %3388 = vmatpush2.msra.mxu0 0.0
    %3389 = vmatprep.subr.mxu0 0.0
    %3390 = vmatpush2.msra.mxu0 0.0
    %3391 = vmatprep.subr.mxu0 0.0
    %3392 = vmatpush2.msra.mxu0 0.0
    %3393 = vmatprep.subr.mxu0 0.0
    %3394 = vmatpush2.msra.mxu0 0.0
    %3395 = vmatprep.subr.mxu0 0.0
    %3396 = vmatpush2.msra.mxu0 0.0
    %3397 = vmatprep.subr.mxu0 0.0
    %3398 = vmatpush2.msra.mxu0 0.0
    %3399 = vmatprep.subr.mxu0 0.0
    %3400 = vmatpush2.msra.mxu0 0.0
    %3401 = vmatprep.mubr.f32.mxu0 0.0
    %3402 = vmatmul.mubr.f32.gmra.mxu0 %v3335
    %v3403 = vpop.f32.mrf.mxu0
    %v3404 = vadd.f32 %v705, %v3403
    %v3405 = vpop.f32.mrf.mxu0
    %3406 = vdwg.mxu0
    %v3407 = vsel %vm268, %v3404, -inf
    %3408 = vmax.xlane.f32.xlu0 %v3407
    %v3409 = vpop.xlane.xlu0 %3408
    %v3410 = vsub.f32 %v3404, %v3409
    %v3411 = vmul.f32 %v3410, 1.442695
    %v3412 = vpow.pop %v3411
    %v3413 = vsel %vm268, %v3412, 0.0
    %3414 = vadd.xlane.f32.xlu0 %v3413
    %v3415 = vpop.xlane.xlu0 %3414
    %v3416 = vlog2.pop %v3415
    %v3417 = vmul.f32 %v3416, 0.6931472
    %v3418 = vadd.f32 %v3417, %v3409
    %v3419 = vsub.f32 %v3404, %v3418
    %s3420 = scalar_lea.vmem [#allocation16], 12
    %3421 = vst.msk [vmem:[%s3420] sm:$0x3] %vm268, %v3419
    %v3422 = vsel %vm268, %v3419, -inf
    %3423 = vmax.xlane.f32.xlu0 %v3422
    %v3424 = vpop.xlane.xlu0 %3423
    %vm3425 = vcmp.eq.f32.partialorder %v3419, %v3424
    %v3426 = vsel %vm3425, %v271, 16
    %v3427 = vsel %vm268, %v3426, 2147483647
    %v3428 = vand.u32 %v3427, 65535
    %v3429 = vshra.s32 %v3427, 16
    %v3430 = vcvt.s32.f32 %v3428
    %v3431 = vcvt.s32.f32 %v3429
    %3432 = vmin.xlane.f32.xlu0 %v3431
    %v3433 = vpop.xlane.xlu0 %3432
    %vm3434 = vcmp.eq.f32.partialorder %v3431, %v3433
    %v3435 = vsel %vm3434, %v3430, inf
    %3436 = vmin.xlane.f32.xlu0 %v3435
    %v3437 = vpop.xlane.xlu0 %3436
    %v3438 = vcvt.f32.s32 %v3437
    %v3439 = vcvt.f32.s32 %v3433
    %v3440 = vshll.u32 %v3439, 16
    %v3441 = vadd.s32 %v3440, %v3438
    %vm3442 = vcmp.eq.s32.totalorder %v271, %v3441
    %v3443 = vsel %vm3442, 1, 0
    %v3444 = vcvt.s32.f32 %v3443
    %vm3445 = vcmp.ne.s32.totalorder %v3441, 0
    %vm3446 = vcmp.ne.s32.totalorder %v3441, 2
    %vm3447 = vmand %vm3445, %vm3446
    %v3448 = vsel %vm3447, 1, 0
    %v3449 = vcvt.s32.f32 %v3448
    %v3450 = vmul.f32 %v3449, %v3331
    %v3451 = vadd.f32 %v2926, %v3450
    %v3452 = vadd.f32 %v2927, %v3449
    %v3454 = vsel %vm275, %v3444, 0
    %3456 = vmatprep.subr.mxu0 0.0
    %3457 = vmatpush1.msra.mxu0 0.0
    %3458 = vmatprep.subr.mxu0 0.0
    %3459 = vmatpush1.msra.mxu0 0.0
    %3460 = vmatprep.subr.mxu0 0.0
    %3461 = vmatpush1.msra.mxu0 0.0
    %3462 = vmatprep.subr.mxu0 0.0
    %3463 = vmatpush1.msra.mxu0 0.0
    %3464 = vmatprep.subr.mxu0 0.0
    %3465 = vmatpush1.msra.mxu0 0.0
    %3466 = vmatprep.subr.mxu0 0.0
    %3467 = vmatpush1.msra.mxu0 0.0
    %3468 = vmatprep.subr.mxu0 0.0
    %3469 = vmatpush1.msra.mxu0 0.0
    %3470 = vmatprep.subr.mxu0 0.0
    %3471 = vmatpush1.msra.mxu0 0.0
    %3472 = vmatprep.subr.mxu0 0.0
    %3473 = vmatpush1.msra.mxu0 0.0
    %3474 = vmatprep.subr.mxu0 0.0
    %3475 = vmatpush1.msra.mxu0 0.0
    %3476 = vmatprep.subr.mxu0 0.0
    %3477 = vmatpush1.msra.mxu0 0.0
    %3478 = vmatprep.subr.mxu0 0.0
    %3479 = vmatpush1.msra.mxu0 0.0
    %3480 = vmatprep.subr.mxu0 0.0
    %3481 = vmatpush1.msra.mxu0 0.0
    %3482 = vmatprep.subr.mxu0 0.0
    %3483 = vmatpush1.msra.mxu0 0.0
    %3484 = vmatprep.subr.mxu0 0.0
    %3485 = vmatpush1.msra.mxu0 %v146
    %3486 = vmatprep.subr.mxu0 0.0
    %3487 = vmatpush1.msra.mxu0 %v145
    %3488 = vmatprep.subr.mxu0 0.0
    %3489 = vmatpush2.msra.mxu0 0.0
    %3490 = vmatprep.subr.mxu0 0.0
    %3491 = vmatpush2.msra.mxu0 0.0
    %3492 = vmatprep.subr.mxu0 0.0
    %3493 = vmatpush2.msra.mxu0 0.0
    %3494 = vmatprep.subr.mxu0 0.0
    %3495 = vmatpush2.msra.mxu0 0.0
    %3496 = vmatprep.subr.mxu0 0.0
    %3497 = vmatpush2.msra.mxu0 0.0
    %3498 = vmatprep.subr.mxu0 0.0
    %3499 = vmatpush2.msra.mxu0 0.0
    %3500 = vmatprep.subr.mxu0 0.0
    %3501 = vmatpush2.msra.mxu0 0.0
    %3502 = vmatprep.subr.mxu0 0.0
    %3503 = vmatpush2.msra.mxu0 0.0
    %3504 = vmatprep.subr.mxu0 0.0
    %3505 = vmatpush2.msra.mxu0 0.0
    %3506 = vmatprep.subr.mxu0 0.0
    %3507 = vmatpush2.msra.mxu0 0.0
    %3508 = vmatprep.subr.mxu0 0.0
    %3509 = vmatpush2.msra.mxu0 0.0
    %3510 = vmatprep.subr.mxu0 0.0
    %3511 = vmatpush2.msra.mxu0 0.0
    %3512 = vmatprep.subr.mxu0 0.0
    %3513 = vmatpush2.msra.mxu0 0.0
    %3514 = vmatprep.subr.mxu0 0.0
    %3515 = vmatpush2.msra.mxu0 0.0
    %3516 = vmatprep.subr.mxu0 0.0
    %3517 = vmatpush2.msra.mxu0 0.0
    %3518 = vmatprep.subr.mxu0 0.0
    %3519 = vmatpush2.msra.mxu0 0.0
    %3520 = vmatprep.mubr.f32.mxu0 0.0
    %3521 = vmatmul.mubr.f32.gmra.mxu0 %v3454
    %v3522 = vpop.f32.mrf.mxu0
    %v3523 = vadd.f32 0.0, %v3522
    %v3524 = vpop.f32.mrf.mxu0
    %3525 = vdwg.mxu0
    %3526 = vmatprep.subr.mxu0 0.0
    %3527 = vmatpush1.msra.mxu0 0.0
    %3528 = vmatprep.subr.mxu0 0.0
    %3529 = vmatpush1.msra.mxu0 0.0
    %3530 = vmatprep.subr.mxu0 0.0
    %3531 = vmatpush1.msra.mxu0 0.0
    %3532 = vmatprep.subr.mxu0 0.0
    %3533 = vmatpush1.msra.mxu0 0.0
    %3534 = vmatprep.subr.mxu0 0.0
    %3535 = vmatpush1.msra.mxu0 0.0
    %3536 = vmatprep.subr.mxu0 0.0
    %3537 = vmatpush1.msra.mxu0 0.0
    %3538 = vmatprep.subr.mxu0 0.0
    %3539 = vmatpush1.msra.mxu0 0.0
    %3540 = vmatprep.subr.mxu0 0.0
    %3541 = vmatpush1.msra.mxu0 0.0
    %3542 = vmatprep.subr.mxu0 0.0
    %3543 = vmatpush1.msra.mxu0 0.0
    %3544 = vmatprep.subr.mxu0 0.0
    %3545 = vmatpush1.msra.mxu0 0.0
    %3546 = vmatprep.subr.mxu0 0.0
    %3547 = vmatpush1.msra.mxu0 0.0
    %3548 = vmatprep.subr.mxu0 0.0
    %3549 = vmatpush1.msra.mxu0 0.0
    %3550 = vmatprep.subr.mxu0 0.0
    %3551 = vmatpush1.msra.mxu0 %v150
    %3552 = vmatprep.subr.mxu0 0.0
    %3553 = vmatpush1.msra.mxu0 %v149
    %3554 = vmatprep.subr.mxu0 0.0
    %3555 = vmatpush1.msra.mxu0 %v148
    %3556 = vmatprep.subr.mxu0 0.0
    %3557 = vmatpush1.msra.mxu0 %v147
    %3558 = vmatprep.subr.mxu0 0.0
    %3559 = vmatpush2.msra.mxu0 0.0
    %3560 = vmatprep.subr.mxu0 0.0
    %3561 = vmatpush2.msra.mxu0 0.0
    %3562 = vmatprep.subr.mxu0 0.0
    %3563 = vmatpush2.msra.mxu0 0.0
    %3564 = vmatprep.subr.mxu0 0.0
    %3565 = vmatpush2.msra.mxu0 0.0
    %3566 = vmatprep.subr.mxu0 0.0
    %3567 = vmatpush2.msra.mxu0 0.0
    %3568 = vmatprep.subr.mxu0 0.0
    %3569 = vmatpush2.msra.mxu0 0.0
    %3570 = vmatprep.subr.mxu0 0.0
    %3571 = vmatpush2.msra.mxu0 0.0
    %3572 = vmatprep.subr.mxu0 0.0
    %3573 = vmatpush2.msra.mxu0 0.0
    %3574 = vmatprep.subr.mxu0 0.0
    %3575 = vmatpush2.msra.mxu0 0.0
    %3576 = vmatprep.subr.mxu0 0.0
    %3577 = vmatpush2.msra.mxu0 0.0
    %3578 = vmatprep.subr.mxu0 0.0
    %3579 = vmatpush2.msra.mxu0 0.0
    %3580 = vmatprep.subr.mxu0 0.0
    %3581 = vmatpush2.msra.mxu0 0.0
    %3582 = vmatprep.subr.mxu0 0.0
    %3583 = vmatpush2.msra.mxu0 0.0
    %3584 = vmatprep.subr.mxu0 0.0
    %3585 = vmatpush2.msra.mxu0 0.0
    %3586 = vmatprep.subr.mxu0 0.0
    %3587 = vmatpush2.msra.mxu0 0.0
    %3588 = vmatprep.subr.mxu0 0.0
    %3589 = vmatpush2.msra.mxu0 0.0
    %3590 = vmatprep.mubr.f32.mxu0 0.0
    %3591 = vmatmul.mubr.f32.gmra.mxu0 %v3335
    %v3592 = vpop.f32.mrf.mxu0
    %v3593 = vadd.f32 0.0, %v3592
    %v3594 = vpop.f32.mrf.mxu0
    %3595 = vdwg.mxu0
    %v3598 = vunpack.c.l.s4 1966171168
    %v3599 = vunpack.c.0.s8 %v3598
    %v3600 = vlaneseq
    %v3601 = vshrl.u32 %v3600, 7
    %v3602 = vsub.s32 %v3599, %v3601
    %v3603 = vrot.slane %v3593, %v3602
    %v3604 = vcombine.high %v3603, %v3603
    %v3606 = vunpack.c.l.s4 1966171168
    %v3607 = vunpack.c.0.s8 %v3606
    %v3608 = vlaneseq
    %v3609 = vshrl.u32 %v3608, 7
    %v3610 = vsub.s32 %v3607, %v3609
    %v3611 = vrot.slane %v3603, %v3610
    %v3613 = vunpack.c.l.s4 1966171168
    %v3614 = vunpack.c.0.s8 %v3613
    %v3615 = vlaneseq
    %v3616 = vshrl.u32 %v3615, 7
    %v3617 = vsub.s32 %v3614, %v3616
    %v3618 = vrot.slane %v3604, %v3617
    %v3619 = vlaneseq
    %v3620 = vshrl.u32 %v3619, 7
    %v3621 = vsub.s32 0, %v3620
    %v3622 = vrot.slane %v3611, %v3621
    %v3623 = vlaneseq
    %v3624 = vshrl.u32 %v3623, 7
    %v3625 = vsub.s32 0, %v3624
    %v3626 = vrot.slane %v3618, %v3625
    %v3629 = vadd.f32 %v260, %v3622
    %v3630 = vadd.f32 %v265, %v3626
    %v3631 = vtanh.pop %v3629
    %v3632 = vtanh.pop %v3630
    %v3633 = vmul.f32 %v3631, %v463
    %v3634 = vmul.f32 %v3632, %v463
    %v3635 = vsel %vm186, %v3633, 0.0
    %3636 = vadd.xlane.f32.xlu0 %v3635
    %v3637 = vpop.xlane.xlu0 %3636
    %v3638 = vsel %vm186, %v3634, 0.0
    %3639 = vadd.xlane.f32.xlu0 %v3638
    %v3640 = vpop.xlane.xlu0 %3639
    %v3643 = vlaneseq
    %v3644 = vshrl.u32 %v3643, 7
    %v3645 = vsub.s32 %v271, %v3644
    %v3646 = vrot.slane %v3637, %v3645
    %v3647 = vlaneseq
    %v3648 = vshrl.u32 %v3647, 7
    %v3649 = vsub.s32 %v271, %v3648
    %v3650 = vrot.slane %v3640, %v3649
    %v3651 = vsel %vm483, %v3650, %v3646
    %v3653 = vsel %vm486, %v3651, -inf
    %3654 = vmax.xlane.f32.xlu0 %v3653
    %v3655 = vpop.xlane.xlu0 %3654
    %v3657 = vlaneseq
    %v3658 = vshrl.u32 %v3657, 7
    %v3659 = vsub.s32 0, %v3658
    %v3660 = vrot.slane %v3655, %v3659
    %v3661 = vlaneseq
    %v3662 = vshrl.u32 %v3661, 7
    %v3663 = vsub.s32 1, %v3662
    %v3664 = vrot.slane %v3655, %v3663
    %v3667 = vsub.f32 %v3637, %v3660
    %v3668 = vsub.f32 %v3640, %v3664
    %v3669 = vmul.f32 %v3667, 1.442695
    %v3670 = vpow.pop %v3669
    %v3671 = vmul.f32 %v3668, 1.442695
    %v3672 = vpow.pop %v3671
    %3675 = vset.pattern.permute.xlu0 0
    %3676 = vperm.xlu0 %3675, %v3670
    %v3677 = vpop.permute.xlu0 %3676
    %3678 = vset.pattern.permute.xlu0 0
    %3679 = vperm.xlu0 %3678, %v3672
    %v3680 = vpop.permute.xlu0 %3679
    %v3681 = vlaneseq
    %v3682 = vshrl.u32 %v3681, 7
    %v3683 = vsub.s32 %v271, %v3682
    %v3684 = vrot.slane %v3677, %v3683
    %v3685 = vlaneseq
    %v3686 = vshrl.u32 %v3685, 7
    %v3687 = vsub.s32 %v271, %v3686
    %v3688 = vrot.slane %v3680, %v3687
    %v3689 = vsel %vm483, %v3688, %v3684
    %v3691 = vsel %vm486, %v3689, 0.0
    %3692 = vadd.xlane.f32.xlu0 %v3691
    %v3693 = vpop.xlane.xlu0 %3692
    %v3694 = vrcp.pop %v3693
    %v3696 = vlaneseq
    %v3697 = vshrl.u32 %v3696, 7
    %v3698 = vsub.s32 0, %v3697
    %v3699 = vrot.slane %v3694, %v3698
    %v3700 = vlaneseq
    %v3701 = vshrl.u32 %v3700, 7
    %v3702 = vsub.s32 1, %v3701
    %v3703 = vrot.slane %v3694, %v3702
    %v3706 = vmul.f32 %v3670, %v3699
    %v3707 = vmul.f32 %v3672, %v3703
    %3709 = vset.pattern.permute.xlu0 0
    %3710 = vperm.xlu0 %3709, %v3706
    %v3711 = vpop.permute.xlu0 %3710
    %3714 = vset.pattern.permute.xlu0 0
    %3715 = vperm.xlu0 %3714, %v3707
    %v3716 = vpop.permute.xlu0 %3715
    %v3718 = vmul.f32 %v3711, %v143
    %v3719 = vmul.f32 %v3716, %v144
    %v3720 = vsel %vm186, %v3718, 0.0
    %v3721 = vrot.slane %v3720, 4
    %v3722 = vadd.f32 %v3720, %v3721
    %v3723 = vrot.slane %v3722, 2
    %v3724 = vadd.f32 %v3722, %v3723
    %v3725 = vrot.slane %v3724, 1
    %v3726 = vadd.f32 %v3724, %v3725
    %v3727 = vsel %vm186, %v3719, 0.0
    %v3728 = vrot.slane %v3727, 4
    %v3729 = vadd.f32 %v3727, %v3728
    %v3730 = vrot.slane %v3729, 2
    %v3731 = vadd.f32 %v3729, %v3730
    %v3732 = vrot.slane %v3731, 1
    %v3733 = vadd.f32 %v3731, %v3732
    %v3736 = vsel %vm483, %v3733, %v3726
    %3737 = vrot.lane.b32.xlu0 %v3736, 32
    %v3738 = vpop.permute.xlu0 %3737
    %3740 = vrot.lane.b32.xlu0 %v3331, 32
    %v3741 = vpop.permute.xlu0 %3740
    %v3743 = vsel %vm186, %v3523, %v3738
    %v3744 = vsel %vm575, %v3743, %v3741
    %v3746 = vsel %vm588, %v3744, 0
    %3748 = vmatprep.subr.mxu0 0.0
    %3749 = vmatpush1.msra.mxu0 0.0
    %3750 = vmatprep.subr.mxu0 0.0
    %3751 = vmatpush1.msra.mxu0 0.0
    %3752 = vmatprep.subr.mxu0 0.0
    %3753 = vmatpush1.msra.mxu0 0.0
    %3754 = vmatprep.subr.mxu0 0.0
    %3755 = vmatpush1.msra.mxu0 0.0
    %3756 = vmatprep.subr.mxu0 %v175
    %3757 = vmatpush1.msra.mxu0 %v174
    %3758 = vmatprep.subr.mxu0 %v173
    %3759 = vmatpush1.msra.mxu0 %v172
    %3760 = vmatprep.subr.mxu0 %v171
    %3761 = vmatpush1.msra.mxu0 %v170
    %3762 = vmatprep.subr.mxu0 %v169
    %3763 = vmatpush1.msra.mxu0 %v168
    %3764 = vmatprep.subr.mxu0 %v167
    %3765 = vmatpush1.msra.mxu0 %v166
    %3766 = vmatprep.subr.mxu0 %v165
    %3767 = vmatpush1.msra.mxu0 %v164
    %3768 = vmatprep.subr.mxu0 %v163
    %3769 = vmatpush1.msra.mxu0 %v162
    %3770 = vmatprep.subr.mxu0 %v161
    %3771 = vmatpush1.msra.mxu0 %v160
    %3772 = vmatprep.subr.mxu0 %v159
    %3773 = vmatpush1.msra.mxu0 %v158
    %3774 = vmatprep.subr.mxu0 %v157
    %3775 = vmatpush1.msra.mxu0 %v156
    %3776 = vmatprep.subr.mxu0 %v155
    %3777 = vmatpush1.msra.mxu0 %v154
    %3778 = vmatprep.subr.mxu0 %v153
    %3779 = vmatpush1.msra.mxu0 %v152
    %3780 = vmatprep.subr.mxu0 0.0
    %3781 = vmatpush2.msra.mxu0 0.0
    %3782 = vmatprep.subr.mxu0 0.0
    %3783 = vmatpush2.msra.mxu0 0.0
    %3784 = vmatprep.subr.mxu0 0.0
    %3785 = vmatpush2.msra.mxu0 0.0
    %3786 = vmatprep.subr.mxu0 0.0
    %3787 = vmatpush2.msra.mxu0 0.0
    %3788 = vmatprep.subr.mxu0 0.0
    %3789 = vmatpush2.msra.mxu0 0.0
    %3790 = vmatprep.subr.mxu0 0.0
    %3791 = vmatpush2.msra.mxu0 0.0
    %3792 = vmatprep.subr.mxu0 0.0
    %3793 = vmatpush2.msra.mxu0 0.0
    %3794 = vmatprep.subr.mxu0 0.0
    %3795 = vmatpush2.msra.mxu0 0.0
    %3796 = vmatprep.subr.mxu0 0.0
    %3797 = vmatpush2.msra.mxu0 0.0
    %3798 = vmatprep.subr.mxu0 0.0
    %3799 = vmatpush2.msra.mxu0 0.0
    %3800 = vmatprep.subr.mxu0 0.0
    %3801 = vmatpush2.msra.mxu0 0.0
    %3802 = vmatprep.subr.mxu0 0.0
    %3803 = vmatpush2.msra.mxu0 0.0
    %3804 = vmatprep.subr.mxu0 0.0
    %3805 = vmatpush2.msra.mxu0 0.0
    %3806 = vmatprep.subr.mxu0 0.0
    %3807 = vmatpush2.msra.mxu0 0.0
    %3808 = vmatprep.subr.mxu0 0.0
    %3809 = vmatpush2.msra.mxu0 0.0
    %3810 = vmatprep.subr.mxu0 0.0
    %3811 = vmatpush2.msra.mxu0 0.0
    %3812 = vmatprep.mubr.f32.mxu0 0.0
    %3813 = vmatmul.mubr.f32.gmra.mxu0 %v3746
    %v3814 = vpop.f32.mrf.mxu0
    %v3815 = vadd.f32 %v581, %v3814
    %v3816 = vpop.f32.mrf.mxu0
    %v3817 = vadd.f32 %v585, %v3816
    %3818 = vdwg.mxu0
    %3820 = vrot.lane.b32.xlu0 %v3815, 32
    %v3821 = vpop.permute.xlu0 %3820
    %v3823 = vadd.f32 %v3815, %v3821
    %v3824 = vsub.f32 0.0, %v3823
    %v3825 = vmul.f32 %v3824, 1.442695
    %v3826 = vpow.pop %v3825
    %v3827 = vadd.f32 %v3826, 1.0
    %v3828 = vrcp.pop %v3827
    %3830 = vrot.lane.b32.xlu0 %v3817, 32
    %v3831 = vpop.permute.xlu0 %3830
    %v3833 = vadd.f32 %v3815, %v3831
    %v3834 = vsub.f32 0.0, %v3833
    %v3835 = vmul.f32 %v3834, 1.442695
    %v3836 = vpow.pop %v3835
    %v3837 = vadd.f32 %v3836, 1.0
    %v3838 = vrcp.pop %v3837
    %3839 = vrot.lane.b32.xlu0 %v3817, 96
    %v3840 = vpop.permute.xlu0 %3839
    %v3842 = vmul.f32 %v3828, %v3840
    %3844 = vrot.lane.b32.xlu0 %v3842, 64
    %v3845 = vpop.permute.xlu0 %3844
    %v3847 = vadd.f32 %v3815, %v3845
    %v3848 = vtanh.pop %v3847
    %v3849 = vsub.f32 1.0, %v3838
    %3851 = vrot.lane.b32.xlu0 %v3848, 96
    %v3852 = vpop.permute.xlu0 %3851
    %v3854 = vmul.f32 %v3849, %v3852
    %v3855 = vmul.f32 %v3838, %v3331
    %v3856 = vadd.f32 %v3854, %v3855
    %3858 = vrot.lane.b32.xlu0 %v3856, 96
    %v3859 = vpop.permute.xlu0 %3858
    %v3860 = vsel %vm186, %v3859, 0
    %3862 = vmatprep.subr.mxu0 0.0
    %3863 = vmatpush1.msra.mxu0 0.0
    %3864 = vmatprep.subr.mxu0 0.0
    %3865 = vmatpush1.msra.mxu0 0.0
    %3866 = vmatprep.subr.mxu0 0.0
    %3867 = vmatpush1.msra.mxu0 0.0
    %3868 = vmatprep.subr.mxu0 0.0
    %3869 = vmatpush1.msra.mxu0 0.0
    %3870 = vmatprep.subr.mxu0 0.0
    %3871 = vmatpush1.msra.mxu0 0.0
    %3872 = vmatprep.subr.mxu0 0.0
    %3873 = vmatpush1.msra.mxu0 0.0
    %3874 = vmatprep.subr.mxu0 0.0
    %3875 = vmatpush1.msra.mxu0 0.0
    %3876 = vmatprep.subr.mxu0 0.0
    %3877 = vmatpush1.msra.mxu0 0.0
    %3878 = vmatprep.subr.mxu0 0.0
    %3879 = vmatpush1.msra.mxu0 0.0
    %3880 = vmatprep.subr.mxu0 0.0
    %3881 = vmatpush1.msra.mxu0 0.0
    %3882 = vmatprep.subr.mxu0 0.0
    %3883 = vmatpush1.msra.mxu0 0.0
    %3884 = vmatprep.subr.mxu0 0.0
    %3885 = vmatpush1.msra.mxu0 0.0
    %3886 = vmatprep.subr.mxu0 0.0
    %3887 = vmatpush1.msra.mxu0 %v180
    %3888 = vmatprep.subr.mxu0 0.0
    %3889 = vmatpush1.msra.mxu0 %v179
    %3890 = vmatprep.subr.mxu0 0.0
    %3891 = vmatpush1.msra.mxu0 %v178
    %3892 = vmatprep.subr.mxu0 0.0
    %3893 = vmatpush1.msra.mxu0 %v177
    %3894 = vmatprep.subr.mxu0 0.0
    %3895 = vmatpush2.msra.mxu0 0.0
    %3896 = vmatprep.subr.mxu0 0.0
    %3897 = vmatpush2.msra.mxu0 0.0
    %3898 = vmatprep.subr.mxu0 0.0
    %3899 = vmatpush2.msra.mxu0 0.0
    %3900 = vmatprep.subr.mxu0 0.0
    %3901 = vmatpush2.msra.mxu0 0.0
    %3902 = vmatprep.subr.mxu0 0.0
    %3903 = vmatpush2.msra.mxu0 0.0
    %3904 = vmatprep.subr.mxu0 0.0
    %3905 = vmatpush2.msra.mxu0 0.0
    %3906 = vmatprep.subr.mxu0 0.0
    %3907 = vmatpush2.msra.mxu0 0.0
    %3908 = vmatprep.subr.mxu0 0.0
    %3909 = vmatpush2.msra.mxu0 0.0
    %3910 = vmatprep.subr.mxu0 0.0
    %3911 = vmatpush2.msra.mxu0 0.0
    %3912 = vmatprep.subr.mxu0 0.0
    %3913 = vmatpush2.msra.mxu0 0.0
    %3914 = vmatprep.subr.mxu0 0.0
    %3915 = vmatpush2.msra.mxu0 0.0
    %3916 = vmatprep.subr.mxu0 0.0
    %3917 = vmatpush2.msra.mxu0 0.0
    %3918 = vmatprep.subr.mxu0 0.0
    %3919 = vmatpush2.msra.mxu0 0.0
    %3920 = vmatprep.subr.mxu0 0.0
    %3921 = vmatpush2.msra.mxu0 0.0
    %3922 = vmatprep.subr.mxu0 0.0
    %3923 = vmatpush2.msra.mxu0 0.0
    %3924 = vmatprep.subr.mxu0 0.0
    %3925 = vmatpush2.msra.mxu0 0.0
    %3926 = vmatprep.mubr.f32.mxu0 0.0
    %3927 = vmatmul.mubr.f32.gmra.mxu0 %v3860
    %v3928 = vpop.f32.mrf.mxu0
    %v3929 = vadd.f32 %v705, %v3928
    %v3930 = vpop.f32.mrf.mxu0
    %3931 = vdwg.mxu0
    %v3932 = vsel %vm268, %v3929, -inf
    %3933 = vmax.xlane.f32.xlu0 %v3932
    %v3934 = vpop.xlane.xlu0 %3933
    %v3935 = vsub.f32 %v3929, %v3934
    %v3936 = vmul.f32 %v3935, 1.442695
    %v3937 = vpow.pop %v3936
    %v3938 = vsel %vm268, %v3937, 0.0
    %3939 = vadd.xlane.f32.xlu0 %v3938
    %v3940 = vpop.xlane.xlu0 %3939
    %v3941 = vlog2.pop %v3940
    %v3942 = vmul.f32 %v3941, 0.6931472
    %v3943 = vadd.f32 %v3942, %v3934
    %v3944 = vsub.f32 %v3929, %v3943
    %s3945 = scalar_lea.vmem [#allocation16], 14
    %3946 = vst.msk [vmem:[%s3945] sm:$0x3] %vm268, %v3944
    %v3947 = vsel %vm268, %v3944, -inf
    %3948 = vmax.xlane.f32.xlu0 %v3947
    %v3949 = vpop.xlane.xlu0 %3948
    %vm3950 = vcmp.eq.f32.partialorder %v3944, %v3949
    %v3951 = vsel %vm3950, %v271, 16
    %v3952 = vsel %vm268, %v3951, 2147483647
    %v3953 = vand.u32 %v3952, 65535
    %v3954 = vshra.s32 %v3952, 16
    %v3955 = vcvt.s32.f32 %v3953
    %v3956 = vcvt.s32.f32 %v3954
    %3957 = vmin.xlane.f32.xlu0 %v3956
    %v3958 = vpop.xlane.xlu0 %3957
    %vm3959 = vcmp.eq.f32.partialorder %v3956, %v3958
    %v3960 = vsel %vm3959, %v3955, inf
    %3961 = vmin.xlane.f32.xlu0 %v3960
    %v3962 = vpop.xlane.xlu0 %3961
    %v3963 = vcvt.f32.s32 %v3962
    %v3964 = vcvt.f32.s32 %v3958
    %v3965 = vshll.u32 %v3964, 16
    %v3966 = vadd.s32 %v3965, %v3963
    %vm3967 = vcmp.ne.s32.totalorder %v3966, 0
    %vm3968 = vcmp.ne.s32.totalorder %v3966, 2
    %vm3969 = vmand %vm3967, %vm3968
    %v3970 = vsel %vm3969, 1, 0
    %v3971 = vcvt.s32.f32 %v3970
    %v3972 = vmul.f32 %v3971, %v3856
    %v3973 = vadd.f32 %v3451, %v3972
    %v3974 = vadd.f32 %v3452, %v3971
    %v3975 = vmax.f32 %v3974, 1.0
    %v3976 = vrcp.pop %v3975
    %v3977 = vmul.f32 %v3973, %v3976
    %v3978 = vld [vmem:[#allocation13] sm:$0xff]
    %v3979 = vld [vmem:[#allocation13 + $0x8] sm:$0xff]
    %v3980 = vld [vmem:[#allocation13 + $0x10] sm:$0xff]
    %v3981 = vld [vmem:[#allocation13 + $0x18] sm:$0xff]
    %v3982 = vld [vmem:[#allocation13 + $0x20] sm:$0xff]
    %v3983 = vld [vmem:[#allocation13 + $0x28] sm:$0xff]
    %v3984 = vld [vmem:[#allocation13 + $0x30] sm:$0xff]
    %v3985 = vld [vmem:[#allocation13 + $0x38] sm:$0xff]
    %v3986 = vld [vmem:[#allocation13 + $0x40] sm:$0xff]
    %v3987 = vld [vmem:[#allocation13 + $0x48] sm:$0xff]
    %v3988 = vld [vmem:[#allocation13 + $0x50] sm:$0xff]
    %v3989 = vld [vmem:[#allocation13 + $0x58] sm:$0xff]
    %v3990 = vld [vmem:[#allocation13 + $0x60] sm:$0xff]
    %v3991 = vld [vmem:[#allocation13 + $0x68] sm:$0xff]
    %v3992 = vld [vmem:[#allocation13 + $0x70] sm:$0xff]
    %v3993 = vld [vmem:[#allocation13 + $0x78] sm:$0xff]
    %v3994 = vld [vmem:[#allocation13 + $0x80] sm:$0xff]
    %v3995 = vld [vmem:[#allocation13 + $0x88] sm:$0xff]
    %v3996 = vld [vmem:[#allocation13 + $0x90] sm:$0xff]
    %v3997 = vld [vmem:[#allocation13 + $0x98] sm:$0xff]
    %v3998 = vld [vmem:[#allocation13 + $0xa0] sm:$0xff]
    %v3999 = vld [vmem:[#allocation13 + $0xa8] sm:$0xff]
    %v4000 = vld [vmem:[#allocation13 + $0xb0] sm:$0xff]
    %v4001 = vld [vmem:[#allocation13 + $0xb8] sm:$0xff]
    %v4002 = vld [vmem:[#allocation14] sm:$0x3]
    %v4003 = vsel %vm186, 0.0, %v3977
    %v4004 = vsel %vm575, %v4003, 0.0
    %v4006 = vlaneseq
    %v4007 = vshrl.u32 %v4006, 7
    %v4008 = vsub.s32 0, %v4007
    %v4009 = vrot.slane %v4002, %v4008
    %v4010 = vlaneseq
    %v4011 = vshrl.u32 %v4010, 7
    %v4012 = vsub.s32 1, %v4011
    %v4013 = vrot.slane %v4002, %v4012
    %v4017 = vsel %vm588, %v4004, 0
    %4019 = vmatprep.subr.mxu0 0.0
    %4020 = vmatpush1.msra.mxu0 0.0
    %4021 = vmatprep.subr.mxu0 0.0
    %4022 = vmatpush1.msra.mxu0 0.0
    %4023 = vmatprep.subr.mxu0 0.0
    %4024 = vmatpush1.msra.mxu0 0.0
    %4025 = vmatprep.subr.mxu0 0.0
    %4026 = vmatpush1.msra.mxu0 0.0
    %4027 = vmatprep.subr.mxu0 %v4001
    %4028 = vmatpush1.msra.mxu0 %v4000
    %4029 = vmatprep.subr.mxu0 %v3999
    %4030 = vmatpush1.msra.mxu0 %v3998
    %4031 = vmatprep.subr.mxu0 %v3997
    %4032 = vmatpush1.msra.mxu0 %v3996
    %4033 = vmatprep.subr.mxu0 %v3995
    %4034 = vmatpush1.msra.mxu0 %v3994
    %4035 = vmatprep.subr.mxu0 %v3993
    %4036 = vmatpush1.msra.mxu0 %v3992
    %4037 = vmatprep.subr.mxu0 %v3991
    %4038 = vmatpush1.msra.mxu0 %v3990
    %4039 = vmatprep.subr.mxu0 %v3989
    %4040 = vmatpush1.msra.mxu0 %v3988
    %4041 = vmatprep.subr.mxu0 %v3987
    %4042 = vmatpush1.msra.mxu0 %v3986
    %4043 = vmatprep.subr.mxu0 %v3985
    %4044 = vmatpush1.msra.mxu0 %v3984
    %4045 = vmatprep.subr.mxu0 %v3983
    %4046 = vmatpush1.msra.mxu0 %v3982
    %4047 = vmatprep.subr.mxu0 %v3981
    %4048 = vmatpush1.msra.mxu0 %v3980
    %4049 = vmatprep.subr.mxu0 %v3979
    %4050 = vmatpush1.msra.mxu0 %v3978
    %4051 = vmatprep.subr.mxu0 0.0
    %4052 = vmatpush2.msra.mxu0 0.0
    %4053 = vmatprep.subr.mxu0 0.0
    %4054 = vmatpush2.msra.mxu0 0.0
    %4055 = vmatprep.subr.mxu0 0.0
    %4056 = vmatpush2.msra.mxu0 0.0
    %4057 = vmatprep.subr.mxu0 0.0
    %4058 = vmatpush2.msra.mxu0 0.0
    %4059 = vmatprep.subr.mxu0 0.0
    %4060 = vmatpush2.msra.mxu0 0.0
    %4061 = vmatprep.subr.mxu0 0.0
    %4062 = vmatpush2.msra.mxu0 0.0
    %4063 = vmatprep.subr.mxu0 0.0
    %4064 = vmatpush2.msra.mxu0 0.0
    %4065 = vmatprep.subr.mxu0 0.0
    %4066 = vmatpush2.msra.mxu0 0.0
    %4067 = vmatprep.subr.mxu0 0.0
    %4068 = vmatpush2.msra.mxu0 0.0
    %4069 = vmatprep.subr.mxu0 0.0
    %4070 = vmatpush2.msra.mxu0 0.0
    %4071 = vmatprep.subr.mxu0 0.0
    %4072 = vmatpush2.msra.mxu0 0.0
    %4073 = vmatprep.subr.mxu0 0.0
    %4074 = vmatpush2.msra.mxu0 0.0
    %4075 = vmatprep.subr.mxu0 0.0
    %4076 = vmatpush2.msra.mxu0 0.0
    %4077 = vmatprep.subr.mxu0 0.0
    %4078 = vmatpush2.msra.mxu0 0.0
    %4079 = vmatprep.subr.mxu0 0.0
    %4080 = vmatpush2.msra.mxu0 0.0
    %4081 = vmatprep.subr.mxu0 0.0
    %4082 = vmatpush2.msra.mxu0 0.0
    %4083 = vmatprep.mubr.f32.mxu0 0.0
    %4084 = vmatmul.mubr.f32.gmra.mxu0 %v4017
    %v4085 = vpop.f32.mrf.mxu0
    %v4086 = vadd.f32 %v4009, %v4085
    %v4087 = vpop.f32.mrf.mxu0
    %v4088 = vadd.f32 %v4013, %v4087
    %4089 = vdwg.mxu0
    %4091 = vrot.lane.b32.xlu0 %v4086, 32
    %v4092 = vpop.permute.xlu0 %4091
    %v4094 = vadd.f32 %v4086, %v4092
    %v4095 = vsub.f32 0.0, %v4094
    %v4096 = vmul.f32 %v4095, 1.442695
    %v4097 = vpow.pop %v4096
    %v4098 = vadd.f32 %v4097, 1.0
    %v4099 = vrcp.pop %v4098
    %4101 = vrot.lane.b32.xlu0 %v4088, 32
    %v4102 = vpop.permute.xlu0 %4101
    %v4104 = vadd.f32 %v4086, %v4102
    %v4105 = vsub.f32 0.0, %v4104
    %v4106 = vmul.f32 %v4105, 1.442695
    %v4107 = vpow.pop %v4106
    %v4108 = vadd.f32 %v4107, 1.0
    %v4109 = vrcp.pop %v4108
    %4110 = vrot.lane.b32.xlu0 %v4088, 96
    %v4111 = vpop.permute.xlu0 %4110
    %v4113 = vmul.f32 %v4099, %v4111
    %4115 = vrot.lane.b32.xlu0 %v4113, 64
    %v4116 = vpop.permute.xlu0 %4115
    %v4118 = vadd.f32 %v4086, %v4116
    %v4119 = vtanh.pop %v4118
    %v4120 = vsub.f32 1.0, %v4109
    %4122 = vrot.lane.b32.xlu0 %v4119, 96
    %v4123 = vpop.permute.xlu0 %4122
    %v4125 = vmul.f32 %v4120, %v4123
    %v4126 = vmul.f32 %v4109, 0.0
    %v4127 = vadd.f32 %v4125, %v4126
    %v4130 = vunpack.c.l.s4 1966171168
    %v4131 = vunpack.c.0.s8 %v4130
    %v4132 = vlaneseq
    %v4133 = vshrl.u32 %v4132, 7
    %v4134 = vsub.s32 %v4131, %v4133
    %v4135 = vrot.slane %v4127, %v4134
    %v4136 = vcombine.high %v4135, %v4135
    %v4138 = vunpack.c.l.s4 1966171168
    %v4139 = vunpack.c.0.s8 %v4138
    %v4140 = vlaneseq
    %v4141 = vshrl.u32 %v4140, 7
    %v4142 = vsub.s32 %v4139, %v4141
    %v4143 = vrot.slane %v4135, %v4142
    %v4145 = vunpack.c.l.s4 1966171168
    %v4146 = vunpack.c.0.s8 %v4145
    %v4147 = vlaneseq
    %v4148 = vshrl.u32 %v4147, 7
    %v4149 = vsub.s32 %v4146, %v4148
    %v4150 = vrot.slane %v4136, %v4149
    %v4151 = vlaneseq
    %v4152 = vshrl.u32 %v4151, 7
    %v4153 = vsub.s32 0, %v4152
    %v4154 = vrot.slane %v4143, %v4153
    %v4155 = vlaneseq
    %v4156 = vshrl.u32 %v4155, 7
    %v4157 = vsub.s32 0, %v4156
    %v4158 = vrot.slane %v4150, %v4157
    %4159 = vrot.lane.b32.xlu0 %v4154, 96
    %v4160 = vpop.permute.xlu0 %4159
    %4161 = vrot.lane.b32.xlu0 %v4158, 96
    %v4162 = vpop.permute.xlu0 %4161
    %vm4165 = vcmask 253952
    %4166 = vst.msk [vmem:[#allocation17] sm:$0x1] %vm4165, %v4160
    %4167 = vst.msk [vmem:[#allocation17 + $0x8] sm:$0x1] %vm4165, %v4162
    %4169 = vrot.lane.b32.xlu0 %v4127, 32
    %v4170 = vpop.permute.xlu0 %4169
    %v4172 = vsel %vm186, %v709, %v3977
    %v4173 = vsel %vm575, %v4172, %v4170
    %v4175 = vsel %vm588, %v4173, 0
    %4177 = vmatprep.subr.mxu0 0.0
    %4178 = vmatpush1.msra.mxu0 0.0
    %4179 = vmatprep.subr.mxu0 0.0
    %4180 = vmatpush1.msra.mxu0 0.0
    %4181 = vmatprep.subr.mxu0 0.0
    %4182 = vmatpush1.msra.mxu0 0.0
    %4183 = vmatprep.subr.mxu0 0.0
    %4184 = vmatpush1.msra.mxu0 0.0
    %4185 = vmatprep.subr.mxu0 %v4001
    %4186 = vmatpush1.msra.mxu0 %v4000
    %4187 = vmatprep.subr.mxu0 %v3999
    %4188 = vmatpush1.msra.mxu0 %v3998
    %4189 = vmatprep.subr.mxu0 %v3997
    %4190 = vmatpush1.msra.mxu0 %v3996
    %4191 = vmatprep.subr.mxu0 %v3995
    %4192 = vmatpush1.msra.mxu0 %v3994
    %4193 = vmatprep.subr.mxu0 %v3993
    %4194 = vmatpush1.msra.mxu0 %v3992
    %4195 = vmatprep.subr.mxu0 %v3991
    %4196 = vmatpush1.msra.mxu0 %v3990
    %4197 = vmatprep.subr.mxu0 %v3989
    %4198 = vmatpush1.msra.mxu0 %v3988
    %4199 = vmatprep.subr.mxu0 %v3987
    %4200 = vmatpush1.msra.mxu0 %v3986
    %4201 = vmatprep.subr.mxu0 %v3985
    %4202 = vmatpush1.msra.mxu0 %v3984
    %4203 = vmatprep.subr.mxu0 %v3983
    %4204 = vmatpush1.msra.mxu0 %v3982
    %4205 = vmatprep.subr.mxu0 %v3981
    %4206 = vmatpush1.msra.mxu0 %v3980
    %4207 = vmatprep.subr.mxu0 %v3979
    %4208 = vmatpush1.msra.mxu0 %v3978
    %4209 = vmatprep.subr.mxu0 0.0
    %4210 = vmatpush2.msra.mxu0 0.0
    %4211 = vmatprep.subr.mxu0 0.0
    %4212 = vmatpush2.msra.mxu0 0.0
    %4213 = vmatprep.subr.mxu0 0.0
    %4214 = vmatpush2.msra.mxu0 0.0
    %4215 = vmatprep.subr.mxu0 0.0
    %4216 = vmatpush2.msra.mxu0 0.0
    %4217 = vmatprep.subr.mxu0 0.0
    %4218 = vmatpush2.msra.mxu0 0.0
    %4219 = vmatprep.subr.mxu0 0.0
    %4220 = vmatpush2.msra.mxu0 0.0
    %4221 = vmatprep.subr.mxu0 0.0
    %4222 = vmatpush2.msra.mxu0 0.0
    %4223 = vmatprep.subr.mxu0 0.0
    %4224 = vmatpush2.msra.mxu0 0.0
    %4225 = vmatprep.subr.mxu0 0.0
    %4226 = vmatpush2.msra.mxu0 0.0
    %4227 = vmatprep.subr.mxu0 0.0
    %4228 = vmatpush2.msra.mxu0 0.0
    %4229 = vmatprep.subr.mxu0 0.0
    %4230 = vmatpush2.msra.mxu0 0.0
    %4231 = vmatprep.subr.mxu0 0.0
    %4232 = vmatpush2.msra.mxu0 0.0
    %4233 = vmatprep.subr.mxu0 0.0
    %4234 = vmatpush2.msra.mxu0 0.0
    %4235 = vmatprep.subr.mxu0 0.0
    %4236 = vmatpush2.msra.mxu0 0.0
    %4237 = vmatprep.subr.mxu0 0.0
    %4238 = vmatpush2.msra.mxu0 0.0
    %4239 = vmatprep.subr.mxu0 0.0
    %4240 = vmatpush2.msra.mxu0 0.0
    %4241 = vmatprep.mubr.f32.mxu0 0.0
    %4242 = vmatmul.mubr.f32.gmra.mxu0 %v4175
    %v4243 = vpop.f32.mrf.mxu0
    %v4244 = vadd.f32 %v4009, %v4243
    %v4245 = vpop.f32.mrf.mxu0
    %v4246 = vadd.f32 %v4013, %v4245
    %4247 = vdwg.mxu0
    %4249 = vrot.lane.b32.xlu0 %v4244, 32
    %v4250 = vpop.permute.xlu0 %4249
    %v4252 = vadd.f32 %v4244, %v4250
    %v4253 = vsub.f32 0.0, %v4252
    %v4254 = vmul.f32 %v4253, 1.442695
    %v4255 = vpow.pop %v4254
    %v4256 = vadd.f32 %v4255, 1.0
    %v4257 = vrcp.pop %v4256
    %4259 = vrot.lane.b32.xlu0 %v4246, 32
    %v4260 = vpop.permute.xlu0 %4259
    %v4262 = vadd.f32 %v4244, %v4260
    %v4263 = vsub.f32 0.0, %v4262
    %v4264 = vmul.f32 %v4263, 1.442695
    %v4265 = vpow.pop %v4264
    %v4266 = vadd.f32 %v4265, 1.0
    %v4267 = vrcp.pop %v4266
    %4268 = vrot.lane.b32.xlu0 %v4246, 96
    %v4269 = vpop.permute.xlu0 %4268
    %v4271 = vmul.f32 %v4257, %v4269
    %4273 = vrot.lane.b32.xlu0 %v4271, 64
    %v4274 = vpop.permute.xlu0 %4273
    %v4276 = vadd.f32 %v4244, %v4274
    %v4277 = vtanh.pop %v4276
    %v4278 = vsub.f32 1.0, %v4267
    %4280 = vrot.lane.b32.xlu0 %v4277, 96
    %v4281 = vpop.permute.xlu0 %4280
    %v4283 = vmul.f32 %v4278, %v4281
    %v4284 = vmul.f32 %v4267, %v4127
    %v4285 = vadd.f32 %v4283, %v4284
    %v4288 = vunpack.c.l.s4 1966171168
    %v4289 = vunpack.c.0.s8 %v4288
    %v4290 = vlaneseq
    %v4291 = vshrl.u32 %v4290, 7
    %v4292 = vsub.s32 %v4289, %v4291
    %v4293 = vrot.slane %v4285, %v4292
    %v4294 = vcombine.high %v4293, %v4293
    %v4296 = vunpack.c.l.s4 1966171168
    %v4297 = vunpack.c.0.s8 %v4296
    %v4298 = vlaneseq
    %v4299 = vshrl.u32 %v4298, 7
    %v4300 = vsub.s32 %v4297, %v4299
    %v4301 = vrot.slane %v4293, %v4300
    %v4303 = vunpack.c.l.s4 1966171168
    %v4304 = vunpack.c.0.s8 %v4303
    %v4305 = vlaneseq
    %v4306 = vshrl.u32 %v4305, 7
    %v4307 = vsub.s32 %v4304, %v4306
    %v4308 = vrot.slane %v4294, %v4307
    %v4309 = vlaneseq
    %v4310 = vshrl.u32 %v4309, 7
    %v4311 = vsub.s32 0, %v4310
    %v4312 = vrot.slane %v4301, %v4311
    %v4313 = vlaneseq
    %v4314 = vshrl.u32 %v4313, 7
    %v4315 = vsub.s32 0, %v4314
    %v4316 = vrot.slane %v4308, %v4315
    %4317 = vrot.lane.b32.xlu0 %v4312, 96
    %v4318 = vpop.permute.xlu0 %4317
    %4319 = vrot.lane.b32.xlu0 %v4316, 96
    %v4320 = vpop.permute.xlu0 %4319
    %4323 = vst.msk [vmem:[#allocation17 + $0x1] sm:$0x1] %vm4165, %v4318
    %4324 = vst.msk [vmem:[#allocation17 + $0x9] sm:$0x1] %vm4165, %v4320
    %4326 = vrot.lane.b32.xlu0 %v4285, 32
    %v4327 = vpop.permute.xlu0 %4326
    %v4329 = vsel %vm186, %v1234, %v3977
    %v4330 = vsel %vm575, %v4329, %v4327
    %v4332 = vsel %vm588, %v4330, 0
    %4334 = vmatprep.subr.mxu0 0.0
    %4335 = vmatpush1.msra.mxu0 0.0
    %4336 = vmatprep.subr.mxu0 0.0
    %4337 = vmatpush1.msra.mxu0 0.0
    %4338 = vmatprep.subr.mxu0 0.0
    %4339 = vmatpush1.msra.mxu0 0.0
    %4340 = vmatprep.subr.mxu0 0.0
    %4341 = vmatpush1.msra.mxu0 0.0
    %4342 = vmatprep.subr.mxu0 %v4001
    %4343 = vmatpush1.msra.mxu0 %v4000
    %4344 = vmatprep.subr.mxu0 %v3999
    %4345 = vmatpush1.msra.mxu0 %v3998
    %4346 = vmatprep.subr.mxu0 %v3997
    %4347 = vmatpush1.msra.mxu0 %v3996
    %4348 = vmatprep.subr.mxu0 %v3995
    %4349 = vmatpush1.msra.mxu0 %v3994
    %4350 = vmatprep.subr.mxu0 %v3993
    %4351 = vmatpush1.msra.mxu0 %v3992
    %4352 = vmatprep.subr.mxu0 %v3991
    %4353 = vmatpush1.msra.mxu0 %v3990
    %4354 = vmatprep.subr.mxu0 %v3989
    %4355 = vmatpush1.msra.mxu0 %v3988
    %4356 = vmatprep.subr.mxu0 %v3987
    %4357 = vmatpush1.msra.mxu0 %v3986
    %4358 = vmatprep.subr.mxu0 %v3985
    %4359 = vmatpush1.msra.mxu0 %v3984
    %4360 = vmatprep.subr.mxu0 %v3983
    %4361 = vmatpush1.msra.mxu0 %v3982
    %4362 = vmatprep.subr.mxu0 %v3981
    %4363 = vmatpush1.msra.mxu0 %v3980
    %4364 = vmatprep.subr.mxu0 %v3979
    %4365 = vmatpush1.msra.mxu0 %v3978
    %4366 = vmatprep.subr.mxu0 0.0
    %4367 = vmatpush2.msra.mxu0 0.0
    %4368 = vmatprep.subr.mxu0 0.0
    %4369 = vmatpush2.msra.mxu0 0.0
    %4370 = vmatprep.subr.mxu0 0.0
    %4371 = vmatpush2.msra.mxu0 0.0
    %4372 = vmatprep.subr.mxu0 0.0
    %4373 = vmatpush2.msra.mxu0 0.0
    %4374 = vmatprep.subr.mxu0 0.0
    %4375 = vmatpush2.msra.mxu0 0.0
    %4376 = vmatprep.subr.mxu0 0.0
    %4377 = vmatpush2.msra.mxu0 0.0
    %4378 = vmatprep.subr.mxu0 0.0
    %4379 = vmatpush2.msra.mxu0 0.0
    %4380 = vmatprep.subr.mxu0 0.0
    %4381 = vmatpush2.msra.mxu0 0.0
    %4382 = vmatprep.subr.mxu0 0.0
    %4383 = vmatpush2.msra.mxu0 0.0
    %4384 = vmatprep.subr.mxu0 0.0
    %4385 = vmatpush2.msra.mxu0 0.0
    %4386 = vmatprep.subr.mxu0 0.0
    %4387 = vmatpush2.msra.mxu0 0.0
    %4388 = vmatprep.subr.mxu0 0.0
    %4389 = vmatpush2.msra.mxu0 0.0
    %4390 = vmatprep.subr.mxu0 0.0
    %4391 = vmatpush2.msra.mxu0 0.0
    %4392 = vmatprep.subr.mxu0 0.0
    %4393 = vmatpush2.msra.mxu0 0.0
    %4394 = vmatprep.subr.mxu0 0.0
    %4395 = vmatpush2.msra.mxu0 0.0
    %4396 = vmatprep.subr.mxu0 0.0
    %4397 = vmatpush2.msra.mxu0 0.0
    %4398 = vmatprep.mubr.f32.mxu0 0.0
    %4399 = vmatmul.mubr.f32.gmra.mxu0 %v4332
    %v4400 = vpop.f32.mrf.mxu0
    %v4401 = vadd.f32 %v4009, %v4400
    %v4402 = vpop.f32.mrf.mxu0
    %v4403 = vadd.f32 %v4013, %v4402
    %4404 = vdwg.mxu0
    %4406 = vrot.lane.b32.xlu0 %v4401, 32
    %v4407 = vpop.permute.xlu0 %4406
    %v4409 = vadd.f32 %v4401, %v4407
    %v4410 = vsub.f32 0.0, %v4409
    %v4411 = vmul.f32 %v4410, 1.442695
    %v4412 = vpow.pop %v4411
    %v4413 = vadd.f32 %v4412, 1.0
    %v4414 = vrcp.pop %v4413
    %4416 = vrot.lane.b32.xlu0 %v4403, 32
    %v4417 = vpop.permute.xlu0 %4416
    %v4419 = vadd.f32 %v4401, %v4417
    %v4420 = vsub.f32 0.0, %v4419
    %v4421 = vmul.f32 %v4420, 1.442695
    %v4422 = vpow.pop %v4421
    %v4423 = vadd.f32 %v4422, 1.0
    %v4424 = vrcp.pop %v4423
    %4425 = vrot.lane.b32.xlu0 %v4403, 96
    %v4426 = vpop.permute.xlu0 %4425
    %v4428 = vmul.f32 %v4414, %v4426
    %4430 = vrot.lane.b32.xlu0 %v4428, 64
    %v4431 = vpop.permute.xlu0 %4430
    %v4433 = vadd.f32 %v4401, %v4431
    %v4434 = vtanh.pop %v4433
    %v4435 = vsub.f32 1.0, %v4424
    %4437 = vrot.lane.b32.xlu0 %v4434, 96
    %v4438 = vpop.permute.xlu0 %4437
    %v4440 = vmul.f32 %v4435, %v4438
    %v4441 = vmul.f32 %v4424, %v4285
    %v4442 = vadd.f32 %v4440, %v4441
    %v4445 = vunpack.c.l.s4 1966171168
    %v4446 = vunpack.c.0.s8 %v4445
    %v4447 = vlaneseq
    %v4448 = vshrl.u32 %v4447, 7
    %v4449 = vsub.s32 %v4446, %v4448
    %v4450 = vrot.slane %v4442, %v4449
    %v4451 = vcombine.high %v4450, %v4450
    %v4453 = vunpack.c.l.s4 1966171168
    %v4454 = vunpack.c.0.s8 %v4453
    %v4455 = vlaneseq
    %v4456 = vshrl.u32 %v4455, 7
    %v4457 = vsub.s32 %v4454, %v4456
    %v4458 = vrot.slane %v4450, %v4457
    %v4460 = vunpack.c.l.s4 1966171168
    %v4461 = vunpack.c.0.s8 %v4460
    %v4462 = vlaneseq
    %v4463 = vshrl.u32 %v4462, 7
    %v4464 = vsub.s32 %v4461, %v4463
    %v4465 = vrot.slane %v4451, %v4464
    %v4466 = vlaneseq
    %v4467 = vshrl.u32 %v4466, 7
    %v4468 = vsub.s32 0, %v4467
    %v4469 = vrot.slane %v4458, %v4468
    %v4470 = vlaneseq
    %v4471 = vshrl.u32 %v4470, 7
    %v4472 = vsub.s32 0, %v4471
    %v4473 = vrot.slane %v4465, %v4472
    %4474 = vrot.lane.b32.xlu0 %v4469, 96
    %v4475 = vpop.permute.xlu0 %4474
    %4476 = vrot.lane.b32.xlu0 %v4473, 96
    %v4477 = vpop.permute.xlu0 %4476
    %4480 = vst.msk [vmem:[#allocation17 + $0x2] sm:$0x1] %vm4165, %v4475
    %4481 = vst.msk [vmem:[#allocation17 + $0xa] sm:$0x1] %vm4165, %v4477
    %4483 = vrot.lane.b32.xlu0 %v4442, 32
    %v4484 = vpop.permute.xlu0 %4483
    %v4486 = vsel %vm186, %v1759, %v3977
    %v4487 = vsel %vm575, %v4486, %v4484
    %v4489 = vsel %vm588, %v4487, 0
    %4491 = vmatprep.subr.mxu0 0.0
    %4492 = vmatpush1.msra.mxu0 0.0
    %4493 = vmatprep.subr.mxu0 0.0
    %4494 = vmatpush1.msra.mxu0 0.0
    %4495 = vmatprep.subr.mxu0 0.0
    %4496 = vmatpush1.msra.mxu0 0.0
    %4497 = vmatprep.subr.mxu0 0.0
    %4498 = vmatpush1.msra.mxu0 0.0
    %4499 = vmatprep.subr.mxu0 %v4001
    %4500 = vmatpush1.msra.mxu0 %v4000
    %4501 = vmatprep.subr.mxu0 %v3999
    %4502 = vmatpush1.msra.mxu0 %v3998
    %4503 = vmatprep.subr.mxu0 %v3997
    %4504 = vmatpush1.msra.mxu0 %v3996
    %4505 = vmatprep.subr.mxu0 %v3995
    %4506 = vmatpush1.msra.mxu0 %v3994
    %4507 = vmatprep.subr.mxu0 %v3993
    %4508 = vmatpush1.msra.mxu0 %v3992
    %4509 = vmatprep.subr.mxu0 %v3991
    %4510 = vmatpush1.msra.mxu0 %v3990
    %4511 = vmatprep.subr.mxu0 %v3989
    %4512 = vmatpush1.msra.mxu0 %v3988
    %4513 = vmatprep.subr.mxu0 %v3987
    %4514 = vmatpush1.msra.mxu0 %v3986
    %4515 = vmatprep.subr.mxu0 %v3985
    %4516 = vmatpush1.msra.mxu0 %v3984
    %4517 = vmatprep.subr.mxu0 %v3983
    %4518 = vmatpush1.msra.mxu0 %v3982
    %4519 = vmatprep.subr.mxu0 %v3981
    %4520 = vmatpush1.msra.mxu0 %v3980
    %4521 = vmatprep.subr.mxu0 %v3979
    %4522 = vmatpush1.msra.mxu0 %v3978
    %4523 = vmatprep.subr.mxu0 0.0
    %4524 = vmatpush2.msra.mxu0 0.0
    %4525 = vmatprep.subr.mxu0 0.0
    %4526 = vmatpush2.msra.mxu0 0.0
    %4527 = vmatprep.subr.mxu0 0.0
    %4528 = vmatpush2.msra.mxu0 0.0
    %4529 = vmatprep.subr.mxu0 0.0
    %4530 = vmatpush2.msra.mxu0 0.0
    %4531 = vmatprep.subr.mxu0 0.0
    %4532 = vmatpush2.msra.mxu0 0.0
    %4533 = vmatprep.subr.mxu0 0.0
    %4534 = vmatpush2.msra.mxu0 0.0
    %4535 = vmatprep.subr.mxu0 0.0
    %4536 = vmatpush2.msra.mxu0 0.0
    %4537 = vmatprep.subr.mxu0 0.0
    %4538 = vmatpush2.msra.mxu0 0.0
    %4539 = vmatprep.subr.mxu0 0.0
    %4540 = vmatpush2.msra.mxu0 0.0
    %4541 = vmatprep.subr.mxu0 0.0
    %4542 = vmatpush2.msra.mxu0 0.0
    %4543 = vmatprep.subr.mxu0 0.0
    %4544 = vmatpush2.msra.mxu0 0.0
    %4545 = vmatprep.subr.mxu0 0.0
    %4546 = vmatpush2.msra.mxu0 0.0
    %4547 = vmatprep.subr.mxu0 0.0
    %4548 = vmatpush2.msra.mxu0 0.0
    %4549 = vmatprep.subr.mxu0 0.0
    %4550 = vmatpush2.msra.mxu0 0.0
    %4551 = vmatprep.subr.mxu0 0.0
    %4552 = vmatpush2.msra.mxu0 0.0
    %4553 = vmatprep.subr.mxu0 0.0
    %4554 = vmatpush2.msra.mxu0 0.0
    %4555 = vmatprep.mubr.f32.mxu0 0.0
    %4556 = vmatmul.mubr.f32.gmra.mxu0 %v4489
    %v4557 = vpop.f32.mrf.mxu0
    %v4558 = vadd.f32 %v4009, %v4557
    %v4559 = vpop.f32.mrf.mxu0
    %v4560 = vadd.f32 %v4013, %v4559
    %4561 = vdwg.mxu0
    %4563 = vrot.lane.b32.xlu0 %v4558, 32
    %v4564 = vpop.permute.xlu0 %4563
    %v4566 = vadd.f32 %v4558, %v4564
    %v4567 = vsub.f32 0.0, %v4566
    %v4568 = vmul.f32 %v4567, 1.442695
    %v4569 = vpow.pop %v4568
    %v4570 = vadd.f32 %v4569, 1.0
    %v4571 = vrcp.pop %v4570
    %4573 = vrot.lane.b32.xlu0 %v4560, 32
    %v4574 = vpop.permute.xlu0 %4573
    %v4576 = vadd.f32 %v4558, %v4574
    %v4577 = vsub.f32 0.0, %v4576
    %v4578 = vmul.f32 %v4577, 1.442695
    %v4579 = vpow.pop %v4578
    %v4580 = vadd.f32 %v4579, 1.0
    %v4581 = vrcp.pop %v4580
    %4582 = vrot.lane.b32.xlu0 %v4560, 96
    %v4583 = vpop.permute.xlu0 %4582
    %v4585 = vmul.f32 %v4571, %v4583
    %4587 = vrot.lane.b32.xlu0 %v4585, 64
    %v4588 = vpop.permute.xlu0 %4587
    %v4590 = vadd.f32 %v4558, %v4588
    %v4591 = vtanh.pop %v4590
    %v4592 = vsub.f32 1.0, %v4581
    %4594 = vrot.lane.b32.xlu0 %v4591, 96
    %v4595 = vpop.permute.xlu0 %4594
    %v4597 = vmul.f32 %v4592, %v4595
    %v4598 = vmul.f32 %v4581, %v4442
    %v4599 = vadd.f32 %v4597, %v4598
    %v4602 = vunpack.c.l.s4 1966171168
    %v4603 = vunpack.c.0.s8 %v4602
    %v4604 = vlaneseq
    %v4605 = vshrl.u32 %v4604, 7
    %v4606 = vsub.s32 %v4603, %v4605
    %v4607 = vrot.slane %v4599, %v4606
    %v4608 = vcombine.high %v4607, %v4607
    %v4610 = vunpack.c.l.s4 1966171168
    %v4611 = vunpack.c.0.s8 %v4610
    %v4612 = vlaneseq
    %v4613 = vshrl.u32 %v4612, 7
    %v4614 = vsub.s32 %v4611, %v4613
    %v4615 = vrot.slane %v4607, %v4614
    %v4617 = vunpack.c.l.s4 1966171168
    %v4618 = vunpack.c.0.s8 %v4617
    %v4619 = vlaneseq
    %v4620 = vshrl.u32 %v4619, 7
    %v4621 = vsub.s32 %v4618, %v4620
    %v4622 = vrot.slane %v4608, %v4621
    %v4623 = vlaneseq
    %v4624 = vshrl.u32 %v4623, 7
    %v4625 = vsub.s32 0, %v4624
    %v4626 = vrot.slane %v4615, %v4625
    %v4627 = vlaneseq
    %v4628 = vshrl.u32 %v4627, 7
    %v4629 = vsub.s32 0, %v4628
    %v4630 = vrot.slane %v4622, %v4629
    %4631 = vrot.lane.b32.xlu0 %v4626, 96
    %v4632 = vpop.permute.xlu0 %4631
    %4633 = vrot.lane.b32.xlu0 %v4630, 96
    %v4634 = vpop.permute.xlu0 %4633
    %4637 = vst.msk [vmem:[#allocation17 + $0x3] sm:$0x1] %vm4165, %v4632
    %4638 = vst.msk [vmem:[#allocation17 + $0xb] sm:$0x1] %vm4165, %v4634
    %4640 = vrot.lane.b32.xlu0 %v4599, 32
    %v4641 = vpop.permute.xlu0 %4640
    %v4643 = vsel %vm186, %v2284, %v3977
    %v4644 = vsel %vm575, %v4643, %v4641
    %v4646 = vsel %vm588, %v4644, 0
    %4648 = vmatprep.subr.mxu0 0.0
    %4649 = vmatpush1.msra.mxu0 0.0
    %4650 = vmatprep.subr.mxu0 0.0
    %4651 = vmatpush1.msra.mxu0 0.0
    %4652 = vmatprep.subr.mxu0 0.0
    %4653 = vmatpush1.msra.mxu0 0.0
    %4654 = vmatprep.subr.mxu0 0.0
    %4655 = vmatpush1.msra.mxu0 0.0
    %4656 = vmatprep.subr.mxu0 %v4001
    %4657 = vmatpush1.msra.mxu0 %v4000
    %4658 = vmatprep.subr.mxu0 %v3999
    %4659 = vmatpush1.msra.mxu0 %v3998
    %4660 = vmatprep.subr.mxu0 %v3997
    %4661 = vmatpush1.msra.mxu0 %v3996
    %4662 = vmatprep.subr.mxu0 %v3995
    %4663 = vmatpush1.msra.mxu0 %v3994
    %4664 = vmatprep.subr.mxu0 %v3993
    %4665 = vmatpush1.msra.mxu0 %v3992
    %4666 = vmatprep.subr.mxu0 %v3991
    %4667 = vmatpush1.msra.mxu0 %v3990
    %4668 = vmatprep.subr.mxu0 %v3989
    %4669 = vmatpush1.msra.mxu0 %v3988
    %4670 = vmatprep.subr.mxu0 %v3987
    %4671 = vmatpush1.msra.mxu0 %v3986
    %4672 = vmatprep.subr.mxu0 %v3985
    %4673 = vmatpush1.msra.mxu0 %v3984
    %4674 = vmatprep.subr.mxu0 %v3983
    %4675 = vmatpush1.msra.mxu0 %v3982
    %4676 = vmatprep.subr.mxu0 %v3981
    %4677 = vmatpush1.msra.mxu0 %v3980
    %4678 = vmatprep.subr.mxu0 %v3979
    %4679 = vmatpush1.msra.mxu0 %v3978
    %4680 = vmatprep.subr.mxu0 0.0
    %4681 = vmatpush2.msra.mxu0 0.0
    %4682 = vmatprep.subr.mxu0 0.0
    %4683 = vmatpush2.msra.mxu0 0.0
    %4684 = vmatprep.subr.mxu0 0.0
    %4685 = vmatpush2.msra.mxu0 0.0
    %4686 = vmatprep.subr.mxu0 0.0
    %4687 = vmatpush2.msra.mxu0 0.0
    %4688 = vmatprep.subr.mxu0 0.0
    %4689 = vmatpush2.msra.mxu0 0.0
    %4690 = vmatprep.subr.mxu0 0.0
    %4691 = vmatpush2.msra.mxu0 0.0
    %4692 = vmatprep.subr.mxu0 0.0
    %4693 = vmatpush2.msra.mxu0 0.0
    %4694 = vmatprep.subr.mxu0 0.0
    %4695 = vmatpush2.msra.mxu0 0.0
    %4696 = vmatprep.subr.mxu0 0.0
    %4697 = vmatpush2.msra.mxu0 0.0
    %4698 = vmatprep.subr.mxu0 0.0
    %4699 = vmatpush2.msra.mxu0 0.0
    %4700 = vmatprep.subr.mxu0 0.0
    %4701 = vmatpush2.msra.mxu0 0.0
    %4702 = vmatprep.subr.mxu0 0.0
    %4703 = vmatpush2.msra.mxu0 0.0
    %4704 = vmatprep.subr.mxu0 0.0
    %4705 = vmatpush2.msra.mxu0 0.0
    %4706 = vmatprep.subr.mxu0 0.0
    %4707 = vmatpush2.msra.mxu0 0.0
    %4708 = vmatprep.subr.mxu0 0.0
    %4709 = vmatpush2.msra.mxu0 0.0
    %4710 = vmatprep.subr.mxu0 0.0
    %4711 = vmatpush2.msra.mxu0 0.0
    %4712 = vmatprep.mubr.f32.mxu0 0.0
    %4713 = vmatmul.mubr.f32.gmra.mxu0 %v4646
    %v4714 = vpop.f32.mrf.mxu0
    %v4715 = vadd.f32 %v4009, %v4714
    %v4716 = vpop.f32.mrf.mxu0
    %v4717 = vadd.f32 %v4013, %v4716
    %4718 = vdwg.mxu0
    %4720 = vrot.lane.b32.xlu0 %v4715, 32
    %v4721 = vpop.permute.xlu0 %4720
    %v4723 = vadd.f32 %v4715, %v4721
    %v4724 = vsub.f32 0.0, %v4723
    %v4725 = vmul.f32 %v4724, 1.442695
    %v4726 = vpow.pop %v4725
    %v4727 = vadd.f32 %v4726, 1.0
    %v4728 = vrcp.pop %v4727
    %4730 = vrot.lane.b32.xlu0 %v4717, 32
    %v4731 = vpop.permute.xlu0 %4730
    %v4733 = vadd.f32 %v4715, %v4731
    %v4734 = vsub.f32 0.0, %v4733
    %v4735 = vmul.f32 %v4734, 1.442695
    %v4736 = vpow.pop %v4735
    %v4737 = vadd.f32 %v4736, 1.0
    %v4738 = vrcp.pop %v4737
    %4739 = vrot.lane.b32.xlu0 %v4717, 96
    %v4740 = vpop.permute.xlu0 %4739
    %v4742 = vmul.f32 %v4728, %v4740
    %4744 = vrot.lane.b32.xlu0 %v4742, 64
    %v4745 = vpop.permute.xlu0 %4744
    %v4747 = vadd.f32 %v4715, %v4745
    %v4748 = vtanh.pop %v4747
    %v4749 = vsub.f32 1.0, %v4738
    %4751 = vrot.lane.b32.xlu0 %v4748, 96
    %v4752 = vpop.permute.xlu0 %4751
    %v4754 = vmul.f32 %v4749, %v4752
    %v4755 = vmul.f32 %v4738, %v4599
    %v4756 = vadd.f32 %v4754, %v4755
    %v4759 = vunpack.c.l.s4 1966171168
    %v4760 = vunpack.c.0.s8 %v4759
    %v4761 = vlaneseq
    %v4762 = vshrl.u32 %v4761, 7
    %v4763 = vsub.s32 %v4760, %v4762
    %v4764 = vrot.slane %v4756, %v4763
    %v4765 = vcombine.high %v4764, %v4764
    %v4767 = vunpack.c.l.s4 1966171168
    %v4768 = vunpack.c.0.s8 %v4767
    %v4769 = vlaneseq
    %v4770 = vshrl.u32 %v4769, 7
    %v4771 = vsub.s32 %v4768, %v4770
    %v4772 = vrot.slane %v4764, %v4771
    %v4774 = vunpack.c.l.s4 1966171168
    %v4775 = vunpack.c.0.s8 %v4774
    %v4776 = vlaneseq
    %v4777 = vshrl.u32 %v4776, 7
    %v4778 = vsub.s32 %v4775, %v4777
    %v4779 = vrot.slane %v4765, %v4778
    %v4780 = vlaneseq
    %v4781 = vshrl.u32 %v4780, 7
    %v4782 = vsub.s32 0, %v4781
    %v4783 = vrot.slane %v4772, %v4782
    %v4784 = vlaneseq
    %v4785 = vshrl.u32 %v4784, 7
    %v4786 = vsub.s32 0, %v4785
    %v4787 = vrot.slane %v4779, %v4786
    %4788 = vrot.lane.b32.xlu0 %v4783, 96
    %v4789 = vpop.permute.xlu0 %4788
    %4790 = vrot.lane.b32.xlu0 %v4787, 96
    %v4791 = vpop.permute.xlu0 %4790
    %4794 = vst.msk [vmem:[#allocation17 + $0x4] sm:$0x1] %vm4165, %v4789
    %4795 = vst.msk [vmem:[#allocation17 + $0xc] sm:$0x1] %vm4165, %v4791
    %4797 = vrot.lane.b32.xlu0 %v4756, 32
    %v4798 = vpop.permute.xlu0 %4797
    %v4800 = vsel %vm186, %v2809, %v3977
    %v4801 = vsel %vm575, %v4800, %v4798
    %v4803 = vsel %vm588, %v4801, 0
    %4805 = vmatprep.subr.mxu0 0.0
    %4806 = vmatpush1.msra.mxu0 0.0
    %4807 = vmatprep.subr.mxu0 0.0
    %4808 = vmatpush1.msra.mxu0 0.0
    %4809 = vmatprep.subr.mxu0 0.0
    %4810 = vmatpush1.msra.mxu0 0.0
    %4811 = vmatprep.subr.mxu0 0.0
    %4812 = vmatpush1.msra.mxu0 0.0
    %4813 = vmatprep.subr.mxu0 %v4001
    %4814 = vmatpush1.msra.mxu0 %v4000
    %4815 = vmatprep.subr.mxu0 %v3999
    %4816 = vmatpush1.msra.mxu0 %v3998
    %4817 = vmatprep.subr.mxu0 %v3997
    %4818 = vmatpush1.msra.mxu0 %v3996
    %4819 = vmatprep.subr.mxu0 %v3995
    %4820 = vmatpush1.msra.mxu0 %v3994
    %4821 = vmatprep.subr.mxu0 %v3993
    %4822 = vmatpush1.msra.mxu0 %v3992
    %4823 = vmatprep.subr.mxu0 %v3991
    %4824 = vmatpush1.msra.mxu0 %v3990
    %4825 = vmatprep.subr.mxu0 %v3989
    %4826 = vmatpush1.msra.mxu0 %v3988
    %4827 = vmatprep.subr.mxu0 %v3987
    %4828 = vmatpush1.msra.mxu0 %v3986
    %4829 = vmatprep.subr.mxu0 %v3985
    %4830 = vmatpush1.msra.mxu0 %v3984
    %4831 = vmatprep.subr.mxu0 %v3983
    %4832 = vmatpush1.msra.mxu0 %v3982
    %4833 = vmatprep.subr.mxu0 %v3981
    %4834 = vmatpush1.msra.mxu0 %v3980
    %4835 = vmatprep.subr.mxu0 %v3979
    %4836 = vmatpush1.msra.mxu0 %v3978
    %4837 = vmatprep.subr.mxu0 0.0
    %4838 = vmatpush2.msra.mxu0 0.0
    %4839 = vmatprep.subr.mxu0 0.0
    %4840 = vmatpush2.msra.mxu0 0.0
    %4841 = vmatprep.subr.mxu0 0.0
    %4842 = vmatpush2.msra.mxu0 0.0
    %4843 = vmatprep.subr.mxu0 0.0
    %4844 = vmatpush2.msra.mxu0 0.0
    %4845 = vmatprep.subr.mxu0 0.0
    %4846 = vmatpush2.msra.mxu0 0.0
    %4847 = vmatprep.subr.mxu0 0.0
    %4848 = vmatpush2.msra.mxu0 0.0
    %4849 = vmatprep.subr.mxu0 0.0
    %4850 = vmatpush2.msra.mxu0 0.0
    %4851 = vmatprep.subr.mxu0 0.0
    %4852 = vmatpush2.msra.mxu0 0.0
    %4853 = vmatprep.subr.mxu0 0.0
    %4854 = vmatpush2.msra.mxu0 0.0
    %4855 = vmatprep.subr.mxu0 0.0
    %4856 = vmatpush2.msra.mxu0 0.0
    %4857 = vmatprep.subr.mxu0 0.0
    %4858 = vmatpush2.msra.mxu0 0.0
    %4859 = vmatprep.subr.mxu0 0.0
    %4860 = vmatpush2.msra.mxu0 0.0
    %4861 = vmatprep.subr.mxu0 0.0
    %4862 = vmatpush2.msra.mxu0 0.0
    %4863 = vmatprep.subr.mxu0 0.0
    %4864 = vmatpush2.msra.mxu0 0.0
    %4865 = vmatprep.subr.mxu0 0.0
    %4866 = vmatpush2.msra.mxu0 0.0
    %4867 = vmatprep.subr.mxu0 0.0
    %4868 = vmatpush2.msra.mxu0 0.0
    %4869 = vmatprep.mubr.f32.mxu0 0.0
    %4870 = vmatmul.mubr.f32.gmra.mxu0 %v4803
    %v4871 = vpop.f32.mrf.mxu0
    %v4872 = vadd.f32 %v4009, %v4871
    %v4873 = vpop.f32.mrf.mxu0
    %v4874 = vadd.f32 %v4013, %v4873
    %4875 = vdwg.mxu0
    %4877 = vrot.lane.b32.xlu0 %v4872, 32
    %v4878 = vpop.permute.xlu0 %4877
    %v4880 = vadd.f32 %v4872, %v4878
    %v4881 = vsub.f32 0.0, %v4880
    %v4882 = vmul.f32 %v4881, 1.442695
    %v4883 = vpow.pop %v4882
    %v4884 = vadd.f32 %v4883, 1.0
    %v4885 = vrcp.pop %v4884
    %4887 = vrot.lane.b32.xlu0 %v4874, 32
    %v4888 = vpop.permute.xlu0 %4887
    %v4890 = vadd.f32 %v4872, %v4888
    %v4891 = vsub.f32 0.0, %v4890
    %v4892 = vmul.f32 %v4891, 1.442695
    %v4893 = vpow.pop %v4892
    %v4894 = vadd.f32 %v4893, 1.0
    %v4895 = vrcp.pop %v4894
    %4896 = vrot.lane.b32.xlu0 %v4874, 96
    %v4897 = vpop.permute.xlu0 %4896
    %v4899 = vmul.f32 %v4885, %v4897
    %4901 = vrot.lane.b32.xlu0 %v4899, 64
    %v4902 = vpop.permute.xlu0 %4901
    %v4904 = vadd.f32 %v4872, %v4902
    %v4905 = vtanh.pop %v4904
    %v4906 = vsub.f32 1.0, %v4895
    %4908 = vrot.lane.b32.xlu0 %v4905, 96
    %v4909 = vpop.permute.xlu0 %4908
    %v4911 = vmul.f32 %v4906, %v4909
    %v4912 = vmul.f32 %v4895, %v4756
    %v4913 = vadd.f32 %v4911, %v4912
    %v4916 = vunpack.c.l.s4 1966171168
    %v4917 = vunpack.c.0.s8 %v4916
    %v4918 = vlaneseq
    %v4919 = vshrl.u32 %v4918, 7
    %v4920 = vsub.s32 %v4917, %v4919
    %v4921 = vrot.slane %v4913, %v4920
    %v4922 = vcombine.high %v4921, %v4921
    %v4924 = vunpack.c.l.s4 1966171168
    %v4925 = vunpack.c.0.s8 %v4924
    %v4926 = vlaneseq
    %v4927 = vshrl.u32 %v4926, 7
    %v4928 = vsub.s32 %v4925, %v4927
    %v4929 = vrot.slane %v4921, %v4928
    %v4931 = vunpack.c.l.s4 1966171168
    %v4932 = vunpack.c.0.s8 %v4931
    %v4933 = vlaneseq
    %v4934 = vshrl.u32 %v4933, 7
    %v4935 = vsub.s32 %v4932, %v4934
    %v4936 = vrot.slane %v4922, %v4935
    %v4937 = vlaneseq
    %v4938 = vshrl.u32 %v4937, 7
    %v4939 = vsub.s32 0, %v4938
    %v4940 = vrot.slane %v4929, %v4939
    %v4941 = vlaneseq
    %v4942 = vshrl.u32 %v4941, 7
    %v4943 = vsub.s32 0, %v4942
    %v4944 = vrot.slane %v4936, %v4943
    %4945 = vrot.lane.b32.xlu0 %v4940, 96
    %v4946 = vpop.permute.xlu0 %4945
    %4947 = vrot.lane.b32.xlu0 %v4944, 96
    %v4948 = vpop.permute.xlu0 %4947
    %4951 = vst.msk [vmem:[#allocation17 + $0x5] sm:$0x1] %vm4165, %v4946
    %4952 = vst.msk [vmem:[#allocation17 + $0xd] sm:$0x1] %vm4165, %v4948
    %4954 = vrot.lane.b32.xlu0 %v4913, 32
    %v4955 = vpop.permute.xlu0 %4954
    %v4957 = vsel %vm186, %v3334, %v3977
    %v4958 = vsel %vm575, %v4957, %v4955
    %v4960 = vsel %vm588, %v4958, 0
    %4962 = vmatprep.subr.mxu0 0.0
    %4963 = vmatpush1.msra.mxu0 0.0
    %4964 = vmatprep.subr.mxu0 0.0
    %4965 = vmatpush1.msra.mxu0 0.0
    %4966 = vmatprep.subr.mxu0 0.0
    %4967 = vmatpush1.msra.mxu0 0.0
    %4968 = vmatprep.subr.mxu0 0.0
    %4969 = vmatpush1.msra.mxu0 0.0
    %4970 = vmatprep.subr.mxu0 %v4001
    %4971 = vmatpush1.msra.mxu0 %v4000
    %4972 = vmatprep.subr.mxu0 %v3999
    %4973 = vmatpush1.msra.mxu0 %v3998
    %4974 = vmatprep.subr.mxu0 %v3997
    %4975 = vmatpush1.msra.mxu0 %v3996
    %4976 = vmatprep.subr.mxu0 %v3995
    %4977 = vmatpush1.msra.mxu0 %v3994
    %4978 = vmatprep.subr.mxu0 %v3993
    %4979 = vmatpush1.msra.mxu0 %v3992
    %4980 = vmatprep.subr.mxu0 %v3991
    %4981 = vmatpush1.msra.mxu0 %v3990
    %4982 = vmatprep.subr.mxu0 %v3989
    %4983 = vmatpush1.msra.mxu0 %v3988
    %4984 = vmatprep.subr.mxu0 %v3987
    %4985 = vmatpush1.msra.mxu0 %v3986
    %4986 = vmatprep.subr.mxu0 %v3985
    %4987 = vmatpush1.msra.mxu0 %v3984
    %4988 = vmatprep.subr.mxu0 %v3983
    %4989 = vmatpush1.msra.mxu0 %v3982
    %4990 = vmatprep.subr.mxu0 %v3981
    %4991 = vmatpush1.msra.mxu0 %v3980
    %4992 = vmatprep.subr.mxu0 %v3979
    %4993 = vmatpush1.msra.mxu0 %v3978
    %4994 = vmatprep.subr.mxu0 0.0
    %4995 = vmatpush2.msra.mxu0 0.0
    %4996 = vmatprep.subr.mxu0 0.0
    %4997 = vmatpush2.msra.mxu0 0.0
    %4998 = vmatprep.subr.mxu0 0.0
    %4999 = vmatpush2.msra.mxu0 0.0
    %5000 = vmatprep.subr.mxu0 0.0
    %5001 = vmatpush2.msra.mxu0 0.0
    %5002 = vmatprep.subr.mxu0 0.0
    %5003 = vmatpush2.msra.mxu0 0.0
    %5004 = vmatprep.subr.mxu0 0.0
    %5005 = vmatpush2.msra.mxu0 0.0
    %5006 = vmatprep.subr.mxu0 0.0
    %5007 = vmatpush2.msra.mxu0 0.0
    %5008 = vmatprep.subr.mxu0 0.0
    %5009 = vmatpush2.msra.mxu0 0.0
    %5010 = vmatprep.subr.mxu0 0.0
    %5011 = vmatpush2.msra.mxu0 0.0
    %5012 = vmatprep.subr.mxu0 0.0
    %5013 = vmatpush2.msra.mxu0 0.0
    %5014 = vmatprep.subr.mxu0 0.0
    %5015 = vmatpush2.msra.mxu0 0.0
    %5016 = vmatprep.subr.mxu0 0.0
    %5017 = vmatpush2.msra.mxu0 0.0
    %5018 = vmatprep.subr.mxu0 0.0
    %5019 = vmatpush2.msra.mxu0 0.0
    %5020 = vmatprep.subr.mxu0 0.0
    %5021 = vmatpush2.msra.mxu0 0.0
    %5022 = vmatprep.subr.mxu0 0.0
    %5023 = vmatpush2.msra.mxu0 0.0
    %5024 = vmatprep.subr.mxu0 0.0
    %5025 = vmatpush2.msra.mxu0 0.0
    %5026 = vmatprep.mubr.f32.mxu0 0.0
    %5027 = vmatmul.mubr.f32.gmra.mxu0 %v4960
    %v5028 = vpop.f32.mrf.mxu0
    %v5029 = vadd.f32 %v4009, %v5028
    %v5030 = vpop.f32.mrf.mxu0
    %v5031 = vadd.f32 %v4013, %v5030
    %5032 = vdwg.mxu0
    %5034 = vrot.lane.b32.xlu0 %v5029, 32
    %v5035 = vpop.permute.xlu0 %5034
    %v5037 = vadd.f32 %v5029, %v5035
    %v5038 = vsub.f32 0.0, %v5037
    %v5039 = vmul.f32 %v5038, 1.442695
    %v5040 = vpow.pop %v5039
    %v5041 = vadd.f32 %v5040, 1.0
    %v5042 = vrcp.pop %v5041
    %5044 = vrot.lane.b32.xlu0 %v5031, 32
    %v5045 = vpop.permute.xlu0 %5044
    %v5047 = vadd.f32 %v5029, %v5045
    %v5048 = vsub.f32 0.0, %v5047
    %v5049 = vmul.f32 %v5048, 1.442695
    %v5050 = vpow.pop %v5049
    %v5051 = vadd.f32 %v5050, 1.0
    %v5052 = vrcp.pop %v5051
    %5053 = vrot.lane.b32.xlu0 %v5031, 96
    %v5054 = vpop.permute.xlu0 %5053
    %v5056 = vmul.f32 %v5042, %v5054
    %5058 = vrot.lane.b32.xlu0 %v5056, 64
    %v5059 = vpop.permute.xlu0 %5058
    %v5061 = vadd.f32 %v5029, %v5059
    %v5062 = vtanh.pop %v5061
    %v5063 = vsub.f32 1.0, %v5052
    %5065 = vrot.lane.b32.xlu0 %v5062, 96
    %v5066 = vpop.permute.xlu0 %5065
    %v5068 = vmul.f32 %v5063, %v5066
    %v5069 = vmul.f32 %v5052, %v4913
    %v5070 = vadd.f32 %v5068, %v5069
    %v5073 = vunpack.c.l.s4 1966171168
    %v5074 = vunpack.c.0.s8 %v5073
    %v5075 = vlaneseq
    %v5076 = vshrl.u32 %v5075, 7
    %v5077 = vsub.s32 %v5074, %v5076
    %v5078 = vrot.slane %v5070, %v5077
    %v5079 = vcombine.high %v5078, %v5078
    %v5081 = vunpack.c.l.s4 1966171168
    %v5082 = vunpack.c.0.s8 %v5081
    %v5083 = vlaneseq
    %v5084 = vshrl.u32 %v5083, 7
    %v5085 = vsub.s32 %v5082, %v5084
    %v5086 = vrot.slane %v5078, %v5085
    %v5088 = vunpack.c.l.s4 1966171168
    %v5089 = vunpack.c.0.s8 %v5088
    %v5090 = vlaneseq
    %v5091 = vshrl.u32 %v5090, 7
    %v5092 = vsub.s32 %v5089, %v5091
    %v5093 = vrot.slane %v5079, %v5092
    %v5094 = vlaneseq
    %v5095 = vshrl.u32 %v5094, 7
    %v5096 = vsub.s32 0, %v5095
    %v5097 = vrot.slane %v5086, %v5096
    %v5098 = vlaneseq
    %v5099 = vshrl.u32 %v5098, 7
    %v5100 = vsub.s32 0, %v5099
    %v5101 = vrot.slane %v5093, %v5100
    %5102 = vrot.lane.b32.xlu0 %v5097, 96
    %v5103 = vpop.permute.xlu0 %5102
    %5104 = vrot.lane.b32.xlu0 %v5101, 96
    %v5105 = vpop.permute.xlu0 %5104
    %5108 = vst.msk [vmem:[#allocation17 + $0x6] sm:$0x1] %vm4165, %v5103
    %5109 = vst.msk [vmem:[#allocation17 + $0xe] sm:$0x1] %vm4165, %v5105
    %5111 = vrot.lane.b32.xlu0 %v5070, 32
    %v5112 = vpop.permute.xlu0 %5111
    %v5114 = vsel %vm186, %v3859, %v3977
    %v5115 = vsel %vm575, %v5114, %v5112
    %v5117 = vsel %vm588, %v5115, 0
    %5119 = vmatprep.subr.mxu0 0.0
    %5120 = vmatpush1.msra.mxu0 0.0
    %5121 = vmatprep.subr.mxu0 0.0
    %5122 = vmatpush1.msra.mxu0 0.0
    %5123 = vmatprep.subr.mxu0 0.0
    %5124 = vmatpush1.msra.mxu0 0.0
    %5125 = vmatprep.subr.mxu0 0.0
    %5126 = vmatpush1.msra.mxu0 0.0
    %5127 = vmatprep.subr.mxu0 %v4001
    %5128 = vmatpush1.msra.mxu0 %v4000
    %5129 = vmatprep.subr.mxu0 %v3999
    %5130 = vmatpush1.msra.mxu0 %v3998
    %5131 = vmatprep.subr.mxu0 %v3997
    %5132 = vmatpush1.msra.mxu0 %v3996
    %5133 = vmatprep.subr.mxu0 %v3995
    %5134 = vmatpush1.msra.mxu0 %v3994
    %5135 = vmatprep.subr.mxu0 %v3993
    %5136 = vmatpush1.msra.mxu0 %v3992
    %5137 = vmatprep.subr.mxu0 %v3991
    %5138 = vmatpush1.msra.mxu0 %v3990
    %5139 = vmatprep.subr.mxu0 %v3989
    %5140 = vmatpush1.msra.mxu0 %v3988
    %5141 = vmatprep.subr.mxu0 %v3987
    %5142 = vmatpush1.msra.mxu0 %v3986
    %5143 = vmatprep.subr.mxu0 %v3985
    %5144 = vmatpush1.msra.mxu0 %v3984
    %5145 = vmatprep.subr.mxu0 %v3983
    %5146 = vmatpush1.msra.mxu0 %v3982
    %5147 = vmatprep.subr.mxu0 %v3981
    %5148 = vmatpush1.msra.mxu0 %v3980
    %5149 = vmatprep.subr.mxu0 %v3979
    %5150 = vmatpush1.msra.mxu0 %v3978
    %5151 = vmatprep.subr.mxu0 0.0
    %5152 = vmatpush2.msra.mxu0 0.0
    %5153 = vmatprep.subr.mxu0 0.0
    %5154 = vmatpush2.msra.mxu0 0.0
    %5155 = vmatprep.subr.mxu0 0.0
    %5156 = vmatpush2.msra.mxu0 0.0
    %5157 = vmatprep.subr.mxu0 0.0
    %5158 = vmatpush2.msra.mxu0 0.0
    %5159 = vmatprep.subr.mxu0 0.0
    %5160 = vmatpush2.msra.mxu0 0.0
    %5161 = vmatprep.subr.mxu0 0.0
    %5162 = vmatpush2.msra.mxu0 0.0
    %5163 = vmatprep.subr.mxu0 0.0
    %5164 = vmatpush2.msra.mxu0 0.0
    %5165 = vmatprep.subr.mxu0 0.0
    %5166 = vmatpush2.msra.mxu0 0.0
    %5167 = vmatprep.subr.mxu0 0.0
    %5168 = vmatpush2.msra.mxu0 0.0
    %5169 = vmatprep.subr.mxu0 0.0
    %5170 = vmatpush2.msra.mxu0 0.0
    %5171 = vmatprep.subr.mxu0 0.0
    %5172 = vmatpush2.msra.mxu0 0.0
    %5173 = vmatprep.subr.mxu0 0.0
    %5174 = vmatpush2.msra.mxu0 0.0
    %5175 = vmatprep.subr.mxu0 0.0
    %5176 = vmatpush2.msra.mxu0 0.0
    %5177 = vmatprep.subr.mxu0 0.0
    %5178 = vmatpush2.msra.mxu0 0.0
    %5179 = vmatprep.subr.mxu0 0.0
    %5180 = vmatpush2.msra.mxu0 0.0
    %5181 = vmatprep.subr.mxu0 0.0
    %5182 = vmatpush2.msra.mxu0 0.0
    %5183 = vmatprep.mubr.f32.mxu0 0.0
    %5184 = vmatmul.mubr.f32.gmra.mxu0 %v5117
    %v5185 = vpop.f32.mrf.mxu0
    %v5186 = vadd.f32 %v4009, %v5185
    %v5187 = vpop.f32.mrf.mxu0
    %v5188 = vadd.f32 %v4013, %v5187
    %5189 = vdwg.mxu0
    %5191 = vrot.lane.b32.xlu0 %v5186, 32
    %v5192 = vpop.permute.xlu0 %5191
    %v5194 = vadd.f32 %v5186, %v5192
    %v5195 = vsub.f32 0.0, %v5194
    %v5196 = vmul.f32 %v5195, 1.442695
    %v5197 = vpow.pop %v5196
    %v5198 = vadd.f32 %v5197, 1.0
    %v5199 = vrcp.pop %v5198
    %5201 = vrot.lane.b32.xlu0 %v5188, 32
    %v5202 = vpop.permute.xlu0 %5201
    %v5204 = vadd.f32 %v5186, %v5202
    %v5205 = vsub.f32 0.0, %v5204
    %v5206 = vmul.f32 %v5205, 1.442695
    %v5207 = vpow.pop %v5206
    %v5208 = vadd.f32 %v5207, 1.0
    %v5209 = vrcp.pop %v5208
    %5210 = vrot.lane.b32.xlu0 %v5188, 96
    %v5211 = vpop.permute.xlu0 %5210
    %v5213 = vmul.f32 %v5199, %v5211
    %5215 = vrot.lane.b32.xlu0 %v5213, 64
    %v5216 = vpop.permute.xlu0 %5215
    %v5218 = vadd.f32 %v5186, %v5216
    %v5219 = vtanh.pop %v5218
    %v5220 = vsub.f32 1.0, %v5209
    %5222 = vrot.lane.b32.xlu0 %v5219, 96
    %v5223 = vpop.permute.xlu0 %5222
    %v5225 = vmul.f32 %v5220, %v5223
    %v5226 = vmul.f32 %v5209, %v5070
    %v5227 = vadd.f32 %v5225, %v5226
    %v5230 = vunpack.c.l.s4 1966171168
    %v5231 = vunpack.c.0.s8 %v5230
    %v5232 = vlaneseq
    %v5233 = vshrl.u32 %v5232, 7
    %v5234 = vsub.s32 %v5231, %v5233
    %v5235 = vrot.slane %v5227, %v5234
    %v5236 = vcombine.high %v5235, %v5235
    %v5238 = vunpack.c.l.s4 1966171168
    %v5239 = vunpack.c.0.s8 %v5238
    %v5240 = vlaneseq
    %v5241 = vshrl.u32 %v5240, 7
    %v5242 = vsub.s32 %v5239, %v5241
    %v5243 = vrot.slane %v5235, %v5242
    %v5245 = vunpack.c.l.s4 1966171168
    %v5246 = vunpack.c.0.s8 %v5245
    %v5247 = vlaneseq
    %v5248 = vshrl.u32 %v5247, 7
    %v5249 = vsub.s32 %v5246, %v5248
    %v5250 = vrot.slane %v5236, %v5249
    %v5251 = vlaneseq
    %v5252 = vshrl.u32 %v5251, 7
    %v5253 = vsub.s32 0, %v5252
    %v5254 = vrot.slane %v5243, %v5253
    %v5255 = vlaneseq
    %v5256 = vshrl.u32 %v5255, 7
    %v5257 = vsub.s32 0, %v5256
    %v5258 = vrot.slane %v5250, %v5257
    %5259 = vrot.lane.b32.xlu0 %v5254, 96
    %v5260 = vpop.permute.xlu0 %5259
    %5261 = vrot.lane.b32.xlu0 %v5258, 96
    %v5262 = vpop.permute.xlu0 %5261
    %5265 = vst.msk [vmem:[#allocation17 + $0x7] sm:$0x1] %vm4165, %v5260
    %5266 = vst.msk [vmem:[#allocation17 + $0xf] sm:$0x1] %vm4165, %v5262
    // Predicated region
    $region78: #{caption_generator_forward.1} parent=1 // pred_check
      _
    $region79: #{caption_generator_forward.1} parent=1 // pred_check_branch
      %5268 = sbr.rel (0) target = $region81
    $region80: #{caption_generator_forward.1} parent=1 // pred_region
      %s5270 = ssub.s32 256, 256
      %5271 = vsyncadd [#allocation4], %s5270
      %s5272 = sshll.u32 [#allocation16], 4
      %s5273 = int_to_ptr.vmem [resolvable:$true] %s5272
      %5278 = dma.vmem_to_hbm [thread:$0]  %s5273, 256, %s11, [#allocation4], 32, 32, 2
    $region81: #{caption_generator_forward.1} parent=1 // pred_fallthru
      _
    // Predicated region
    $region82: #{caption_generator_forward.1} parent=1 // pred_check
      _
    $region83: #{caption_generator_forward.1} parent=1 // pred_check_branch
      %5280 = sbr.rel (0) target = $region85
    $region84: #{caption_generator_forward.1} parent=1 // pred_region
      %s5282 = ssub.s32 256, 256
      %5283 = vsyncadd [#allocation18], %s5282
      %s5284 = sshll.u32 [#allocation17], 4
      %s5285 = int_to_ptr.vmem [resolvable:$true] %s5284
      %5290 = dma.vmem_to_hbm [thread:$0]  %s5285, 256, %s12, [#allocation18], 128, 128, 8
    $region85: #{caption_generator_forward.1} parent=1 // pred_fallthru
      _
    // Predicated region
    $region86: #{caption_generator_forward.1} parent=1 // pred_check
      _
    $region87: #{caption_generator_forward.1} parent=1 // pred_check_branch
      %5292 = sbr.rel (0) target = $region89
    $region88: #{caption_generator_forward.1} parent=1 // pred_region
      %5293 = dma.done [#allocation4], 256
    $region89: #{caption_generator_forward.1} parent=1 // pred_fallthru
      _
    // Predicated region
    $region90: #{caption_generator_forward.1} parent=1 // pred_check
      _
    $region91: #{caption_generator_forward.1} parent=1 // pred_check_branch
      %5295 = sbr.rel (0) target = $region93
    $region92: #{caption_generator_forward.1} parent=1 // pred_region
      %5296 = dma.done [#allocation18], 256
    $region93: #{caption_generator_forward.1} parent=1 // pred_fallthru
      _
    %5297 = vsyncpa [#allocation3], 1
    %5298 = vsyncpa [#allocation6], 1
    %5299 = vsyncpa [#allocation9], 1
    %5300 = vsyncpa [#allocation12], 1
    %5301 = vsyncpa [#allocation15], 1
    %5302 = vsyncpa [#allocation4], 1
    %5303 = vsyncpa [#allocation18], 1

</llo_original>
